<compile_context>
chip_gen: v7x
topology: tpu7x:2x2x1
jax: 0.10.0
libtpu: 0.0.40
codegen_flags: <defaults>
</compile_context>

<pallas_src>
import jax
import jax.numpy as jnp
from jax import lax
from jax.experimental import pallas as pl
from jax.experimental.pallas import tpu as pltpu

GROUPS = 8
EPS = 1e-5
LANE = 128
MATMUL_DTYPE = jnp.float32  # see TODO above


def _round_up(a, b):
    return (a + b - 1) // b * b


def _vmem_limit_bytes():
    # Generation-aware scoped-VMEM limit: ~96 MiB on 128 MiB parts (v5e/v6e),
    # ~48 MiB on 64 MiB parts (v7x).  Conservative fallback if the query fails.
    try:
        phys = pltpu.get_tpu_info().vmem_capacity_bytes
    except Exception:
        phys = 128 * 1024 * 1024
    return int(min(96 * 1024 * 1024, phys * 3 // 4))


VMEM_LIMIT = _vmem_limit_bytes()


# ---------------------------------------------------------------------------
# Kernel 1: tiled (M, K) x (K, Np) matmul + bias.  Weight / bias VMEM-resident.
# Used only for the (tiny) time/cond embedding projection and the 1x1 shortcut.
# ---------------------------------------------------------------------------
def _matmul_bias_kernel(x_ref, w_ref, b_ref, o_ref):
    acc = jnp.dot(x_ref[...], w_ref[...], preferred_element_type=jnp.float32)
    o_ref[...] = (acc + b_ref[...]).astype(o_ref.dtype)


def matmul_bias(x, w, b, *, tm=512):
    """x: (M, K), w: (K, Np), b: (1, Np), Np % 128 == 0  ->  (M, Np) f32."""
    M, K = x.shape
    Kw, Np = w.shape
    assert K == Kw and Np % LANE == 0 and b.shape == (1, Np)

    x = x.astype(MATMUL_DTYPE)
    w = w.astype(MATMUL_DTYPE)

    tm = min(tm, _round_up(M, 8))
    Mp = _round_up(M, tm)
    if Mp != M:
        x = jnp.pad(x, ((0, Mp - M), (0, 0)))

    out = pl.pallas_call(
        _matmul_bias_kernel,
        out_shape=jax.ShapeDtypeStruct((Mp, Np), jnp.float32),
        grid_spec=pltpu.PrefetchScalarGridSpec(
            num_scalar_prefetch=0,
            grid=(Mp // tm,),
            in_specs=[
                pl.BlockSpec((tm, K), lambda i: (i, 0)),   # streamed over M
                pl.BlockSpec((K, Np), lambda i: (0, 0)),   # resident weight
                pl.BlockSpec((1, Np), lambda i: (0, 0)),   # resident bias
            ],
            out_specs=pl.BlockSpec((tm, Np), lambda i: (i, 0)),
        ),
        compiler_params=pltpu.CompilerParams(
            dimension_semantics=("parallel",),
            vmem_limit_bytes=VMEM_LIMIT,
        ),
        cost_estimate=pl.CostEstimate(
            flops=2 * Mp * K * Np,
            transcendentals=0,
            bytes_accessed=4 * (Mp * K + K * Np + Np + Mp * Np),
        ),
    )(x, w, b)
    return out[:M] if Mp != M else out


# ---------------------------------------------------------------------------
# Kernel 2: fused Conv3x3 (+bias) + GroupNorm + SiLU + add, one sample / step.
#   * conv: 9 tap-matmuls on windowed loads of the spatially padded sample
#     (no im2col in HBM, conv output never leaves VMEM)
#   * GN stats: single (2, Cp) x (Cp, Cp) group-reduce matmul; the one-hot
#     "same group" matrix is built in-kernel from tiny group-id vectors.
#   * `add` is either a (1, Cp) per-sample row (time/cond embedding, broadcast
#     over HW) or a full (HW, Cp) residual block.
# ---------------------------------------------------------------------------
def _make_conv_gn_silu_add_kernel(H, W, Ck, Cp, Cout, eps):
    HW = H * W
    gsize = Cout // GROUPS
    inv_count = 1.0 / float(HW * gsize)

    def kernel(xp_ref, w_ref, b_ref, add_ref, gamma_ref, beta_ref,
               gid_r_ref, gid_c_ref, o_ref):
        # ---- 3x3 conv as 9 tap matmuls (f32 MXU accumulation) ----
        acc = jnp.zeros((HW, Cp), jnp.float32)
        for kh in range(3):
            for kw in range(3):
                patch = xp_ref[0, kh:kh + H, kw:kw + W, :].reshape(HW, Ck)
                acc = acc + jnp.dot(patch.astype(MATMUL_DTYPE),
                                    w_ref[kh * 3 + kw],
                                    preferred_element_type=jnp.float32)
        acc = acc + b_ref[...]

        # ---- GroupNorm statistics: one stacked (2, Cp) group-reduce matmul ----
        s = jnp.concatenate(
            [jnp.sum(acc, axis=0, keepdims=True),
             jnp.sum(acc * acc, axis=0, keepdims=True)], axis=0)      # (2, Cp)
        gid_r = gid_r_ref[...]                                        # (Cp, 1)
        gid_c = gid_c_ref[...]                                        # (1, Cp)
        valid_c = gid_c < GROUPS                                      # (1, Cp)
        gmat = ((gid_r == gid_c) & valid_c & (gid_r < GROUPS)).astype(jnp.float32)
        red = jnp.dot(s, gmat, preferred_element_type=jnp.float32) * inv_count
        mean = red[0:1, :]
        var = red[1:2, :] - mean * mean
        inv_std = lax.rsqrt(var + eps)

        # ---- normalize + affine + SiLU + add ----
        y = (acc - mean) * inv_std * gamma_ref[...] + beta_ref[...]
        y = y * jax.nn.sigmoid(y)                                     # SiLU
        y = y + add_ref[0]                                            # (1,Cp) or (HW,Cp)
        y = jnp.where(valid_c, y, 0.0)        # keep lane-padded channels exactly 0
        o_ref[0] = y.astype(o_ref.dtype)

    return kernel


def conv3x3_gn_silu_add(xp, w9, b, add, gamma, beta, gid_r, gid_c, *, cout):
    """xp: (N, H+2, W+2, Ck) spatially padded NHWC input.
       w9: (9, Ck, Cp); b/gamma/beta: (1, Cp); add: (N, A, Cp), A in {1, H*W}.
       Returns (N, H*W, Cp) f32 (lane-padded channels are exactly zero)."""
    N, Hp2, Wp2, Ck = xp.shape
    H, W = Hp2 - 2, Wp2 - 2
    HW = H * W
    Cp = w9.shape[-1]
    A = add.shape[1]
    assert Cp % LANE == 0 and cout % GROUPS == 0

    kernel = _make_conv_gn_silu_add_kernel(H, W, Ck, Cp, cout, EPS)
    return pl.pallas_call(
        kernel,
        out_shape=jax.ShapeDtypeStruct((N, HW, Cp), jnp.float32),
        grid_spec=pltpu.PrefetchScalarGridSpec(
            num_scalar_prefetch=0,
            grid=(N,),
            in_specs=[
                pl.BlockSpec((1, Hp2, Wp2, Ck), lambda n: (n, 0, 0, 0)),
                pl.BlockSpec((9, Ck, Cp), lambda n: (0, 0, 0)),   # resident weight
                pl.BlockSpec((1, Cp), lambda n: (0, 0)),          # resident bias
                pl.BlockSpec((1, A, Cp), lambda n: (n, 0, 0)),    # add (emb / residual)
                pl.BlockSpec((1, Cp), lambda n: (0, 0)),          # resident gamma
                pl.BlockSpec((1, Cp), lambda n: (0, 0)),          # resident beta
                pl.BlockSpec((Cp, 1), lambda n: (0, 0)),          # group ids (rows)
                pl.BlockSpec((1, Cp), lambda n: (0, 0)),          # group ids (cols)
            ],
            out_specs=pl.BlockSpec((1, HW, Cp), lambda n: (n, 0, 0)),
        ),
        compiler_params=pltpu.CompilerParams(
            dimension_semantics=("parallel",),
            vmem_limit_bytes=VMEM_LIMIT,
        ),
        cost_estimate=pl.CostEstimate(
            flops=2 * N * HW * 9 * Ck * Cp + 2 * N * 2 * Cp * Cp,
            transcendentals=N * HW * Cp,
            bytes_accessed=4 * (N * Hp2 * Wp2 * Ck + 9 * Ck * Cp
                                + N * A * Cp + N * HW * Cp),
        ),
    )(xp, w9, b, add, gamma, beta, gid_r, gid_c)


# ---------------------------------------------------------------------------
# Glue (plain JAX): layout + padding only (no im2col, no patch tensors).
# ---------------------------------------------------------------------------
def _pad_lanes(a, cp):
    return jnp.pad(a, [(0, 0)] * (a.ndim - 1) + [(0, cp - a.shape[-1])])


def residual_block_forward(x_nchw, t, z, p):
    """ResidualBlock forward (NCHW in / NCHW out), f32."""
    N, Cin, H, W = x_nchw.shape
    Cout = p["conv1_w"].shape[0]
    assert Cout % GROUPS == 0
    Cp = _round_up(Cout, LANE)
    HW = H * W
    gsize = Cout // GROUPS

    x_nhwc = jnp.transpose(x_nchw, (0, 2, 3, 1))                    # (N, H, W, Cin)

    # per-channel group ids; lane-padded channels get the dummy group GROUPS
    ch = jnp.arange(Cp, dtype=jnp.int32)
    gid = jnp.where(ch < Cout, ch // gsize, GROUPS).astype(jnp.int32)
    gid_r = gid.reshape(Cp, 1)
    gid_c = gid.reshape(1, Cp)

    g1 = _pad_lanes(p["gn1_g"].reshape(1, -1), Cp)
    b1 = _pad_lanes(p["gn1_b"].reshape(1, -1), Cp)
    g2 = _pad_lanes(p["gn2_g"].reshape(1, -1), Cp)
    b2 = _pad_lanes(p["gn2_b"].reshape(1, -1), Cp)

    # ---- time (+ cond) embedding: ONE fused small matmul+bias ----
    if z is not None:
        emb_in = jnp.concatenate([t, z], axis=1)
        emb_w = jnp.concatenate([p["time_w"].T, p["cond_w"].T], axis=0)
        emb_b = (p["time_b"] + p["cond_b"]).reshape(1, -1)
    else:
        emb_in, emb_w, emb_b = t, p["time_w"].T, p["time_b"].reshape(1, -1)
    add_row = matmul_bias(emb_in, _pad_lanes(emb_w, Cp), _pad_lanes(emb_b, Cp))
    add_row = add_row.reshape(N, 1, Cp)

    # ---- block1: fused Conv3x3 + GN + SiLU + time/cond-emb add ----
    w1 = jnp.transpose(p["conv1_w"], (2, 3, 1, 0))                  # (3,3,Cin,Cout)
    w1 = _pad_lanes(w1, Cp).reshape(9, Cin, Cp).astype(MATMUL_DTYPE)
    cb1 = _pad_lanes(p["conv1_b"].reshape(1, -1), Cp)
    xp1 = jnp.pad(x_nhwc, ((0, 0), (1, 1), (1, 1), (0, 0)))
    h1 = conv3x3_gn_silu_add(xp1, w1, cb1, add_row, g1, b1, gid_r, gid_c,
                             cout=Cout)                             # (N, HW, Cp)

    # ---- shortcut: 1x1 conv if channel counts differ, identity otherwise ----
    if Cin != Cout:
        ws = p["short_w"].reshape(Cout, Cin).T                      # (Cin, Cout)
        sc = matmul_bias(x_nhwc.reshape(N * HW, Cin),
                         _pad_lanes(ws, Cp),
                         _pad_lanes(p["short_b"].reshape(1, -1), Cp))
    else:
        sc = _pad_lanes(x_nhwc.reshape(N * HW, Cin), Cp)
    sc = sc.reshape(N, HW, Cp)

    # ---- block2: fused Conv3x3 + GN + SiLU + residual add ----
    # h1 keeps its (zero) lane-padded channels; conv2's K rows for those
    # channels are zero, so there is no slice + re-pad HBM roundtrip here.
    w2 = jnp.transpose(p["conv2_w"], (2, 3, 1, 0))                  # (3,3,Cout,Cout)
    w2 = jnp.pad(w2, ((0, 0), (0, 0), (0, Cp - Cout), (0, Cp - Cout)))
    w2 = w2.reshape(9, Cp, Cp).astype(MATMUL_DTYPE)
    cb2 = _pad_lanes(p["conv2_b"].reshape(1, -1), Cp)
    xp2 = jnp.pad(h1.reshape(N, H, W, Cp), ((0, 0), (1, 1), (1, 1), (0, 0)))
    out = conv3x3_gn_silu_add(xp2, w2, cb2, sc, g2, b2, gid_r, gid_c,
                              cout=Cout)                            # (N, HW, Cp)

    out = out[..., :Cout].reshape(N, H, W, Cout)
    return jnp.transpose(out, (0, 3, 1, 2))                         # NCHW


# ---------------------------------------------------------------------------
# Pure-JAX reference (mirrors the PyTorch module exactly).
# ---------------------------------------------------------------------------
def _reference_forward(x, t, z, p):
    hp = jax.lax.Precision.HIGHEST

    def conv(v, w, b, pad):
        o = jax.lax.conv_general_dilated(
            v, w, (1, 1), ((pad, pad), (pad, pad)),
            dimension_numbers=("NCHW", "OIHW", "NCHW"), precision=hp)
        return o + b.reshape(1, -1, 1, 1)

    def gn(v, g, b):
        n, c, h, w = v.shape
        vg = v.reshape(n, GROUPS, c // GROUPS, h, w)
        mean = jnp.mean(vg, axis=(2, 3, 4), keepdims=True)
        var = jnp.mean((vg - mean) ** 2, axis=(2, 3, 4), keepdims=True)
        vn = ((vg - mean) * jax.lax.rsqrt(var + EPS)).reshape(n, c, h, w)
        return vn * g.reshape(1, -1, 1, 1) + b.reshape(1, -1, 1, 1)

    def silu(v):
        return v * jax.nn.sigmoid(v)

    cin, cout = x.shape[1], p["conv1_w"].shape[0]
    h = silu(gn(conv(x, p["conv1_w"], p["conv1_b"], 1), p["gn1_g"], p["gn1_b"]))
    h = h + (jnp.dot(t, p["time_w"].T, precision=hp) + p["time_b"])[:, :, None, None]
    if z is not None:
        h = h + (jnp.dot(z, p["cond_w"].T, precision=hp) + p["cond_b"])[:, :, None, None]
    h = silu(gn(conv(h, p["conv2_w"], p["conv2_b"], 1), p["gn2_g"], p["gn2_b"]))
    sc = conv(x, p["short_w"], p["short_b"], 0) if cin != cout else x
    return h + sc


if __name__ == "__main__":
    key = jax.random.PRNGKey(0)
    ks = jax.random.split(key, 17)

    N, Cin, Cout, H, W = 2, 4, 8, 16, 16
    T_DIM, Z_DIM = 32, 16

    def uinit(k, shape, fan_in):
        bound = 1.0 / (fan_in ** 0.5)
        return jax.random.uniform(k, shape, jnp.float32, -bound, bound)

    x = jax.random.normal(ks[0], (N, Cin, H, W), jnp.float32)
    t = jax.random.normal(ks[1], (N, T_DIM), jnp.float32)
    z = jax.random.normal(ks[2], (N, Z_DIM), jnp.float32)

    params = {
        "conv1_w": uinit(ks[3], (Cout, Cin, 3, 3), Cin * 9),
        "conv1_b": uinit(ks[4], (Cout,), Cin * 9),
        "gn1_g": 1.0 + 0.1 * jax.random.normal(ks[5], (Cout,), jnp.float32),
        "gn1_b": 0.1 * jax.random.normal(ks[6], (Cout,), jnp.float32),
        "conv2_w": uinit(ks[7], (Cout, Cout, 3, 3), Cout * 9),
        "conv2_b": uinit(ks[8], (Cout,), Cout * 9),
        "gn2_g": 1.0 + 0.1 * jax.random.normal(ks[9], (Cout,), jnp.float32),
        "gn2_b": 0.1 * jax.random.normal(ks[10], (Cout,), jnp.float32),
        "time_w": uinit(ks[11], (Cout, T_DIM), T_DIM),
        "time_b": uinit(ks[12], (Cout,), T_DIM),
        "cond_w": uinit(ks[13], (Cout, Z_DIM), Z_DIM),
        "cond_b": uinit(ks[14], (Cout,), Z_DIM),
        "short_w": uinit(ks[15], (Cout, Cin, 1, 1), Cin),
        "short_b": uinit(ks[16], (Cout,), Cin),
    }

    fwd = jax.jit(residual_block_forward)
    y = fwd(x, t, z, params)
    jax.block_until_ready(y)

    y_ref = _reference_forward(x, t, z, params)
    assert y.shape == (N, Cout, H, W)
    assert bool(jnp.all(jnp.isfinite(y)))
    assert jnp.allclose(y, y_ref, atol=1e-3, rtol=1e-3), \
        float(jnp.max(jnp.abs(y - y_ref)))

    print("KERNEL_OK")
</pallas_src>

<mosaic_0001>
module attributes {stable_mosaic.version = 11 : i64} {
  func.func @_matmul_bias_kernel(%arg0: i32, %arg1: memref<8x48xf32, #tpu.memory_space<vmem>>, %arg2: memref<48x128xf32, #tpu.memory_space<vmem>>, %arg3: memref<1x128xf32, #tpu.memory_space<vmem>>, %arg4: memref<8x128xf32, #tpu.memory_space<vmem>>) attributes {dimension_semantics = [#tpu.dimension_semantics<parallel>], iteration_bounds = array<i64: 1>, scalar_prefetch = 0 : i64, scratch_operands = 0 : i64, tpu.core_type = #tpu.core_type<tc>, window_params = [{transform_indices = @transform_0, window_bounds = array<i64: 8, 48>}, {pipeline_mode = #tpu.pipeline_mode<synchronous>, transform_indices = @transform_1, window_bounds = array<i64: 48, 128>}, {pipeline_mode = #tpu.pipeline_mode<synchronous>, transform_indices = @transform_2, window_bounds = array<i64: 1, 128>}, {transform_indices = @transform_3, window_bounds = array<i64: 8, 128>}]} {
    %c0 = arith.constant 0 : index
    %c0_0 = arith.constant 0 : index
    %0 = vector.load %arg1[%c0, %c0_0] : memref<8x48xf32, #tpu.memory_space<vmem>>, vector<8x48xf32>
    %c0_1 = arith.constant 0 : index
    %c0_2 = arith.constant 0 : index
    %1 = vector.load %arg2[%c0_1, %c0_2] : memref<48x128xf32, #tpu.memory_space<vmem>>, vector<48x128xf32>
    %cst = arith.constant dense<0.000000e+00> : vector<8x128xf32>
    %2 = tpu.matmul %0, %1, %cst {dimension_numbers = #tpu.dot_dimension_numbers<[1], [0], [0], [1], [0, 0, 1, 1], [], []>} : vector<8x48xf32>, vector<48x128xf32>, vector<8x128xf32> -> vector<8x128xf32>
    %c0_3 = arith.constant 0 : index
    %c0_4 = arith.constant 0 : index
    %3 = vector.load %arg3[%c0_3, %c0_4] : memref<1x128xf32, #tpu.memory_space<vmem>>, vector<1x128xf32>
    %4 = vector.broadcast %3 : vector<1x128xf32> to vector<8x128xf32>
    %5 = arith.addf %2, %4 : vector<8x128xf32>
    %c0_5 = arith.constant 0 : index
    %c0_6 = arith.constant 0 : index
    %6 = vector.load %arg4[%c0_5, %c0_6] : memref<8x128xf32, #tpu.memory_space<vmem>>, vector<8x128xf32>
    tpu.vector_store %arg4[%c0_5, %c0_6], %5 {strides = array<i32>} : memref<8x128xf32, #tpu.memory_space<vmem>>, vector<8x128xf32>,
    return
  }
  func.func @transform_0(%arg0: i32) -> (i32, i32) {
    %c0_i32 = arith.constant 0 : i32
    %c0_i32_0 = arith.constant 0 : i32
    return %arg0, %c0_i32 : i32, i32
  }
  func.func @transform_1(%arg0: i32) -> (i32, i32) {
    %c0_i32 = arith.constant 0 : i32
    %c0_i32_0 = arith.constant 0 : i32
    %c0_i32_1 = arith.constant 0 : i32
    return %c0_i32, %c0_i32_0 : i32, i32
  }
  func.func @transform_2(%arg0: i32) -> (i32, i32) {
    %c0_i32 = arith.constant 0 : i32
    %c0_i32_0 = arith.constant 0 : i32
    %c0_i32_1 = arith.constant 0 : i32
    return %c0_i32, %c0_i32_0 : i32, i32
  }
  func.func @transform_3(%arg0: i32) -> (i32, i32) {
    %c0_i32 = arith.constant 0 : i32
    %c0_i32_0 = arith.constant 0 : i32
    return %arg0, %c0_i32 : i32, i32
  }
}

module attributes {stable_mosaic.version = 11 : i64} {
  func.func @_matmul_bias_kernel(%arg0: i32, %arg1: memref<512x4xf32, #tpu.memory_space<vmem>>, %arg2: memref<4x128xf32, #tpu.memory_space<vmem>>, %arg3: memref<1x128xf32, #tpu.memory_space<vmem>>, %arg4: memref<512x128xf32, #tpu.memory_space<vmem>>) attributes {dimension_semantics = [#tpu.dimension_semantics<parallel>], iteration_bounds = array<i64: 1>, scalar_prefetch = 0 : i64, scratch_operands = 0 : i64, tpu.core_type = #tpu.core_type<tc>, window_params = [{transform_indices = @transform_0, window_bounds = array<i64: 512, 4>}, {pipeline_mode = #tpu.pipeline_mode<synchronous>, transform_indices = @transform_1, window_bounds = array<i64: 4, 128>}, {pipeline_mode = #tpu.pipeline_mode<synchronous>, transform_indices = @transform_2, window_bounds = array<i64: 1, 128>}, {transform_indices = @transform_3, window_bounds = array<i64: 512, 128>}]} {
    %c0 = arith.constant 0 : index
    %c0_0 = arith.constant 0 : index
    %0 = vector.load %arg1[%c0, %c0_0] : memref<512x4xf32, #tpu.memory_space<vmem>>, vector<512x4xf32>
    %c0_1 = arith.constant 0 : index
    %c0_2 = arith.constant 0 : index
    %1 = vector.load %arg2[%c0_1, %c0_2] : memref<4x128xf32, #tpu.memory_space<vmem>>, vector<4x128xf32>
    %cst = arith.constant dense<0.000000e+00> : vector<512x128xf32>
    %2 = tpu.matmul %0, %1, %cst {dimension_numbers = #tpu.dot_dimension_numbers<[1], [0], [0], [1], [0, 0, 1, 1], [], []>} : vector<512x4xf32>, vector<4x128xf32>, vector<512x128xf32> -> vector<512x128xf32>
    %c0_3 = arith.constant 0 : index
    %c0_4 = arith.constant 0 : index
    %3 = vector.load %arg3[%c0_3, %c0_4] : memref<1x128xf32, #tpu.memory_space<vmem>>, vector<1x128xf32>
    %4 = vector.broadcast %3 : vector<1x128xf32> to vector<512x128xf32>
    %5 = arith.addf %2, %4 : vector<512x128xf32>
    %c0_5 = arith.constant 0 : index
    %c0_6 = arith.constant 0 : index
    %6 = vector.load %arg4[%c0_5, %c0_6] : memref<512x128xf32, #tpu.memory_space<vmem>>, vector<512x128xf32>
    tpu.vector_store %arg4[%c0_5, %c0_6], %5 {strides = array<i32>} : memref<512x128xf32, #tpu.memory_space<vmem>>, vector<512x128xf32>,
    return
  }
  func.func @transform_0(%arg0: i32) -> (i32, i32) {
    %c0_i32 = arith.constant 0 : i32
    %c0_i32_0 = arith.constant 0 : i32
    return %arg0, %c0_i32 : i32, i32
  }
  func.func @transform_1(%arg0: i32) -> (i32, i32) {
    %c0_i32 = arith.constant 0 : i32
    %c0_i32_0 = arith.constant 0 : i32
    %c0_i32_1 = arith.constant 0 : i32
    return %c0_i32, %c0_i32_0 : i32, i32
  }
  func.func @transform_2(%arg0: i32) -> (i32, i32) {
    %c0_i32 = arith.constant 0 : i32
    %c0_i32_0 = arith.constant 0 : i32
    %c0_i32_1 = arith.constant 0 : i32
    return %c0_i32, %c0_i32_0 : i32, i32
  }
  func.func @transform_3(%arg0: i32) -> (i32, i32) {
    %c0_i32 = arith.constant 0 : i32
    %c0_i32_0 = arith.constant 0 : i32
    return %arg0, %c0_i32 : i32, i32
  }
}

module attributes {stable_mosaic.version = 11 : i64} {
  func.func @kernel(%arg0: i32, %arg1: memref<1x18x18x4xf32, #tpu.memory_space<vmem>>, %arg2: memref<9x4x128xf32, #tpu.memory_space<vmem>>, %arg3: memref<1x128xf32, #tpu.memory_space<vmem>>, %arg4: memref<1x1x128xf32, #tpu.memory_space<vmem>>, %arg5: memref<1x128xf32, #tpu.memory_space<vmem>>, %arg6: memref<1x128xf32, #tpu.memory_space<vmem>>, %arg7: memref<128x1xi32, #tpu.memory_space<vmem>>, %arg8: memref<1x128xi32, #tpu.memory_space<vmem>>, %arg9: memref<1x256x128xf32, #tpu.memory_space<vmem>>) attributes {dimension_semantics = [#tpu.dimension_semantics<parallel>], iteration_bounds = array<i64: 2>, scalar_prefetch = 0 : i64, scratch_operands = 0 : i64, tpu.core_type = #tpu.core_type<tc>, window_params = [{transform_indices = @transform_0, window_bounds = array<i64: 1, 18, 18, 4>}, {pipeline_mode = #tpu.pipeline_mode<synchronous>, transform_indices = @transform_1, window_bounds = array<i64: 9, 4, 128>}, {pipeline_mode = #tpu.pipeline_mode<synchronous>, transform_indices = @transform_2, window_bounds = array<i64: 1, 128>}, {transform_indices = @transform_3, window_bounds = array<i64: 1, 1, 128>}, {pipeline_mode = #tpu.pipeline_mode<synchronous>, transform_indices = @transform_4, window_bounds = array<i64: 1, 128>}, {pipeline_mode = #tpu.pipeline_mode<synchronous>, transform_indices = @transform_5, window_bounds = array<i64: 1, 128>}, {pipeline_mode = #tpu.pipeline_mode<synchronous>, transform_indices = @transform_6, window_bounds = array<i64: 128, 1>}, {pipeline_mode = #tpu.pipeline_mode<synchronous>, transform_indices = @transform_7, window_bounds = array<i64: 1, 128>}, {transform_indices = @transform_8, window_bounds = array<i64: 1, 256, 128>}]} {
    %cst = arith.constant 0.000000e+00 : f32
    %0 = vector.broadcast %cst : f32 to vector<256x128xf32>
    %c0 = arith.constant 0 : index
    %c0_0 = arith.constant 0 : index
    %c0_1 = arith.constant 0 : index
    %c0_2 = arith.constant 0 : index
    %1 = vector.load %arg1[%c0, %c0_0, %c0_1, %c0_2] : memref<1x18x18x4xf32, #tpu.memory_space<vmem>>, vector<1x16x16x4xf32>
    %2 = vector.shape_cast %1 : vector<1x16x16x4xf32> to vector<16x16x4xf32>
    %3 = vector.shape_cast %2 : vector<16x16x4xf32> to vector<256x4xf32>
    %c0_3 = arith.constant 0 : index
    %c0_4 = arith.constant 0 : index
    %c0_5 = arith.constant 0 : index
    %4 = vector.load %arg2[%c0_3, %c0_4, %c0_5] : memref<9x4x128xf32, #tpu.memory_space<vmem>>, vector<1x4x128xf32>
    %5 = vector.shape_cast %4 : vector<1x4x128xf32> to vector<4x128xf32>
    %cst_6 = arith.constant dense<0.000000e+00> : vector<256x128xf32>
    %6 = tpu.matmul %3, %5, %cst_6 {dimension_numbers = #tpu.dot_dimension_numbers<[1], [0], [0], [1], [0, 0, 1, 1], [], []>} : vector<256x4xf32>, vector<4x128xf32>, vector<256x128xf32> -> vector<256x128xf32>
    %7 = arith.addf %0, %6 : vector<256x128xf32>
    %c0_7 = arith.constant 0 : index
    %c0_8 = arith.constant 0 : index
    %c1 = arith.constant 1 : index
    %c0_9 = arith.constant 0 : index
    %8 = vector.load %arg1[%c0_7, %c0_8, %c1, %c0_9] : memref<1x18x18x4xf32, #tpu.memory_space<vmem>>, vector<1x16x16x4xf32>
    %9 = vector.shape_cast %8 : vector<1x16x16x4xf32> to vector<16x16x4xf32>
    %10 = vector.shape_cast %9 : vector<16x16x4xf32> to vector<256x4xf32>
    %c1_10 = arith.constant 1 : index
    %c0_11 = arith.constant 0 : index
    %c0_12 = arith.constant 0 : index
    %11 = vector.load %arg2[%c1_10, %c0_11, %c0_12] : memref<9x4x128xf32, #tpu.memory_space<vmem>>, vector<1x4x128xf32>
    %12 = vector.shape_cast %11 : vector<1x4x128xf32> to vector<4x128xf32>
    %cst_13 = arith.constant dense<0.000000e+00> : vector<256x128xf32>
    %13 = tpu.matmul %10, %12, %cst_13 {dimension_numbers = #tpu.dot_dimension_numbers<[1], [0], [0], [1], [0, 0, 1, 1], [], []>} : vector<256x4xf32>, vector<4x128xf32>, vector<256x128xf32> -> vector<256x128xf32>
    %14 = arith.addf %7, %13 : vector<256x128xf32>
    %c0_14 = arith.constant 0 : index
    %c0_15 = arith.constant 0 : index
    %c2 = arith.constant 2 : index
    %c0_16 = arith.constant 0 : index
    %15 = vector.load %arg1[%c0_14, %c0_15, %c2, %c0_16] : memref<1x18x18x4xf32, #tpu.memory_space<vmem>>, vector<1x16x16x4xf32>
    %16 = vector.shape_cast %15 : vector<1x16x16x4xf32> to vector<16x16x4xf32>
    %17 = vector.shape_cast %16 : vector<16x16x4xf32> to vector<256x4xf32>
    %c2_17 = arith.constant 2 : index
    %c0_18 = arith.constant 0 : index
    %c0_19 = arith.constant 0 : index
    %18 = vector.load %arg2[%c2_17, %c0_18, %c0_19] : memref<9x4x128xf32, #tpu.memory_space<vmem>>, vector<1x4x128xf32>
    %19 = vector.shape_cast %18 : vector<1x4x128xf32> to vector<4x128xf32>
    %cst_20 = arith.constant dense<0.000000e+00> : vector<256x128xf32>
    %20 = tpu.matmul %17, %19, %cst_20 {dimension_numbers = #tpu.dot_dimension_numbers<[1], [0], [0], [1], [0, 0, 1, 1], [], []>} : vector<256x4xf32>, vector<4x128xf32>, vector<256x128xf32> -> vector<256x128xf32>
    %21 = arith.addf %14, %20 : vector<256x128xf32>
    %c0_21 = arith.constant 0 : index
    %c1_22 = arith.constant 1 : index
    %c0_23 = arith.constant 0 : index
    %c0_24 = arith.constant 0 : index
    %22 = vector.load %arg1[%c0_21, %c1_22, %c0_23, %c0_24] : memref<1x18x18x4xf32, #tpu.memory_space<vmem>>, vector<1x16x16x4xf32>
    %23 = vector.shape_cast %22 : vector<1x16x16x4xf32> to vector<16x16x4xf32>
    %24 = vector.shape_cast %23 : vector<16x16x4xf32> to vector<256x4xf32>
    %c3 = arith.constant 3 : index
    %c0_25 = arith.constant 0 : index
    %c0_26 = arith.constant 0 : index
    %25 = vector.load %arg2[%c3, %c0_25, %c0_26] : memref<9x4x128xf32, #tpu.memory_space<vmem>>, vector<1x4x128xf32>
    %26 = vector.shape_cast %25 : vector<1x4x128xf32> to vector<4x128xf32>
    %cst_27 = arith.constant dense<0.000000e+00> : vector<256x128xf32>
    %27 = tpu.matmul %24, %26, %cst_27 {dimension_numbers = #tpu.dot_dimension_numbers<[1], [0], [0], [1], [0, 0, 1, 1], [], []>} : vector<256x4xf32>, vector<4x128xf32>, vector<256x128xf32> -> vector<256x128xf32>
    %28 = arith.addf %21, %27 : vector<256x128xf32>
    %c0_28 = arith.constant 0 : index
    %c1_29 = arith.constant 1 : index
    %c1_30 = arith.constant 1 : index
    %c0_31 = arith.constant 0 : index
    %29 = vector.load %arg1[%c0_28, %c1_29, %c1_30, %c0_31] : memref<1x18x18x4xf32, #tpu.memory_space<vmem>>, vector<1x16x16x4xf32>
    %30 = vector.shape_cast %29 : vector<1x16x16x4xf32> to vector<16x16x4xf32>
    %31 = vector.shape_cast %30 : vector<16x16x4xf32> to vector<256x4xf32>
    %c4 = arith.constant 4 : index
    %c0_32 = arith.constant 0 : index
    %c0_33 = arith.constant 0 : index
    %32 = vector.load %arg2[%c4, %c0_32, %c0_33] : memref<9x4x128xf32, #tpu.memory_space<vmem>>, vector<1x4x128xf32>
    %33 = vector.shape_cast %32 : vector<1x4x128xf32> to vector<4x128xf32>
    %cst_34 = arith.constant dense<0.000000e+00> : vector<256x128xf32>
    %34 = tpu.matmul %31, %33, %cst_34 {dimension_numbers = #tpu.dot_dimension_numbers<[1], [0], [0], [1], [0, 0, 1, 1], [], []>} : vector<256x4xf32>, vector<4x128xf32>, vector<256x128xf32> -> vector<256x128xf32>
    %35 = arith.addf %28, %34 : vector<256x128xf32>
    %c0_35 = arith.constant 0 : index
    %c1_36 = arith.constant 1 : index
    %c2_37 = arith.constant 2 : index
    %c0_38 = arith.constant 0 : index
    %36 = vector.load %arg1[%c0_35, %c1_36, %c2_37, %c0_38] : memref<1x18x18x4xf32, #tpu.memory_space<vmem>>, vector<1x16x16x4xf32>
    %37 = vector.shape_cast %36 : vector<1x16x16x4xf32> to vector<16x16x4xf32>
    %38 = vector.shape_cast %37 : vector<16x16x4xf32> to vector<256x4xf32>
    %c5 = arith.constant 5 : index
    %c0_39 = arith.constant 0 : index
    %c0_40 = arith.constant 0 : index
    %39 = vector.load %arg2[%c5, %c0_39, %c0_40] : memref<9x4x128xf32, #tpu.memory_space<vmem>>, vector<1x4x128xf32>
    %40 = vector.shape_cast %39 : vector<1x4x128xf32> to vector<4x128xf32>
    %cst_41 = arith.constant dense<0.000000e+00> : vector<256x128xf32>
    %41 = tpu.matmul %38, %40, %cst_41 {dimension_numbers = #tpu.dot_dimension_numbers<[1], [0], [0], [1], [0, 0, 1, 1], [], []>} : vector<256x4xf32>, vector<4x128xf32>, vector<256x128xf32> -> vector<256x128xf32>
    %42 = arith.addf %35, %41 : vector<256x128xf32>
    %c0_42 = arith.constant 0 : index
    %c2_43 = arith.constant 2 : index
    %c0_44 = arith.constant 0 : index
    %c0_45 = arith.constant 0 : index
    %43 = vector.load %arg1[%c0_42, %c2_43, %c0_44, %c0_45] : memref<1x18x18x4xf32, #tpu.memory_space<vmem>>, vector<1x16x16x4xf32>
    %44 = vector.shape_cast %43 : vector<1x16x16x4xf32> to vector<16x16x4xf32>
    %45 = vector.shape_cast %44 : vector<16x16x4xf32> to vector<256x4xf32>
    %c6 = arith.constant 6 : index
    %c0_46 = arith.constant 0 : index
    %c0_47 = arith.constant 0 : index
    %46 = vector.load %arg2[%c6, %c0_46, %c0_47] : memref<9x4x128xf32, #tpu.memory_space<vmem>>, vector<1x4x128xf32>
    %47 = vector.shape_cast %46 : vector<1x4x128xf32> to vector<4x128xf32>
    %cst_48 = arith.constant dense<0.000000e+00> : vector<256x128xf32>
    %48 = tpu.matmul %45, %47, %cst_48 {dimension_numbers = #tpu.dot_dimension_numbers<[1], [0], [0], [1], [0, 0, 1, 1], [], []>} : vector<256x4xf32>, vector<4x128xf32>, vector<256x128xf32> -> vector<256x128xf32>
    %49 = arith.addf %42, %48 : vector<256x128xf32>
    %c0_49 = arith.constant 0 : index
    %c2_50 = arith.constant 2 : index
    %c1_51 = arith.constant 1 : index
    %c0_52 = arith.constant 0 : index
    %50 = vector.load %arg1[%c0_49, %c2_50, %c1_51, %c0_52] : memref<1x18x18x4xf32, #tpu.memory_space<vmem>>, vector<1x16x16x4xf32>
    %51 = vector.shape_cast %50 : vector<1x16x16x4xf32> to vector<16x16x4xf32>
    %52 = vector.shape_cast %51 : vector<16x16x4xf32> to vector<256x4xf32>
    %c7 = arith.constant 7 : index
    %c0_53 = arith.constant 0 : index
    %c0_54 = arith.constant 0 : index
    %53 = vector.load %arg2[%c7, %c0_53, %c0_54] : memref<9x4x128xf32, #tpu.memory_space<vmem>>, vector<1x4x128xf32>
    %54 = vector.shape_cast %53 : vector<1x4x128xf32> to vector<4x128xf32>
    %cst_55 = arith.constant dense<0.000000e+00> : vector<256x128xf32>
    %55 = tpu.matmul %52, %54, %cst_55 {dimension_numbers = #tpu.dot_dimension_numbers<[1], [0], [0], [1], [0, 0, 1, 1], [], []>} : vector<256x4xf32>, vector<4x128xf32>, vector<256x128xf32> -> vector<256x128xf32>
    %56 = arith.addf %49, %55 : vector<256x128xf32>
    %c0_56 = arith.constant 0 : index
    %c2_57 = arith.constant 2 : index
    %c2_58 = arith.constant 2 : index
    %c0_59 = arith.constant 0 : index
    %57 = vector.load %arg1[%c0_56, %c2_57, %c2_58, %c0_59] : memref<1x18x18x4xf32, #tpu.memory_space<vmem>>, vector<1x16x16x4xf32>
    %58 = vector.shape_cast %57 : vector<1x16x16x4xf32> to vector<16x16x4xf32>
    %59 = vector.shape_cast %58 : vector<16x16x4xf32> to vector<256x4xf32>
    %c8 = arith.constant 8 : index
    %c0_60 = arith.constant 0 : index
    %c0_61 = arith.constant 0 : index
    %60 = vector.load %arg2[%c8, %c0_60, %c0_61] : memref<9x4x128xf32, #tpu.memory_space<vmem>>, vector<1x4x128xf32>
    %61 = vector.shape_cast %60 : vector<1x4x128xf32> to vector<4x128xf32>
    %cst_62 = arith.constant dense<0.000000e+00> : vector<256x128xf32>
    %62 = tpu.matmul %59, %61, %cst_62 {dimension_numbers = #tpu.dot_dimension_numbers<[1], [0], [0], [1], [0, 0, 1, 1], [], []>} : vector<256x4xf32>, vector<4x128xf32>, vector<256x128xf32> -> vector<256x128xf32>
    %63 = arith.addf %56, %62 : vector<256x128xf32>
    %c0_63 = arith.constant 0 : index
    %c0_64 = arith.constant 0 : index
    %64 = vector.load %arg3[%c0_63, %c0_64] : memref<1x128xf32, #tpu.memory_space<vmem>>, vector<1x128xf32>
    %65 = vector.broadcast %64 : vector<1x128xf32> to vector<256x128xf32>
    %66 = arith.addf %63, %65 : vector<256x128xf32>
    %cst_65 = arith.constant dense<0.000000e+00> : vector<128xf32>
    %67 = vector.multi_reduction <add>, %66, %cst_65 [0] : vector<256x128xf32> to vector<128xf32>
    %68 = vector.shape_cast %67 : vector<128xf32> to vector<1x128xf32>
    %69 = arith.mulf %66, %66 : vector<256x128xf32>
    %cst_66 = arith.constant dense<0.000000e+00> : vector<128xf32>
    %70 = vector.multi_reduction <add>, %69, %cst_66 [0] : vector<256x128xf32> to vector<128xf32>
    %71 = vector.shape_cast %70 : vector<128xf32> to vector<1x128xf32>
    %72 = tpu.concatenate %68, %71 in 0 : vector<1x128xf32>, vector<1x128xf32> -> vector<2x128xf32>
    %c0_67 = arith.constant 0 : index
    %c0_68 = arith.constant 0 : index
    %73 = vector.load %arg7[%c0_67, %c0_68] : memref<128x1xi32, #tpu.memory_space<vmem>>, vector<128x1xi32>
    %c0_69 = arith.constant 0 : index
    %c0_70 = arith.constant 0 : index
    %74 = vector.load %arg8[%c0_69, %c0_70] : memref<1x128xi32, #tpu.memory_space<vmem>>, vector<1x128xi32>
    %c8_i32 = arith.constant 8 : i32
    %75 = vector.broadcast %c8_i32 : i32 to vector<1x128xi32>
    %76 = arith.cmpi slt, %74, %75 : vector<1x128xi32>
    %77 = vector.broadcast %73 : vector<128x1xi32> to vector<128x128xi32>
    %78 = vector.broadcast %74 : vector<1x128xi32> to vector<128x128xi32>
    %79 = arith.cmpi eq, %77, %78 : vector<128x128xi32>
    %80 = vector.broadcast %76 : vector<1x128xi1> to vector<128x128xi1>
    %81 = arith.andi %79, %80 : vector<128x128xi1>
    %c8_i32_71 = arith.constant 8 : i32
    %82 = vector.broadcast %c8_i32_71 : i32 to vector<128x1xi32>
    %83 = arith.cmpi slt, %73, %82 : vector<128x1xi32>
    %84 = vector.broadcast %83 : vector<128x1xi1> to vector<128x128xi1>
    %85 = arith.andi %81, %84 : vector<128x128xi1>
    %86 = arith.extui %85 : vector<128x128xi1> to vector<128x128xi32>
    %87 = arith.sitofp %86 : vector<128x128xi32> to vector<128x128xf32>
    %cst_72 = arith.constant dense<0.000000e+00> : vector<2x128xf32>
    %88 = tpu.matmul %72, %87, %cst_72 {dimension_numbers = #tpu.dot_dimension_numbers<[1], [0], [0], [1], [0, 0, 1, 1], [], []>} : vector<2x128xf32>, vector<128x128xf32>, vector<2x128xf32> -> vector<2x128xf32>
    %cst_73 = arith.constant 3.906250e-03 : f32
    %89 = vector.broadcast %cst_73 : f32 to vector<2x128xf32>
    %90 = arith.mulf %88, %89 : vector<2x128xf32>
    %91 = vector.extract_strided_slice %90 {offsets = [0, 0], sizes = [1, 128], strides = [1, 1]} : vector<2x128xf32> to vector<1x128xf32>
    %92 = vector.extract_strided_slice %90 {offsets = [1, 0], sizes = [1, 128], strides = [1, 1]} : vector<2x128xf32> to vector<1x128xf32>
    %93 = arith.mulf %91, %91 : vector<1x128xf32>
    %94 = arith.subf %92, %93 : vector<1x128xf32>
    %cst_74 = arith.constant 9.99999974E-6 : f32
    %95 = vector.broadcast %cst_74 : f32 to vector<1x128xf32>
    %96 = arith.addf %94, %95 : vector<1x128xf32>
    %97 = math.rsqrt %96 : vector<1x128xf32>
    %98 = vector.broadcast %91 : vector<1x128xf32> to vector<256x128xf32>
    %99 = arith.subf %66, %98 : vector<256x128xf32>
    %100 = vector.broadcast %97 : vector<1x128xf32> to vector<256x128xf32>
    %101 = arith.mulf %99, %100 : vector<256x128xf32>
    %c0_75 = arith.constant 0 : index
    %c0_76 = arith.constant 0 : index
    %102 = vector.load %arg5[%c0_75, %c0_76] : memref<1x128xf32, #tpu.memory_space<vmem>>, vector<1x128xf32>
    %103 = vector.broadcast %102 : vector<1x128xf32> to vector<256x128xf32>
    %104 = arith.mulf %101, %103 : vector<256x128xf32>
    %c0_77 = arith.constant 0 : index
    %c0_78 = arith.constant 0 : index
    %105 = vector.load %arg6[%c0_77, %c0_78] : memref<1x128xf32, #tpu.memory_space<vmem>>, vector<1x128xf32>
    %106 = vector.broadcast %105 : vector<1x128xf32> to vector<256x128xf32>
    %107 = arith.addf %104, %106 : vector<256x128xf32>
    %108 = arith.negf %107 : vector<256x128xf32>
    %109 = math.exp %108 : vector<256x128xf32>
    %cst_79 = arith.constant 1.000000e+00 : f32
    %110 = vector.broadcast %cst_79 : f32 to vector<256x128xf32>
    %111 = arith.addf %110, %109 : vector<256x128xf32>
    %112 = arith.divf %110, %111 : vector<256x128xf32>
    %113 = arith.mulf %107, %112 : vector<256x128xf32>
    %c0_80 = arith.constant 0 : index
    %c0_81 = arith.constant 0 : index
    %c0_82 = arith.constant 0 : index
    %114 = vector.load %arg4[%c0_80, %c0_81, %c0_82] : memref<1x1x128xf32, #tpu.memory_space<vmem>>, vector<1x1x128xf32>
    %115 = vector.shape_cast %114 : vector<1x1x128xf32> to vector<1x128xf32>
    %116 = vector.broadcast %115 : vector<1x128xf32> to vector<256x128xf32>
    %117 = arith.addf %113, %116 : vector<256x128xf32>
    %cst_83 = arith.constant 0.000000e+00 : f32
    %118 = vector.shape_cast %76 : vector<1x128xi1> to vector<1x128xi1>
    %119 = vector.broadcast %118 : vector<1x128xi1> to vector<256x128xi1>
    %120 = vector.broadcast %cst_83 : f32 to vector<256x128xf32>
    %121 = arith.select %119, %117, %120 : vector<256x128xi1>, vector<256x128xf32>
    %c0_84 = arith.constant 0 : index
    %c0_85 = arith.constant 0 : index
    %c0_86 = arith.constant 0 : index
    %122 = vector.load %arg9[%c0_84, %c0_85, %c0_86] : memref<1x256x128xf32, #tpu.memory_space<vmem>>, vector<1x256x128xf32>
    %123 = vector.shape_cast %122 : vector<1x256x128xf32> to vector<256x128xf32>
    %124 = vector.shape_cast %121 : vector<256x128xf32> to vector<1x256x128xf32>
    tpu.vector_store %arg9[%c0_84, %c0_85, %c0_86], %124 {strides = array<i32>} : memref<1x256x128xf32, #tpu.memory_space<vmem>>, vector<1x256x128xf32>,
    return
  }
  func.func @transform_0(%arg0: i32) -> (i32, i32, i32, i32) {
    %c0_i32 = arith.constant 0 : i32
    %c0_i32_0 = arith.constant 0 : i32
    %c0_i32_1 = arith.constant 0 : i32
    %c0_i32_2 = arith.constant 0 : i32
    return %arg0, %c0_i32, %c0_i32_0, %c0_i32_1 : i32, i32, i32, i32
  }
  func.func @transform_1(%arg0: i32) -> (i32, i32, i32) {
    %c0_i32 = arith.constant 0 : i32
    %c0_i32_0 = arith.constant 0 : i32
    %c0_i32_1 = arith.constant 0 : i32
    %c0_i32_2 = arith.constant 0 : i32
    return %c0_i32, %c0_i32_0, %c0_i32_1 : i32, i32, i32
  }
  func.func @transform_2(%arg0: i32) -> (i32, i32) {
    %c0_i32 = arith.constant 0 : i32
    %c0_i32_0 = arith.constant 0 : i32
    %c0_i32_1 = arith.constant 0 : i32
    return %c0_i32, %c0_i32_0 : i32, i32
  }
  func.func @transform_3(%arg0: i32) -> (i32, i32, i32) {
    %c0_i32 = arith.constant 0 : i32
    %c0_i32_0 = arith.constant 0 : i32
    %c0_i32_1 = arith.constant 0 : i32
    return %arg0, %c0_i32, %c0_i32_0 : i32, i32, i32
  }
  func.func @transform_4(%arg0: i32) -> (i32, i32) {
    %c0_i32 = arith.constant 0 : i32
    %c0_i32_0 = arith.constant 0 : i32
    %c0_i32_1 = arith.constant 0 : i32
    return %c0_i32, %c0_i32_0 : i32, i32
  }
  func.func @transform_5(%arg0: i32) -> (i32, i32) {
    %c0_i32 = arith.constant 0 : i32
    %c0_i32_0 = arith.constant 0 : i32
    %c0_i32_1 = arith.constant 0 : i32
    return %c0_i32, %c0_i32_0 : i32, i32
  }
  func.func @transform_6(%arg0: i32) -> (i32, i32) {
    %c0_i32 = arith.constant 0 : i32
    %c0_i32_0 = arith.constant 0 : i32
    %c0_i32_1 = arith.constant 0 : i32
    return %c0_i32, %c0_i32_0 : i32, i32
  }
  func.func @transform_7(%arg0: i32) -> (i32, i32) {
    %c0_i32 = arith.constant 0 : i32
    %c0_i32_0 = arith.constant 0 : i32
    %c0_i32_1 = arith.constant 0 : i32
    return %c0_i32, %c0_i32_0 : i32, i32
  }
  func.func @transform_8(%arg0: i32) -> (i32, i32, i32) {
    %c0_i32 = arith.constant 0 : i32
    %c0_i32_0 = arith.constant 0 : i32
    %c0_i32_1 = arith.constant 0 : i32
    return %arg0, %c0_i32, %c0_i32_0 : i32, i32, i32
  }
}

module attributes {stable_mosaic.version = 11 : i64} {
  func.func @kernel(%arg0: i32, %arg1: memref<1x18x18x128xf32, #tpu.memory_space<vmem>>, %arg2: memref<9x128x128xf32, #tpu.memory_space<vmem>>, %arg3: memref<1x128xf32, #tpu.memory_space<vmem>>, %arg4: memref<1x256x128xf32, #tpu.memory_space<vmem>>, %arg5: memref<1x128xf32, #tpu.memory_space<vmem>>, %arg6: memref<1x128xf32, #tpu.memory_space<vmem>>, %arg7: memref<128x1xi32, #tpu.memory_space<vmem>>, %arg8: memref<1x128xi32, #tpu.memory_space<vmem>>, %arg9: memref<1x256x128xf32, #tpu.memory_space<vmem>>) attributes {dimension_semantics = [#tpu.dimension_semantics<parallel>], iteration_bounds = array<i64: 2>, scalar_prefetch = 0 : i64, scratch_operands = 0 : i64, tpu.core_type = #tpu.core_type<tc>, window_params = [{transform_indices = @transform_0, window_bounds = array<i64: 1, 18, 18, 128>}, {pipeline_mode = #tpu.pipeline_mode<synchronous>, transform_indices = @transform_1, window_bounds = array<i64: 9, 128, 128>}, {pipeline_mode = #tpu.pipeline_mode<synchronous>, transform_indices = @transform_2, window_bounds = array<i64: 1, 128>}, {transform_indices = @transform_3, window_bounds = array<i64: 1, 256, 128>}, {pipeline_mode = #tpu.pipeline_mode<synchronous>, transform_indices = @transform_4, window_bounds = array<i64: 1, 128>}, {pipeline_mode = #tpu.pipeline_mode<synchronous>, transform_indices = @transform_5, window_bounds = array<i64: 1, 128>}, {pipeline_mode = #tpu.pipeline_mode<synchronous>, transform_indices = @transform_6, window_bounds = array<i64: 128, 1>}, {pipeline_mode = #tpu.pipeline_mode<synchronous>, transform_indices = @transform_7, window_bounds = array<i64: 1, 128>}, {transform_indices = @transform_8, window_bounds = array<i64: 1, 256, 128>}]} {
    %cst = arith.constant 0.000000e+00 : f32
    %0 = vector.broadcast %cst : f32 to vector<256x128xf32>
    %c0 = arith.constant 0 : index
    %c0_0 = arith.constant 0 : index
    %c0_1 = arith.constant 0 : index
    %c0_2 = arith.constant 0 : index
    %1 = vector.load %arg1[%c0, %c0_0, %c0_1, %c0_2] : memref<1x18x18x128xf32, #tpu.memory_space<vmem>>, vector<1x16x16x128xf32>
    %2 = vector.shape_cast %1 : vector<1x16x16x128xf32> to vector<16x16x128xf32>
    %3 = vector.shape_cast %2 : vector<16x16x128xf32> to vector<256x128xf32>
    %c0_3 = arith.constant 0 : index
    %c0_4 = arith.constant 0 : index
    %c0_5 = arith.constant 0 : index
    %4 = vector.load %arg2[%c0_3, %c0_4, %c0_5] : memref<9x128x128xf32, #tpu.memory_space<vmem>>, vector<1x128x128xf32>
    %5 = vector.shape_cast %4 : vector<1x128x128xf32> to vector<128x128xf32>
    %cst_6 = arith.constant dense<0.000000e+00> : vector<256x128xf32>
    %6 = tpu.matmul %3, %5, %cst_6 {dimension_numbers = #tpu.dot_dimension_numbers<[1], [0], [0], [1], [0, 0, 1, 1], [], []>} : vector<256x128xf32>, vector<128x128xf32>, vector<256x128xf32> -> vector<256x128xf32>
    %7 = arith.addf %0, %6 : vector<256x128xf32>
    %c0_7 = arith.constant 0 : index
    %c0_8 = arith.constant 0 : index
    %c1 = arith.constant 1 : index
    %c0_9 = arith.constant 0 : index
    %8 = vector.load %arg1[%c0_7, %c0_8, %c1, %c0_9] : memref<1x18x18x128xf32, #tpu.memory_space<vmem>>, vector<1x16x16x128xf32>
    %9 = vector.shape_cast %8 : vector<1x16x16x128xf32> to vector<16x16x128xf32>
    %10 = vector.shape_cast %9 : vector<16x16x128xf32> to vector<256x128xf32>
    %c1_10 = arith.constant 1 : index
    %c0_11 = arith.constant 0 : index
    %c0_12 = arith.constant 0 : index
    %11 = vector.load %arg2[%c1_10, %c0_11, %c0_12] : memref<9x128x128xf32, #tpu.memory_space<vmem>>, vector<1x128x128xf32>
    %12 = vector.shape_cast %11 : vector<1x128x128xf32> to vector<128x128xf32>
    %cst_13 = arith.constant dense<0.000000e+00> : vector<256x128xf32>
    %13 = tpu.matmul %10, %12, %cst_13 {dimension_numbers = #tpu.dot_dimension_numbers<[1], [0], [0], [1], [0, 0, 1, 1], [], []>} : vector<256x128xf32>, vector<128x128xf32>, vector<256x128xf32> -> vector<256x128xf32>
    %14 = arith.addf %7, %13 : vector<256x128xf32>
    %c0_14 = arith.constant 0 : index
    %c0_15 = arith.constant 0 : index
    %c2 = arith.constant 2 : index
    %c0_16 = arith.constant 0 : index
    %15 = vector.load %arg1[%c0_14, %c0_15, %c2, %c0_16] : memref<1x18x18x128xf32, #tpu.memory_space<vmem>>, vector<1x16x16x128xf32>
    %16 = vector.shape_cast %15 : vector<1x16x16x128xf32> to vector<16x16x128xf32>
    %17 = vector.shape_cast %16 : vector<16x16x128xf32> to vector<256x128xf32>
    %c2_17 = arith.constant 2 : index
    %c0_18 = arith.constant 0 : index
    %c0_19 = arith.constant 0 : index
    %18 = vector.load %arg2[%c2_17, %c0_18, %c0_19] : memref<9x128x128xf32, #tpu.memory_space<vmem>>, vector<1x128x128xf32>
    %19 = vector.shape_cast %18 : vector<1x128x128xf32> to vector<128x128xf32>
    %cst_20 = arith.constant dense<0.000000e+00> : vector<256x128xf32>
    %20 = tpu.matmul %17, %19, %cst_20 {dimension_numbers = #tpu.dot_dimension_numbers<[1], [0], [0], [1], [0, 0, 1, 1], [], []>} : vector<256x128xf32>, vector<128x128xf32>, vector<256x128xf32> -> vector<256x128xf32>
    %21 = arith.addf %14, %20 : vector<256x128xf32>
    %c0_21 = arith.constant 0 : index
    %c1_22 = arith.constant 1 : index
    %c0_23 = arith.constant 0 : index
    %c0_24 = arith.constant 0 : index
    %22 = vector.load %arg1[%c0_21, %c1_22, %c0_23, %c0_24] : memref<1x18x18x128xf32, #tpu.memory_space<vmem>>, vector<1x16x16x128xf32>
    %23 = vector.shape_cast %22 : vector<1x16x16x128xf32> to vector<16x16x128xf32>
    %24 = vector.shape_cast %23 : vector<16x16x128xf32> to vector<256x128xf32>
    %c3 = arith.constant 3 : index
    %c0_25 = arith.constant 0 : index
    %c0_26 = arith.constant 0 : index
    %25 = vector.load %arg2[%c3, %c0_25, %c0_26] : memref<9x128x128xf32, #tpu.memory_space<vmem>>, vector<1x128x128xf32>
    %26 = vector.shape_cast %25 : vector<1x128x128xf32> to vector<128x128xf32>
    %cst_27 = arith.constant dense<0.000000e+00> : vector<256x128xf32>
    %27 = tpu.matmul %24, %26, %cst_27 {dimension_numbers = #tpu.dot_dimension_numbers<[1], [0], [0], [1], [0, 0, 1, 1], [], []>} : vector<256x128xf32>, vector<128x128xf32>, vector<256x128xf32> -> vector<256x128xf32>
    %28 = arith.addf %21, %27 : vector<256x128xf32>
    %c0_28 = arith.constant 0 : index
    %c1_29 = arith.constant 1 : index
    %c1_30 = arith.constant 1 : index
    %c0_31 = arith.constant 0 : index
    %29 = vector.load %arg1[%c0_28, %c1_29, %c1_30, %c0_31] : memref<1x18x18x128xf32, #tpu.memory_space<vmem>>, vector<1x16x16x128xf32>
    %30 = vector.shape_cast %29 : vector<1x16x16x128xf32> to vector<16x16x128xf32>
    %31 = vector.shape_cast %30 : vector<16x16x128xf32> to vector<256x128xf32>
    %c4 = arith.constant 4 : index
    %c0_32 = arith.constant 0 : index
    %c0_33 = arith.constant 0 : index
    %32 = vector.load %arg2[%c4, %c0_32, %c0_33] : memref<9x128x128xf32, #tpu.memory_space<vmem>>, vector<1x128x128xf32>
    %33 = vector.shape_cast %32 : vector<1x128x128xf32> to vector<128x128xf32>
    %cst_34 = arith.constant dense<0.000000e+00> : vector<256x128xf32>
    %34 = tpu.matmul %31, %33, %cst_34 {dimension_numbers = #tpu.dot_dimension_numbers<[1], [0], [0], [1], [0, 0, 1, 1], [], []>} : vector<256x128xf32>, vector<128x128xf32>, vector<256x128xf32> -> vector<256x128xf32>
    %35 = arith.addf %28, %34 : vector<256x128xf32>
    %c0_35 = arith.constant 0 : index
    %c1_36 = arith.constant 1 : index
    %c2_37 = arith.constant 2 : index
    %c0_38 = arith.constant 0 : index
    %36 = vector.load %arg1[%c0_35, %c1_36, %c2_37, %c0_38] : memref<1x18x18x128xf32, #tpu.memory_space<vmem>>, vector<1x16x16x128xf32>
    %37 = vector.shape_cast %36 : vector<1x16x16x128xf32> to vector<16x16x128xf32>
    %38 = vector.shape_cast %37 : vector<16x16x128xf32> to vector<256x128xf32>
    %c5 = arith.constant 5 : index
    %c0_39 = arith.constant 0 : index
    %c0_40 = arith.constant 0 : index
    %39 = vector.load %arg2[%c5, %c0_39, %c0_40] : memref<9x128x128xf32, #tpu.memory_space<vmem>>, vector<1x128x128xf32>
    %40 = vector.shape_cast %39 : vector<1x128x128xf32> to vector<128x128xf32>
    %cst_41 = arith.constant dense<0.000000e+00> : vector<256x128xf32>
    %41 = tpu.matmul %38, %40, %cst_41 {dimension_numbers = #tpu.dot_dimension_numbers<[1], [0], [0], [1], [0, 0, 1, 1], [], []>} : vector<256x128xf32>, vector<128x128xf32>, vector<256x128xf32> -> vector<256x128xf32>
    %42 = arith.addf %35, %41 : vector<256x128xf32>
    %c0_42 = arith.constant 0 : index
    %c2_43 = arith.constant 2 : index
    %c0_44 = arith.constant 0 : index
    %c0_45 = arith.constant 0 : index
    %43 = vector.load %arg1[%c0_42, %c2_43, %c0_44, %c0_45] : memref<1x18x18x128xf32, #tpu.memory_space<vmem>>, vector<1x16x16x128xf32>
    %44 = vector.shape_cast %43 : vector<1x16x16x128xf32> to vector<16x16x128xf32>
    %45 = vector.shape_cast %44 : vector<16x16x128xf32> to vector<256x128xf32>
    %c6 = arith.constant 6 : index
    %c0_46 = arith.constant 0 : index
    %c0_47 = arith.constant 0 : index
    %46 = vector.load %arg2[%c6, %c0_46, %c0_47] : memref<9x128x128xf32, #tpu.memory_space<vmem>>, vector<1x128x128xf32>
    %47 = vector.shape_cast %46 : vector<1x128x128xf32> to vector<128x128xf32>
    %cst_48 = arith.constant dense<0.000000e+00> : vector<256x128xf32>
    %48 = tpu.matmul %45, %47, %cst_48 {dimension_numbers = #tpu.dot_dimension_numbers<[1], [0], [0], [1], [0, 0, 1, 1], [], []>} : vector<256x128xf32>, vector<128x128xf32>, vector<256x128xf32> -> vector<256x128xf32>
    %49 = arith.addf %42, %48 : vector<256x128xf32>
    %c0_49 = arith.constant 0 : index
    %c2_50 = arith.constant 2 : index
    %c1_51 = arith.constant 1 : index
    %c0_52 = arith.constant 0 : index
    %50 = vector.load %arg1[%c0_49, %c2_50, %c1_51, %c0_52] : memref<1x18x18x128xf32, #tpu.memory_space<vmem>>, vector<1x16x16x128xf32>
    %51 = vector.shape_cast %50 : vector<1x16x16x128xf32> to vector<16x16x128xf32>
    %52 = vector.shape_cast %51 : vector<16x16x128xf32> to vector<256x128xf32>
    %c7 = arith.constant 7 : index
    %c0_53 = arith.constant 0 : index
    %c0_54 = arith.constant 0 : index
    %53 = vector.load %arg2[%c7, %c0_53, %c0_54] : memref<9x128x128xf32, #tpu.memory_space<vmem>>, vector<1x128x128xf32>
    %54 = vector.shape_cast %53 : vector<1x128x128xf32> to vector<128x128xf32>
    %cst_55 = arith.constant dense<0.000000e+00> : vector<256x128xf32>
    %55 = tpu.matmul %52, %54, %cst_55 {dimension_numbers = #tpu.dot_dimension_numbers<[1], [0], [0], [1], [0, 0, 1, 1], [], []>} : vector<256x128xf32>, vector<128x128xf32>, vector<256x128xf32> -> vector<256x128xf32>
    %56 = arith.addf %49, %55 : vector<256x128xf32>
    %c0_56 = arith.constant 0 : index
    %c2_57 = arith.constant 2 : index
    %c2_58 = arith.constant 2 : index
    %c0_59 = arith.constant 0 : index
    %57 = vector.load %arg1[%c0_56, %c2_57, %c2_58, %c0_59] : memref<1x18x18x128xf32, #tpu.memory_space<vmem>>, vector<1x16x16x128xf32>
    %58 = vector.shape_cast %57 : vector<1x16x16x128xf32> to vector<16x16x128xf32>
    %59 = vector.shape_cast %58 : vector<16x16x128xf32> to vector<256x128xf32>
    %c8 = arith.constant 8 : index
    %c0_60 = arith.constant 0 : index
    %c0_61 = arith.constant 0 : index
    %60 = vector.load %arg2[%c8, %c0_60, %c0_61] : memref<9x128x128xf32, #tpu.memory_space<vmem>>, vector<1x128x128xf32>
    %61 = vector.shape_cast %60 : vector<1x128x128xf32> to vector<128x128xf32>
    %cst_62 = arith.constant dense<0.000000e+00> : vector<256x128xf32>
    %62 = tpu.matmul %59, %61, %cst_62 {dimension_numbers = #tpu.dot_dimension_numbers<[1], [0], [0], [1], [0, 0, 1, 1], [], []>} : vector<256x128xf32>, vector<128x128xf32>, vector<256x128xf32> -> vector<256x128xf32>
    %63 = arith.addf %56, %62 : vector<256x128xf32>
    %c0_63 = arith.constant 0 : index
    %c0_64 = arith.constant 0 : index
    %64 = vector.load %arg3[%c0_63, %c0_64] : memref<1x128xf32, #tpu.memory_space<vmem>>, vector<1x128xf32>
    %65 = vector.broadcast %64 : vector<1x128xf32> to vector<256x128xf32>
    %66 = arith.addf %63, %65 : vector<256x128xf32>
    %cst_65 = arith.constant dense<0.000000e+00> : vector<128xf32>
    %67 = vector.multi_reduction <add>, %66, %cst_65 [0] : vector<256x128xf32> to vector<128xf32>
    %68 = vector.shape_cast %67 : vector<128xf32> to vector<1x128xf32>
    %69 = arith.mulf %66, %66 : vector<256x128xf32>
    %cst_66 = arith.constant dense<0.000000e+00> : vector<128xf32>
    %70 = vector.multi_reduction <add>, %69, %cst_66 [0] : vector<256x128xf32> to vector<128xf32>
    %71 = vector.shape_cast %70 : vector<128xf32> to vector<1x128xf32>
    %72 = tpu.concatenate %68, %71 in 0 : vector<1x128xf32>, vector<1x128xf32> -> vector<2x128xf32>
    %c0_67 = arith.constant 0 : index
    %c0_68 = arith.constant 0 : index
    %73 = vector.load %arg7[%c0_67, %c0_68] : memref<128x1xi32, #tpu.memory_space<vmem>>, vector<128x1xi32>
    %c0_69 = arith.constant 0 : index
    %c0_70 = arith.constant 0 : index
    %74 = vector.load %arg8[%c0_69, %c0_70] : memref<1x128xi32, #tpu.memory_space<vmem>>, vector<1x128xi32>
    %c8_i32 = arith.constant 8 : i32
    %75 = vector.broadcast %c8_i32 : i32 to vector<1x128xi32>
    %76 = arith.cmpi slt, %74, %75 : vector<1x128xi32>
    %77 = vector.broadcast %73 : vector<128x1xi32> to vector<128x128xi32>
    %78 = vector.broadcast %74 : vector<1x128xi32> to vector<128x128xi32>
    %79 = arith.cmpi eq, %77, %78 : vector<128x128xi32>
    %80 = vector.broadcast %76 : vector<1x128xi1> to vector<128x128xi1>
    %81 = arith.andi %79, %80 : vector<128x128xi1>
    %c8_i32_71 = arith.constant 8 : i32
    %82 = vector.broadcast %c8_i32_71 : i32 to vector<128x1xi32>
    %83 = arith.cmpi slt, %73, %82 : vector<128x1xi32>
    %84 = vector.broadcast %83 : vector<128x1xi1> to vector<128x128xi1>
    %85 = arith.andi %81, %84 : vector<128x128xi1>
    %86 = arith.extui %85 : vector<128x128xi1> to vector<128x128xi32>
    %87 = arith.sitofp %86 : vector<128x128xi32> to vector<128x128xf32>
    %cst_72 = arith.constant dense<0.000000e+00> : vector<2x128xf32>
    %88 = tpu.matmul %72, %87, %cst_72 {dimension_numbers = #tpu.dot_dimension_numbers<[1], [0], [0], [1], [0, 0, 1, 1], [], []>} : vector<2x128xf32>, vector<128x128xf32>, vector<2x128xf32> -> vector<2x128xf32>
    %cst_73 = arith.constant 3.906250e-03 : f32
    %89 = vector.broadcast %cst_73 : f32 to vector<2x128xf32>
    %90 = arith.mulf %88, %89 : vector<2x128xf32>
    %91 = vector.extract_strided_slice %90 {offsets = [0, 0], sizes = [1, 128], strides = [1, 1]} : vector<2x128xf32> to vector<1x128xf32>
    %92 = vector.extract_strided_slice %90 {offsets = [1, 0], sizes = [1, 128], strides = [1, 1]} : vector<2x128xf32> to vector<1x128xf32>
    %93 = arith.mulf %91, %91 : vector<1x128xf32>
    %94 = arith.subf %92, %93 : vector<1x128xf32>
    %cst_74 = arith.constant 9.99999974E-6 : f32
    %95 = vector.broadcast %cst_74 : f32 to vector<1x128xf32>
    %96 = arith.addf %94, %95 : vector<1x128xf32>
    %97 = math.rsqrt %96 : vector<1x128xf32>
    %98 = vector.broadcast %91 : vector<1x128xf32> to vector<256x128xf32>
    %99 = arith.subf %66, %98 : vector<256x128xf32>
    %100 = vector.broadcast %97 : vector<1x128xf32> to vector<256x128xf32>
    %101 = arith.mulf %99, %100 : vector<256x128xf32>
    %c0_75 = arith.constant 0 : index
    %c0_76 = arith.constant 0 : index
    %102 = vector.load %arg5[%c0_75, %c0_76] : memref<1x128xf32, #tpu.memory_space<vmem>>, vector<1x128xf32>
    %103 = vector.broadcast %102 : vector<1x128xf32> to vector<256x128xf32>
    %104 = arith.mulf %101, %103 : vector<256x128xf32>
    %c0_77 = arith.constant 0 : index
    %c0_78 = arith.constant 0 : index
    %105 = vector.load %arg6[%c0_77, %c0_78] : memref<1x128xf32, #tpu.memory_space<vmem>>, vector<1x128xf32>
    %106 = vector.broadcast %105 : vector<1x128xf32> to vector<256x128xf32>
    %107 = arith.addf %104, %106 : vector<256x128xf32>
    %108 = arith.negf %107 : vector<256x128xf32>
    %109 = math.exp %108 : vector<256x128xf32>
    %cst_79 = arith.constant 1.000000e+00 : f32
    %110 = vector.broadcast %cst_79 : f32 to vector<256x128xf32>
    %111 = arith.addf %110, %109 : vector<256x128xf32>
    %112 = arith.divf %110, %111 : vector<256x128xf32>
    %113 = arith.mulf %107, %112 : vector<256x128xf32>
    %c0_80 = arith.constant 0 : index
    %c0_81 = arith.constant 0 : index
    %c0_82 = arith.constant 0 : index
    %114 = vector.load %arg4[%c0_80, %c0_81, %c0_82] : memref<1x256x128xf32, #tpu.memory_space<vmem>>, vector<1x256x128xf32>
    %115 = vector.shape_cast %114 : vector<1x256x128xf32> to vector<256x128xf32>
    %116 = arith.addf %113, %115 : vector<256x128xf32>
    %cst_83 = arith.constant 0.000000e+00 : f32
    %117 = vector.shape_cast %76 : vector<1x128xi1> to vector<1x128xi1>
    %118 = vector.broadcast %117 : vector<1x128xi1> to vector<256x128xi1>
    %119 = vector.broadcast %cst_83 : f32 to vector<256x128xf32>
    %120 = arith.select %118, %116, %119 : vector<256x128xi1>, vector<256x128xf32>
    %c0_84 = arith.constant 0 : index
    %c0_85 = arith.constant 0 : index
    %c0_86 = arith.constant 0 : index
    %121 = vector.load %arg9[%c0_84, %c0_85, %c0_86] : memref<1x256x128xf32, #tpu.memory_space<vmem>>, vector<1x256x128xf32>
    %122 = vector.shape_cast %121 : vector<1x256x128xf32> to vector<256x128xf32>
    %123 = vector.shape_cast %120 : vector<256x128xf32> to vector<1x256x128xf32>
    tpu.vector_store %arg9[%c0_84, %c0_85, %c0_86], %123 {strides = array<i32>} : memref<1x256x128xf32, #tpu.memory_space<vmem>>, vector<1x256x128xf32>,
    return
  }
  func.func @transform_0(%arg0: i32) -> (i32, i32, i32, i32) {
    %c0_i32 = arith.constant 0 : i32
    %c0_i32_0 = arith.constant 0 : i32
    %c0_i32_1 = arith.constant 0 : i32
    %c0_i32_2 = arith.constant 0 : i32
    return %arg0, %c0_i32, %c0_i32_0, %c0_i32_1 : i32, i32, i32, i32
  }
  func.func @transform_1(%arg0: i32) -> (i32, i32, i32) {
    %c0_i32 = arith.constant 0 : i32
    %c0_i32_0 = arith.constant 0 : i32
    %c0_i32_1 = arith.constant 0 : i32
    %c0_i32_2 = arith.constant 0 : i32
    return %c0_i32, %c0_i32_0, %c0_i32_1 : i32, i32, i32
  }
  func.func @transform_2(%arg0: i32) -> (i32, i32) {
    %c0_i32 = arith.constant 0 : i32
    %c0_i32_0 = arith.constant 0 : i32
    %c0_i32_1 = arith.constant 0 : i32
    return %c0_i32, %c0_i32_0 : i32, i32
  }
  func.func @transform_3(%arg0: i32) -> (i32, i32, i32) {
    %c0_i32 = arith.constant 0 : i32
    %c0_i32_0 = arith.constant 0 : i32
    %c0_i32_1 = arith.constant 0 : i32
    return %arg0, %c0_i32, %c0_i32_0 : i32, i32, i32
  }
  func.func @transform_4(%arg0: i32) -> (i32, i32) {
    %c0_i32 = arith.constant 0 : i32
    %c0_i32_0 = arith.constant 0 : i32
    %c0_i32_1 = arith.constant 0 : i32
    return %c0_i32, %c0_i32_0 : i32, i32
  }
  func.func @transform_5(%arg0: i32) -> (i32, i32) {
    %c0_i32 = arith.constant 0 : i32
    %c0_i32_0 = arith.constant 0 : i32
    %c0_i32_1 = arith.constant 0 : i32
    return %c0_i32, %c0_i32_0 : i32, i32
  }
  func.func @transform_6(%arg0: i32) -> (i32, i32) {
    %c0_i32 = arith.constant 0 : i32
    %c0_i32_0 = arith.constant 0 : i32
    %c0_i32_1 = arith.constant 0 : i32
    return %c0_i32, %c0_i32_0 : i32, i32
  }
  func.func @transform_7(%arg0: i32) -> (i32, i32) {
    %c0_i32 = arith.constant 0 : i32
    %c0_i32_0 = arith.constant 0 : i32
    %c0_i32_1 = arith.constant 0 : i32
    return %c0_i32, %c0_i32_0 : i32, i32
  }
  func.func @transform_8(%arg0: i32) -> (i32, i32, i32) {
    %c0_i32 = arith.constant 0 : i32
    %c0_i32_0 = arith.constant 0 : i32
    %c0_i32_1 = arith.constant 0 : i32
    return %arg0, %c0_i32, %c0_i32_0 : i32, i32, i32
  }
}

</mosaic_0001>

<llo_original>
// kernel: residual_block_forward.4
$region0: #{residual_block_forward.4}
  #allocation0 [shape = 'u32[]', space=smem, size = 0x4, offset = 0x4, fixed_abs, tag = 'smem constant byte address 0x4 - core index']
  #allocation1 [shape = 'u32[144,128]{1,0:T(1,128)}', space=vmem, size = 0x12000, scoped, tag = 'internal scratch']
  %s0 = inlined_call_operand.hbm [shape: f32[8,48], index: 0, kind: input, shape index: {}]
  %s1 = inlined_call_operand.hbm [shape: f32[48,128], index: 1, kind: input, shape index: {}]
  %s2 = inlined_call_operand.hbm [shape: f32[1,128], index: 2, kind: input, shape index: {}]
  %s3 = inlined_call_operand.hbm [shape: f32[8,128], index: 3, kind: output, shape index: {}]
  %s4 = sld [smem:[#allocation0]]
  $region34: #{residual_block_forward.4} parent=0
    _
  %s6 = ssub.s32 1, %s4
  %s7 = scalar_select 0, %s6, %s4
  $region1: #{residual_block_forward.4} parent=0
    #allocation2 [shape = 'u8[4096]{0}', space=vmem, size = 0x1000, scoped, tag = 'input window, operand 0, single buffered']
    #allocation3 [shape = 's32[1]{0}', space=sflag, size = 0x4, scoped, tag = 'scoped memory for residual_block_forward.4']
    #allocation4 [shape = 's32[1]{0}', space=sflag, size = 0x4, scoped, tag = 'scoped memory for residual_block_forward.4']
    #allocation5 [shape = 'u8[24576]{0}', space=vmem, size = 0x6000, scoped, tag = 'input window, operand 1, single buffered']
    #allocation6 [shape = 's32[1]{0}', space=sflag, size = 0x4, scoped, tag = 'scoped memory for residual_block_forward.4']
    #allocation7 [shape = 'u8[512]{0}', space=vmem, size = 0x400, scoped, tag = 'input window, operand 2, single buffered']
    #allocation8 [shape = 'u8[4096]{0}', space=vmem, size = 0x1000, scoped, tag = 'output window, operand 0, single buffered']
    %8 = vsyncpa [#allocation3], 0
    %9 = vsyncpa [#allocation6], 0
    %10 = vsyncpa [#allocation4], 0
    // Predicated region
    $region2: #{residual_block_forward.4} parent=1 // pred_check
      _
    $region3: #{residual_block_forward.4} parent=1 // pred_check_branch
      %12 = sbr.rel (0) target = $region5
    $region4: #{residual_block_forward.4} parent=1 // pred_region
      %s14 = ssub.s32 128, 128
      %15 = vsyncadd [#allocation3], %s14
      %s17 = sshll.u32 [#allocation2], 4
      %s18 = int_to_ptr.vmem [resolvable:$true] %s17
      %20 = dma.hbm_to_vmem [thread:$0]  %s0, 128, %s18, [#allocation3]
    $region5: #{residual_block_forward.4} parent=1 // pred_fallthru
      _
    // Predicated region
    $region6: #{residual_block_forward.4} parent=1 // pred_check
      _
    $region7: #{residual_block_forward.4} parent=1 // pred_check_branch
      %22 = sbr.rel (0) target = $region9
    $region8: #{residual_block_forward.4} parent=1 // pred_region
      %s24 = ssub.s32 768, 768
      %25 = vsyncadd [#allocation6], %s24
      %s26 = sshll.u32 [#allocation5], 4
      %s27 = int_to_ptr.vmem [resolvable:$true] %s26
      %32 = dma.hbm_to_vmem [thread:$0]  %s1, 768, %s27, [#allocation6], 128, 128, 8
    $region9: #{residual_block_forward.4} parent=1 // pred_fallthru
      _
    // Predicated region
    $region10: #{residual_block_forward.4} parent=1 // pred_check
      _
    $region11: #{residual_block_forward.4} parent=1 // pred_check_branch
      %34 = sbr.rel (0) target = $region13
    $region12: #{residual_block_forward.4} parent=1 // pred_region
      %s36 = ssub.s32 16, 16
      %37 = vsyncadd [#allocation6], %s36
      %s39 = sshll.u32 [#allocation7], 4
      %s40 = int_to_ptr.vmem [resolvable:$true] %s39
      %42 = dma.hbm_to_vmem [thread:$0]  %s2, 16, %s40, [#allocation6]
    $region13: #{residual_block_forward.4} parent=1 // pred_fallthru
      _
    // Predicated region
    $region14: #{residual_block_forward.4} parent=1 // pred_check
      _
    $region15: #{residual_block_forward.4} parent=1 // pred_check_branch
      %44 = sbr.rel (0) target = $region17
    $region16: #{residual_block_forward.4} parent=1 // pred_region
      %45 = dma.done [#allocation3], 128
    $region17: #{residual_block_forward.4} parent=1 // pred_fallthru
      _
    // Predicated region
    $region18: #{residual_block_forward.4} parent=1 // pred_check
      _
    $region19: #{residual_block_forward.4} parent=1 // pred_check_branch
      %47 = sbr.rel (0) target = $region21
    $region20: #{residual_block_forward.4} parent=1 // pred_region
      %48 = dma.done [#allocation6], 768
    $region21: #{residual_block_forward.4} parent=1 // pred_fallthru
      _
    // Predicated region
    $region22: #{residual_block_forward.4} parent=1 // pred_check
      _
    $region23: #{residual_block_forward.4} parent=1 // pred_check_branch
      %50 = sbr.rel (0) target = $region25
    $region24: #{residual_block_forward.4} parent=1 // pred_region
      %51 = dma.done [#allocation6], 16
    $region25: #{residual_block_forward.4} parent=1 // pred_fallthru
      _
    %v52 = vld [vmem:[#allocation2] sm:$0xff]
    %v53 = vld [vmem:[#allocation5] sm:$0xff]
    %v54 = vld [vmem:[#allocation5 + $0x8] sm:$0xff]
    %v55 = vld [vmem:[#allocation5 + $0x10] sm:$0xff]
    %v56 = vld [vmem:[#allocation5 + $0x18] sm:$0xff]
    %v57 = vld [vmem:[#allocation5 + $0x20] sm:$0xff]
    %v58 = vld [vmem:[#allocation5 + $0x28] sm:$0xff]
    %v59 = vld [vmem:[#allocation7] sm:$0x1]
    %v61 = vlaneseq
    %v62 = vshrl.u32 %v61, 7
    %v63 = vsub.s32 0, %v62
    %v64 = vrot.slane %v59, %v63
    %vm66 = vcmask 392192
    %v68 = vsel %vm66, %v52, 0
    %70 = vmatprep.subr.mxu0 0.0
    %71 = vmatpush1.msra.mxu0 %v53
    %72 = vmatprep.subr.mxu0 0.0
    %73 = vmatpush1.msra.mxu0 %v54
    %74 = vmatprep.subr.mxu0 0.0
    %75 = vmatpush1.msra.mxu0 %v55
    %76 = vmatprep.subr.mxu0 0.0
    %77 = vmatpush1.msra.mxu0 %v56
    %78 = vmatprep.subr.mxu0 0.0
    %79 = vmatpush1.msra.mxu0 %v57
    %80 = vmatprep.subr.mxu0 0.0
    %81 = vmatpush1.msra.mxu0 %v58
    %82 = vmatprep.subr.mxu0 0.0
    %83 = vmatpush1.msra.mxu0 0.0
    %84 = vmatprep.subr.mxu0 0.0
    %85 = vmatpush1.msra.mxu0 0.0
    %86 = vmatprep.subr.mxu0 0.0
    %87 = vmatpush1.msra.mxu0 0.0
    %88 = vmatprep.subr.mxu0 0.0
    %89 = vmatpush1.msra.mxu0 0.0
    %90 = vmatprep.subr.mxu0 0.0
    %91 = vmatpush1.msra.mxu0 0.0
    %92 = vmatprep.subr.mxu0 0.0
    %93 = vmatpush1.msra.mxu0 0.0
    %94 = vmatprep.subr.mxu0 0.0
    %95 = vmatpush1.msra.mxu0 0.0
    %96 = vmatprep.subr.mxu0 0.0
    %97 = vmatpush1.msra.mxu0 0.0
    %98 = vmatprep.subr.mxu0 0.0
    %99 = vmatpush1.msra.mxu0 0.0
    %100 = vmatprep.subr.mxu0 0.0
    %101 = vmatpush1.msra.mxu0 0.0
    %102 = vmatprep.subr.mxu0 0.0
    %103 = vmatpush1.msra.mxu0 0.0
    %104 = vmatprep.subr.mxu0 0.0
    %105 = vmatpush1.msra.mxu0 0.0
    %106 = vmatprep.subr.mxu0 0.0
    %107 = vmatpush1.msra.mxu0 0.0
    %108 = vmatprep.subr.mxu0 0.0
    %109 = vmatpush1.msra.mxu0 0.0
    %110 = vmatprep.subr.mxu0 0.0
    %111 = vmatpush1.msra.mxu0 0.0
    %112 = vmatprep.subr.mxu0 0.0
    %113 = vmatpush1.msra.mxu0 0.0
    %114 = vmatprep.subr.mxu0 0.0
    %115 = vmatpush1.msra.mxu0 0.0
    %116 = vmatprep.subr.mxu0 0.0
    %117 = vmatpush1.msra.mxu0 0.0
    %118 = vmatprep.subr.mxu0 0.0
    %119 = vmatpush1.msra.mxu0 0.0
    %120 = vmatprep.subr.mxu0 0.0
    %121 = vmatpush1.msra.mxu0 0.0
    %122 = vmatprep.subr.mxu0 0.0
    %123 = vmatpush1.msra.mxu0 0.0
    %124 = vmatprep.subr.mxu0 0.0
    %125 = vmatpush1.msra.mxu0 0.0
    %126 = vmatprep.subr.mxu0 0.0
    %127 = vmatpush1.msra.mxu0 0.0
    %128 = vmatprep.subr.mxu0 0.0
    %129 = vmatpush1.msra.mxu0 0.0
    %130 = vmatprep.subr.mxu0 0.0
    %131 = vmatpush1.msra.mxu0 0.0
    %132 = vmatprep.subr.mxu0 0.0
    %133 = vmatpush1.msra.mxu0 0.0
    %134 = vmatprep.mubr.f32.mxu0 0.0
    %135 = vmatmul.mubr.f32.gmra.mrb[0].mxu0 %v68
    %v136 = vpop.f32.mrb[0].mxu0
    %v137 = vadd.f32 %v64, %v136
    %v138 = vpop.f32.mrb[0].mxu0
    %139 = vdwg.mxu0
    %140 = vst [vmem:[#allocation8] sm:$0xff] %v137
    // Predicated region
    $region26: #{residual_block_forward.4} parent=1 // pred_check
      _
    $region27: #{residual_block_forward.4} parent=1 // pred_check_branch
      %142 = sbr.rel (0) target = $region29
    $region28: #{residual_block_forward.4} parent=1 // pred_region
      %s144 = ssub.s32 128, 128
      %145 = vsyncadd [#allocation4], %s144
      %s147 = sshll.u32 [#allocation8], 4
      %s148 = int_to_ptr.vmem [resolvable:$true] %s147
      %150 = dma.vmem_to_hbm [thread:$0]  %s148, 128, %s3, [#allocation4]
    $region29: #{residual_block_forward.4} parent=1 // pred_fallthru
      _
    // Predicated region
    $region30: #{residual_block_forward.4} parent=1 // pred_check
      _
    $region31: #{residual_block_forward.4} parent=1 // pred_check_branch
      %152 = sbr.rel (0) target = $region33
    $region32: #{residual_block_forward.4} parent=1 // pred_region
      %153 = dma.done [#allocation4], 128
    $region33: #{residual_block_forward.4} parent=1 // pred_fallthru
      _
    %154 = vsyncpa [#allocation3], 1
    %155 = vsyncpa [#allocation6], 1
    %156 = vsyncpa [#allocation4], 1

// kernel: residual_block_forward.6
$region0: #{residual_block_forward.6}
  #allocation0 [shape = 'u32[]', space=smem, size = 0x4, offset = 0x4, fixed_abs, tag = 'smem constant byte address 0x4 - core index']
  #allocation1 [shape = 'u32[144,128]{1,0:T(1,128)}', space=vmem, size = 0x12000, scoped, tag = 'internal scratch']
  %s0 = inlined_call_operand.hbm [shape: f32[512,4], index: 0, kind: input, shape index: {}]
  %s1 = inlined_call_operand.hbm [shape: f32[4,128], index: 1, kind: input, shape index: {}]
  %s2 = inlined_call_operand.hbm [shape: f32[1,128], index: 2, kind: input, shape index: {}]
  %s3 = inlined_call_operand.hbm [shape: f32[512,128], index: 3, kind: output, shape index: {}]
  %s4 = sld [smem:[#allocation0]]
  $region34: #{residual_block_forward.6} parent=0
    _
  %s6 = ssub.s32 1, %s4
  %s7 = scalar_select 0, %s6, %s4
  $region1: #{residual_block_forward.6} parent=0
    #allocation2 [shape = 'u8[262144]{0}', space=vmem, size = 0x40000, scoped, tag = 'input window, operand 0, single buffered']
    #allocation3 [shape = 's32[1]{0}', space=sflag, size = 0x4, scoped, tag = 'scoped memory for residual_block_forward.6']
    #allocation4 [shape = 's32[1]{0}', space=sflag, size = 0x4, scoped, tag = 'scoped memory for residual_block_forward.6']
    #allocation5 [shape = 'u8[2048]{0}', space=vmem, size = 0x800, scoped, tag = 'input window, operand 1, single buffered']
    #allocation6 [shape = 's32[1]{0}', space=sflag, size = 0x4, scoped, tag = 'scoped memory for residual_block_forward.6']
    #allocation7 [shape = 'u8[512]{0}', space=vmem, size = 0x400, scoped, tag = 'input window, operand 2, single buffered']
    #allocation8 [shape = 'u8[262144]{0}', space=vmem, size = 0x40000, scoped, tag = 'output window, operand 0, single buffered']
    %8 = vsyncpa [#allocation3], 0
    %9 = vsyncpa [#allocation6], 0
    %10 = vsyncpa [#allocation4], 0
    // Predicated region
    $region2: #{residual_block_forward.6} parent=1 // pred_check
      _
    $region3: #{residual_block_forward.6} parent=1 // pred_check_branch
      %12 = sbr.rel (0) target = $region5
    $region4: #{residual_block_forward.6} parent=1 // pred_region
      %s14 = ssub.s32 8192, 8192
      %15 = vsyncadd [#allocation3], %s14
      %s16 = sshll.u32 [#allocation2], 4
      %s17 = int_to_ptr.vmem [resolvable:$true] %s16
      %22 = dma.hbm_to_vmem [thread:$0]  %s0, 8192, %s17, [#allocation3], 128, 128, 8
    $region5: #{residual_block_forward.6} parent=1 // pred_fallthru
      _
    // Predicated region
    $region6: #{residual_block_forward.6} parent=1 // pred_check
      _
    $region7: #{residual_block_forward.6} parent=1 // pred_check_branch
      %24 = sbr.rel (0) target = $region9
    $region8: #{residual_block_forward.6} parent=1 // pred_region
      %s26 = ssub.s32 64, 64
      %27 = vsyncadd [#allocation6], %s26
      %s29 = sshll.u32 [#allocation5], 4
      %s30 = int_to_ptr.vmem [resolvable:$true] %s29
      %32 = dma.hbm_to_vmem [thread:$0]  %s1, 64, %s30, [#allocation6]
    $region9: #{residual_block_forward.6} parent=1 // pred_fallthru
      _
    // Predicated region
    $region10: #{residual_block_forward.6} parent=1 // pred_check
      _
    $region11: #{residual_block_forward.6} parent=1 // pred_check_branch
      %34 = sbr.rel (0) target = $region13
    $region12: #{residual_block_forward.6} parent=1 // pred_region
      %s36 = ssub.s32 16, 16
      %37 = vsyncadd [#allocation6], %s36
      %s39 = sshll.u32 [#allocation7], 4
      %s40 = int_to_ptr.vmem [resolvable:$true] %s39
      %42 = dma.hbm_to_vmem [thread:$0]  %s2, 16, %s40, [#allocation6]
    $region13: #{residual_block_forward.6} parent=1 // pred_fallthru
      _
    // Predicated region
    $region14: #{residual_block_forward.6} parent=1 // pred_check
      _
    $region15: #{residual_block_forward.6} parent=1 // pred_check_branch
      %44 = sbr.rel (0) target = $region17
    $region16: #{residual_block_forward.6} parent=1 // pred_region
      %45 = dma.done [#allocation3], 8192
    $region17: #{residual_block_forward.6} parent=1 // pred_fallthru
      _
    // Predicated region
    $region18: #{residual_block_forward.6} parent=1 // pred_check
      _
    $region19: #{residual_block_forward.6} parent=1 // pred_check_branch
      %47 = sbr.rel (0) target = $region21
    $region20: #{residual_block_forward.6} parent=1 // pred_region
      %48 = dma.done [#allocation6], 64
    $region21: #{residual_block_forward.6} parent=1 // pred_fallthru
      _
    // Predicated region
    $region22: #{residual_block_forward.6} parent=1 // pred_check
      _
    $region23: #{residual_block_forward.6} parent=1 // pred_check_branch
      %50 = sbr.rel (0) target = $region25
    $region24: #{residual_block_forward.6} parent=1 // pred_region
      %51 = dma.done [#allocation6], 16
    $region25: #{residual_block_forward.6} parent=1 // pred_fallthru
      _
    %v52 = vld [vmem:[#allocation2] sm:$0xff]
    %v53 = vld [vmem:[#allocation2 + $0x8] sm:$0xff]
    %v54 = vld [vmem:[#allocation2 + $0x10] sm:$0xff]
    %v55 = vld [vmem:[#allocation2 + $0x18] sm:$0xff]
    %v56 = vld [vmem:[#allocation2 + $0x20] sm:$0xff]
    %v57 = vld [vmem:[#allocation2 + $0x28] sm:$0xff]
    %v58 = vld [vmem:[#allocation2 + $0x30] sm:$0xff]
    %v59 = vld [vmem:[#allocation2 + $0x38] sm:$0xff]
    %v60 = vld [vmem:[#allocation2 + $0x40] sm:$0xff]
    %v61 = vld [vmem:[#allocation2 + $0x48] sm:$0xff]
    %v62 = vld [vmem:[#allocation2 + $0x50] sm:$0xff]
    %v63 = vld [vmem:[#allocation2 + $0x58] sm:$0xff]
    %v64 = vld [vmem:[#allocation2 + $0x60] sm:$0xff]
    %v65 = vld [vmem:[#allocation2 + $0x68] sm:$0xff]
    %v66 = vld [vmem:[#allocation2 + $0x70] sm:$0xff]
    %v67 = vld [vmem:[#allocation2 + $0x78] sm:$0xff]
    %v68 = vld [vmem:[#allocation2 + $0x80] sm:$0xff]
    %v69 = vld [vmem:[#allocation2 + $0x88] sm:$0xff]
    %v70 = vld [vmem:[#allocation2 + $0x90] sm:$0xff]
    %v71 = vld [vmem:[#allocation2 + $0x98] sm:$0xff]
    %v72 = vld [vmem:[#allocation2 + $0xa0] sm:$0xff]
    %v73 = vld [vmem:[#allocation2 + $0xa8] sm:$0xff]
    %v74 = vld [vmem:[#allocation2 + $0xb0] sm:$0xff]
    %v75 = vld [vmem:[#allocation2 + $0xb8] sm:$0xff]
    %v76 = vld [vmem:[#allocation2 + $0xc0] sm:$0xff]
    %v77 = vld [vmem:[#allocation2 + $0xc8] sm:$0xff]
    %v78 = vld [vmem:[#allocation2 + $0xd0] sm:$0xff]
    %v79 = vld [vmem:[#allocation2 + $0xd8] sm:$0xff]
    %v80 = vld [vmem:[#allocation2 + $0xe0] sm:$0xff]
    %v81 = vld [vmem:[#allocation2 + $0xe8] sm:$0xff]
    %v82 = vld [vmem:[#allocation2 + $0xf0] sm:$0xff]
    %v83 = vld [vmem:[#allocation2 + $0xf8] sm:$0xff]
    %v84 = vld [vmem:[#allocation2 + $0x100] sm:$0xff]
    %v85 = vld [vmem:[#allocation2 + $0x108] sm:$0xff]
    %v86 = vld [vmem:[#allocation2 + $0x110] sm:$0xff]
    %v87 = vld [vmem:[#allocation2 + $0x118] sm:$0xff]
    %v88 = vld [vmem:[#allocation2 + $0x120] sm:$0xff]
    %v89 = vld [vmem:[#allocation2 + $0x128] sm:$0xff]
    %v90 = vld [vmem:[#allocation2 + $0x130] sm:$0xff]
    %v91 = vld [vmem:[#allocation2 + $0x138] sm:$0xff]
    %v92 = vld [vmem:[#allocation2 + $0x140] sm:$0xff]
    %v93 = vld [vmem:[#allocation2 + $0x148] sm:$0xff]
    %v94 = vld [vmem:[#allocation2 + $0x150] sm:$0xff]
    %v95 = vld [vmem:[#allocation2 + $0x158] sm:$0xff]
    %v96 = vld [vmem:[#allocation2 + $0x160] sm:$0xff]
    %v97 = vld [vmem:[#allocation2 + $0x168] sm:$0xff]
    %v98 = vld [vmem:[#allocation2 + $0x170] sm:$0xff]
    %v99 = vld [vmem:[#allocation2 + $0x178] sm:$0xff]
    %v100 = vld [vmem:[#allocation2 + $0x180] sm:$0xff]
    %v101 = vld [vmem:[#allocation2 + $0x188] sm:$0xff]
    %v102 = vld [vmem:[#allocation2 + $0x190] sm:$0xff]
    %v103 = vld [vmem:[#allocation2 + $0x198] sm:$0xff]
    %v104 = vld [vmem:[#allocation2 + $0x1a0] sm:$0xff]
    %v105 = vld [vmem:[#allocation2 + $0x1a8] sm:$0xff]
    %v106 = vld [vmem:[#allocation2 + $0x1b0] sm:$0xff]
    %v107 = vld [vmem:[#allocation2 + $0x1b8] sm:$0xff]
    %v108 = vld [vmem:[#allocation2 + $0x1c0] sm:$0xff]
    %v109 = vld [vmem:[#allocation2 + $0x1c8] sm:$0xff]
    %v110 = vld [vmem:[#allocation2 + $0x1d0] sm:$0xff]
    %v111 = vld [vmem:[#allocation2 + $0x1d8] sm:$0xff]
    %v112 = vld [vmem:[#allocation2 + $0x1e0] sm:$0xff]
    %v113 = vld [vmem:[#allocation2 + $0x1e8] sm:$0xff]
    %v114 = vld [vmem:[#allocation2 + $0x1f0] sm:$0xff]
    %v115 = vld [vmem:[#allocation2 + $0x1f8] sm:$0xff]
    %v116 = vld [vmem:[#allocation5] sm:$0xf]
    %v117 = vld [vmem:[#allocation7] sm:$0x1]
    %v119 = vlaneseq
    %v120 = vshrl.u32 %v119, 7
    %v121 = vsub.s32 0, %v120
    %v122 = vrot.slane %v117, %v121
    %vm124 = vcmask 31744
    %v126 = vsel %vm124, %v52, 0
    %v129 = vsel %vm124, %v53, 0
    %v132 = vsel %vm124, %v54, 0
    %v135 = vsel %vm124, %v55, 0
    %v138 = vsel %vm124, %v56, 0
    %v141 = vsel %vm124, %v57, 0
    %v144 = vsel %vm124, %v58, 0
    %v147 = vsel %vm124, %v59, 0
    %v150 = vsel %vm124, %v60, 0
    %v153 = vsel %vm124, %v61, 0
    %v156 = vsel %vm124, %v62, 0
    %v159 = vsel %vm124, %v63, 0
    %v162 = vsel %vm124, %v64, 0
    %v165 = vsel %vm124, %v65, 0
    %v168 = vsel %vm124, %v66, 0
    %v171 = vsel %vm124, %v67, 0
    %v174 = vsel %vm124, %v68, 0
    %v177 = vsel %vm124, %v69, 0
    %v180 = vsel %vm124, %v70, 0
    %v183 = vsel %vm124, %v71, 0
    %v186 = vsel %vm124, %v72, 0
    %v189 = vsel %vm124, %v73, 0
    %v192 = vsel %vm124, %v74, 0
    %v195 = vsel %vm124, %v75, 0
    %v198 = vsel %vm124, %v76, 0
    %v201 = vsel %vm124, %v77, 0
    %v204 = vsel %vm124, %v78, 0
    %v207 = vsel %vm124, %v79, 0
    %v210 = vsel %vm124, %v80, 0
    %v213 = vsel %vm124, %v81, 0
    %v216 = vsel %vm124, %v82, 0
    %v219 = vsel %vm124, %v83, 0
    %v222 = vsel %vm124, %v84, 0
    %v225 = vsel %vm124, %v85, 0
    %v228 = vsel %vm124, %v86, 0
    %v231 = vsel %vm124, %v87, 0
    %v234 = vsel %vm124, %v88, 0
    %v237 = vsel %vm124, %v89, 0
    %v240 = vsel %vm124, %v90, 0
    %v243 = vsel %vm124, %v91, 0
    %v246 = vsel %vm124, %v92, 0
    %v249 = vsel %vm124, %v93, 0
    %v252 = vsel %vm124, %v94, 0
    %v255 = vsel %vm124, %v95, 0
    %v258 = vsel %vm124, %v96, 0
    %v261 = vsel %vm124, %v97, 0
    %v264 = vsel %vm124, %v98, 0
    %v267 = vsel %vm124, %v99, 0
    %v270 = vsel %vm124, %v100, 0
    %v273 = vsel %vm124, %v101, 0
    %v276 = vsel %vm124, %v102, 0
    %v279 = vsel %vm124, %v103, 0
    %v282 = vsel %vm124, %v104, 0
    %v285 = vsel %vm124, %v105, 0
    %v288 = vsel %vm124, %v106, 0
    %v291 = vsel %vm124, %v107, 0
    %v294 = vsel %vm124, %v108, 0
    %v297 = vsel %vm124, %v109, 0
    %v300 = vsel %vm124, %v110, 0
    %v303 = vsel %vm124, %v111, 0
    %v306 = vsel %vm124, %v112, 0
    %v309 = vsel %vm124, %v113, 0
    %v312 = vsel %vm124, %v114, 0
    %v315 = vsel %vm124, %v115, 0
    %vm317 = vcmask 1043456
    %v319 = vsel %vm317, %v116, 0
    %321 = vmatprep.subr.mxu0 0.0
    %322 = vmatpush1.msra.mxu0 %v319
    %323 = vmatprep.subr.mxu0 0.0
    %324 = vmatpush1.msra.mxu0 0.0
    %325 = vmatprep.subr.mxu0 0.0
    %326 = vmatpush1.msra.mxu0 0.0
    %327 = vmatprep.subr.mxu0 0.0
    %328 = vmatpush1.msra.mxu0 0.0
    %329 = vmatprep.subr.mxu0 0.0
    %330 = vmatpush1.msra.mxu0 0.0
    %331 = vmatprep.subr.mxu0 0.0
    %332 = vmatpush1.msra.mxu0 0.0
    %333 = vmatprep.subr.mxu0 0.0
    %334 = vmatpush1.msra.mxu0 0.0
    %335 = vmatprep.subr.mxu0 0.0
    %336 = vmatpush1.msra.mxu0 0.0
    %337 = vmatprep.subr.mxu0 0.0
    %338 = vmatpush1.msra.mxu0 0.0
    %339 = vmatprep.subr.mxu0 0.0
    %340 = vmatpush1.msra.mxu0 0.0
    %341 = vmatprep.subr.mxu0 0.0
    %342 = vmatpush1.msra.mxu0 0.0
    %343 = vmatprep.subr.mxu0 0.0
    %344 = vmatpush1.msra.mxu0 0.0
    %345 = vmatprep.subr.mxu0 0.0
    %346 = vmatpush1.msra.mxu0 0.0
    %347 = vmatprep.subr.mxu0 0.0
    %348 = vmatpush1.msra.mxu0 0.0
    %349 = vmatprep.subr.mxu0 0.0
    %350 = vmatpush1.msra.mxu0 0.0
    %351 = vmatprep.subr.mxu0 0.0
    %352 = vmatpush1.msra.mxu0 0.0
    %353 = vmatprep.subr.mxu0 0.0
    %354 = vmatpush1.msra.mxu0 0.0
    %355 = vmatprep.subr.mxu0 0.0
    %356 = vmatpush1.msra.mxu0 0.0
    %357 = vmatprep.subr.mxu0 0.0
    %358 = vmatpush1.msra.mxu0 0.0
    %359 = vmatprep.subr.mxu0 0.0
    %360 = vmatpush1.msra.mxu0 0.0
    %361 = vmatprep.subr.mxu0 0.0
    %362 = vmatpush1.msra.mxu0 0.0
    %363 = vmatprep.subr.mxu0 0.0
    %364 = vmatpush1.msra.mxu0 0.0
    %365 = vmatprep.subr.mxu0 0.0
    %366 = vmatpush1.msra.mxu0 0.0
    %367 = vmatprep.subr.mxu0 0.0
    %368 = vmatpush1.msra.mxu0 0.0
    %369 = vmatprep.subr.mxu0 0.0
    %370 = vmatpush1.msra.mxu0 0.0
    %371 = vmatprep.subr.mxu0 0.0
    %372 = vmatpush1.msra.mxu0 0.0
    %373 = vmatprep.subr.mxu0 0.0
    %374 = vmatpush1.msra.mxu0 0.0
    %375 = vmatprep.subr.mxu0 0.0
    %376 = vmatpush1.msra.mxu0 0.0
    %377 = vmatprep.subr.mxu0 0.0
    %378 = vmatpush1.msra.mxu0 0.0
    %379 = vmatprep.subr.mxu0 0.0
    %380 = vmatpush1.msra.mxu0 0.0
    %381 = vmatprep.subr.mxu0 0.0
    %382 = vmatpush1.msra.mxu0 0.0
    %383 = vmatprep.subr.mxu0 0.0
    %384 = vmatpush1.msra.mxu0 0.0
    %385 = vmatprep.mubr.f32.mxu0 0.0
    %386 = vmatmul.mubr.f32.gmra.mrb[0].mxu0 %v126
    %v387 = vpop.f32.mrb[0].mxu0
    %v388 = vadd.f32 %v122, %v387
    %v389 = vpop.f32.mrb[0].mxu0
    %390 = vmatprep.mubr.f32.mxu0 0.0
    %391 = vmatmul.mubr.f32.gmra.mrb[0].mxu0 %v129
    %v392 = vpop.f32.mrb[0].mxu0
    %v393 = vadd.f32 %v122, %v392
    %v394 = vpop.f32.mrb[0].mxu0
    %395 = vmatprep.mubr.f32.mxu0 0.0
    %396 = vmatmul.mubr.f32.gmra.mrb[0].mxu0 %v132
    %v397 = vpop.f32.mrb[0].mxu0
    %v398 = vadd.f32 %v122, %v397
    %v399 = vpop.f32.mrb[0].mxu0
    %400 = vmatprep.mubr.f32.mxu0 0.0
    %401 = vmatmul.mubr.f32.gmra.mrb[0].mxu0 %v135
    %v402 = vpop.f32.mrb[0].mxu0
    %v403 = vadd.f32 %v122, %v402
    %v404 = vpop.f32.mrb[0].mxu0
    %405 = vmatprep.mubr.f32.mxu0 0.0
    %406 = vmatmul.mubr.f32.gmra.mrb[0].mxu0 %v138
    %v407 = vpop.f32.mrb[0].mxu0
    %v408 = vadd.f32 %v122, %v407
    %v409 = vpop.f32.mrb[0].mxu0
    %410 = vmatprep.mubr.f32.mxu0 0.0
    %411 = vmatmul.mubr.f32.gmra.mrb[0].mxu0 %v141
    %v412 = vpop.f32.mrb[0].mxu0
    %v413 = vadd.f32 %v122, %v412
    %v414 = vpop.f32.mrb[0].mxu0
    %415 = vmatprep.mubr.f32.mxu0 0.0
    %416 = vmatmul.mubr.f32.gmra.mrb[0].mxu0 %v144
    %v417 = vpop.f32.mrb[0].mxu0
    %v418 = vadd.f32 %v122, %v417
    %v419 = vpop.f32.mrb[0].mxu0
    %420 = vmatprep.mubr.f32.mxu0 0.0
    %421 = vmatmul.mubr.f32.gmra.mrb[0].mxu0 %v147
    %v422 = vpop.f32.mrb[0].mxu0
    %v423 = vadd.f32 %v122, %v422
    %v424 = vpop.f32.mrb[0].mxu0
    %425 = vmatprep.mubr.f32.mxu0 0.0
    %426 = vmatmul.mubr.f32.gmra.mrb[0].mxu0 %v150
    %v427 = vpop.f32.mrb[0].mxu0
    %v428 = vadd.f32 %v122, %v427
    %v429 = vpop.f32.mrb[0].mxu0
    %430 = vmatprep.mubr.f32.mxu0 0.0
    %431 = vmatmul.mubr.f32.gmra.mrb[0].mxu0 %v153
    %v432 = vpop.f32.mrb[0].mxu0
    %v433 = vadd.f32 %v122, %v432
    %v434 = vpop.f32.mrb[0].mxu0
    %435 = vmatprep.mubr.f32.mxu0 0.0
    %436 = vmatmul.mubr.f32.gmra.mrb[0].mxu0 %v156
    %v437 = vpop.f32.mrb[0].mxu0
    %v438 = vadd.f32 %v122, %v437
    %v439 = vpop.f32.mrb[0].mxu0
    %440 = vmatprep.mubr.f32.mxu0 0.0
    %441 = vmatmul.mubr.f32.gmra.mrb[0].mxu0 %v159
    %v442 = vpop.f32.mrb[0].mxu0
    %v443 = vadd.f32 %v122, %v442
    %v444 = vpop.f32.mrb[0].mxu0
    %445 = vmatprep.mubr.f32.mxu0 0.0
    %446 = vmatmul.mubr.f32.gmra.mrb[0].mxu0 %v162
    %v447 = vpop.f32.mrb[0].mxu0
    %v448 = vadd.f32 %v122, %v447
    %v449 = vpop.f32.mrb[0].mxu0
    %450 = vmatprep.mubr.f32.mxu0 0.0
    %451 = vmatmul.mubr.f32.gmra.mrb[0].mxu0 %v165
    %v452 = vpop.f32.mrb[0].mxu0
    %v453 = vadd.f32 %v122, %v452
    %v454 = vpop.f32.mrb[0].mxu0
    %455 = vmatprep.mubr.f32.mxu0 0.0
    %456 = vmatmul.mubr.f32.gmra.mrb[0].mxu0 %v168
    %v457 = vpop.f32.mrb[0].mxu0
    %v458 = vadd.f32 %v122, %v457
    %v459 = vpop.f32.mrb[0].mxu0
    %460 = vmatprep.mubr.f32.mxu0 0.0
    %461 = vmatmul.mubr.f32.gmra.mrb[0].mxu0 %v171
    %v462 = vpop.f32.mrb[0].mxu0
    %v463 = vadd.f32 %v122, %v462
    %v464 = vpop.f32.mrb[0].mxu0
    %465 = vmatprep.mubr.f32.mxu0 0.0
    %466 = vmatmul.mubr.f32.gmra.mrb[0].mxu0 %v174
    %v467 = vpop.f32.mrb[0].mxu0
    %v468 = vadd.f32 %v122, %v467
    %v469 = vpop.f32.mrb[0].mxu0
    %470 = vmatprep.mubr.f32.mxu0 0.0
    %471 = vmatmul.mubr.f32.gmra.mrb[0].mxu0 %v177
    %v472 = vpop.f32.mrb[0].mxu0
    %v473 = vadd.f32 %v122, %v472
    %v474 = vpop.f32.mrb[0].mxu0
    %475 = vmatprep.mubr.f32.mxu0 0.0
    %476 = vmatmul.mubr.f32.gmra.mrb[0].mxu0 %v180
    %v477 = vpop.f32.mrb[0].mxu0
    %v478 = vadd.f32 %v122, %v477
    %v479 = vpop.f32.mrb[0].mxu0
    %480 = vmatprep.mubr.f32.mxu0 0.0
    %481 = vmatmul.mubr.f32.gmra.mrb[0].mxu0 %v183
    %v482 = vpop.f32.mrb[0].mxu0
    %v483 = vadd.f32 %v122, %v482
    %v484 = vpop.f32.mrb[0].mxu0
    %485 = vmatprep.mubr.f32.mxu0 0.0
    %486 = vmatmul.mubr.f32.gmra.mrb[0].mxu0 %v186
    %v487 = vpop.f32.mrb[0].mxu0
    %v488 = vadd.f32 %v122, %v487
    %v489 = vpop.f32.mrb[0].mxu0
    %490 = vmatprep.mubr.f32.mxu0 0.0
    %491 = vmatmul.mubr.f32.gmra.mrb[0].mxu0 %v189
    %v492 = vpop.f32.mrb[0].mxu0
    %v493 = vadd.f32 %v122, %v492
    %v494 = vpop.f32.mrb[0].mxu0
    %495 = vmatprep.mubr.f32.mxu0 0.0
    %496 = vmatmul.mubr.f32.gmra.mrb[0].mxu0 %v192
    %v497 = vpop.f32.mrb[0].mxu0
    %v498 = vadd.f32 %v122, %v497
    %v499 = vpop.f32.mrb[0].mxu0
    %500 = vmatprep.mubr.f32.mxu0 0.0
    %501 = vmatmul.mubr.f32.gmra.mrb[0].mxu0 %v195
    %v502 = vpop.f32.mrb[0].mxu0
    %v503 = vadd.f32 %v122, %v502
    %v504 = vpop.f32.mrb[0].mxu0
    %505 = vmatprep.mubr.f32.mxu0 0.0
    %506 = vmatmul.mubr.f32.gmra.mrb[0].mxu0 %v198
    %v507 = vpop.f32.mrb[0].mxu0
    %v508 = vadd.f32 %v122, %v507
    %v509 = vpop.f32.mrb[0].mxu0
    %510 = vmatprep.mubr.f32.mxu0 0.0
    %511 = vmatmul.mubr.f32.gmra.mrb[0].mxu0 %v201
    %v512 = vpop.f32.mrb[0].mxu0
    %v513 = vadd.f32 %v122, %v512
    %v514 = vpop.f32.mrb[0].mxu0
    %515 = vmatprep.mubr.f32.mxu0 0.0
    %516 = vmatmul.mubr.f32.gmra.mrb[0].mxu0 %v204
    %v517 = vpop.f32.mrb[0].mxu0
    %v518 = vadd.f32 %v122, %v517
    %v519 = vpop.f32.mrb[0].mxu0
    %520 = vmatprep.mubr.f32.mxu0 0.0
    %521 = vmatmul.mubr.f32.gmra.mrb[0].mxu0 %v207
    %v522 = vpop.f32.mrb[0].mxu0
    %v523 = vadd.f32 %v122, %v522
    %v524 = vpop.f32.mrb[0].mxu0
    %525 = vmatprep.mubr.f32.mxu0 0.0
    %526 = vmatmul.mubr.f32.gmra.mrb[0].mxu0 %v210
    %v527 = vpop.f32.mrb[0].mxu0
    %v528 = vadd.f32 %v122, %v527
    %v529 = vpop.f32.mrb[0].mxu0
    %530 = vmatprep.mubr.f32.mxu0 0.0
    %531 = vmatmul.mubr.f32.gmra.mrb[0].mxu0 %v213
    %v532 = vpop.f32.mrb[0].mxu0
    %v533 = vadd.f32 %v122, %v532
    %v534 = vpop.f32.mrb[0].mxu0
    %535 = vmatprep.mubr.f32.mxu0 0.0
    %536 = vmatmul.mubr.f32.gmra.mrb[0].mxu0 %v216
    %v537 = vpop.f32.mrb[0].mxu0
    %v538 = vadd.f32 %v122, %v537
    %v539 = vpop.f32.mrb[0].mxu0
    %540 = vmatprep.mubr.f32.mxu0 0.0
    %541 = vmatmul.mubr.f32.gmra.mrb[0].mxu0 %v219
    %v542 = vpop.f32.mrb[0].mxu0
    %v543 = vadd.f32 %v122, %v542
    %v544 = vpop.f32.mrb[0].mxu0
    %545 = vmatprep.mubr.f32.mxu0 0.0
    %546 = vmatmul.mubr.f32.gmra.mrb[0].mxu0 %v222
    %v547 = vpop.f32.mrb[0].mxu0
    %v548 = vadd.f32 %v122, %v547
    %v549 = vpop.f32.mrb[0].mxu0
    %550 = vmatprep.mubr.f32.mxu0 0.0
    %551 = vmatmul.mubr.f32.gmra.mrb[0].mxu0 %v225
    %v552 = vpop.f32.mrb[0].mxu0
    %v553 = vadd.f32 %v122, %v552
    %v554 = vpop.f32.mrb[0].mxu0
    %555 = vmatprep.mubr.f32.mxu0 0.0
    %556 = vmatmul.mubr.f32.gmra.mrb[0].mxu0 %v228
    %v557 = vpop.f32.mrb[0].mxu0
    %v558 = vadd.f32 %v122, %v557
    %v559 = vpop.f32.mrb[0].mxu0
    %560 = vmatprep.mubr.f32.mxu0 0.0
    %561 = vmatmul.mubr.f32.gmra.mrb[0].mxu0 %v231
    %v562 = vpop.f32.mrb[0].mxu0
    %v563 = vadd.f32 %v122, %v562
    %v564 = vpop.f32.mrb[0].mxu0
    %565 = vmatprep.mubr.f32.mxu0 0.0
    %566 = vmatmul.mubr.f32.gmra.mrb[0].mxu0 %v234
    %v567 = vpop.f32.mrb[0].mxu0
    %v568 = vadd.f32 %v122, %v567
    %v569 = vpop.f32.mrb[0].mxu0
    %570 = vmatprep.mubr.f32.mxu0 0.0
    %571 = vmatmul.mubr.f32.gmra.mrb[0].mxu0 %v237
    %v572 = vpop.f32.mrb[0].mxu0
    %v573 = vadd.f32 %v122, %v572
    %v574 = vpop.f32.mrb[0].mxu0
    %575 = vmatprep.mubr.f32.mxu0 0.0
    %576 = vmatmul.mubr.f32.gmra.mrb[0].mxu0 %v240
    %v577 = vpop.f32.mrb[0].mxu0
    %v578 = vadd.f32 %v122, %v577
    %v579 = vpop.f32.mrb[0].mxu0
    %580 = vmatprep.mubr.f32.mxu0 0.0
    %581 = vmatmul.mubr.f32.gmra.mrb[0].mxu0 %v243
    %v582 = vpop.f32.mrb[0].mxu0
    %v583 = vadd.f32 %v122, %v582
    %v584 = vpop.f32.mrb[0].mxu0
    %585 = vmatprep.mubr.f32.mxu0 0.0
    %586 = vmatmul.mubr.f32.gmra.mrb[0].mxu0 %v246
    %v587 = vpop.f32.mrb[0].mxu0
    %v588 = vadd.f32 %v122, %v587
    %v589 = vpop.f32.mrb[0].mxu0
    %590 = vmatprep.mubr.f32.mxu0 0.0
    %591 = vmatmul.mubr.f32.gmra.mrb[0].mxu0 %v249
    %v592 = vpop.f32.mrb[0].mxu0
    %v593 = vadd.f32 %v122, %v592
    %v594 = vpop.f32.mrb[0].mxu0
    %595 = vmatprep.mubr.f32.mxu0 0.0
    %596 = vmatmul.mubr.f32.gmra.mrb[0].mxu0 %v252
    %v597 = vpop.f32.mrb[0].mxu0
    %v598 = vadd.f32 %v122, %v597
    %v599 = vpop.f32.mrb[0].mxu0
    %600 = vmatprep.mubr.f32.mxu0 0.0
    %601 = vmatmul.mubr.f32.gmra.mrb[0].mxu0 %v255
    %v602 = vpop.f32.mrb[0].mxu0
    %v603 = vadd.f32 %v122, %v602
    %v604 = vpop.f32.mrb[0].mxu0
    %605 = vmatprep.mubr.f32.mxu0 0.0
    %606 = vmatmul.mubr.f32.gmra.mrb[0].mxu0 %v258
    %v607 = vpop.f32.mrb[0].mxu0
    %v608 = vadd.f32 %v122, %v607
    %v609 = vpop.f32.mrb[0].mxu0
    %610 = vmatprep.mubr.f32.mxu0 0.0
    %611 = vmatmul.mubr.f32.gmra.mrb[0].mxu0 %v261
    %v612 = vpop.f32.mrb[0].mxu0
    %v613 = vadd.f32 %v122, %v612
    %v614 = vpop.f32.mrb[0].mxu0
    %615 = vmatprep.mubr.f32.mxu0 0.0
    %616 = vmatmul.mubr.f32.gmra.mrb[0].mxu0 %v264
    %v617 = vpop.f32.mrb[0].mxu0
    %v618 = vadd.f32 %v122, %v617
    %v619 = vpop.f32.mrb[0].mxu0
    %620 = vmatprep.mubr.f32.mxu0 0.0
    %621 = vmatmul.mubr.f32.gmra.mrb[0].mxu0 %v267
    %v622 = vpop.f32.mrb[0].mxu0
    %v623 = vadd.f32 %v122, %v622
    %v624 = vpop.f32.mrb[0].mxu0
    %625 = vmatprep.mubr.f32.mxu0 0.0
    %626 = vmatmul.mubr.f32.gmra.mrb[0].mxu0 %v270
    %v627 = vpop.f32.mrb[0].mxu0
    %v628 = vadd.f32 %v122, %v627
    %v629 = vpop.f32.mrb[0].mxu0
    %630 = vmatprep.mubr.f32.mxu0 0.0
    %631 = vmatmul.mubr.f32.gmra.mrb[0].mxu0 %v273
    %v632 = vpop.f32.mrb[0].mxu0
    %v633 = vadd.f32 %v122, %v632
    %v634 = vpop.f32.mrb[0].mxu0
    %635 = vmatprep.mubr.f32.mxu0 0.0
    %636 = vmatmul.mubr.f32.gmra.mrb[0].mxu0 %v276
    %v637 = vpop.f32.mrb[0].mxu0
    %v638 = vadd.f32 %v122, %v637
    %v639 = vpop.f32.mrb[0].mxu0
    %640 = vmatprep.mubr.f32.mxu0 0.0
    %641 = vmatmul.mubr.f32.gmra.mrb[0].mxu0 %v279
    %v642 = vpop.f32.mrb[0].mxu0
    %v643 = vadd.f32 %v122, %v642
    %v644 = vpop.f32.mrb[0].mxu0
    %645 = vmatprep.mubr.f32.mxu0 0.0
    %646 = vmatmul.mubr.f32.gmra.mrb[0].mxu0 %v282
    %v647 = vpop.f32.mrb[0].mxu0
    %v648 = vadd.f32 %v122, %v647
    %v649 = vpop.f32.mrb[0].mxu0
    %650 = vmatprep.mubr.f32.mxu0 0.0
    %651 = vmatmul.mubr.f32.gmra.mrb[0].mxu0 %v285
    %v652 = vpop.f32.mrb[0].mxu0
    %v653 = vadd.f32 %v122, %v652
    %v654 = vpop.f32.mrb[0].mxu0
    %655 = vmatprep.mubr.f32.mxu0 0.0
    %656 = vmatmul.mubr.f32.gmra.mrb[0].mxu0 %v288
    %v657 = vpop.f32.mrb[0].mxu0
    %v658 = vadd.f32 %v122, %v657
    %v659 = vpop.f32.mrb[0].mxu0
    %660 = vmatprep.mubr.f32.mxu0 0.0
    %661 = vmatmul.mubr.f32.gmra.mrb[0].mxu0 %v291
    %v662 = vpop.f32.mrb[0].mxu0
    %v663 = vadd.f32 %v122, %v662
    %v664 = vpop.f32.mrb[0].mxu0
    %665 = vmatprep.mubr.f32.mxu0 0.0
    %666 = vmatmul.mubr.f32.gmra.mrb[0].mxu0 %v294
    %v667 = vpop.f32.mrb[0].mxu0
    %v668 = vadd.f32 %v122, %v667
    %v669 = vpop.f32.mrb[0].mxu0
    %670 = vmatprep.mubr.f32.mxu0 0.0
    %671 = vmatmul.mubr.f32.gmra.mrb[0].mxu0 %v297
    %v672 = vpop.f32.mrb[0].mxu0
    %v673 = vadd.f32 %v122, %v672
    %v674 = vpop.f32.mrb[0].mxu0
    %675 = vmatprep.mubr.f32.mxu0 0.0
    %676 = vmatmul.mubr.f32.gmra.mrb[0].mxu0 %v300
    %v677 = vpop.f32.mrb[0].mxu0
    %v678 = vadd.f32 %v122, %v677
    %v679 = vpop.f32.mrb[0].mxu0
    %680 = vmatprep.mubr.f32.mxu0 0.0
    %681 = vmatmul.mubr.f32.gmra.mrb[0].mxu0 %v303
    %v682 = vpop.f32.mrb[0].mxu0
    %v683 = vadd.f32 %v122, %v682
    %v684 = vpop.f32.mrb[0].mxu0
    %685 = vmatprep.mubr.f32.mxu0 0.0
    %686 = vmatmul.mubr.f32.gmra.mrb[0].mxu0 %v306
    %v687 = vpop.f32.mrb[0].mxu0
    %v688 = vadd.f32 %v122, %v687
    %v689 = vpop.f32.mrb[0].mxu0
    %690 = vmatprep.mubr.f32.mxu0 0.0
    %691 = vmatmul.mubr.f32.gmra.mrb[0].mxu0 %v309
    %v692 = vpop.f32.mrb[0].mxu0
    %v693 = vadd.f32 %v122, %v692
    %v694 = vpop.f32.mrb[0].mxu0
    %695 = vmatprep.mubr.f32.mxu0 0.0
    %696 = vmatmul.mubr.f32.gmra.mrb[0].mxu0 %v312
    %v697 = vpop.f32.mrb[0].mxu0
    %v698 = vadd.f32 %v122, %v697
    %v699 = vpop.f32.mrb[0].mxu0
    %700 = vmatprep.mubr.f32.mxu0 0.0
    %701 = vmatmul.mubr.f32.gmra.mrb[0].mxu0 %v315
    %v702 = vpop.f32.mrb[0].mxu0
    %v703 = vadd.f32 %v122, %v702
    %v704 = vpop.f32.mrb[0].mxu0
    %705 = vdwg.mxu0
    %706 = vst [vmem:[#allocation8] sm:$0xff] %v388
    %707 = vst [vmem:[#allocation8 + $0x8] sm:$0xff] %v393
    %708 = vst [vmem:[#allocation8 + $0x10] sm:$0xff] %v398
    %709 = vst [vmem:[#allocation8 + $0x18] sm:$0xff] %v403
    %710 = vst [vmem:[#allocation8 + $0x20] sm:$0xff] %v408
    %711 = vst [vmem:[#allocation8 + $0x28] sm:$0xff] %v413
    %712 = vst [vmem:[#allocation8 + $0x30] sm:$0xff] %v418
    %713 = vst [vmem:[#allocation8 + $0x38] sm:$0xff] %v423
    %714 = vst [vmem:[#allocation8 + $0x40] sm:$0xff] %v428
    %715 = vst [vmem:[#allocation8 + $0x48] sm:$0xff] %v433
    %716 = vst [vmem:[#allocation8 + $0x50] sm:$0xff] %v438
    %717 = vst [vmem:[#allocation8 + $0x58] sm:$0xff] %v443
    %718 = vst [vmem:[#allocation8 + $0x60] sm:$0xff] %v448
    %719 = vst [vmem:[#allocation8 + $0x68] sm:$0xff] %v453
    %720 = vst [vmem:[#allocation8 + $0x70] sm:$0xff] %v458
    %721 = vst [vmem:[#allocation8 + $0x78] sm:$0xff] %v463
    %722 = vst [vmem:[#allocation8 + $0x80] sm:$0xff] %v468
    %723 = vst [vmem:[#allocation8 + $0x88] sm:$0xff] %v473
    %724 = vst [vmem:[#allocation8 + $0x90] sm:$0xff] %v478
    %725 = vst [vmem:[#allocation8 + $0x98] sm:$0xff] %v483
    %726 = vst [vmem:[#allocation8 + $0xa0] sm:$0xff] %v488
    %727 = vst [vmem:[#allocation8 + $0xa8] sm:$0xff] %v493
    %728 = vst [vmem:[#allocation8 + $0xb0] sm:$0xff] %v498
    %729 = vst [vmem:[#allocation8 + $0xb8] sm:$0xff] %v503
    %730 = vst [vmem:[#allocation8 + $0xc0] sm:$0xff] %v508
    %731 = vst [vmem:[#allocation8 + $0xc8] sm:$0xff] %v513
    %732 = vst [vmem:[#allocation8 + $0xd0] sm:$0xff] %v518
    %733 = vst [vmem:[#allocation8 + $0xd8] sm:$0xff] %v523
    %734 = vst [vmem:[#allocation8 + $0xe0] sm:$0xff] %v528
    %735 = vst [vmem:[#allocation8 + $0xe8] sm:$0xff] %v533
    %736 = vst [vmem:[#allocation8 + $0xf0] sm:$0xff] %v538
    %737 = vst [vmem:[#allocation8 + $0xf8] sm:$0xff] %v543
    %738 = vst [vmem:[#allocation8 + $0x100] sm:$0xff] %v548
    %739 = vst [vmem:[#allocation8 + $0x108] sm:$0xff] %v553
    %740 = vst [vmem:[#allocation8 + $0x110] sm:$0xff] %v558
    %741 = vst [vmem:[#allocation8 + $0x118] sm:$0xff] %v563
    %742 = vst [vmem:[#allocation8 + $0x120] sm:$0xff] %v568
    %743 = vst [vmem:[#allocation8 + $0x128] sm:$0xff] %v573
    %744 = vst [vmem:[#allocation8 + $0x130] sm:$0xff] %v578
    %745 = vst [vmem:[#allocation8 + $0x138] sm:$0xff] %v583
    %746 = vst [vmem:[#allocation8 + $0x140] sm:$0xff] %v588
    %747 = vst [vmem:[#allocation8 + $0x148] sm:$0xff] %v593
    %748 = vst [vmem:[#allocation8 + $0x150] sm:$0xff] %v598
    %749 = vst [vmem:[#allocation8 + $0x158] sm:$0xff] %v603
    %750 = vst [vmem:[#allocation8 + $0x160] sm:$0xff] %v608
    %751 = vst [vmem:[#allocation8 + $0x168] sm:$0xff] %v613
    %752 = vst [vmem:[#allocation8 + $0x170] sm:$0xff] %v618
    %753 = vst [vmem:[#allocation8 + $0x178] sm:$0xff] %v623
    %754 = vst [vmem:[#allocation8 + $0x180] sm:$0xff] %v628
    %755 = vst [vmem:[#allocation8 + $0x188] sm:$0xff] %v633
    %756 = vst [vmem:[#allocation8 + $0x190] sm:$0xff] %v638
    %757 = vst [vmem:[#allocation8 + $0x198] sm:$0xff] %v643
    %758 = vst [vmem:[#allocation8 + $0x1a0] sm:$0xff] %v648
    %759 = vst [vmem:[#allocation8 + $0x1a8] sm:$0xff] %v653
    %760 = vst [vmem:[#allocation8 + $0x1b0] sm:$0xff] %v658
    %761 = vst [vmem:[#allocation8 + $0x1b8] sm:$0xff] %v663
    %762 = vst [vmem:[#allocation8 + $0x1c0] sm:$0xff] %v668
    %763 = vst [vmem:[#allocation8 + $0x1c8] sm:$0xff] %v673
    %764 = vst [vmem:[#allocation8 + $0x1d0] sm:$0xff] %v678
    %765 = vst [vmem:[#allocation8 + $0x1d8] sm:$0xff] %v683
    %766 = vst [vmem:[#allocation8 + $0x1e0] sm:$0xff] %v688
    %767 = vst [vmem:[#allocation8 + $0x1e8] sm:$0xff] %v693
    %768 = vst [vmem:[#allocation8 + $0x1f0] sm:$0xff] %v698
    %769 = vst [vmem:[#allocation8 + $0x1f8] sm:$0xff] %v703
    // Predicated region
    $region26: #{residual_block_forward.6} parent=1 // pred_check
      _
    $region27: #{residual_block_forward.6} parent=1 // pred_check_branch
      %771 = sbr.rel (0) target = $region29
    $region28: #{residual_block_forward.6} parent=1 // pred_region
      %s773 = ssub.s32 8192, 8192
      %774 = vsyncadd [#allocation4], %s773
      %s775 = sshll.u32 [#allocation8], 4
      %s776 = int_to_ptr.vmem [resolvable:$true] %s775
      %781 = dma.vmem_to_hbm [thread:$0]  %s776, 8192, %s3, [#allocation4], 128, 128, 8
    $region29: #{residual_block_forward.6} parent=1 // pred_fallthru
      _
    // Predicated region
    $region30: #{residual_block_forward.6} parent=1 // pred_check
      _
    $region31: #{residual_block_forward.6} parent=1 // pred_check_branch
      %783 = sbr.rel (0) target = $region33
    $region32: #{residual_block_forward.6} parent=1 // pred_region
      %784 = dma.done [#allocation4], 8192
    $region33: #{residual_block_forward.6} parent=1 // pred_fallthru
      _
    %785 = vsyncpa [#allocation3], 1
    %786 = vsyncpa [#allocation6], 1
    %787 = vsyncpa [#allocation4], 1

// kernel: residual_block_forward.5
$region0: #{residual_block_forward.5}
  #allocation0 [shape = 'u32[]', space=smem, size = 0x4, offset = 0x4, fixed_abs, tag = 'smem constant byte address 0x4 - core index']
  #allocation1 [shape = 'u32[144,128]{1,0:T(1,128)}', space=vmem, size = 0x12000, scoped, tag = 'internal scratch']
  %s0 = inlined_call_operand.hbm [shape: f32[2,18,18,4], index: 0, kind: input, shape index: {}]
  %s1 = inlined_call_operand.hbm [shape: f32[9,4,128], index: 1, kind: input, shape index: {}]
  %s2 = inlined_call_operand.hbm [shape: f32[1,128], index: 2, kind: input, shape index: {}]
  %s3 = inlined_call_operand.hbm [shape: f32[2,1,128], index: 3, kind: input, shape index: {}]
  %s4 = inlined_call_operand.hbm [shape: f32[1,128], index: 4, kind: input, shape index: {}]
  %s5 = inlined_call_operand.hbm [shape: f32[1,128], index: 5, kind: input, shape index: {}]
  %s6 = inlined_call_operand.hbm [shape: s32[128,1], index: 6, kind: input, shape index: {}]
  %s7 = inlined_call_operand.hbm [shape: s32[1,128], index: 7, kind: input, shape index: {}]
  %s8 = inlined_call_operand.hbm [shape: f32[2,256,128], index: 8, kind: output, shape index: {}]
  %s9 = sld [smem:[#allocation0]]
  $region97: #{residual_block_forward.5} parent=0
    _
  %s11 = ssub.s32 1, %s9
  %s12 = scalar_select 0, %s11, %s9
  $region1: #{residual_block_forward.5} parent=0
    #allocation2 [shape = 'u8[442368]{0}', space=vmem, size = 0x6c000, scoped, tag = 'input window, operand 0']
    #allocation3 [shape = 's32[2]{0}', space=sflag, size = 0x8, scoped, tag = 'scoped memory for residual_block_forward.5']
    #allocation4 [shape = 's32[2]{0}', space=sflag, size = 0x8, scoped, tag = 'scoped memory for residual_block_forward.5']
    #allocation5 [shape = 'u8[18432]{0}', space=vmem, size = 0x4800, scoped, tag = 'input window, operand 1, single buffered']
    #allocation6 [shape = 's32[1]{0}', space=sflag, size = 0x4, scoped, tag = 'scoped memory for residual_block_forward.5']
    #allocation7 [shape = 'u8[512]{0}', space=vmem, size = 0x400, scoped, tag = 'input window, operand 2, single buffered']
    #allocation8 [shape = 'u8[1024]{0}', space=vmem, size = 0x400, scoped, tag = 'input window, operand 3']
    #allocation9 [shape = 's32[2]{0}', space=sflag, size = 0x8, scoped, tag = 'scoped memory for residual_block_forward.5']
    #allocation10 [shape = 'u8[512]{0}', space=vmem, size = 0x400, scoped, tag = 'input window, operand 4, single buffered']
    #allocation11 [shape = 'u8[512]{0}', space=vmem, size = 0x400, scoped, tag = 'input window, operand 5, single buffered']
    #allocation12 [shape = 's32[1]{0}', space=sflag, size = 0x4, scoped, tag = 'scoped memory for residual_block_forward.5']
    #allocation13 [shape = 'u8[65536]{0}', space=vmem, size = 0x10000, scoped, tag = 'input window, operand 6, single buffered']
    #allocation14 [shape = 'u8[512]{0}', space=vmem, size = 0x400, scoped, tag = 'input window, operand 7, single buffered']
    #allocation15 [shape = 's32[1]{0}', space=sflag, size = 0x4, scoped, tag = 'scoped memory for residual_block_forward.5']
    #allocation16 [shape = 'u8[262144]{0}', space=vmem, size = 0x40000, scoped, tag = 'output window, operand 0']
    %13 = vsyncpa [#allocation3], 0
    %s14 = scalar_lea.sflag [#allocation3], 1
    %15 = vsyncpa %s14, 0
    %16 = vsyncpa [#allocation6], 0
    %17 = vsyncpa [#allocation9], 0
    %s18 = scalar_lea.sflag [#allocation9], 1
    %19 = vsyncpa %s18, 0
    %20 = vsyncpa [#allocation12], 0
    %21 = vsyncpa [#allocation15], 0
    %22 = vsyncpa [#allocation4], 0
    %s23 = scalar_lea.sflag [#allocation4], 1
    %24 = vsyncpa %s23, 0
    loop: start=0, step=1, limit=4
    $region2: #{residual_block_forward.5} parent=1 // loop_pre_header
      _
    $region3: #{residual_block_forward.5} parent=1 // loop_header
      %s26 = sphi 0, %s30
      %p27 = scmp.ge.s32.totalorder %s26, 4
      %s36 = sphi 0, %s38
      %s39 = sphi 0, %s36
      %s40 = sphi 0, %s39
      %s56 = sphi 0, %s40
      %s60 = sphi 0, %s60
      %s62 = sphi 0, %s60
      %s63 = sphi 0, %s62
      %s77 = sphi 0, %s63
      %s81 = sphi 0, %s81
      %s83 = sphi 0, %s81
      %s84 = sphi 0, %s83
      %s98 = sphi 0, %s84
      %s104 = sphi 0, %s106
      %s107 = sphi 0, %s104
      %s108 = sphi 0, %s107
      %s124 = sphi 0, %s108
      %s128 = sphi 0, %s128
      %s130 = sphi 0, %s128
      %s131 = sphi 0, %s130
      %s145 = sphi 0, %s131
      %s149 = sphi 0, %s149
      %s151 = sphi 0, %s149
      %s152 = sphi 0, %s151
      %s166 = sphi 0, %s152
      %s170 = sphi 0, %s170
      %s172 = sphi 0, %s170
      %s173 = sphi 0, %s172
      %s187 = sphi 0, %s173
      %s191 = sphi 0, %s191
      %s193 = sphi 0, %s191
      %s194 = sphi 0, %s193
      %s208 = sphi 0, %s194
      %s214 = sphi 0, %s216
      %s217 = sphi 0, %s214
      %s218 = sphi 0, %s217
      %s234 = sphi 0, %s218
    $region4: #{residual_block_forward.5} parent=1 // loop_header_branch
      %29 = sbr.rel (%p27) target = $region8
    $region5: #{residual_block_forward.5} parent=1 // loop_body
      %s31 = ssub.s32 %s26, 1
      %s32 = ssub.s32 %s26, 2
      %s33 = sadd.s32 %s26, 1
      %s34 = ssub.s32 %s26, %s33
      %p35 = scmp.eq.s32.totalorder %s34, 0
      %s37 = sadd.s32 %s36, 1
      %s38 = scalar_select %p35, %s36, %s37
      %p41 = pneg %p35
      %p42 = scmp.eq.s32.totalorder %s26, 1
      %p43 = por %p41, %p42
      %p44 = scmp.ne.s32.totalorder %s36, %s39
      %p45 = scmp.eq.s32.totalorder %s26, 0
      %p46 = por %p44, %p45
      %p47 = scmp.ne.s32.totalorder %s36, %s39
      %p48 = scmp.eq.s32.totalorder %s31, 1
      %p49 = por %p47, %p48
      %p50 = scmp.ne.s32.totalorder %s39, %s40
      %p51 = scmp.eq.s32.totalorder %s31, 0
      %p52 = por %p50, %p51
      %p53 = scmp.ne.s32.totalorder %s39, %s40
      %p54 = scmp.eq.s32.totalorder %s32, 1
      %p55 = por %p53, %p54
      %p57 = scmp.ne.s32.totalorder %s40, %s56
      %p58 = scmp.eq.s32.totalorder %s32, 0
      %p59 = por %p57, %p58
      %s61 = sadd.s32 %s60, 1
      %p64 = scmp.eq.s32.totalorder %s26, 1
      %p65 = scmp.ne.s32.totalorder %s60, %s62
      %p66 = scmp.eq.s32.totalorder %s26, 0
      %p67 = por %p65, %p66
      %p68 = scmp.ne.s32.totalorder %s60, %s62
      %p69 = scmp.eq.s32.totalorder %s31, 1
      %p70 = por %p68, %p69
      %p71 = scmp.ne.s32.totalorder %s62, %s63
      %p72 = scmp.eq.s32.totalorder %s31, 0
      %p73 = por %p71, %p72
      %p74 = scmp.ne.s32.totalorder %s62, %s63
      %p75 = scmp.eq.s32.totalorder %s32, 1
      %p76 = por %p74, %p75
      %p78 = scmp.ne.s32.totalorder %s63, %s77
      %p79 = scmp.eq.s32.totalorder %s32, 0
      %p80 = por %p78, %p79
      %s82 = sadd.s32 %s81, 1
      %p85 = scmp.eq.s32.totalorder %s26, 1
      %p86 = scmp.ne.s32.totalorder %s81, %s83
      %p87 = scmp.eq.s32.totalorder %s26, 0
      %p88 = por %p86, %p87
      %p89 = scmp.ne.s32.totalorder %s81, %s83
      %p90 = scmp.eq.s32.totalorder %s31, 1
      %p91 = por %p89, %p90
      %p92 = scmp.ne.s32.totalorder %s83, %s84
      %p93 = scmp.eq.s32.totalorder %s31, 0
      %p94 = por %p92, %p93
      %p95 = scmp.ne.s32.totalorder %s83, %s84
      %p96 = scmp.eq.s32.totalorder %s32, 1
      %p97 = por %p95, %p96
      %p99 = scmp.ne.s32.totalorder %s84, %s98
      %p100 = scmp.eq.s32.totalorder %s32, 0
      %p101 = por %p99, %p100
      %s102 = ssub.s32 %s26, %s33
      %p103 = scmp.eq.s32.totalorder %s102, 0
      %s105 = sadd.s32 %s104, 1
      %s106 = scalar_select %p103, %s104, %s105
      %p109 = pneg %p103
      %p110 = scmp.eq.s32.totalorder %s26, 1
      %p111 = por %p109, %p110
      %p112 = scmp.ne.s32.totalorder %s104, %s107
      %p113 = scmp.eq.s32.totalorder %s26, 0
      %p114 = por %p112, %p113
      %p115 = scmp.ne.s32.totalorder %s104, %s107
      %p116 = scmp.eq.s32.totalorder %s31, 1
      %p117 = por %p115, %p116
      %p118 = scmp.ne.s32.totalorder %s107, %s108
      %p119 = scmp.eq.s32.totalorder %s31, 0
      %p120 = por %p118, %p119
      %p121 = scmp.ne.s32.totalorder %s107, %s108
      %p122 = scmp.eq.s32.totalorder %s32, 1
      %p123 = por %p121, %p122
      %p125 = scmp.ne.s32.totalorder %s108, %s124
      %p126 = scmp.eq.s32.totalorder %s32, 0
      %p127 = por %p125, %p126
      %s129 = sadd.s32 %s128, 1
      %p132 = scmp.eq.s32.totalorder %s26, 1
      %p133 = scmp.ne.s32.totalorder %s128, %s130
      %p134 = scmp.eq.s32.totalorder %s26, 0
      %p135 = por %p133, %p134
      %p136 = scmp.ne.s32.totalorder %s128, %s130
      %p137 = scmp.eq.s32.totalorder %s31, 1
      %p138 = por %p136, %p137
      %p139 = scmp.ne.s32.totalorder %s130, %s131
      %p140 = scmp.eq.s32.totalorder %s31, 0
      %p141 = por %p139, %p140
      %p142 = scmp.ne.s32.totalorder %s130, %s131
      %p143 = scmp.eq.s32.totalorder %s32, 1
      %p144 = por %p142, %p143
      %p146 = scmp.ne.s32.totalorder %s131, %s145
      %p147 = scmp.eq.s32.totalorder %s32, 0
      %p148 = por %p146, %p147
      %s150 = sadd.s32 %s149, 1
      %p153 = scmp.eq.s32.totalorder %s26, 1
      %p154 = scmp.ne.s32.totalorder %s149, %s151
      %p155 = scmp.eq.s32.totalorder %s26, 0
      %p156 = por %p154, %p155
      %p157 = scmp.ne.s32.totalorder %s149, %s151
      %p158 = scmp.eq.s32.totalorder %s31, 1
      %p159 = por %p157, %p158
      %p160 = scmp.ne.s32.totalorder %s151, %s152
      %p161 = scmp.eq.s32.totalorder %s31, 0
      %p162 = por %p160, %p161
      %p163 = scmp.ne.s32.totalorder %s151, %s152
      %p164 = scmp.eq.s32.totalorder %s32, 1
      %p165 = por %p163, %p164
      %p167 = scmp.ne.s32.totalorder %s152, %s166
      %p168 = scmp.eq.s32.totalorder %s32, 0
      %p169 = por %p167, %p168
      %s171 = sadd.s32 %s170, 1
      %p174 = scmp.eq.s32.totalorder %s26, 1
      %p175 = scmp.ne.s32.totalorder %s170, %s172
      %p176 = scmp.eq.s32.totalorder %s26, 0
      %p177 = por %p175, %p176
      %p178 = scmp.ne.s32.totalorder %s170, %s172
      %p179 = scmp.eq.s32.totalorder %s31, 1
      %p180 = por %p178, %p179
      %p181 = scmp.ne.s32.totalorder %s172, %s173
      %p182 = scmp.eq.s32.totalorder %s31, 0
      %p183 = por %p181, %p182
      %p184 = scmp.ne.s32.totalorder %s172, %s173
      %p185 = scmp.eq.s32.totalorder %s32, 1
      %p186 = por %p184, %p185
      %p188 = scmp.ne.s32.totalorder %s173, %s187
      %p189 = scmp.eq.s32.totalorder %s32, 0
      %p190 = por %p188, %p189
      %s192 = sadd.s32 %s191, 1
      %p195 = scmp.eq.s32.totalorder %s26, 1
      %p196 = scmp.ne.s32.totalorder %s191, %s193
      %p197 = scmp.eq.s32.totalorder %s26, 0
      %p198 = por %p196, %p197
      %p199 = scmp.ne.s32.totalorder %s191, %s193
      %p200 = scmp.eq.s32.totalorder %s31, 1
      %p201 = por %p199, %p200
      %p202 = scmp.ne.s32.totalorder %s193, %s194
      %p203 = scmp.eq.s32.totalorder %s31, 0
      %p204 = por %p202, %p203
      %p205 = scmp.ne.s32.totalorder %s193, %s194
      %p206 = scmp.eq.s32.totalorder %s32, 1
      %p207 = por %p205, %p206
      %p209 = scmp.ne.s32.totalorder %s194, %s208
      %p210 = scmp.eq.s32.totalorder %s32, 0
      %p211 = por %p209, %p210
      %s212 = ssub.s32 %s26, %s33
      %p213 = scmp.eq.s32.totalorder %s212, 0
      %s215 = sadd.s32 %s214, 1
      %s216 = scalar_select %p213, %s214, %s215
      %p219 = pneg %p213
      %p220 = scmp.eq.s32.totalorder %s26, 1
      %p221 = por %p219, %p220
      %p222 = scmp.ne.s32.totalorder %s214, %s217
      %p223 = scmp.eq.s32.totalorder %s26, 0
      %p224 = por %p222, %p223
      %p225 = scmp.ne.s32.totalorder %s214, %s217
      %p226 = scmp.eq.s32.totalorder %s31, 1
      %p227 = por %p225, %p226
      %p228 = scmp.ne.s32.totalorder %s217, %s218
      %p229 = scmp.eq.s32.totalorder %s31, 0
      %p230 = por %p228, %p229
      %p231 = scmp.ne.s32.totalorder %s217, %s218
      %p232 = scmp.eq.s32.totalorder %s32, 1
      %p233 = por %p231, %p232
      %p235 = scmp.ne.s32.totalorder %s218, %s234
      %p236 = scmp.eq.s32.totalorder %s32, 0
      %p237 = por %p235, %p236
      %p238 = scmp.le.s32.totalorder 1, %s26
      %p239 = scmp.lt.s32.totalorder %s26, 3
      %p240 = pnand %p238, %p239
      %p241 = pneg %p240
      // Predicated region
      $region9: #{residual_block_forward.5} parent=5 // pred_check
        _
      $region10: #{residual_block_forward.5} parent=5 // pred_check_branch
        %243 = sbr.rel (%p240) target = $region12
      $region11: #{residual_block_forward.5} parent=5 // pred_region
        %s244 = ssub.s32 %s26, 1
        // Predicated region
        $region13: #{residual_block_forward.5} parent=11 // pred_check
          %p245 = pneg %p73
        $region14: #{residual_block_forward.5} parent=11 // pred_check_branch
          %247 = sbr.rel (%p245) target = $region16
        $region15: #{residual_block_forward.5} parent=11 // pred_region
          %s249 = ssub.s32 576, 576
          %250 = vsyncadd [#allocation6], %s249
          %s251 = sshll.u32 [#allocation5], 4
          %s252 = int_to_ptr.vmem [resolvable:$true] %s251
          %257 = dma.hbm_to_vmem [thread:$0]  %s1, 576, %s252, [#allocation6], 64, 64, 4
        $region16: #{residual_block_forward.5} parent=11 // pred_fallthru
          _
        // Predicated region
        $region17: #{residual_block_forward.5} parent=11 // pred_check
          %p258 = pneg %p94
        $region18: #{residual_block_forward.5} parent=11 // pred_check_branch
          %260 = sbr.rel (%p258) target = $region20
        $region19: #{residual_block_forward.5} parent=11 // pred_region
          %s262 = ssub.s32 16, 16
          %263 = vsyncadd [#allocation6], %s262
          %s265 = sshll.u32 [#allocation7], 4
          %s266 = int_to_ptr.vmem [resolvable:$true] %s265
          %268 = dma.hbm_to_vmem [thread:$0]  %s2, 16, %s266, [#allocation6]
        $region20: #{residual_block_forward.5} parent=11 // pred_fallthru
          _
        // Predicated region
        $region21: #{residual_block_forward.5} parent=11 // pred_check
          %p269 = pneg %p141
        $region22: #{residual_block_forward.5} parent=11 // pred_check_branch
          %271 = sbr.rel (%p269) target = $region24
        $region23: #{residual_block_forward.5} parent=11 // pred_region
          %s273 = ssub.s32 16, 16
          %274 = vsyncadd [#allocation9], %s273
          %s276 = sshll.u32 [#allocation10], 4
          %s277 = int_to_ptr.vmem [resolvable:$true] %s276
          %279 = dma.hbm_to_vmem [thread:$0]  %s4, 16, %s277, [#allocation9]
        $region24: #{residual_block_forward.5} parent=11 // pred_fallthru
          _
        // Predicated region
        $region25: #{residual_block_forward.5} parent=11 // pred_check
          %p280 = pneg %p162
        $region26: #{residual_block_forward.5} parent=11 // pred_check_branch
          %282 = sbr.rel (%p280) target = $region28
        $region27: #{residual_block_forward.5} parent=11 // pred_region
          %s284 = ssub.s32 16, 16
          %285 = vsyncadd [#allocation12], %s284
          %s287 = sshll.u32 [#allocation11], 4
          %s288 = int_to_ptr.vmem [resolvable:$true] %s287
          %290 = dma.hbm_to_vmem [thread:$0]  %s5, 16, %s288, [#allocation12]
        $region28: #{residual_block_forward.5} parent=11 // pred_fallthru
          _
        // Predicated region
        $region29: #{residual_block_forward.5} parent=11 // pred_check
          %p291 = pneg %p183
        $region30: #{residual_block_forward.5} parent=11 // pred_check_branch
          %293 = sbr.rel (%p291) target = $region32
        $region31: #{residual_block_forward.5} parent=11 // pred_region
          %s295 = ssub.s32 2048, 2048
          %296 = vsyncadd [#allocation12], %s295
          %s297 = sshll.u32 [#allocation13], 4
          %s298 = int_to_ptr.vmem [resolvable:$true] %s297
          %303 = dma.hbm_to_vmem [thread:$0]  %s6, 2048, %s298, [#allocation12], 128, 128, 8
        $region32: #{residual_block_forward.5} parent=11 // pred_fallthru
          _
        // Predicated region
        $region33: #{residual_block_forward.5} parent=11 // pred_check
          %p304 = pneg %p204
        $region34: #{residual_block_forward.5} parent=11 // pred_check_branch
          %306 = sbr.rel (%p304) target = $region36
        $region35: #{residual_block_forward.5} parent=11 // pred_region
          %s308 = ssub.s32 16, 16
          %309 = vsyncadd [#allocation15], %s308
          %s311 = sshll.u32 [#allocation14], 4
          %s312 = int_to_ptr.vmem [resolvable:$true] %s311
          %314 = dma.hbm_to_vmem [thread:$0]  %s7, 16, %s312, [#allocation15]
        $region36: #{residual_block_forward.5} parent=11 // pred_fallthru
          _
      $region12: #{residual_block_forward.5} parent=5 // pred_fallthru
        _
      %p315 = scmp.lt.s32.totalorder %s26, 2
      // Predicated region
      $region37: #{residual_block_forward.5} parent=5 // pred_check
        %p316 = pneg %p315
      $region38: #{residual_block_forward.5} parent=5 // pred_check_branch
        %318 = sbr.rel (%p316) target = $region40
      $region39: #{residual_block_forward.5} parent=5 // pred_region
        // Predicated region
        $region41: #{residual_block_forward.5} parent=39 // pred_check
          %p319 = pneg %p46
        $region42: #{residual_block_forward.5} parent=39 // pred_check_branch
          %321 = sbr.rel (%p319) target = $region44
        $region43: #{residual_block_forward.5} parent=39 // pred_region
          %s322 = sand.u32 %s36, 1
          %s323 = scalar_lea.sflag [#allocation3], %s322
          %s324 = sand.u32 %s36, 1
          %s325 = smul.addr %s324, 432
          %s326 = scalar_lea.vmem [#allocation2], %s325
          %s328 = ssub.s32 6912, 6912
          %329 = vsyncadd %s323, %s328
          %s330 = smul.addr %s26, 54
          %s331 = smul.addr %s330, 128
          %s332 = scalar_lea.hbm %s0, %s331
          %s333 = sshll.u32 %s326, 4
          %s334 = int_to_ptr.vmem [resolvable:$true] %s333
          %339 = dma.hbm_to_vmem [thread:$0]  %s332, 6912, %s334, %s323, 128, 128, 8
        $region44: #{residual_block_forward.5} parent=39 // pred_fallthru
          _
        // Predicated region
        $region45: #{residual_block_forward.5} parent=39 // pred_check
          %p340 = pneg %p114
        $region46: #{residual_block_forward.5} parent=39 // pred_check_branch
          %342 = sbr.rel (%p340) target = $region48
        $region47: #{residual_block_forward.5} parent=39 // pred_region
          %s343 = sand.u32 %s26, 1
          %s344 = scalar_lea.sflag [#allocation9], %s343
          %s345 = sand.u32 %s104, 1
          %s346 = scalar_lea.vmem [#allocation8], %s345
          %s348 = ssub.s32 16, 16
          %349 = vsyncadd %s344, %s348
          %s350 = smul.addr %s26, 16
          %s351 = scalar_lea.hbm %s3, %s350
          %s353 = sshll.u32 %s346, 4
          %s354 = int_to_ptr.vmem [resolvable:$true] %s353
          %356 = dma.hbm_to_vmem [thread:$0]  %s351, 16, %s354, %s344
        $region48: #{residual_block_forward.5} parent=39 // pred_fallthru
          _
      $region40: #{residual_block_forward.5} parent=5 // pred_fallthru
        _
      %p357 = scmp.le.s32.totalorder 1, %s26
      %p358 = scmp.lt.s32.totalorder %s26, 3
      %p359 = pnand %p357, %p358
      %p360 = pneg %p359
      // Predicated region
      $region49: #{residual_block_forward.5} parent=5 // pred_check
        _
      $region50: #{residual_block_forward.5} parent=5 // pred_check_branch
        %362 = sbr.rel (%p359) target = $region52
      $region51: #{residual_block_forward.5} parent=5 // pred_region
        %s363 = ssub.s32 %s26, 1
        %s364 = sand.u32 %s39, 1
        %s365 = scalar_lea.sflag [#allocation3], %s364
        %s366 = sand.u32 %s39, 1
        %s367 = smul.addr %s366, 432
        %s368 = scalar_lea.vmem [#allocation2], %s367
        // Predicated region
        $region53: #{residual_block_forward.5} parent=51 // pred_check
          %p369 = pneg %p52
        $region54: #{residual_block_forward.5} parent=51 // pred_check_branch
          %371 = sbr.rel (%p369) target = $region56
        $region55: #{residual_block_forward.5} parent=51 // pred_region
          %372 = dma.done %s365, 6912
        $region56: #{residual_block_forward.5} parent=51 // pred_fallthru
          _
        // Predicated region
        $region57: #{residual_block_forward.5} parent=51 // pred_check
          %p373 = pneg %p73
        $region58: #{residual_block_forward.5} parent=51 // pred_check_branch
          %375 = sbr.rel (%p373) target = $region60
        $region59: #{residual_block_forward.5} parent=51 // pred_region
          %376 = dma.done [#allocation6], 576
        $region60: #{residual_block_forward.5} parent=51 // pred_fallthru
          _
        // Predicated region
        $region61: #{residual_block_forward.5} parent=51 // pred_check
          %p377 = pneg %p94
        $region62: #{residual_block_forward.5} parent=51 // pred_check_branch
          %379 = sbr.rel (%p377) target = $region64
        $region63: #{residual_block_forward.5} parent=51 // pred_region
          %380 = dma.done [#allocation6], 16
        $region64: #{residual_block_forward.5} parent=51 // pred_fallthru
          _
        %s381 = sand.u32 %s31, 1
        %s382 = scalar_lea.sflag [#allocation9], %s381
        %s383 = sand.u32 %s107, 1
        %s384 = scalar_lea.vmem [#allocation8], %s383
        // Predicated region
        $region65: #{residual_block_forward.5} parent=51 // pred_check
          %p385 = pneg %p120
        $region66: #{residual_block_forward.5} parent=51 // pred_check_branch
          %387 = sbr.rel (%p385) target = $region68
        $region67: #{residual_block_forward.5} parent=51 // pred_region
          %388 = dma.done %s382, 16
        $region68: #{residual_block_forward.5} parent=51 // pred_fallthru
          _
        // Predicated region
        $region69: #{residual_block_forward.5} parent=51 // pred_check
          %p389 = pneg %p141
        $region70: #{residual_block_forward.5} parent=51 // pred_check_branch
          %391 = sbr.rel (%p389) target = $region72
        $region71: #{residual_block_forward.5} parent=51 // pred_region
          %392 = dma.done [#allocation9], 16
        $region72: #{residual_block_forward.5} parent=51 // pred_fallthru
          _
        // Predicated region
        $region73: #{residual_block_forward.5} parent=51 // pred_check
          %p393 = pneg %p162
        $region74: #{residual_block_forward.5} parent=51 // pred_check_branch
          %395 = sbr.rel (%p393) target = $region76
        $region75: #{residual_block_forward.5} parent=51 // pred_region
          %396 = dma.done [#allocation12], 16
        $region76: #{residual_block_forward.5} parent=51 // pred_fallthru
          _
        // Predicated region
        $region77: #{residual_block_forward.5} parent=51 // pred_check
          %p397 = pneg %p183
        $region78: #{residual_block_forward.5} parent=51 // pred_check_branch
          %399 = sbr.rel (%p397) target = $region80
        $region79: #{residual_block_forward.5} parent=51 // pred_region
          %400 = dma.done [#allocation12], 2048
        $region80: #{residual_block_forward.5} parent=51 // pred_fallthru
          _
        // Predicated region
        $region81: #{residual_block_forward.5} parent=51 // pred_check
          %p401 = pneg %p204
        $region82: #{residual_block_forward.5} parent=51 // pred_check_branch
          %403 = sbr.rel (%p401) target = $region84
        $region83: #{residual_block_forward.5} parent=51 // pred_region
          %404 = dma.done [#allocation15], 16
        $region84: #{residual_block_forward.5} parent=51 // pred_fallthru
          _
        %s405 = sand.u32 %s39, 1
        %s406 = scalar_lea.sflag [#allocation3], %s405
        %s407 = sand.u32 %s39, 1
        %s408 = smul.addr %s407, 432
        %s409 = scalar_lea.vmem [#allocation2], %s408
        %p410 = pneg %p52
        %p411 = pneg %p49
        %p412 = pneg %p73
        %p413 = pneg %p70
        %p414 = pneg %p94
        %p415 = pneg %p91
        %s416 = sand.u32 %s31, 1
        %s417 = scalar_lea.sflag [#allocation9], %s416
        %s418 = sand.u32 %s107, 1
        %s419 = scalar_lea.vmem [#allocation8], %s418
        %p420 = pneg %p120
        %p421 = pneg %p117
        %p422 = pneg %p141
        %p423 = pneg %p138
        %p424 = pneg %p162
        %p425 = pneg %p159
        %p426 = pneg %p183
        %p427 = pneg %p180
        %p428 = pneg %p204
        %p429 = pneg %p201
        %p430 = pneg %p230
        %p431 = pneg %p227
        %s432 = sand.u32 %s217, 1
        %s433 = scalar_lea.sflag [#allocation4], %s432
        %s434 = sand.u32 %s217, 1
        %s435 = smul.addr %s434, 256
        %s436 = scalar_lea.vmem [#allocation16], %s435
        %v437 = vld [vmem:[%s368] sm:$0xff]
        %v438 = vld [vmem:[%s368 + $0x8] sm:$0xff]
        %v439 = vld [vmem:[%s368 + $0x18] sm:$0xff]
        %v440 = vld [vmem:[%s368 + $0x20] sm:$0xff]
        %v441 = vld [vmem:[%s368 + $0x30] sm:$0xff]
        %v442 = vld [vmem:[%s368 + $0x38] sm:$0xff]
        %v443 = vld [vmem:[%s368 + $0x48] sm:$0xff]
        %v444 = vld [vmem:[%s368 + $0x50] sm:$0xff]
        %v445 = vld [vmem:[%s368 + $0x60] sm:$0xff]
        %v446 = vld [vmem:[%s368 + $0x68] sm:$0xff]
        %v447 = vld [vmem:[%s368 + $0x78] sm:$0xff]
        %v448 = vld [vmem:[%s368 + $0x80] sm:$0xff]
        %v449 = vld [vmem:[%s368 + $0x90] sm:$0xff]
        %v450 = vld [vmem:[%s368 + $0x98] sm:$0xff]
        %v451 = vld [vmem:[%s368 + $0xa8] sm:$0xff]
        %v452 = vld [vmem:[%s368 + $0xb0] sm:$0xff]
        %v453 = vld [vmem:[%s368 + $0xc0] sm:$0xff]
        %v454 = vld [vmem:[%s368 + $0xc8] sm:$0xff]
        %v455 = vld [vmem:[%s368 + $0xd8] sm:$0xff]
        %v456 = vld [vmem:[%s368 + $0xe0] sm:$0xff]
        %v457 = vld [vmem:[%s368 + $0xf0] sm:$0xff]
        %v458 = vld [vmem:[%s368 + $0xf8] sm:$0xff]
        %v459 = vld [vmem:[%s368 + $0x108] sm:$0xff]
        %v460 = vld [vmem:[%s368 + $0x110] sm:$0xff]
        %v461 = vld [vmem:[%s368 + $0x120] sm:$0xff]
        %v462 = vld [vmem:[%s368 + $0x128] sm:$0xff]
        %v463 = vld [vmem:[%s368 + $0x138] sm:$0xff]
        %v464 = vld [vmem:[%s368 + $0x140] sm:$0xff]
        %v465 = vld [vmem:[%s368 + $0x150] sm:$0xff]
        %v466 = vld [vmem:[%s368 + $0x158] sm:$0xff]
        %v467 = vld [vmem:[%s368 + $0x168] sm:$0xff]
        %v468 = vld [vmem:[%s368 + $0x170] sm:$0xff]
        %v469 = vld [vmem:[#allocation5] sm:$0xf]
        %v470 = vld [vmem:[%s368 + $0x1] sm:$0xff]
        %v471 = vld [vmem:[%s368 + $0x9] sm:$0xff]
        %v472 = vld [vmem:[%s368 + $0x19] sm:$0xff]
        %v473 = vld [vmem:[%s368 + $0x21] sm:$0xff]
        %v474 = vld [vmem:[%s368 + $0x31] sm:$0xff]
        %v475 = vld [vmem:[%s368 + $0x39] sm:$0xff]
        %v476 = vld [vmem:[%s368 + $0x49] sm:$0xff]
        %v477 = vld [vmem:[%s368 + $0x51] sm:$0xff]
        %v478 = vld [vmem:[%s368 + $0x61] sm:$0xff]
        %v479 = vld [vmem:[%s368 + $0x69] sm:$0xff]
        %v480 = vld [vmem:[%s368 + $0x79] sm:$0xff]
        %v481 = vld [vmem:[%s368 + $0x81] sm:$0xff]
        %v482 = vld [vmem:[%s368 + $0x91] sm:$0xff]
        %v483 = vld [vmem:[%s368 + $0x99] sm:$0xff]
        %v484 = vld [vmem:[%s368 + $0xa9] sm:$0xff]
        %v485 = vld [vmem:[%s368 + $0xb1] sm:$0xff]
        %v486 = vld [vmem:[%s368 + $0xc1] sm:$0xff]
        %v487 = vld [vmem:[%s368 + $0xc9] sm:$0xff]
        %v488 = vld [vmem:[%s368 + $0xd9] sm:$0xff]
        %v489 = vld [vmem:[%s368 + $0xe1] sm:$0xff]
        %v490 = vld [vmem:[%s368 + $0xf1] sm:$0xff]
        %v491 = vld [vmem:[%s368 + $0xf9] sm:$0xff]
        %v492 = vld [vmem:[%s368 + $0x109] sm:$0xff]
        %v493 = vld [vmem:[%s368 + $0x111] sm:$0xff]
        %v494 = vld [vmem:[%s368 + $0x121] sm:$0xff]
        %v495 = vld [vmem:[%s368 + $0x129] sm:$0xff]
        %v496 = vld [vmem:[%s368 + $0x139] sm:$0xff]
        %v497 = vld [vmem:[%s368 + $0x141] sm:$0xff]
        %v498 = vld [vmem:[%s368 + $0x151] sm:$0xff]
        %v499 = vld [vmem:[%s368 + $0x159] sm:$0xff]
        %v500 = vld [vmem:[%s368 + $0x169] sm:$0xff]
        %v501 = vld [vmem:[%s368 + $0x171] sm:$0xff]
        %s502 = scalar_lea.vmem [#allocation5], 4
        %v503 = vld [vmem:[%s502] sm:$0xf]
        %vm504 = vcmask 31744
        %v506 = vsel %vm504, %v470, 0
        %v509 = vsel %vm504, %v471, 0
        %v512 = vsel %vm504, %v472, 0
        %v515 = vsel %vm504, %v473, 0
        %v518 = vsel %vm504, %v474, 0
        %v521 = vsel %vm504, %v475, 0
        %v524 = vsel %vm504, %v476, 0
        %v527 = vsel %vm504, %v477, 0
        %v530 = vsel %vm504, %v478, 0
        %v533 = vsel %vm504, %v479, 0
        %v536 = vsel %vm504, %v480, 0
        %v539 = vsel %vm504, %v481, 0
        %v542 = vsel %vm504, %v482, 0
        %v545 = vsel %vm504, %v483, 0
        %v548 = vsel %vm504, %v484, 0
        %v551 = vsel %vm504, %v485, 0
        %v554 = vsel %vm504, %v486, 0
        %v557 = vsel %vm504, %v487, 0
        %v560 = vsel %vm504, %v488, 0
        %v563 = vsel %vm504, %v489, 0
        %v566 = vsel %vm504, %v490, 0
        %v569 = vsel %vm504, %v491, 0
        %v572 = vsel %vm504, %v492, 0
        %v575 = vsel %vm504, %v493, 0
        %v578 = vsel %vm504, %v494, 0
        %v581 = vsel %vm504, %v495, 0
        %v584 = vsel %vm504, %v496, 0
        %v587 = vsel %vm504, %v497, 0
        %v590 = vsel %vm504, %v498, 0
        %v593 = vsel %vm504, %v499, 0
        %v596 = vsel %vm504, %v500, 0
        %v599 = vsel %vm504, %v501, 0
        %vm601 = vcmask 1043456
        %v603 = vsel %vm601, %v503, 0
        %605 = vmatprep.subr.mxu0 0.0
        %606 = vmatpush1.msra.mxu0 %v603
        %607 = vmatprep.subr.mxu0 0.0
        %608 = vmatpush1.msra.mxu0 0.0
        %609 = vmatprep.subr.mxu0 0.0
        %610 = vmatpush1.msra.mxu0 0.0
        %611 = vmatprep.subr.mxu0 0.0
        %612 = vmatpush1.msra.mxu0 0.0
        %613 = vmatprep.subr.mxu0 0.0
        %614 = vmatpush1.msra.mxu0 0.0
        %615 = vmatprep.subr.mxu0 0.0
        %616 = vmatpush1.msra.mxu0 0.0
        %617 = vmatprep.subr.mxu0 0.0
        %618 = vmatpush1.msra.mxu0 0.0
        %619 = vmatprep.subr.mxu0 0.0
        %620 = vmatpush1.msra.mxu0 0.0
        %621 = vmatprep.subr.mxu0 0.0
        %622 = vmatpush1.msra.mxu0 0.0
        %623 = vmatprep.subr.mxu0 0.0
        %624 = vmatpush1.msra.mxu0 0.0
        %625 = vmatprep.subr.mxu0 0.0
        %626 = vmatpush1.msra.mxu0 0.0
        %627 = vmatprep.subr.mxu0 0.0
        %628 = vmatpush1.msra.mxu0 0.0
        %629 = vmatprep.subr.mxu0 0.0
        %630 = vmatpush1.msra.mxu0 0.0
        %631 = vmatprep.subr.mxu0 0.0
        %632 = vmatpush1.msra.mxu0 0.0
        %633 = vmatprep.subr.mxu0 0.0
        %634 = vmatpush1.msra.mxu0 0.0
        %635 = vmatprep.subr.mxu0 0.0
        %636 = vmatpush1.msra.mxu0 0.0
        %637 = vmatprep.subr.mxu0 0.0
        %638 = vmatpush1.msra.mxu0 0.0
        %639 = vmatprep.subr.mxu0 0.0
        %640 = vmatpush1.msra.mxu0 0.0
        %641 = vmatprep.subr.mxu0 0.0
        %642 = vmatpush1.msra.mxu0 0.0
        %643 = vmatprep.subr.mxu0 0.0
        %644 = vmatpush1.msra.mxu0 0.0
        %645 = vmatprep.subr.mxu0 0.0
        %646 = vmatpush1.msra.mxu0 0.0
        %647 = vmatprep.subr.mxu0 0.0
        %648 = vmatpush1.msra.mxu0 0.0
        %649 = vmatprep.subr.mxu0 0.0
        %650 = vmatpush1.msra.mxu0 0.0
        %651 = vmatprep.subr.mxu0 0.0
        %652 = vmatpush1.msra.mxu0 0.0
        %653 = vmatprep.subr.mxu0 0.0
        %654 = vmatpush1.msra.mxu0 0.0
        %655 = vmatprep.subr.mxu0 0.0
        %656 = vmatpush1.msra.mxu0 0.0
        %657 = vmatprep.subr.mxu0 0.0
        %658 = vmatpush1.msra.mxu0 0.0
        %659 = vmatprep.subr.mxu0 0.0
        %660 = vmatpush1.msra.mxu0 0.0
        %661 = vmatprep.subr.mxu0 0.0
        %662 = vmatpush1.msra.mxu0 0.0
        %663 = vmatprep.subr.mxu0 0.0
        %664 = vmatpush1.msra.mxu0 0.0
        %665 = vmatprep.subr.mxu0 0.0
        %666 = vmatpush1.msra.mxu0 0.0
        %667 = vmatprep.subr.mxu0 0.0
        %668 = vmatpush1.msra.mxu0 0.0
        %669 = vmatprep.mubr.f32.mxu0 0.0
        %670 = vmatmul.mubr.f32.gmra.mrb[0].mxu0 %v506
        %v671 = vpop.f32.mrb[0].mxu0
        %v672 = vadd.f32 0.0, %v671
        %v673 = vpop.f32.mrb[0].mxu0
        %674 = vmatprep.mubr.f32.mxu0 0.0
        %675 = vmatmul.mubr.f32.gmra.mrb[0].mxu0 %v509
        %v676 = vpop.f32.mrb[0].mxu0
        %v677 = vadd.f32 0.0, %v676
        %v678 = vpop.f32.mrb[0].mxu0
        %679 = vmatprep.mubr.f32.mxu0 0.0
        %680 = vmatmul.mubr.f32.gmra.mrb[0].mxu0 %v512
        %v681 = vpop.f32.mrb[0].mxu0
        %v682 = vadd.f32 0.0, %v681
        %v683 = vpop.f32.mrb[0].mxu0
        %684 = vmatprep.mubr.f32.mxu0 0.0
        %685 = vmatmul.mubr.f32.gmra.mrb[0].mxu0 %v515
        %v686 = vpop.f32.mrb[0].mxu0
        %v687 = vadd.f32 0.0, %v686
        %v688 = vpop.f32.mrb[0].mxu0
        %689 = vmatprep.mubr.f32.mxu0 0.0
        %690 = vmatmul.mubr.f32.gmra.mrb[0].mxu0 %v518
        %v691 = vpop.f32.mrb[0].mxu0
        %v692 = vadd.f32 0.0, %v691
        %v693 = vpop.f32.mrb[0].mxu0
        %694 = vmatprep.mubr.f32.mxu0 0.0
        %695 = vmatmul.mubr.f32.gmra.mrb[0].mxu0 %v521
        %v696 = vpop.f32.mrb[0].mxu0
        %v697 = vadd.f32 0.0, %v696
        %v698 = vpop.f32.mrb[0].mxu0
        %699 = vmatprep.mubr.f32.mxu0 0.0
        %700 = vmatmul.mubr.f32.gmra.mrb[0].mxu0 %v524
        %v701 = vpop.f32.mrb[0].mxu0
        %v702 = vadd.f32 0.0, %v701
        %v703 = vpop.f32.mrb[0].mxu0
        %704 = vmatprep.mubr.f32.mxu0 0.0
        %705 = vmatmul.mubr.f32.gmra.mrb[0].mxu0 %v527
        %v706 = vpop.f32.mrb[0].mxu0
        %v707 = vadd.f32 0.0, %v706
        %v708 = vpop.f32.mrb[0].mxu0
        %709 = vmatprep.mubr.f32.mxu0 0.0
        %710 = vmatmul.mubr.f32.gmra.mrb[0].mxu0 %v530
        %v711 = vpop.f32.mrb[0].mxu0
        %v712 = vadd.f32 0.0, %v711
        %v713 = vpop.f32.mrb[0].mxu0
        %714 = vmatprep.mubr.f32.mxu0 0.0
        %715 = vmatmul.mubr.f32.gmra.mrb[0].mxu0 %v533
        %v716 = vpop.f32.mrb[0].mxu0
        %v717 = vadd.f32 0.0, %v716
        %v718 = vpop.f32.mrb[0].mxu0
        %719 = vmatprep.mubr.f32.mxu0 0.0
        %720 = vmatmul.mubr.f32.gmra.mrb[0].mxu0 %v536
        %v721 = vpop.f32.mrb[0].mxu0
        %v722 = vadd.f32 0.0, %v721
        %v723 = vpop.f32.mrb[0].mxu0
        %724 = vmatprep.mubr.f32.mxu0 0.0
        %725 = vmatmul.mubr.f32.gmra.mrb[0].mxu0 %v539
        %v726 = vpop.f32.mrb[0].mxu0
        %v727 = vadd.f32 0.0, %v726
        %v728 = vpop.f32.mrb[0].mxu0
        %729 = vmatprep.mubr.f32.mxu0 0.0
        %730 = vmatmul.mubr.f32.gmra.mrb[0].mxu0 %v542
        %v731 = vpop.f32.mrb[0].mxu0
        %v732 = vadd.f32 0.0, %v731
        %v733 = vpop.f32.mrb[0].mxu0
        %734 = vmatprep.mubr.f32.mxu0 0.0
        %735 = vmatmul.mubr.f32.gmra.mrb[0].mxu0 %v545
        %v736 = vpop.f32.mrb[0].mxu0
        %v737 = vadd.f32 0.0, %v736
        %v738 = vpop.f32.mrb[0].mxu0
        %739 = vmatprep.mubr.f32.mxu0 0.0
        %740 = vmatmul.mubr.f32.gmra.mrb[0].mxu0 %v548
        %v741 = vpop.f32.mrb[0].mxu0
        %v742 = vadd.f32 0.0, %v741
        %v743 = vpop.f32.mrb[0].mxu0
        %744 = vmatprep.mubr.f32.mxu0 0.0
        %745 = vmatmul.mubr.f32.gmra.mrb[0].mxu0 %v551
        %v746 = vpop.f32.mrb[0].mxu0
        %v747 = vadd.f32 0.0, %v746
        %v748 = vpop.f32.mrb[0].mxu0
        %749 = vmatprep.mubr.f32.mxu0 0.0
        %750 = vmatmul.mubr.f32.gmra.mrb[0].mxu0 %v554
        %v751 = vpop.f32.mrb[0].mxu0
        %v752 = vadd.f32 0.0, %v751
        %v753 = vpop.f32.mrb[0].mxu0
        %754 = vmatprep.mubr.f32.mxu0 0.0
        %755 = vmatmul.mubr.f32.gmra.mrb[0].mxu0 %v557
        %v756 = vpop.f32.mrb[0].mxu0
        %v757 = vadd.f32 0.0, %v756
        %v758 = vpop.f32.mrb[0].mxu0
        %759 = vmatprep.mubr.f32.mxu0 0.0
        %760 = vmatmul.mubr.f32.gmra.mrb[0].mxu0 %v560
        %v761 = vpop.f32.mrb[0].mxu0
        %v762 = vadd.f32 0.0, %v761
        %v763 = vpop.f32.mrb[0].mxu0
        %764 = vmatprep.mubr.f32.mxu0 0.0
        %765 = vmatmul.mubr.f32.gmra.mrb[0].mxu0 %v563
        %v766 = vpop.f32.mrb[0].mxu0
        %v767 = vadd.f32 0.0, %v766
        %v768 = vpop.f32.mrb[0].mxu0
        %769 = vmatprep.mubr.f32.mxu0 0.0
        %770 = vmatmul.mubr.f32.gmra.mrb[0].mxu0 %v566
        %v771 = vpop.f32.mrb[0].mxu0
        %v772 = vadd.f32 0.0, %v771
        %v773 = vpop.f32.mrb[0].mxu0
        %774 = vmatprep.mubr.f32.mxu0 0.0
        %775 = vmatmul.mubr.f32.gmra.mrb[0].mxu0 %v569
        %v776 = vpop.f32.mrb[0].mxu0
        %v777 = vadd.f32 0.0, %v776
        %v778 = vpop.f32.mrb[0].mxu0
        %779 = vmatprep.mubr.f32.mxu0 0.0
        %780 = vmatmul.mubr.f32.gmra.mrb[0].mxu0 %v572
        %v781 = vpop.f32.mrb[0].mxu0
        %v782 = vadd.f32 0.0, %v781
        %v783 = vpop.f32.mrb[0].mxu0
        %784 = vmatprep.mubr.f32.mxu0 0.0
        %785 = vmatmul.mubr.f32.gmra.mrb[0].mxu0 %v575
        %v786 = vpop.f32.mrb[0].mxu0
        %v787 = vadd.f32 0.0, %v786
        %v788 = vpop.f32.mrb[0].mxu0
        %789 = vmatprep.mubr.f32.mxu0 0.0
        %790 = vmatmul.mubr.f32.gmra.mrb[0].mxu0 %v578
        %v791 = vpop.f32.mrb[0].mxu0
        %v792 = vadd.f32 0.0, %v791
        %v793 = vpop.f32.mrb[0].mxu0
        %794 = vmatprep.mubr.f32.mxu0 0.0
        %795 = vmatmul.mubr.f32.gmra.mrb[0].mxu0 %v581
        %v796 = vpop.f32.mrb[0].mxu0
        %v797 = vadd.f32 0.0, %v796
        %v798 = vpop.f32.mrb[0].mxu0
        %799 = vmatprep.mubr.f32.mxu0 0.0
        %800 = vmatmul.mubr.f32.gmra.mrb[0].mxu0 %v584
        %v801 = vpop.f32.mrb[0].mxu0
        %v802 = vadd.f32 0.0, %v801
        %v803 = vpop.f32.mrb[0].mxu0
        %804 = vmatprep.mubr.f32.mxu0 0.0
        %805 = vmatmul.mubr.f32.gmra.mrb[0].mxu0 %v587
        %v806 = vpop.f32.mrb[0].mxu0
        %v807 = vadd.f32 0.0, %v806
        %v808 = vpop.f32.mrb[0].mxu0
        %809 = vmatprep.mubr.f32.mxu0 0.0
        %810 = vmatmul.mubr.f32.gmra.mrb[0].mxu0 %v590
        %v811 = vpop.f32.mrb[0].mxu0
        %v812 = vadd.f32 0.0, %v811
        %v813 = vpop.f32.mrb[0].mxu0
        %814 = vmatprep.mubr.f32.mxu0 0.0
        %815 = vmatmul.mubr.f32.gmra.mrb[0].mxu0 %v593
        %v816 = vpop.f32.mrb[0].mxu0
        %v817 = vadd.f32 0.0, %v816
        %v818 = vpop.f32.mrb[0].mxu0
        %819 = vmatprep.mubr.f32.mxu0 0.0
        %820 = vmatmul.mubr.f32.gmra.mrb[0].mxu0 %v596
        %v821 = vpop.f32.mrb[0].mxu0
        %v822 = vadd.f32 0.0, %v821
        %v823 = vpop.f32.mrb[0].mxu0
        %824 = vmatprep.mubr.f32.mxu0 0.0
        %825 = vmatmul.mubr.f32.gmra.mrb[0].mxu0 %v599
        %v826 = vpop.f32.mrb[0].mxu0
        %v827 = vadd.f32 0.0, %v826
        %v828 = vpop.f32.mrb[0].mxu0
        %829 = vdwg.mxu0
        %v831 = vsel %vm504, %v437, 0
        %v834 = vsel %vm504, %v438, 0
        %v837 = vsel %vm504, %v439, 0
        %v840 = vsel %vm504, %v440, 0
        %v843 = vsel %vm504, %v441, 0
        %v846 = vsel %vm504, %v442, 0
        %v849 = vsel %vm504, %v443, 0
        %v852 = vsel %vm504, %v444, 0
        %v855 = vsel %vm504, %v445, 0
        %v858 = vsel %vm504, %v446, 0
        %v861 = vsel %vm504, %v447, 0
        %v864 = vsel %vm504, %v448, 0
        %v867 = vsel %vm504, %v449, 0
        %v870 = vsel %vm504, %v450, 0
        %v873 = vsel %vm504, %v451, 0
        %v876 = vsel %vm504, %v452, 0
        %v879 = vsel %vm504, %v453, 0
        %v882 = vsel %vm504, %v454, 0
        %v885 = vsel %vm504, %v455, 0
        %v888 = vsel %vm504, %v456, 0
        %v891 = vsel %vm504, %v457, 0
        %v894 = vsel %vm504, %v458, 0
        %v897 = vsel %vm504, %v459, 0
        %v900 = vsel %vm504, %v460, 0
        %v903 = vsel %vm504, %v461, 0
        %v906 = vsel %vm504, %v462, 0
        %v909 = vsel %vm504, %v463, 0
        %v912 = vsel %vm504, %v464, 0
        %v915 = vsel %vm504, %v465, 0
        %v918 = vsel %vm504, %v466, 0
        %v921 = vsel %vm504, %v467, 0
        %v924 = vsel %vm504, %v468, 0
        %v927 = vsel %vm601, %v469, 0
        %929 = vmatprep.subr.mxu0 0.0
        %930 = vmatpush1.msra.mxu0 %v927
        %931 = vmatprep.subr.mxu0 0.0
        %932 = vmatpush1.msra.mxu0 0.0
        %933 = vmatprep.subr.mxu0 0.0
        %934 = vmatpush1.msra.mxu0 0.0
        %935 = vmatprep.subr.mxu0 0.0
        %936 = vmatpush1.msra.mxu0 0.0
        %937 = vmatprep.subr.mxu0 0.0
        %938 = vmatpush1.msra.mxu0 0.0
        %939 = vmatprep.subr.mxu0 0.0
        %940 = vmatpush1.msra.mxu0 0.0
        %941 = vmatprep.subr.mxu0 0.0
        %942 = vmatpush1.msra.mxu0 0.0
        %943 = vmatprep.subr.mxu0 0.0
        %944 = vmatpush1.msra.mxu0 0.0
        %945 = vmatprep.subr.mxu0 0.0
        %946 = vmatpush1.msra.mxu0 0.0
        %947 = vmatprep.subr.mxu0 0.0
        %948 = vmatpush1.msra.mxu0 0.0
        %949 = vmatprep.subr.mxu0 0.0
        %950 = vmatpush1.msra.mxu0 0.0
        %951 = vmatprep.subr.mxu0 0.0
        %952 = vmatpush1.msra.mxu0 0.0
        %953 = vmatprep.subr.mxu0 0.0
        %954 = vmatpush1.msra.mxu0 0.0
        %955 = vmatprep.subr.mxu0 0.0
        %956 = vmatpush1.msra.mxu0 0.0
        %957 = vmatprep.subr.mxu0 0.0
        %958 = vmatpush1.msra.mxu0 0.0
        %959 = vmatprep.subr.mxu0 0.0
        %960 = vmatpush1.msra.mxu0 0.0
        %961 = vmatprep.subr.mxu0 0.0
        %962 = vmatpush1.msra.mxu0 0.0
        %963 = vmatprep.subr.mxu0 0.0
        %964 = vmatpush1.msra.mxu0 0.0
        %965 = vmatprep.subr.mxu0 0.0
        %966 = vmatpush1.msra.mxu0 0.0
        %967 = vmatprep.subr.mxu0 0.0
        %968 = vmatpush1.msra.mxu0 0.0
        %969 = vmatprep.subr.mxu0 0.0
        %970 = vmatpush1.msra.mxu0 0.0
        %971 = vmatprep.subr.mxu0 0.0
        %972 = vmatpush1.msra.mxu0 0.0
        %973 = vmatprep.subr.mxu0 0.0
        %974 = vmatpush1.msra.mxu0 0.0
        %975 = vmatprep.subr.mxu0 0.0
        %976 = vmatpush1.msra.mxu0 0.0
        %977 = vmatprep.subr.mxu0 0.0
        %978 = vmatpush1.msra.mxu0 0.0
        %979 = vmatprep.subr.mxu0 0.0
        %980 = vmatpush1.msra.mxu0 0.0
        %981 = vmatprep.subr.mxu0 0.0
        %982 = vmatpush1.msra.mxu0 0.0
        %983 = vmatprep.subr.mxu0 0.0
        %984 = vmatpush1.msra.mxu0 0.0
        %985 = vmatprep.subr.mxu0 0.0
        %986 = vmatpush1.msra.mxu0 0.0
        %987 = vmatprep.subr.mxu0 0.0
        %988 = vmatpush1.msra.mxu0 0.0
        %989 = vmatprep.subr.mxu0 0.0
        %990 = vmatpush1.msra.mxu0 0.0
        %991 = vmatprep.subr.mxu0 0.0
        %992 = vmatpush1.msra.mxu0 0.0
        %993 = vmatprep.mubr.f32.mxu0 0.0
        %994 = vmatmul.mubr.f32.gmra.mrb[0].mxu0 %v831
        %v995 = vpop.f32.mrb[0].mxu0
        %v996 = vadd.f32 %v672, %v995
        %v997 = vpop.f32.mrb[0].mxu0
        %998 = vmatprep.mubr.f32.mxu0 0.0
        %999 = vmatmul.mubr.f32.gmra.mrb[0].mxu0 %v834
        %v1000 = vpop.f32.mrb[0].mxu0
        %v1001 = vadd.f32 %v677, %v1000
        %v1002 = vpop.f32.mrb[0].mxu0
        %1003 = vmatprep.mubr.f32.mxu0 0.0
        %1004 = vmatmul.mubr.f32.gmra.mrb[0].mxu0 %v837
        %v1005 = vpop.f32.mrb[0].mxu0
        %v1006 = vadd.f32 %v682, %v1005
        %v1007 = vpop.f32.mrb[0].mxu0
        %1008 = vmatprep.mubr.f32.mxu0 0.0
        %1009 = vmatmul.mubr.f32.gmra.mrb[0].mxu0 %v840
        %v1010 = vpop.f32.mrb[0].mxu0
        %v1011 = vadd.f32 %v687, %v1010
        %v1012 = vpop.f32.mrb[0].mxu0
        %1013 = vmatprep.mubr.f32.mxu0 0.0
        %1014 = vmatmul.mubr.f32.gmra.mrb[0].mxu0 %v843
        %v1015 = vpop.f32.mrb[0].mxu0
        %v1016 = vadd.f32 %v692, %v1015
        %v1017 = vpop.f32.mrb[0].mxu0
        %1018 = vmatprep.mubr.f32.mxu0 0.0
        %1019 = vmatmul.mubr.f32.gmra.mrb[0].mxu0 %v846
        %v1020 = vpop.f32.mrb[0].mxu0
        %v1021 = vadd.f32 %v697, %v1020
        %v1022 = vpop.f32.mrb[0].mxu0
        %1023 = vmatprep.mubr.f32.mxu0 0.0
        %1024 = vmatmul.mubr.f32.gmra.mrb[0].mxu0 %v849
        %v1025 = vpop.f32.mrb[0].mxu0
        %v1026 = vadd.f32 %v702, %v1025
        %v1027 = vpop.f32.mrb[0].mxu0
        %1028 = vmatprep.mubr.f32.mxu0 0.0
        %1029 = vmatmul.mubr.f32.gmra.mrb[0].mxu0 %v852
        %v1030 = vpop.f32.mrb[0].mxu0
        %v1031 = vadd.f32 %v707, %v1030
        %v1032 = vpop.f32.mrb[0].mxu0
        %1033 = vmatprep.mubr.f32.mxu0 0.0
        %1034 = vmatmul.mubr.f32.gmra.mrb[0].mxu0 %v855
        %v1035 = vpop.f32.mrb[0].mxu0
        %v1036 = vadd.f32 %v712, %v1035
        %v1037 = vpop.f32.mrb[0].mxu0
        %1038 = vmatprep.mubr.f32.mxu0 0.0
        %1039 = vmatmul.mubr.f32.gmra.mrb[0].mxu0 %v858
        %v1040 = vpop.f32.mrb[0].mxu0
        %v1041 = vadd.f32 %v717, %v1040
        %v1042 = vpop.f32.mrb[0].mxu0
        %1043 = vmatprep.mubr.f32.mxu0 0.0
        %1044 = vmatmul.mubr.f32.gmra.mrb[0].mxu0 %v861
        %v1045 = vpop.f32.mrb[0].mxu0
        %v1046 = vadd.f32 %v722, %v1045
        %v1047 = vpop.f32.mrb[0].mxu0
        %1048 = vmatprep.mubr.f32.mxu0 0.0
        %1049 = vmatmul.mubr.f32.gmra.mrb[0].mxu0 %v864
        %v1050 = vpop.f32.mrb[0].mxu0
        %v1051 = vadd.f32 %v727, %v1050
        %v1052 = vpop.f32.mrb[0].mxu0
        %1053 = vmatprep.mubr.f32.mxu0 0.0
        %1054 = vmatmul.mubr.f32.gmra.mrb[0].mxu0 %v867
        %v1055 = vpop.f32.mrb[0].mxu0
        %v1056 = vadd.f32 %v732, %v1055
        %v1057 = vpop.f32.mrb[0].mxu0
        %1058 = vmatprep.mubr.f32.mxu0 0.0
        %1059 = vmatmul.mubr.f32.gmra.mrb[0].mxu0 %v870
        %v1060 = vpop.f32.mrb[0].mxu0
        %v1061 = vadd.f32 %v737, %v1060
        %v1062 = vpop.f32.mrb[0].mxu0
        %1063 = vmatprep.mubr.f32.mxu0 0.0
        %1064 = vmatmul.mubr.f32.gmra.mrb[0].mxu0 %v873
        %v1065 = vpop.f32.mrb[0].mxu0
        %v1066 = vadd.f32 %v742, %v1065
        %v1067 = vpop.f32.mrb[0].mxu0
        %1068 = vmatprep.mubr.f32.mxu0 0.0
        %1069 = vmatmul.mubr.f32.gmra.mrb[0].mxu0 %v876
        %v1070 = vpop.f32.mrb[0].mxu0
        %v1071 = vadd.f32 %v747, %v1070
        %v1072 = vpop.f32.mrb[0].mxu0
        %1073 = vmatprep.mubr.f32.mxu0 0.0
        %1074 = vmatmul.mubr.f32.gmra.mrb[0].mxu0 %v879
        %v1075 = vpop.f32.mrb[0].mxu0
        %v1076 = vadd.f32 %v752, %v1075
        %v1077 = vpop.f32.mrb[0].mxu0
        %1078 = vmatprep.mubr.f32.mxu0 0.0
        %1079 = vmatmul.mubr.f32.gmra.mrb[0].mxu0 %v882
        %v1080 = vpop.f32.mrb[0].mxu0
        %v1081 = vadd.f32 %v757, %v1080
        %v1082 = vpop.f32.mrb[0].mxu0
        %1083 = vmatprep.mubr.f32.mxu0 0.0
        %1084 = vmatmul.mubr.f32.gmra.mrb[0].mxu0 %v885
        %v1085 = vpop.f32.mrb[0].mxu0
        %v1086 = vadd.f32 %v762, %v1085
        %v1087 = vpop.f32.mrb[0].mxu0
        %1088 = vmatprep.mubr.f32.mxu0 0.0
        %1089 = vmatmul.mubr.f32.gmra.mrb[0].mxu0 %v888
        %v1090 = vpop.f32.mrb[0].mxu0
        %v1091 = vadd.f32 %v767, %v1090
        %v1092 = vpop.f32.mrb[0].mxu0
        %1093 = vmatprep.mubr.f32.mxu0 0.0
        %1094 = vmatmul.mubr.f32.gmra.mrb[0].mxu0 %v891
        %v1095 = vpop.f32.mrb[0].mxu0
        %v1096 = vadd.f32 %v772, %v1095
        %v1097 = vpop.f32.mrb[0].mxu0
        %1098 = vmatprep.mubr.f32.mxu0 0.0
        %1099 = vmatmul.mubr.f32.gmra.mrb[0].mxu0 %v894
        %v1100 = vpop.f32.mrb[0].mxu0
        %v1101 = vadd.f32 %v777, %v1100
        %v1102 = vpop.f32.mrb[0].mxu0
        %1103 = vmatprep.mubr.f32.mxu0 0.0
        %1104 = vmatmul.mubr.f32.gmra.mrb[0].mxu0 %v897
        %v1105 = vpop.f32.mrb[0].mxu0
        %v1106 = vadd.f32 %v782, %v1105
        %v1107 = vpop.f32.mrb[0].mxu0
        %1108 = vmatprep.mubr.f32.mxu0 0.0
        %1109 = vmatmul.mubr.f32.gmra.mrb[0].mxu0 %v900
        %v1110 = vpop.f32.mrb[0].mxu0
        %v1111 = vadd.f32 %v787, %v1110
        %v1112 = vpop.f32.mrb[0].mxu0
        %1113 = vmatprep.mubr.f32.mxu0 0.0
        %1114 = vmatmul.mubr.f32.gmra.mrb[0].mxu0 %v903
        %v1115 = vpop.f32.mrb[0].mxu0
        %v1116 = vadd.f32 %v792, %v1115
        %v1117 = vpop.f32.mrb[0].mxu0
        %1118 = vmatprep.mubr.f32.mxu0 0.0
        %1119 = vmatmul.mubr.f32.gmra.mrb[0].mxu0 %v906
        %v1120 = vpop.f32.mrb[0].mxu0
        %v1121 = vadd.f32 %v797, %v1120
        %v1122 = vpop.f32.mrb[0].mxu0
        %1123 = vmatprep.mubr.f32.mxu0 0.0
        %1124 = vmatmul.mubr.f32.gmra.mrb[0].mxu0 %v909
        %v1125 = vpop.f32.mrb[0].mxu0
        %v1126 = vadd.f32 %v802, %v1125
        %v1127 = vpop.f32.mrb[0].mxu0
        %1128 = vmatprep.mubr.f32.mxu0 0.0
        %1129 = vmatmul.mubr.f32.gmra.mrb[0].mxu0 %v912
        %v1130 = vpop.f32.mrb[0].mxu0
        %v1131 = vadd.f32 %v807, %v1130
        %v1132 = vpop.f32.mrb[0].mxu0
        %1133 = vmatprep.mubr.f32.mxu0 0.0
        %1134 = vmatmul.mubr.f32.gmra.mrb[0].mxu0 %v915
        %v1135 = vpop.f32.mrb[0].mxu0
        %v1136 = vadd.f32 %v812, %v1135
        %v1137 = vpop.f32.mrb[0].mxu0
        %1138 = vmatprep.mubr.f32.mxu0 0.0
        %1139 = vmatmul.mubr.f32.gmra.mrb[0].mxu0 %v918
        %v1140 = vpop.f32.mrb[0].mxu0
        %v1141 = vadd.f32 %v817, %v1140
        %v1142 = vpop.f32.mrb[0].mxu0
        %1143 = vmatprep.mubr.f32.mxu0 0.0
        %1144 = vmatmul.mubr.f32.gmra.mrb[0].mxu0 %v921
        %v1145 = vpop.f32.mrb[0].mxu0
        %v1146 = vadd.f32 %v822, %v1145
        %v1147 = vpop.f32.mrb[0].mxu0
        %1148 = vmatprep.mubr.f32.mxu0 0.0
        %1149 = vmatmul.mubr.f32.gmra.mrb[0].mxu0 %v924
        %v1150 = vpop.f32.mrb[0].mxu0
        %v1151 = vadd.f32 %v827, %v1150
        %v1152 = vpop.f32.mrb[0].mxu0
        %1153 = vdwg.mxu0
        %v1154 = vld [vmem:[%s368 + $0x2] sm:$0xff]
        %v1155 = vld [vmem:[%s368 + $0xa] sm:$0xff]
        %v1156 = vld [vmem:[%s368 + $0x1a] sm:$0xff]
        %v1157 = vld [vmem:[%s368 + $0x22] sm:$0xff]
        %v1158 = vld [vmem:[%s368 + $0x32] sm:$0xff]
        %v1159 = vld [vmem:[%s368 + $0x3a] sm:$0xff]
        %v1160 = vld [vmem:[%s368 + $0x4a] sm:$0xff]
        %v1161 = vld [vmem:[%s368 + $0x52] sm:$0xff]
        %v1162 = vld [vmem:[%s368 + $0x62] sm:$0xff]
        %v1163 = vld [vmem:[%s368 + $0x6a] sm:$0xff]
        %v1164 = vld [vmem:[%s368 + $0x7a] sm:$0xff]
        %v1165 = vld [vmem:[%s368 + $0x82] sm:$0xff]
        %v1166 = vld [vmem:[%s368 + $0x92] sm:$0xff]
        %v1167 = vld [vmem:[%s368 + $0x9a] sm:$0xff]
        %v1168 = vld [vmem:[%s368 + $0xaa] sm:$0xff]
        %v1169 = vld [vmem:[%s368 + $0xb2] sm:$0xff]
        %v1170 = vld [vmem:[%s368 + $0xc2] sm:$0xff]
        %v1171 = vld [vmem:[%s368 + $0xca] sm:$0xff]
        %v1172 = vld [vmem:[%s368 + $0xda] sm:$0xff]
        %v1173 = vld [vmem:[%s368 + $0xe2] sm:$0xff]
        %v1174 = vld [vmem:[%s368 + $0xf2] sm:$0xff]
        %v1175 = vld [vmem:[%s368 + $0xfa] sm:$0xff]
        %v1176 = vld [vmem:[%s368 + $0x10a] sm:$0xff]
        %v1177 = vld [vmem:[%s368 + $0x112] sm:$0xff]
        %v1178 = vld [vmem:[%s368 + $0x122] sm:$0xff]
        %v1179 = vld [vmem:[%s368 + $0x12a] sm:$0xff]
        %v1180 = vld [vmem:[%s368 + $0x13a] sm:$0xff]
        %v1181 = vld [vmem:[%s368 + $0x142] sm:$0xff]
        %v1182 = vld [vmem:[%s368 + $0x152] sm:$0xff]
        %v1183 = vld [vmem:[%s368 + $0x15a] sm:$0xff]
        %v1184 = vld [vmem:[%s368 + $0x16a] sm:$0xff]
        %v1185 = vld [vmem:[%s368 + $0x172] sm:$0xff]
        %s1186 = scalar_lea.vmem [#allocation5], 8
        %v1187 = vld [vmem:[%s1186] sm:$0xf]
        %v1189 = vsel %vm504, %v1154, 0
        %v1192 = vsel %vm504, %v1155, 0
        %v1195 = vsel %vm504, %v1156, 0
        %v1198 = vsel %vm504, %v1157, 0
        %v1201 = vsel %vm504, %v1158, 0
        %v1204 = vsel %vm504, %v1159, 0
        %v1207 = vsel %vm504, %v1160, 0
        %v1210 = vsel %vm504, %v1161, 0
        %v1213 = vsel %vm504, %v1162, 0
        %v1216 = vsel %vm504, %v1163, 0
        %v1219 = vsel %vm504, %v1164, 0
        %v1222 = vsel %vm504, %v1165, 0
        %v1225 = vsel %vm504, %v1166, 0
        %v1228 = vsel %vm504, %v1167, 0
        %v1231 = vsel %vm504, %v1168, 0
        %v1234 = vsel %vm504, %v1169, 0
        %v1237 = vsel %vm504, %v1170, 0
        %v1240 = vsel %vm504, %v1171, 0
        %v1243 = vsel %vm504, %v1172, 0
        %v1246 = vsel %vm504, %v1173, 0
        %v1249 = vsel %vm504, %v1174, 0
        %v1252 = vsel %vm504, %v1175, 0
        %v1255 = vsel %vm504, %v1176, 0
        %v1258 = vsel %vm504, %v1177, 0
        %v1261 = vsel %vm504, %v1178, 0
        %v1264 = vsel %vm504, %v1179, 0
        %v1267 = vsel %vm504, %v1180, 0
        %v1270 = vsel %vm504, %v1181, 0
        %v1273 = vsel %vm504, %v1182, 0
        %v1276 = vsel %vm504, %v1183, 0
        %v1279 = vsel %vm504, %v1184, 0
        %v1282 = vsel %vm504, %v1185, 0
        %v1285 = vsel %vm601, %v1187, 0
        %1287 = vmatprep.subr.mxu0 0.0
        %1288 = vmatpush1.msra.mxu0 %v1285
        %1289 = vmatprep.subr.mxu0 0.0
        %1290 = vmatpush1.msra.mxu0 0.0
        %1291 = vmatprep.subr.mxu0 0.0
        %1292 = vmatpush1.msra.mxu0 0.0
        %1293 = vmatprep.subr.mxu0 0.0
        %1294 = vmatpush1.msra.mxu0 0.0
        %1295 = vmatprep.subr.mxu0 0.0
        %1296 = vmatpush1.msra.mxu0 0.0
        %1297 = vmatprep.subr.mxu0 0.0
        %1298 = vmatpush1.msra.mxu0 0.0
        %1299 = vmatprep.subr.mxu0 0.0
        %1300 = vmatpush1.msra.mxu0 0.0
        %1301 = vmatprep.subr.mxu0 0.0
        %1302 = vmatpush1.msra.mxu0 0.0
        %1303 = vmatprep.subr.mxu0 0.0
        %1304 = vmatpush1.msra.mxu0 0.0
        %1305 = vmatprep.subr.mxu0 0.0
        %1306 = vmatpush1.msra.mxu0 0.0
        %1307 = vmatprep.subr.mxu0 0.0
        %1308 = vmatpush1.msra.mxu0 0.0
        %1309 = vmatprep.subr.mxu0 0.0
        %1310 = vmatpush1.msra.mxu0 0.0
        %1311 = vmatprep.subr.mxu0 0.0
        %1312 = vmatpush1.msra.mxu0 0.0
        %1313 = vmatprep.subr.mxu0 0.0
        %1314 = vmatpush1.msra.mxu0 0.0
        %1315 = vmatprep.subr.mxu0 0.0
        %1316 = vmatpush1.msra.mxu0 0.0
        %1317 = vmatprep.subr.mxu0 0.0
        %1318 = vmatpush1.msra.mxu0 0.0
        %1319 = vmatprep.subr.mxu0 0.0
        %1320 = vmatpush1.msra.mxu0 0.0
        %1321 = vmatprep.subr.mxu0 0.0
        %1322 = vmatpush1.msra.mxu0 0.0
        %1323 = vmatprep.subr.mxu0 0.0
        %1324 = vmatpush1.msra.mxu0 0.0
        %1325 = vmatprep.subr.mxu0 0.0
        %1326 = vmatpush1.msra.mxu0 0.0
        %1327 = vmatprep.subr.mxu0 0.0
        %1328 = vmatpush1.msra.mxu0 0.0
        %1329 = vmatprep.subr.mxu0 0.0
        %1330 = vmatpush1.msra.mxu0 0.0
        %1331 = vmatprep.subr.mxu0 0.0
        %1332 = vmatpush1.msra.mxu0 0.0
        %1333 = vmatprep.subr.mxu0 0.0
        %1334 = vmatpush1.msra.mxu0 0.0
        %1335 = vmatprep.subr.mxu0 0.0
        %1336 = vmatpush1.msra.mxu0 0.0
        %1337 = vmatprep.subr.mxu0 0.0
        %1338 = vmatpush1.msra.mxu0 0.0
        %1339 = vmatprep.subr.mxu0 0.0
        %1340 = vmatpush1.msra.mxu0 0.0
        %1341 = vmatprep.subr.mxu0 0.0
        %1342 = vmatpush1.msra.mxu0 0.0
        %1343 = vmatprep.subr.mxu0 0.0
        %1344 = vmatpush1.msra.mxu0 0.0
        %1345 = vmatprep.subr.mxu0 0.0
        %1346 = vmatpush1.msra.mxu0 0.0
        %1347 = vmatprep.subr.mxu0 0.0
        %1348 = vmatpush1.msra.mxu0 0.0
        %1349 = vmatprep.subr.mxu0 0.0
        %1350 = vmatpush1.msra.mxu0 0.0
        %1351 = vmatprep.mubr.f32.mxu0 0.0
        %1352 = vmatmul.mubr.f32.gmra.mrb[0].mxu0 %v1189
        %v1353 = vpop.f32.mrb[0].mxu0
        %v1354 = vadd.f32 0.0, %v1353
        %v1355 = vpop.f32.mrb[0].mxu0
        %1356 = vmatprep.mubr.f32.mxu0 0.0
        %1357 = vmatmul.mubr.f32.gmra.mrb[0].mxu0 %v1192
        %v1358 = vpop.f32.mrb[0].mxu0
        %v1359 = vadd.f32 0.0, %v1358
        %v1360 = vpop.f32.mrb[0].mxu0
        %1361 = vmatprep.mubr.f32.mxu0 0.0
        %1362 = vmatmul.mubr.f32.gmra.mrb[0].mxu0 %v1195
        %v1363 = vpop.f32.mrb[0].mxu0
        %v1364 = vadd.f32 0.0, %v1363
        %v1365 = vpop.f32.mrb[0].mxu0
        %1366 = vmatprep.mubr.f32.mxu0 0.0
        %1367 = vmatmul.mubr.f32.gmra.mrb[0].mxu0 %v1198
        %v1368 = vpop.f32.mrb[0].mxu0
        %v1369 = vadd.f32 0.0, %v1368
        %v1370 = vpop.f32.mrb[0].mxu0
        %1371 = vmatprep.mubr.f32.mxu0 0.0
        %1372 = vmatmul.mubr.f32.gmra.mrb[0].mxu0 %v1201
        %v1373 = vpop.f32.mrb[0].mxu0
        %v1374 = vadd.f32 0.0, %v1373
        %v1375 = vpop.f32.mrb[0].mxu0
        %1376 = vmatprep.mubr.f32.mxu0 0.0
        %1377 = vmatmul.mubr.f32.gmra.mrb[0].mxu0 %v1204
        %v1378 = vpop.f32.mrb[0].mxu0
        %v1379 = vadd.f32 0.0, %v1378
        %v1380 = vpop.f32.mrb[0].mxu0
        %1381 = vmatprep.mubr.f32.mxu0 0.0
        %1382 = vmatmul.mubr.f32.gmra.mrb[0].mxu0 %v1207
        %v1383 = vpop.f32.mrb[0].mxu0
        %v1384 = vadd.f32 0.0, %v1383
        %v1385 = vpop.f32.mrb[0].mxu0
        %1386 = vmatprep.mubr.f32.mxu0 0.0
        %1387 = vmatmul.mubr.f32.gmra.mrb[0].mxu0 %v1210
        %v1388 = vpop.f32.mrb[0].mxu0
        %v1389 = vadd.f32 0.0, %v1388
        %v1390 = vpop.f32.mrb[0].mxu0
        %1391 = vmatprep.mubr.f32.mxu0 0.0
        %1392 = vmatmul.mubr.f32.gmra.mrb[0].mxu0 %v1213
        %v1393 = vpop.f32.mrb[0].mxu0
        %v1394 = vadd.f32 0.0, %v1393
        %v1395 = vpop.f32.mrb[0].mxu0
        %1396 = vmatprep.mubr.f32.mxu0 0.0
        %1397 = vmatmul.mubr.f32.gmra.mrb[0].mxu0 %v1216
        %v1398 = vpop.f32.mrb[0].mxu0
        %v1399 = vadd.f32 0.0, %v1398
        %v1400 = vpop.f32.mrb[0].mxu0
        %1401 = vmatprep.mubr.f32.mxu0 0.0
        %1402 = vmatmul.mubr.f32.gmra.mrb[0].mxu0 %v1219
        %v1403 = vpop.f32.mrb[0].mxu0
        %v1404 = vadd.f32 0.0, %v1403
        %v1405 = vpop.f32.mrb[0].mxu0
        %1406 = vmatprep.mubr.f32.mxu0 0.0
        %1407 = vmatmul.mubr.f32.gmra.mrb[0].mxu0 %v1222
        %v1408 = vpop.f32.mrb[0].mxu0
        %v1409 = vadd.f32 0.0, %v1408
        %v1410 = vpop.f32.mrb[0].mxu0
        %1411 = vmatprep.mubr.f32.mxu0 0.0
        %1412 = vmatmul.mubr.f32.gmra.mrb[0].mxu0 %v1225
        %v1413 = vpop.f32.mrb[0].mxu0
        %v1414 = vadd.f32 0.0, %v1413
        %v1415 = vpop.f32.mrb[0].mxu0
        %1416 = vmatprep.mubr.f32.mxu0 0.0
        %1417 = vmatmul.mubr.f32.gmra.mrb[0].mxu0 %v1228
        %v1418 = vpop.f32.mrb[0].mxu0
        %v1419 = vadd.f32 0.0, %v1418
        %v1420 = vpop.f32.mrb[0].mxu0
        %1421 = vmatprep.mubr.f32.mxu0 0.0
        %1422 = vmatmul.mubr.f32.gmra.mrb[0].mxu0 %v1231
        %v1423 = vpop.f32.mrb[0].mxu0
        %v1424 = vadd.f32 0.0, %v1423
        %v1425 = vpop.f32.mrb[0].mxu0
        %1426 = vmatprep.mubr.f32.mxu0 0.0
        %1427 = vmatmul.mubr.f32.gmra.mrb[0].mxu0 %v1234
        %v1428 = vpop.f32.mrb[0].mxu0
        %v1429 = vadd.f32 0.0, %v1428
        %v1430 = vpop.f32.mrb[0].mxu0
        %1431 = vmatprep.mubr.f32.mxu0 0.0
        %1432 = vmatmul.mubr.f32.gmra.mrb[0].mxu0 %v1237
        %v1433 = vpop.f32.mrb[0].mxu0
        %v1434 = vadd.f32 0.0, %v1433
        %v1435 = vpop.f32.mrb[0].mxu0
        %1436 = vmatprep.mubr.f32.mxu0 0.0
        %1437 = vmatmul.mubr.f32.gmra.mrb[0].mxu0 %v1240
        %v1438 = vpop.f32.mrb[0].mxu0
        %v1439 = vadd.f32 0.0, %v1438
        %v1440 = vpop.f32.mrb[0].mxu0
        %1441 = vmatprep.mubr.f32.mxu0 0.0
        %1442 = vmatmul.mubr.f32.gmra.mrb[0].mxu0 %v1243
        %v1443 = vpop.f32.mrb[0].mxu0
        %v1444 = vadd.f32 0.0, %v1443
        %v1445 = vpop.f32.mrb[0].mxu0
        %1446 = vmatprep.mubr.f32.mxu0 0.0
        %1447 = vmatmul.mubr.f32.gmra.mrb[0].mxu0 %v1246
        %v1448 = vpop.f32.mrb[0].mxu0
        %v1449 = vadd.f32 0.0, %v1448
        %v1450 = vpop.f32.mrb[0].mxu0
        %1451 = vmatprep.mubr.f32.mxu0 0.0
        %1452 = vmatmul.mubr.f32.gmra.mrb[0].mxu0 %v1249
        %v1453 = vpop.f32.mrb[0].mxu0
        %v1454 = vadd.f32 0.0, %v1453
        %v1455 = vpop.f32.mrb[0].mxu0
        %1456 = vmatprep.mubr.f32.mxu0 0.0
        %1457 = vmatmul.mubr.f32.gmra.mrb[0].mxu0 %v1252
        %v1458 = vpop.f32.mrb[0].mxu0
        %v1459 = vadd.f32 0.0, %v1458
        %v1460 = vpop.f32.mrb[0].mxu0
        %1461 = vmatprep.mubr.f32.mxu0 0.0
        %1462 = vmatmul.mubr.f32.gmra.mrb[0].mxu0 %v1255
        %v1463 = vpop.f32.mrb[0].mxu0
        %v1464 = vadd.f32 0.0, %v1463
        %v1465 = vpop.f32.mrb[0].mxu0
        %1466 = vmatprep.mubr.f32.mxu0 0.0
        %1467 = vmatmul.mubr.f32.gmra.mrb[0].mxu0 %v1258
        %v1468 = vpop.f32.mrb[0].mxu0
        %v1469 = vadd.f32 0.0, %v1468
        %v1470 = vpop.f32.mrb[0].mxu0
        %1471 = vmatprep.mubr.f32.mxu0 0.0
        %1472 = vmatmul.mubr.f32.gmra.mrb[0].mxu0 %v1261
        %v1473 = vpop.f32.mrb[0].mxu0
        %v1474 = vadd.f32 0.0, %v1473
        %v1475 = vpop.f32.mrb[0].mxu0
        %1476 = vmatprep.mubr.f32.mxu0 0.0
        %1477 = vmatmul.mubr.f32.gmra.mrb[0].mxu0 %v1264
        %v1478 = vpop.f32.mrb[0].mxu0
        %v1479 = vadd.f32 0.0, %v1478
        %v1480 = vpop.f32.mrb[0].mxu0
        %1481 = vmatprep.mubr.f32.mxu0 0.0
        %1482 = vmatmul.mubr.f32.gmra.mrb[0].mxu0 %v1267
        %v1483 = vpop.f32.mrb[0].mxu0
        %v1484 = vadd.f32 0.0, %v1483
        %v1485 = vpop.f32.mrb[0].mxu0
        %1486 = vmatprep.mubr.f32.mxu0 0.0
        %1487 = vmatmul.mubr.f32.gmra.mrb[0].mxu0 %v1270
        %v1488 = vpop.f32.mrb[0].mxu0
        %v1489 = vadd.f32 0.0, %v1488
        %v1490 = vpop.f32.mrb[0].mxu0
        %1491 = vmatprep.mubr.f32.mxu0 0.0
        %1492 = vmatmul.mubr.f32.gmra.mrb[0].mxu0 %v1273
        %v1493 = vpop.f32.mrb[0].mxu0
        %v1494 = vadd.f32 0.0, %v1493
        %v1495 = vpop.f32.mrb[0].mxu0
        %1496 = vmatprep.mubr.f32.mxu0 0.0
        %1497 = vmatmul.mubr.f32.gmra.mrb[0].mxu0 %v1276
        %v1498 = vpop.f32.mrb[0].mxu0
        %v1499 = vadd.f32 0.0, %v1498
        %v1500 = vpop.f32.mrb[0].mxu0
        %1501 = vmatprep.mubr.f32.mxu0 0.0
        %1502 = vmatmul.mubr.f32.gmra.mrb[0].mxu0 %v1279
        %v1503 = vpop.f32.mrb[0].mxu0
        %v1504 = vadd.f32 0.0, %v1503
        %v1505 = vpop.f32.mrb[0].mxu0
        %1506 = vmatprep.mubr.f32.mxu0 0.0
        %1507 = vmatmul.mubr.f32.gmra.mrb[0].mxu0 %v1282
        %v1508 = vpop.f32.mrb[0].mxu0
        %v1509 = vadd.f32 0.0, %v1508
        %v1510 = vpop.f32.mrb[0].mxu0
        %1511 = vdwg.mxu0
        %v1512 = vadd.f32 %v996, %v1354
        %v1513 = vadd.f32 %v1001, %v1359
        %v1514 = vadd.f32 %v1006, %v1364
        %v1515 = vadd.f32 %v1011, %v1369
        %v1516 = vadd.f32 %v1016, %v1374
        %v1517 = vadd.f32 %v1021, %v1379
        %v1518 = vadd.f32 %v1026, %v1384
        %v1519 = vadd.f32 %v1031, %v1389
        %v1520 = vadd.f32 %v1036, %v1394
        %v1521 = vadd.f32 %v1041, %v1399
        %v1522 = vadd.f32 %v1046, %v1404
        %v1523 = vadd.f32 %v1051, %v1409
        %v1524 = vadd.f32 %v1056, %v1414
        %v1525 = vadd.f32 %v1061, %v1419
        %v1526 = vadd.f32 %v1066, %v1424
        %v1527 = vadd.f32 %v1071, %v1429
        %v1528 = vadd.f32 %v1076, %v1434
        %v1529 = vadd.f32 %v1081, %v1439
        %v1530 = vadd.f32 %v1086, %v1444
        %v1531 = vadd.f32 %v1091, %v1449
        %v1532 = vadd.f32 %v1096, %v1454
        %v1533 = vadd.f32 %v1101, %v1459
        %v1534 = vadd.f32 %v1106, %v1464
        %v1535 = vadd.f32 %v1111, %v1469
        %v1536 = vadd.f32 %v1116, %v1474
        %v1537 = vadd.f32 %v1121, %v1479
        %v1538 = vadd.f32 %v1126, %v1484
        %v1539 = vadd.f32 %v1131, %v1489
        %v1540 = vadd.f32 %v1136, %v1494
        %v1541 = vadd.f32 %v1141, %v1499
        %v1542 = vadd.f32 %v1146, %v1504
        %v1543 = vadd.f32 %v1151, %v1509
        %s1544 = scalar_lea.vmem %s368, 24 [#allocation2]
        %v1545 = vld [vmem:[%s1544] sm:$0xff]
        %v1546 = vld [vmem:[%s1544 + $0x8] sm:$0xff]
        %v1547 = vld [vmem:[%s1544 + $0x18] sm:$0xff]
        %v1548 = vld [vmem:[%s1544 + $0x20] sm:$0xff]
        %v1549 = vld [vmem:[%s1544 + $0x30] sm:$0xff]
        %v1550 = vld [vmem:[%s1544 + $0x38] sm:$0xff]
        %v1551 = vld [vmem:[%s1544 + $0x48] sm:$0xff]
        %v1552 = vld [vmem:[%s1544 + $0x50] sm:$0xff]
        %v1553 = vld [vmem:[%s1544 + $0x60] sm:$0xff]
        %v1554 = vld [vmem:[%s1544 + $0x68] sm:$0xff]
        %v1555 = vld [vmem:[%s1544 + $0x78] sm:$0xff]
        %v1556 = vld [vmem:[%s1544 + $0x80] sm:$0xff]
        %v1557 = vld [vmem:[%s1544 + $0x90] sm:$0xff]
        %v1558 = vld [vmem:[%s1544 + $0x98] sm:$0xff]
        %v1559 = vld [vmem:[%s1544 + $0xa8] sm:$0xff]
        %v1560 = vld [vmem:[%s1544 + $0xb0] sm:$0xff]
        %v1561 = vld [vmem:[%s1544 + $0xc0] sm:$0xff]
        %v1562 = vld [vmem:[%s1544 + $0xc8] sm:$0xff]
        %v1563 = vld [vmem:[%s1544 + $0xd8] sm:$0xff]
        %v1564 = vld [vmem:[%s1544 + $0xe0] sm:$0xff]
        %v1565 = vld [vmem:[%s1544 + $0xf0] sm:$0xff]
        %v1566 = vld [vmem:[%s1544 + $0xf8] sm:$0xff]
        %v1567 = vld [vmem:[%s1544 + $0x108] sm:$0xff]
        %v1568 = vld [vmem:[%s1544 + $0x110] sm:$0xff]
        %v1569 = vld [vmem:[%s1544 + $0x120] sm:$0xff]
        %v1570 = vld [vmem:[%s1544 + $0x128] sm:$0xff]
        %v1571 = vld [vmem:[%s1544 + $0x138] sm:$0xff]
        %v1572 = vld [vmem:[%s1544 + $0x140] sm:$0xff]
        %v1573 = vld [vmem:[%s1544 + $0x150] sm:$0xff]
        %v1574 = vld [vmem:[%s1544 + $0x158] sm:$0xff]
        %v1575 = vld [vmem:[%s1544 + $0x168] sm:$0xff]
        %v1576 = vld [vmem:[%s1544 + $0x170] sm:$0xff]
        %s1577 = scalar_lea.vmem [#allocation5], 12
        %v1578 = vld [vmem:[%s1577] sm:$0xf]
        %v1580 = vsel %vm504, %v1545, 0
        %v1583 = vsel %vm504, %v1546, 0
        %v1586 = vsel %vm504, %v1547, 0
        %v1589 = vsel %vm504, %v1548, 0
        %v1592 = vsel %vm504, %v1549, 0
        %v1595 = vsel %vm504, %v1550, 0
        %v1598 = vsel %vm504, %v1551, 0
        %v1601 = vsel %vm504, %v1552, 0
        %v1604 = vsel %vm504, %v1553, 0
        %v1607 = vsel %vm504, %v1554, 0
        %v1610 = vsel %vm504, %v1555, 0
        %v1613 = vsel %vm504, %v1556, 0
        %v1616 = vsel %vm504, %v1557, 0
        %v1619 = vsel %vm504, %v1558, 0
        %v1622 = vsel %vm504, %v1559, 0
        %v1625 = vsel %vm504, %v1560, 0
        %v1628 = vsel %vm504, %v1561, 0
        %v1631 = vsel %vm504, %v1562, 0
        %v1634 = vsel %vm504, %v1563, 0
        %v1637 = vsel %vm504, %v1564, 0
        %v1640 = vsel %vm504, %v1565, 0
        %v1643 = vsel %vm504, %v1566, 0
        %v1646 = vsel %vm504, %v1567, 0
        %v1649 = vsel %vm504, %v1568, 0
        %v1652 = vsel %vm504, %v1569, 0
        %v1655 = vsel %vm504, %v1570, 0
        %v1658 = vsel %vm504, %v1571, 0
        %v1661 = vsel %vm504, %v1572, 0
        %v1664 = vsel %vm504, %v1573, 0
        %v1667 = vsel %vm504, %v1574, 0
        %v1670 = vsel %vm504, %v1575, 0
        %v1673 = vsel %vm504, %v1576, 0
        %v1676 = vsel %vm601, %v1578, 0
        %1678 = vmatprep.subr.mxu0 0.0
        %1679 = vmatpush1.msra.mxu0 %v1676
        %1680 = vmatprep.subr.mxu0 0.0
        %1681 = vmatpush1.msra.mxu0 0.0
        %1682 = vmatprep.subr.mxu0 0.0
        %1683 = vmatpush1.msra.mxu0 0.0
        %1684 = vmatprep.subr.mxu0 0.0
        %1685 = vmatpush1.msra.mxu0 0.0
        %1686 = vmatprep.subr.mxu0 0.0
        %1687 = vmatpush1.msra.mxu0 0.0
        %1688 = vmatprep.subr.mxu0 0.0
        %1689 = vmatpush1.msra.mxu0 0.0
        %1690 = vmatprep.subr.mxu0 0.0
        %1691 = vmatpush1.msra.mxu0 0.0
        %1692 = vmatprep.subr.mxu0 0.0
        %1693 = vmatpush1.msra.mxu0 0.0
        %1694 = vmatprep.subr.mxu0 0.0
        %1695 = vmatpush1.msra.mxu0 0.0
        %1696 = vmatprep.subr.mxu0 0.0
        %1697 = vmatpush1.msra.mxu0 0.0
        %1698 = vmatprep.subr.mxu0 0.0
        %1699 = vmatpush1.msra.mxu0 0.0
        %1700 = vmatprep.subr.mxu0 0.0
        %1701 = vmatpush1.msra.mxu0 0.0
        %1702 = vmatprep.subr.mxu0 0.0
        %1703 = vmatpush1.msra.mxu0 0.0
        %1704 = vmatprep.subr.mxu0 0.0
        %1705 = vmatpush1.msra.mxu0 0.0
        %1706 = vmatprep.subr.mxu0 0.0
        %1707 = vmatpush1.msra.mxu0 0.0
        %1708 = vmatprep.subr.mxu0 0.0
        %1709 = vmatpush1.msra.mxu0 0.0
        %1710 = vmatprep.subr.mxu0 0.0
        %1711 = vmatpush1.msra.mxu0 0.0
        %1712 = vmatprep.subr.mxu0 0.0
        %1713 = vmatpush1.msra.mxu0 0.0
        %1714 = vmatprep.subr.mxu0 0.0
        %1715 = vmatpush1.msra.mxu0 0.0
        %1716 = vmatprep.subr.mxu0 0.0
        %1717 = vmatpush1.msra.mxu0 0.0
        %1718 = vmatprep.subr.mxu0 0.0
        %1719 = vmatpush1.msra.mxu0 0.0
        %1720 = vmatprep.subr.mxu0 0.0
        %1721 = vmatpush1.msra.mxu0 0.0
        %1722 = vmatprep.subr.mxu0 0.0
        %1723 = vmatpush1.msra.mxu0 0.0
        %1724 = vmatprep.subr.mxu0 0.0
        %1725 = vmatpush1.msra.mxu0 0.0
        %1726 = vmatprep.subr.mxu0 0.0
        %1727 = vmatpush1.msra.mxu0 0.0
        %1728 = vmatprep.subr.mxu0 0.0
        %1729 = vmatpush1.msra.mxu0 0.0
        %1730 = vmatprep.subr.mxu0 0.0
        %1731 = vmatpush1.msra.mxu0 0.0
        %1732 = vmatprep.subr.mxu0 0.0
        %1733 = vmatpush1.msra.mxu0 0.0
        %1734 = vmatprep.subr.mxu0 0.0
        %1735 = vmatpush1.msra.mxu0 0.0
        %1736 = vmatprep.subr.mxu0 0.0
        %1737 = vmatpush1.msra.mxu0 0.0
        %1738 = vmatprep.subr.mxu0 0.0
        %1739 = vmatpush1.msra.mxu0 0.0
        %1740 = vmatprep.subr.mxu0 0.0
        %1741 = vmatpush1.msra.mxu0 0.0
        %1742 = vmatprep.mubr.f32.mxu0 0.0
        %1743 = vmatmul.mubr.f32.gmra.mrb[0].mxu0 %v1580
        %v1744 = vpop.f32.mrb[0].mxu0
        %v1745 = vadd.f32 0.0, %v1744
        %v1746 = vpop.f32.mrb[0].mxu0
        %1747 = vmatprep.mubr.f32.mxu0 0.0
        %1748 = vmatmul.mubr.f32.gmra.mrb[0].mxu0 %v1583
        %v1749 = vpop.f32.mrb[0].mxu0
        %v1750 = vadd.f32 0.0, %v1749
        %v1751 = vpop.f32.mrb[0].mxu0
        %1752 = vmatprep.mubr.f32.mxu0 0.0
        %1753 = vmatmul.mubr.f32.gmra.mrb[0].mxu0 %v1586
        %v1754 = vpop.f32.mrb[0].mxu0
        %v1755 = vadd.f32 0.0, %v1754
        %v1756 = vpop.f32.mrb[0].mxu0
        %1757 = vmatprep.mubr.f32.mxu0 0.0
        %1758 = vmatmul.mubr.f32.gmra.mrb[0].mxu0 %v1589
        %v1759 = vpop.f32.mrb[0].mxu0
        %v1760 = vadd.f32 0.0, %v1759
        %v1761 = vpop.f32.mrb[0].mxu0
        %1762 = vmatprep.mubr.f32.mxu0 0.0
        %1763 = vmatmul.mubr.f32.gmra.mrb[0].mxu0 %v1592
        %v1764 = vpop.f32.mrb[0].mxu0
        %v1765 = vadd.f32 0.0, %v1764
        %v1766 = vpop.f32.mrb[0].mxu0
        %1767 = vmatprep.mubr.f32.mxu0 0.0
        %1768 = vmatmul.mubr.f32.gmra.mrb[0].mxu0 %v1595
        %v1769 = vpop.f32.mrb[0].mxu0
        %v1770 = vadd.f32 0.0, %v1769
        %v1771 = vpop.f32.mrb[0].mxu0
        %1772 = vmatprep.mubr.f32.mxu0 0.0
        %1773 = vmatmul.mubr.f32.gmra.mrb[0].mxu0 %v1598
        %v1774 = vpop.f32.mrb[0].mxu0
        %v1775 = vadd.f32 0.0, %v1774
        %v1776 = vpop.f32.mrb[0].mxu0
        %1777 = vmatprep.mubr.f32.mxu0 0.0
        %1778 = vmatmul.mubr.f32.gmra.mrb[0].mxu0 %v1601
        %v1779 = vpop.f32.mrb[0].mxu0
        %v1780 = vadd.f32 0.0, %v1779
        %v1781 = vpop.f32.mrb[0].mxu0
        %1782 = vmatprep.mubr.f32.mxu0 0.0
        %1783 = vmatmul.mubr.f32.gmra.mrb[0].mxu0 %v1604
        %v1784 = vpop.f32.mrb[0].mxu0
        %v1785 = vadd.f32 0.0, %v1784
        %v1786 = vpop.f32.mrb[0].mxu0
        %1787 = vmatprep.mubr.f32.mxu0 0.0
        %1788 = vmatmul.mubr.f32.gmra.mrb[0].mxu0 %v1607
        %v1789 = vpop.f32.mrb[0].mxu0
        %v1790 = vadd.f32 0.0, %v1789
        %v1791 = vpop.f32.mrb[0].mxu0
        %1792 = vmatprep.mubr.f32.mxu0 0.0
        %1793 = vmatmul.mubr.f32.gmra.mrb[0].mxu0 %v1610
        %v1794 = vpop.f32.mrb[0].mxu0
        %v1795 = vadd.f32 0.0, %v1794
        %v1796 = vpop.f32.mrb[0].mxu0
        %1797 = vmatprep.mubr.f32.mxu0 0.0
        %1798 = vmatmul.mubr.f32.gmra.mrb[0].mxu0 %v1613
        %v1799 = vpop.f32.mrb[0].mxu0
        %v1800 = vadd.f32 0.0, %v1799
        %v1801 = vpop.f32.mrb[0].mxu0
        %1802 = vmatprep.mubr.f32.mxu0 0.0
        %1803 = vmatmul.mubr.f32.gmra.mrb[0].mxu0 %v1616
        %v1804 = vpop.f32.mrb[0].mxu0
        %v1805 = vadd.f32 0.0, %v1804
        %v1806 = vpop.f32.mrb[0].mxu0
        %1807 = vmatprep.mubr.f32.mxu0 0.0
        %1808 = vmatmul.mubr.f32.gmra.mrb[0].mxu0 %v1619
        %v1809 = vpop.f32.mrb[0].mxu0
        %v1810 = vadd.f32 0.0, %v1809
        %v1811 = vpop.f32.mrb[0].mxu0
        %1812 = vmatprep.mubr.f32.mxu0 0.0
        %1813 = vmatmul.mubr.f32.gmra.mrb[0].mxu0 %v1622
        %v1814 = vpop.f32.mrb[0].mxu0
        %v1815 = vadd.f32 0.0, %v1814
        %v1816 = vpop.f32.mrb[0].mxu0
        %1817 = vmatprep.mubr.f32.mxu0 0.0
        %1818 = vmatmul.mubr.f32.gmra.mrb[0].mxu0 %v1625
        %v1819 = vpop.f32.mrb[0].mxu0
        %v1820 = vadd.f32 0.0, %v1819
        %v1821 = vpop.f32.mrb[0].mxu0
        %1822 = vmatprep.mubr.f32.mxu0 0.0
        %1823 = vmatmul.mubr.f32.gmra.mrb[0].mxu0 %v1628
        %v1824 = vpop.f32.mrb[0].mxu0
        %v1825 = vadd.f32 0.0, %v1824
        %v1826 = vpop.f32.mrb[0].mxu0
        %1827 = vmatprep.mubr.f32.mxu0 0.0
        %1828 = vmatmul.mubr.f32.gmra.mrb[0].mxu0 %v1631
        %v1829 = vpop.f32.mrb[0].mxu0
        %v1830 = vadd.f32 0.0, %v1829
        %v1831 = vpop.f32.mrb[0].mxu0
        %1832 = vmatprep.mubr.f32.mxu0 0.0
        %1833 = vmatmul.mubr.f32.gmra.mrb[0].mxu0 %v1634
        %v1834 = vpop.f32.mrb[0].mxu0
        %v1835 = vadd.f32 0.0, %v1834
        %v1836 = vpop.f32.mrb[0].mxu0
        %1837 = vmatprep.mubr.f32.mxu0 0.0
        %1838 = vmatmul.mubr.f32.gmra.mrb[0].mxu0 %v1637
        %v1839 = vpop.f32.mrb[0].mxu0
        %v1840 = vadd.f32 0.0, %v1839
        %v1841 = vpop.f32.mrb[0].mxu0
        %1842 = vmatprep.mubr.f32.mxu0 0.0
        %1843 = vmatmul.mubr.f32.gmra.mrb[0].mxu0 %v1640
        %v1844 = vpop.f32.mrb[0].mxu0
        %v1845 = vadd.f32 0.0, %v1844
        %v1846 = vpop.f32.mrb[0].mxu0
        %1847 = vmatprep.mubr.f32.mxu0 0.0
        %1848 = vmatmul.mubr.f32.gmra.mrb[0].mxu0 %v1643
        %v1849 = vpop.f32.mrb[0].mxu0
        %v1850 = vadd.f32 0.0, %v1849
        %v1851 = vpop.f32.mrb[0].mxu0
        %1852 = vmatprep.mubr.f32.mxu0 0.0
        %1853 = vmatmul.mubr.f32.gmra.mrb[0].mxu0 %v1646
        %v1854 = vpop.f32.mrb[0].mxu0
        %v1855 = vadd.f32 0.0, %v1854
        %v1856 = vpop.f32.mrb[0].mxu0
        %1857 = vmatprep.mubr.f32.mxu0 0.0
        %1858 = vmatmul.mubr.f32.gmra.mrb[0].mxu0 %v1649
        %v1859 = vpop.f32.mrb[0].mxu0
        %v1860 = vadd.f32 0.0, %v1859
        %v1861 = vpop.f32.mrb[0].mxu0
        %1862 = vmatprep.mubr.f32.mxu0 0.0
        %1863 = vmatmul.mubr.f32.gmra.mrb[0].mxu0 %v1652
        %v1864 = vpop.f32.mrb[0].mxu0
        %v1865 = vadd.f32 0.0, %v1864
        %v1866 = vpop.f32.mrb[0].mxu0
        %1867 = vmatprep.mubr.f32.mxu0 0.0
        %1868 = vmatmul.mubr.f32.gmra.mrb[0].mxu0 %v1655
        %v1869 = vpop.f32.mrb[0].mxu0
        %v1870 = vadd.f32 0.0, %v1869
        %v1871 = vpop.f32.mrb[0].mxu0
        %1872 = vmatprep.mubr.f32.mxu0 0.0
        %1873 = vmatmul.mubr.f32.gmra.mrb[0].mxu0 %v1658
        %v1874 = vpop.f32.mrb[0].mxu0
        %v1875 = vadd.f32 0.0, %v1874
        %v1876 = vpop.f32.mrb[0].mxu0
        %1877 = vmatprep.mubr.f32.mxu0 0.0
        %1878 = vmatmul.mubr.f32.gmra.mrb[0].mxu0 %v1661
        %v1879 = vpop.f32.mrb[0].mxu0
        %v1880 = vadd.f32 0.0, %v1879
        %v1881 = vpop.f32.mrb[0].mxu0
        %1882 = vmatprep.mubr.f32.mxu0 0.0
        %1883 = vmatmul.mubr.f32.gmra.mrb[0].mxu0 %v1664
        %v1884 = vpop.f32.mrb[0].mxu0
        %v1885 = vadd.f32 0.0, %v1884
        %v1886 = vpop.f32.mrb[0].mxu0
        %1887 = vmatprep.mubr.f32.mxu0 0.0
        %1888 = vmatmul.mubr.f32.gmra.mrb[0].mxu0 %v1667
        %v1889 = vpop.f32.mrb[0].mxu0
        %v1890 = vadd.f32 0.0, %v1889
        %v1891 = vpop.f32.mrb[0].mxu0
        %1892 = vmatprep.mubr.f32.mxu0 0.0
        %1893 = vmatmul.mubr.f32.gmra.mrb[0].mxu0 %v1670
        %v1894 = vpop.f32.mrb[0].mxu0
        %v1895 = vadd.f32 0.0, %v1894
        %v1896 = vpop.f32.mrb[0].mxu0
        %1897 = vmatprep.mubr.f32.mxu0 0.0
        %1898 = vmatmul.mubr.f32.gmra.mrb[0].mxu0 %v1673
        %v1899 = vpop.f32.mrb[0].mxu0
        %v1900 = vadd.f32 0.0, %v1899
        %v1901 = vpop.f32.mrb[0].mxu0
        %1902 = vdwg.mxu0
        %v1903 = vadd.f32 %v1512, %v1745
        %v1904 = vadd.f32 %v1513, %v1750
        %v1905 = vadd.f32 %v1514, %v1755
        %v1906 = vadd.f32 %v1515, %v1760
        %v1907 = vadd.f32 %v1516, %v1765
        %v1908 = vadd.f32 %v1517, %v1770
        %v1909 = vadd.f32 %v1518, %v1775
        %v1910 = vadd.f32 %v1519, %v1780
        %v1911 = vadd.f32 %v1520, %v1785
        %v1912 = vadd.f32 %v1521, %v1790
        %v1913 = vadd.f32 %v1522, %v1795
        %v1914 = vadd.f32 %v1523, %v1800
        %v1915 = vadd.f32 %v1524, %v1805
        %v1916 = vadd.f32 %v1525, %v1810
        %v1917 = vadd.f32 %v1526, %v1815
        %v1918 = vadd.f32 %v1527, %v1820
        %v1919 = vadd.f32 %v1528, %v1825
        %v1920 = vadd.f32 %v1529, %v1830
        %v1921 = vadd.f32 %v1530, %v1835
        %v1922 = vadd.f32 %v1531, %v1840
        %v1923 = vadd.f32 %v1532, %v1845
        %v1924 = vadd.f32 %v1533, %v1850
        %v1925 = vadd.f32 %v1534, %v1855
        %v1926 = vadd.f32 %v1535, %v1860
        %v1927 = vadd.f32 %v1536, %v1865
        %v1928 = vadd.f32 %v1537, %v1870
        %v1929 = vadd.f32 %v1538, %v1875
        %v1930 = vadd.f32 %v1539, %v1880
        %v1931 = vadd.f32 %v1540, %v1885
        %v1932 = vadd.f32 %v1541, %v1890
        %v1933 = vadd.f32 %v1542, %v1895
        %v1934 = vadd.f32 %v1543, %v1900
        %v1935 = vld [vmem:[%s1544 + $0x1] sm:$0xff]
        %v1936 = vld [vmem:[%s1544 + $0x9] sm:$0xff]
        %v1937 = vld [vmem:[%s1544 + $0x19] sm:$0xff]
        %v1938 = vld [vmem:[%s1544 + $0x21] sm:$0xff]
        %v1939 = vld [vmem:[%s1544 + $0x31] sm:$0xff]
        %v1940 = vld [vmem:[%s1544 + $0x39] sm:$0xff]
        %v1941 = vld [vmem:[%s1544 + $0x49] sm:$0xff]
        %v1942 = vld [vmem:[%s1544 + $0x51] sm:$0xff]
        %v1943 = vld [vmem:[%s1544 + $0x61] sm:$0xff]
        %v1944 = vld [vmem:[%s1544 + $0x69] sm:$0xff]
        %v1945 = vld [vmem:[%s1544 + $0x79] sm:$0xff]
        %v1946 = vld [vmem:[%s1544 + $0x81] sm:$0xff]
        %v1947 = vld [vmem:[%s1544 + $0x91] sm:$0xff]
        %v1948 = vld [vmem:[%s1544 + $0x99] sm:$0xff]
        %v1949 = vld [vmem:[%s1544 + $0xa9] sm:$0xff]
        %v1950 = vld [vmem:[%s1544 + $0xb1] sm:$0xff]
        %v1951 = vld [vmem:[%s1544 + $0xc1] sm:$0xff]
        %v1952 = vld [vmem:[%s1544 + $0xc9] sm:$0xff]
        %v1953 = vld [vmem:[%s1544 + $0xd9] sm:$0xff]
        %v1954 = vld [vmem:[%s1544 + $0xe1] sm:$0xff]
        %v1955 = vld [vmem:[%s1544 + $0xf1] sm:$0xff]
        %v1956 = vld [vmem:[%s1544 + $0xf9] sm:$0xff]
        %v1957 = vld [vmem:[%s1544 + $0x109] sm:$0xff]
        %v1958 = vld [vmem:[%s1544 + $0x111] sm:$0xff]
        %v1959 = vld [vmem:[%s1544 + $0x121] sm:$0xff]
        %v1960 = vld [vmem:[%s1544 + $0x129] sm:$0xff]
        %v1961 = vld [vmem:[%s1544 + $0x139] sm:$0xff]
        %v1962 = vld [vmem:[%s1544 + $0x141] sm:$0xff]
        %v1963 = vld [vmem:[%s1544 + $0x151] sm:$0xff]
        %v1964 = vld [vmem:[%s1544 + $0x159] sm:$0xff]
        %v1965 = vld [vmem:[%s1544 + $0x169] sm:$0xff]
        %v1966 = vld [vmem:[%s1544 + $0x171] sm:$0xff]
        %s1967 = scalar_lea.vmem [#allocation5], 16
        %v1968 = vld [vmem:[%s1967] sm:$0xf]
        %v1970 = vsel %vm504, %v1935, 0
        %v1973 = vsel %vm504, %v1936, 0
        %v1976 = vsel %vm504, %v1937, 0
        %v1979 = vsel %vm504, %v1938, 0
        %v1982 = vsel %vm504, %v1939, 0
        %v1985 = vsel %vm504, %v1940, 0
        %v1988 = vsel %vm504, %v1941, 0
        %v1991 = vsel %vm504, %v1942, 0
        %v1994 = vsel %vm504, %v1943, 0
        %v1997 = vsel %vm504, %v1944, 0
        %v2000 = vsel %vm504, %v1945, 0
        %v2003 = vsel %vm504, %v1946, 0
        %v2006 = vsel %vm504, %v1947, 0
        %v2009 = vsel %vm504, %v1948, 0
        %v2012 = vsel %vm504, %v1949, 0
        %v2015 = vsel %vm504, %v1950, 0
        %v2018 = vsel %vm504, %v1951, 0
        %v2021 = vsel %vm504, %v1952, 0
        %v2024 = vsel %vm504, %v1953, 0
        %v2027 = vsel %vm504, %v1954, 0
        %v2030 = vsel %vm504, %v1955, 0
        %v2033 = vsel %vm504, %v1956, 0
        %v2036 = vsel %vm504, %v1957, 0
        %v2039 = vsel %vm504, %v1958, 0
        %v2042 = vsel %vm504, %v1959, 0
        %v2045 = vsel %vm504, %v1960, 0
        %v2048 = vsel %vm504, %v1961, 0
        %v2051 = vsel %vm504, %v1962, 0
        %v2054 = vsel %vm504, %v1963, 0
        %v2057 = vsel %vm504, %v1964, 0
        %v2060 = vsel %vm504, %v1965, 0
        %v2063 = vsel %vm504, %v1966, 0
        %v2066 = vsel %vm601, %v1968, 0
        %2068 = vmatprep.subr.mxu0 0.0
        %2069 = vmatpush1.msra.mxu0 %v2066
        %2070 = vmatprep.subr.mxu0 0.0
        %2071 = vmatpush1.msra.mxu0 0.0
        %2072 = vmatprep.subr.mxu0 0.0
        %2073 = vmatpush1.msra.mxu0 0.0
        %2074 = vmatprep.subr.mxu0 0.0
        %2075 = vmatpush1.msra.mxu0 0.0
        %2076 = vmatprep.subr.mxu0 0.0
        %2077 = vmatpush1.msra.mxu0 0.0
        %2078 = vmatprep.subr.mxu0 0.0
        %2079 = vmatpush1.msra.mxu0 0.0
        %2080 = vmatprep.subr.mxu0 0.0
        %2081 = vmatpush1.msra.mxu0 0.0
        %2082 = vmatprep.subr.mxu0 0.0
        %2083 = vmatpush1.msra.mxu0 0.0
        %2084 = vmatprep.subr.mxu0 0.0
        %2085 = vmatpush1.msra.mxu0 0.0
        %2086 = vmatprep.subr.mxu0 0.0
        %2087 = vmatpush1.msra.mxu0 0.0
        %2088 = vmatprep.subr.mxu0 0.0
        %2089 = vmatpush1.msra.mxu0 0.0
        %2090 = vmatprep.subr.mxu0 0.0
        %2091 = vmatpush1.msra.mxu0 0.0
        %2092 = vmatprep.subr.mxu0 0.0
        %2093 = vmatpush1.msra.mxu0 0.0
        %2094 = vmatprep.subr.mxu0 0.0
        %2095 = vmatpush1.msra.mxu0 0.0
        %2096 = vmatprep.subr.mxu0 0.0
        %2097 = vmatpush1.msra.mxu0 0.0
        %2098 = vmatprep.subr.mxu0 0.0
        %2099 = vmatpush1.msra.mxu0 0.0
        %2100 = vmatprep.subr.mxu0 0.0
        %2101 = vmatpush1.msra.mxu0 0.0
        %2102 = vmatprep.subr.mxu0 0.0
        %2103 = vmatpush1.msra.mxu0 0.0
        %2104 = vmatprep.subr.mxu0 0.0
        %2105 = vmatpush1.msra.mxu0 0.0
        %2106 = vmatprep.subr.mxu0 0.0
        %2107 = vmatpush1.msra.mxu0 0.0
        %2108 = vmatprep.subr.mxu0 0.0
        %2109 = vmatpush1.msra.mxu0 0.0
        %2110 = vmatprep.subr.mxu0 0.0
        %2111 = vmatpush1.msra.mxu0 0.0
        %2112 = vmatprep.subr.mxu0 0.0
        %2113 = vmatpush1.msra.mxu0 0.0
        %2114 = vmatprep.subr.mxu0 0.0
        %2115 = vmatpush1.msra.mxu0 0.0
        %2116 = vmatprep.subr.mxu0 0.0
        %2117 = vmatpush1.msra.mxu0 0.0
        %2118 = vmatprep.subr.mxu0 0.0
        %2119 = vmatpush1.msra.mxu0 0.0
        %2120 = vmatprep.subr.mxu0 0.0
        %2121 = vmatpush1.msra.mxu0 0.0
        %2122 = vmatprep.subr.mxu0 0.0
        %2123 = vmatpush1.msra.mxu0 0.0
        %2124 = vmatprep.subr.mxu0 0.0
        %2125 = vmatpush1.msra.mxu0 0.0
        %2126 = vmatprep.subr.mxu0 0.0
        %2127 = vmatpush1.msra.mxu0 0.0
        %2128 = vmatprep.subr.mxu0 0.0
        %2129 = vmatpush1.msra.mxu0 0.0
        %2130 = vmatprep.subr.mxu0 0.0
        %2131 = vmatpush1.msra.mxu0 0.0
        %2132 = vmatprep.mubr.f32.mxu0 0.0
        %2133 = vmatmul.mubr.f32.gmra.mrb[0].mxu0 %v1970
        %v2134 = vpop.f32.mrb[0].mxu0
        %v2135 = vadd.f32 0.0, %v2134
        %v2136 = vpop.f32.mrb[0].mxu0
        %2137 = vmatprep.mubr.f32.mxu0 0.0
        %2138 = vmatmul.mubr.f32.gmra.mrb[0].mxu0 %v1973
        %v2139 = vpop.f32.mrb[0].mxu0
        %v2140 = vadd.f32 0.0, %v2139
        %v2141 = vpop.f32.mrb[0].mxu0
        %2142 = vmatprep.mubr.f32.mxu0 0.0
        %2143 = vmatmul.mubr.f32.gmra.mrb[0].mxu0 %v1976
        %v2144 = vpop.f32.mrb[0].mxu0
        %v2145 = vadd.f32 0.0, %v2144
        %v2146 = vpop.f32.mrb[0].mxu0
        %2147 = vmatprep.mubr.f32.mxu0 0.0
        %2148 = vmatmul.mubr.f32.gmra.mrb[0].mxu0 %v1979
        %v2149 = vpop.f32.mrb[0].mxu0
        %v2150 = vadd.f32 0.0, %v2149
        %v2151 = vpop.f32.mrb[0].mxu0
        %2152 = vmatprep.mubr.f32.mxu0 0.0
        %2153 = vmatmul.mubr.f32.gmra.mrb[0].mxu0 %v1982
        %v2154 = vpop.f32.mrb[0].mxu0
        %v2155 = vadd.f32 0.0, %v2154
        %v2156 = vpop.f32.mrb[0].mxu0
        %2157 = vmatprep.mubr.f32.mxu0 0.0
        %2158 = vmatmul.mubr.f32.gmra.mrb[0].mxu0 %v1985
        %v2159 = vpop.f32.mrb[0].mxu0
        %v2160 = vadd.f32 0.0, %v2159
        %v2161 = vpop.f32.mrb[0].mxu0
        %2162 = vmatprep.mubr.f32.mxu0 0.0
        %2163 = vmatmul.mubr.f32.gmra.mrb[0].mxu0 %v1988
        %v2164 = vpop.f32.mrb[0].mxu0
        %v2165 = vadd.f32 0.0, %v2164
        %v2166 = vpop.f32.mrb[0].mxu0
        %2167 = vmatprep.mubr.f32.mxu0 0.0
        %2168 = vmatmul.mubr.f32.gmra.mrb[0].mxu0 %v1991
        %v2169 = vpop.f32.mrb[0].mxu0
        %v2170 = vadd.f32 0.0, %v2169
        %v2171 = vpop.f32.mrb[0].mxu0
        %2172 = vmatprep.mubr.f32.mxu0 0.0
        %2173 = vmatmul.mubr.f32.gmra.mrb[0].mxu0 %v1994
        %v2174 = vpop.f32.mrb[0].mxu0
        %v2175 = vadd.f32 0.0, %v2174
        %v2176 = vpop.f32.mrb[0].mxu0
        %2177 = vmatprep.mubr.f32.mxu0 0.0
        %2178 = vmatmul.mubr.f32.gmra.mrb[0].mxu0 %v1997
        %v2179 = vpop.f32.mrb[0].mxu0
        %v2180 = vadd.f32 0.0, %v2179
        %v2181 = vpop.f32.mrb[0].mxu0
        %2182 = vmatprep.mubr.f32.mxu0 0.0
        %2183 = vmatmul.mubr.f32.gmra.mrb[0].mxu0 %v2000
        %v2184 = vpop.f32.mrb[0].mxu0
        %v2185 = vadd.f32 0.0, %v2184
        %v2186 = vpop.f32.mrb[0].mxu0
        %2187 = vmatprep.mubr.f32.mxu0 0.0
        %2188 = vmatmul.mubr.f32.gmra.mrb[0].mxu0 %v2003
        %v2189 = vpop.f32.mrb[0].mxu0
        %v2190 = vadd.f32 0.0, %v2189
        %v2191 = vpop.f32.mrb[0].mxu0
        %2192 = vmatprep.mubr.f32.mxu0 0.0
        %2193 = vmatmul.mubr.f32.gmra.mrb[0].mxu0 %v2006
        %v2194 = vpop.f32.mrb[0].mxu0
        %v2195 = vadd.f32 0.0, %v2194
        %v2196 = vpop.f32.mrb[0].mxu0
        %2197 = vmatprep.mubr.f32.mxu0 0.0
        %2198 = vmatmul.mubr.f32.gmra.mrb[0].mxu0 %v2009
        %v2199 = vpop.f32.mrb[0].mxu0
        %v2200 = vadd.f32 0.0, %v2199
        %v2201 = vpop.f32.mrb[0].mxu0
        %2202 = vmatprep.mubr.f32.mxu0 0.0
        %2203 = vmatmul.mubr.f32.gmra.mrb[0].mxu0 %v2012
        %v2204 = vpop.f32.mrb[0].mxu0
        %v2205 = vadd.f32 0.0, %v2204
        %v2206 = vpop.f32.mrb[0].mxu0
        %2207 = vmatprep.mubr.f32.mxu0 0.0
        %2208 = vmatmul.mubr.f32.gmra.mrb[0].mxu0 %v2015
        %v2209 = vpop.f32.mrb[0].mxu0
        %v2210 = vadd.f32 0.0, %v2209
        %v2211 = vpop.f32.mrb[0].mxu0
        %2212 = vmatprep.mubr.f32.mxu0 0.0
        %2213 = vmatmul.mubr.f32.gmra.mrb[0].mxu0 %v2018
        %v2214 = vpop.f32.mrb[0].mxu0
        %v2215 = vadd.f32 0.0, %v2214
        %v2216 = vpop.f32.mrb[0].mxu0
        %2217 = vmatprep.mubr.f32.mxu0 0.0
        %2218 = vmatmul.mubr.f32.gmra.mrb[0].mxu0 %v2021
        %v2219 = vpop.f32.mrb[0].mxu0
        %v2220 = vadd.f32 0.0, %v2219
        %v2221 = vpop.f32.mrb[0].mxu0
        %2222 = vmatprep.mubr.f32.mxu0 0.0
        %2223 = vmatmul.mubr.f32.gmra.mrb[0].mxu0 %v2024
        %v2224 = vpop.f32.mrb[0].mxu0
        %v2225 = vadd.f32 0.0, %v2224
        %v2226 = vpop.f32.mrb[0].mxu0
        %2227 = vmatprep.mubr.f32.mxu0 0.0
        %2228 = vmatmul.mubr.f32.gmra.mrb[0].mxu0 %v2027
        %v2229 = vpop.f32.mrb[0].mxu0
        %v2230 = vadd.f32 0.0, %v2229
        %v2231 = vpop.f32.mrb[0].mxu0
        %2232 = vmatprep.mubr.f32.mxu0 0.0
        %2233 = vmatmul.mubr.f32.gmra.mrb[0].mxu0 %v2030
        %v2234 = vpop.f32.mrb[0].mxu0
        %v2235 = vadd.f32 0.0, %v2234
        %v2236 = vpop.f32.mrb[0].mxu0
        %2237 = vmatprep.mubr.f32.mxu0 0.0
        %2238 = vmatmul.mubr.f32.gmra.mrb[0].mxu0 %v2033
        %v2239 = vpop.f32.mrb[0].mxu0
        %v2240 = vadd.f32 0.0, %v2239
        %v2241 = vpop.f32.mrb[0].mxu0
        %2242 = vmatprep.mubr.f32.mxu0 0.0
        %2243 = vmatmul.mubr.f32.gmra.mrb[0].mxu0 %v2036
        %v2244 = vpop.f32.mrb[0].mxu0
        %v2245 = vadd.f32 0.0, %v2244
        %v2246 = vpop.f32.mrb[0].mxu0
        %2247 = vmatprep.mubr.f32.mxu0 0.0
        %2248 = vmatmul.mubr.f32.gmra.mrb[0].mxu0 %v2039
        %v2249 = vpop.f32.mrb[0].mxu0
        %v2250 = vadd.f32 0.0, %v2249
        %v2251 = vpop.f32.mrb[0].mxu0
        %2252 = vmatprep.mubr.f32.mxu0 0.0
        %2253 = vmatmul.mubr.f32.gmra.mrb[0].mxu0 %v2042
        %v2254 = vpop.f32.mrb[0].mxu0
        %v2255 = vadd.f32 0.0, %v2254
        %v2256 = vpop.f32.mrb[0].mxu0
        %2257 = vmatprep.mubr.f32.mxu0 0.0
        %2258 = vmatmul.mubr.f32.gmra.mrb[0].mxu0 %v2045
        %v2259 = vpop.f32.mrb[0].mxu0
        %v2260 = vadd.f32 0.0, %v2259
        %v2261 = vpop.f32.mrb[0].mxu0
        %2262 = vmatprep.mubr.f32.mxu0 0.0
        %2263 = vmatmul.mubr.f32.gmra.mrb[0].mxu0 %v2048
        %v2264 = vpop.f32.mrb[0].mxu0
        %v2265 = vadd.f32 0.0, %v2264
        %v2266 = vpop.f32.mrb[0].mxu0
        %2267 = vmatprep.mubr.f32.mxu0 0.0
        %2268 = vmatmul.mubr.f32.gmra.mrb[0].mxu0 %v2051
        %v2269 = vpop.f32.mrb[0].mxu0
        %v2270 = vadd.f32 0.0, %v2269
        %v2271 = vpop.f32.mrb[0].mxu0
        %2272 = vmatprep.mubr.f32.mxu0 0.0
        %2273 = vmatmul.mubr.f32.gmra.mrb[0].mxu0 %v2054
        %v2274 = vpop.f32.mrb[0].mxu0
        %v2275 = vadd.f32 0.0, %v2274
        %v2276 = vpop.f32.mrb[0].mxu0
        %2277 = vmatprep.mubr.f32.mxu0 0.0
        %2278 = vmatmul.mubr.f32.gmra.mrb[0].mxu0 %v2057
        %v2279 = vpop.f32.mrb[0].mxu0
        %v2280 = vadd.f32 0.0, %v2279
        %v2281 = vpop.f32.mrb[0].mxu0
        %2282 = vmatprep.mubr.f32.mxu0 0.0
        %2283 = vmatmul.mubr.f32.gmra.mrb[0].mxu0 %v2060
        %v2284 = vpop.f32.mrb[0].mxu0
        %v2285 = vadd.f32 0.0, %v2284
        %v2286 = vpop.f32.mrb[0].mxu0
        %2287 = vmatprep.mubr.f32.mxu0 0.0
        %2288 = vmatmul.mubr.f32.gmra.mrb[0].mxu0 %v2063
        %v2289 = vpop.f32.mrb[0].mxu0
        %v2290 = vadd.f32 0.0, %v2289
        %v2291 = vpop.f32.mrb[0].mxu0
        %2292 = vdwg.mxu0
        %v2293 = vadd.f32 %v1903, %v2135
        %v2294 = vadd.f32 %v1904, %v2140
        %v2295 = vadd.f32 %v1905, %v2145
        %v2296 = vadd.f32 %v1906, %v2150
        %v2297 = vadd.f32 %v1907, %v2155
        %v2298 = vadd.f32 %v1908, %v2160
        %v2299 = vadd.f32 %v1909, %v2165
        %v2300 = vadd.f32 %v1910, %v2170
        %v2301 = vadd.f32 %v1911, %v2175
        %v2302 = vadd.f32 %v1912, %v2180
        %v2303 = vadd.f32 %v1913, %v2185
        %v2304 = vadd.f32 %v1914, %v2190
        %v2305 = vadd.f32 %v1915, %v2195
        %v2306 = vadd.f32 %v1916, %v2200
        %v2307 = vadd.f32 %v1917, %v2205
        %v2308 = vadd.f32 %v1918, %v2210
        %v2309 = vadd.f32 %v1919, %v2215
        %v2310 = vadd.f32 %v1920, %v2220
        %v2311 = vadd.f32 %v1921, %v2225
        %v2312 = vadd.f32 %v1922, %v2230
        %v2313 = vadd.f32 %v1923, %v2235
        %v2314 = vadd.f32 %v1924, %v2240
        %v2315 = vadd.f32 %v1925, %v2245
        %v2316 = vadd.f32 %v1926, %v2250
        %v2317 = vadd.f32 %v1927, %v2255
        %v2318 = vadd.f32 %v1928, %v2260
        %v2319 = vadd.f32 %v1929, %v2265
        %v2320 = vadd.f32 %v1930, %v2270
        %v2321 = vadd.f32 %v1931, %v2275
        %v2322 = vadd.f32 %v1932, %v2280
        %v2323 = vadd.f32 %v1933, %v2285
        %v2324 = vadd.f32 %v1934, %v2290
        %v2325 = vld [vmem:[%s1544 + $0x2] sm:$0xff]
        %v2326 = vld [vmem:[%s1544 + $0xa] sm:$0xff]
        %v2327 = vld [vmem:[%s1544 + $0x1a] sm:$0xff]
        %v2328 = vld [vmem:[%s1544 + $0x22] sm:$0xff]
        %v2329 = vld [vmem:[%s1544 + $0x32] sm:$0xff]
        %v2330 = vld [vmem:[%s1544 + $0x3a] sm:$0xff]
        %v2331 = vld [vmem:[%s1544 + $0x4a] sm:$0xff]
        %v2332 = vld [vmem:[%s1544 + $0x52] sm:$0xff]
        %v2333 = vld [vmem:[%s1544 + $0x62] sm:$0xff]
        %v2334 = vld [vmem:[%s1544 + $0x6a] sm:$0xff]
        %v2335 = vld [vmem:[%s1544 + $0x7a] sm:$0xff]
        %v2336 = vld [vmem:[%s1544 + $0x82] sm:$0xff]
        %v2337 = vld [vmem:[%s1544 + $0x92] sm:$0xff]
        %v2338 = vld [vmem:[%s1544 + $0x9a] sm:$0xff]
        %v2339 = vld [vmem:[%s1544 + $0xaa] sm:$0xff]
        %v2340 = vld [vmem:[%s1544 + $0xb2] sm:$0xff]
        %v2341 = vld [vmem:[%s1544 + $0xc2] sm:$0xff]
        %v2342 = vld [vmem:[%s1544 + $0xca] sm:$0xff]
        %v2343 = vld [vmem:[%s1544 + $0xda] sm:$0xff]
        %v2344 = vld [vmem:[%s1544 + $0xe2] sm:$0xff]
        %v2345 = vld [vmem:[%s1544 + $0xf2] sm:$0xff]
        %v2346 = vld [vmem:[%s1544 + $0xfa] sm:$0xff]
        %v2347 = vld [vmem:[%s1544 + $0x10a] sm:$0xff]
        %v2348 = vld [vmem:[%s1544 + $0x112] sm:$0xff]
        %v2349 = vld [vmem:[%s1544 + $0x122] sm:$0xff]
        %v2350 = vld [vmem:[%s1544 + $0x12a] sm:$0xff]
        %v2351 = vld [vmem:[%s1544 + $0x13a] sm:$0xff]
        %v2352 = vld [vmem:[%s1544 + $0x142] sm:$0xff]
        %v2353 = vld [vmem:[%s1544 + $0x152] sm:$0xff]
        %v2354 = vld [vmem:[%s1544 + $0x15a] sm:$0xff]
        %v2355 = vld [vmem:[%s1544 + $0x16a] sm:$0xff]
        %v2356 = vld [vmem:[%s1544 + $0x172] sm:$0xff]
        %s2357 = scalar_lea.vmem [#allocation5], 20
        %v2358 = vld [vmem:[%s2357] sm:$0xf]
        %v2360 = vsel %vm504, %v2325, 0
        %v2363 = vsel %vm504, %v2326, 0
        %v2366 = vsel %vm504, %v2327, 0
        %v2369 = vsel %vm504, %v2328, 0
        %v2372 = vsel %vm504, %v2329, 0
        %v2375 = vsel %vm504, %v2330, 0
        %v2378 = vsel %vm504, %v2331, 0
        %v2381 = vsel %vm504, %v2332, 0
        %v2384 = vsel %vm504, %v2333, 0
        %v2387 = vsel %vm504, %v2334, 0
        %v2390 = vsel %vm504, %v2335, 0
        %v2393 = vsel %vm504, %v2336, 0
        %v2396 = vsel %vm504, %v2337, 0
        %v2399 = vsel %vm504, %v2338, 0
        %v2402 = vsel %vm504, %v2339, 0
        %v2405 = vsel %vm504, %v2340, 0
        %v2408 = vsel %vm504, %v2341, 0
        %v2411 = vsel %vm504, %v2342, 0
        %v2414 = vsel %vm504, %v2343, 0
        %v2417 = vsel %vm504, %v2344, 0
        %v2420 = vsel %vm504, %v2345, 0
        %v2423 = vsel %vm504, %v2346, 0
        %v2426 = vsel %vm504, %v2347, 0
        %v2429 = vsel %vm504, %v2348, 0
        %v2432 = vsel %vm504, %v2349, 0
        %v2435 = vsel %vm504, %v2350, 0
        %v2438 = vsel %vm504, %v2351, 0
        %v2441 = vsel %vm504, %v2352, 0
        %v2444 = vsel %vm504, %v2353, 0
        %v2447 = vsel %vm504, %v2354, 0
        %v2450 = vsel %vm504, %v2355, 0
        %v2453 = vsel %vm504, %v2356, 0
        %v2456 = vsel %vm601, %v2358, 0
        %2458 = vmatprep.subr.mxu0 0.0
        %2459 = vmatpush1.msra.mxu0 %v2456
        %2460 = vmatprep.subr.mxu0 0.0
        %2461 = vmatpush1.msra.mxu0 0.0
        %2462 = vmatprep.subr.mxu0 0.0
        %2463 = vmatpush1.msra.mxu0 0.0
        %2464 = vmatprep.subr.mxu0 0.0
        %2465 = vmatpush1.msra.mxu0 0.0
        %2466 = vmatprep.subr.mxu0 0.0
        %2467 = vmatpush1.msra.mxu0 0.0
        %2468 = vmatprep.subr.mxu0 0.0
        %2469 = vmatpush1.msra.mxu0 0.0
        %2470 = vmatprep.subr.mxu0 0.0
        %2471 = vmatpush1.msra.mxu0 0.0
        %2472 = vmatprep.subr.mxu0 0.0
        %2473 = vmatpush1.msra.mxu0 0.0
        %2474 = vmatprep.subr.mxu0 0.0
        %2475 = vmatpush1.msra.mxu0 0.0
        %2476 = vmatprep.subr.mxu0 0.0
        %2477 = vmatpush1.msra.mxu0 0.0
        %2478 = vmatprep.subr.mxu0 0.0
        %2479 = vmatpush1.msra.mxu0 0.0
        %2480 = vmatprep.subr.mxu0 0.0
        %2481 = vmatpush1.msra.mxu0 0.0
        %2482 = vmatprep.subr.mxu0 0.0
        %2483 = vmatpush1.msra.mxu0 0.0
        %2484 = vmatprep.subr.mxu0 0.0
        %2485 = vmatpush1.msra.mxu0 0.0
        %2486 = vmatprep.subr.mxu0 0.0
        %2487 = vmatpush1.msra.mxu0 0.0
        %2488 = vmatprep.subr.mxu0 0.0
        %2489 = vmatpush1.msra.mxu0 0.0
        %2490 = vmatprep.subr.mxu0 0.0
        %2491 = vmatpush1.msra.mxu0 0.0
        %2492 = vmatprep.subr.mxu0 0.0
        %2493 = vmatpush1.msra.mxu0 0.0
        %2494 = vmatprep.subr.mxu0 0.0
        %2495 = vmatpush1.msra.mxu0 0.0
        %2496 = vmatprep.subr.mxu0 0.0
        %2497 = vmatpush1.msra.mxu0 0.0
        %2498 = vmatprep.subr.mxu0 0.0
        %2499 = vmatpush1.msra.mxu0 0.0
        %2500 = vmatprep.subr.mxu0 0.0
        %2501 = vmatpush1.msra.mxu0 0.0
        %2502 = vmatprep.subr.mxu0 0.0
        %2503 = vmatpush1.msra.mxu0 0.0
        %2504 = vmatprep.subr.mxu0 0.0
        %2505 = vmatpush1.msra.mxu0 0.0
        %2506 = vmatprep.subr.mxu0 0.0
        %2507 = vmatpush1.msra.mxu0 0.0
        %2508 = vmatprep.subr.mxu0 0.0
        %2509 = vmatpush1.msra.mxu0 0.0
        %2510 = vmatprep.subr.mxu0 0.0
        %2511 = vmatpush1.msra.mxu0 0.0
        %2512 = vmatprep.subr.mxu0 0.0
        %2513 = vmatpush1.msra.mxu0 0.0
        %2514 = vmatprep.subr.mxu0 0.0
        %2515 = vmatpush1.msra.mxu0 0.0
        %2516 = vmatprep.subr.mxu0 0.0
        %2517 = vmatpush1.msra.mxu0 0.0
        %2518 = vmatprep.subr.mxu0 0.0
        %2519 = vmatpush1.msra.mxu0 0.0
        %2520 = vmatprep.subr.mxu0 0.0
        %2521 = vmatpush1.msra.mxu0 0.0
        %2522 = vmatprep.mubr.f32.mxu0 0.0
        %2523 = vmatmul.mubr.f32.gmra.mrb[0].mxu0 %v2360
        %v2524 = vpop.f32.mrb[0].mxu0
        %v2525 = vadd.f32 0.0, %v2524
        %v2526 = vpop.f32.mrb[0].mxu0
        %2527 = vmatprep.mubr.f32.mxu0 0.0
        %2528 = vmatmul.mubr.f32.gmra.mrb[0].mxu0 %v2363
        %v2529 = vpop.f32.mrb[0].mxu0
        %v2530 = vadd.f32 0.0, %v2529
        %v2531 = vpop.f32.mrb[0].mxu0
        %2532 = vmatprep.mubr.f32.mxu0 0.0
        %2533 = vmatmul.mubr.f32.gmra.mrb[0].mxu0 %v2366
        %v2534 = vpop.f32.mrb[0].mxu0
        %v2535 = vadd.f32 0.0, %v2534
        %v2536 = vpop.f32.mrb[0].mxu0
        %2537 = vmatprep.mubr.f32.mxu0 0.0
        %2538 = vmatmul.mubr.f32.gmra.mrb[0].mxu0 %v2369
        %v2539 = vpop.f32.mrb[0].mxu0
        %v2540 = vadd.f32 0.0, %v2539
        %v2541 = vpop.f32.mrb[0].mxu0
        %2542 = vmatprep.mubr.f32.mxu0 0.0
        %2543 = vmatmul.mubr.f32.gmra.mrb[0].mxu0 %v2372
        %v2544 = vpop.f32.mrb[0].mxu0
        %v2545 = vadd.f32 0.0, %v2544
        %v2546 = vpop.f32.mrb[0].mxu0
        %2547 = vmatprep.mubr.f32.mxu0 0.0
        %2548 = vmatmul.mubr.f32.gmra.mrb[0].mxu0 %v2375
        %v2549 = vpop.f32.mrb[0].mxu0
        %v2550 = vadd.f32 0.0, %v2549
        %v2551 = vpop.f32.mrb[0].mxu0
        %2552 = vmatprep.mubr.f32.mxu0 0.0
        %2553 = vmatmul.mubr.f32.gmra.mrb[0].mxu0 %v2378
        %v2554 = vpop.f32.mrb[0].mxu0
        %v2555 = vadd.f32 0.0, %v2554
        %v2556 = vpop.f32.mrb[0].mxu0
        %2557 = vmatprep.mubr.f32.mxu0 0.0
        %2558 = vmatmul.mubr.f32.gmra.mrb[0].mxu0 %v2381
        %v2559 = vpop.f32.mrb[0].mxu0
        %v2560 = vadd.f32 0.0, %v2559
        %v2561 = vpop.f32.mrb[0].mxu0
        %2562 = vmatprep.mubr.f32.mxu0 0.0
        %2563 = vmatmul.mubr.f32.gmra.mrb[0].mxu0 %v2384
        %v2564 = vpop.f32.mrb[0].mxu0
        %v2565 = vadd.f32 0.0, %v2564
        %v2566 = vpop.f32.mrb[0].mxu0
        %2567 = vmatprep.mubr.f32.mxu0 0.0
        %2568 = vmatmul.mubr.f32.gmra.mrb[0].mxu0 %v2387
        %v2569 = vpop.f32.mrb[0].mxu0
        %v2570 = vadd.f32 0.0, %v2569
        %v2571 = vpop.f32.mrb[0].mxu0
        %2572 = vmatprep.mubr.f32.mxu0 0.0
        %2573 = vmatmul.mubr.f32.gmra.mrb[0].mxu0 %v2390
        %v2574 = vpop.f32.mrb[0].mxu0
        %v2575 = vadd.f32 0.0, %v2574
        %v2576 = vpop.f32.mrb[0].mxu0
        %2577 = vmatprep.mubr.f32.mxu0 0.0
        %2578 = vmatmul.mubr.f32.gmra.mrb[0].mxu0 %v2393
        %v2579 = vpop.f32.mrb[0].mxu0
        %v2580 = vadd.f32 0.0, %v2579
        %v2581 = vpop.f32.mrb[0].mxu0
        %2582 = vmatprep.mubr.f32.mxu0 0.0
        %2583 = vmatmul.mubr.f32.gmra.mrb[0].mxu0 %v2396
        %v2584 = vpop.f32.mrb[0].mxu0
        %v2585 = vadd.f32 0.0, %v2584
        %v2586 = vpop.f32.mrb[0].mxu0
        %2587 = vmatprep.mubr.f32.mxu0 0.0
        %2588 = vmatmul.mubr.f32.gmra.mrb[0].mxu0 %v2399
        %v2589 = vpop.f32.mrb[0].mxu0
        %v2590 = vadd.f32 0.0, %v2589
        %v2591 = vpop.f32.mrb[0].mxu0
        %2592 = vmatprep.mubr.f32.mxu0 0.0
        %2593 = vmatmul.mubr.f32.gmra.mrb[0].mxu0 %v2402
        %v2594 = vpop.f32.mrb[0].mxu0
        %v2595 = vadd.f32 0.0, %v2594
        %v2596 = vpop.f32.mrb[0].mxu0
        %2597 = vmatprep.mubr.f32.mxu0 0.0
        %2598 = vmatmul.mubr.f32.gmra.mrb[0].mxu0 %v2405
        %v2599 = vpop.f32.mrb[0].mxu0
        %v2600 = vadd.f32 0.0, %v2599
        %v2601 = vpop.f32.mrb[0].mxu0
        %2602 = vmatprep.mubr.f32.mxu0 0.0
        %2603 = vmatmul.mubr.f32.gmra.mrb[0].mxu0 %v2408
        %v2604 = vpop.f32.mrb[0].mxu0
        %v2605 = vadd.f32 0.0, %v2604
        %v2606 = vpop.f32.mrb[0].mxu0
        %2607 = vmatprep.mubr.f32.mxu0 0.0
        %2608 = vmatmul.mubr.f32.gmra.mrb[0].mxu0 %v2411
        %v2609 = vpop.f32.mrb[0].mxu0
        %v2610 = vadd.f32 0.0, %v2609
        %v2611 = vpop.f32.mrb[0].mxu0
        %2612 = vmatprep.mubr.f32.mxu0 0.0
        %2613 = vmatmul.mubr.f32.gmra.mrb[0].mxu0 %v2414
        %v2614 = vpop.f32.mrb[0].mxu0
        %v2615 = vadd.f32 0.0, %v2614
        %v2616 = vpop.f32.mrb[0].mxu0
        %2617 = vmatprep.mubr.f32.mxu0 0.0
        %2618 = vmatmul.mubr.f32.gmra.mrb[0].mxu0 %v2417
        %v2619 = vpop.f32.mrb[0].mxu0
        %v2620 = vadd.f32 0.0, %v2619
        %v2621 = vpop.f32.mrb[0].mxu0
        %2622 = vmatprep.mubr.f32.mxu0 0.0
        %2623 = vmatmul.mubr.f32.gmra.mrb[0].mxu0 %v2420
        %v2624 = vpop.f32.mrb[0].mxu0
        %v2625 = vadd.f32 0.0, %v2624
        %v2626 = vpop.f32.mrb[0].mxu0
        %2627 = vmatprep.mubr.f32.mxu0 0.0
        %2628 = vmatmul.mubr.f32.gmra.mrb[0].mxu0 %v2423
        %v2629 = vpop.f32.mrb[0].mxu0
        %v2630 = vadd.f32 0.0, %v2629
        %v2631 = vpop.f32.mrb[0].mxu0
        %2632 = vmatprep.mubr.f32.mxu0 0.0
        %2633 = vmatmul.mubr.f32.gmra.mrb[0].mxu0 %v2426
        %v2634 = vpop.f32.mrb[0].mxu0
        %v2635 = vadd.f32 0.0, %v2634
        %v2636 = vpop.f32.mrb[0].mxu0
        %2637 = vmatprep.mubr.f32.mxu0 0.0
        %2638 = vmatmul.mubr.f32.gmra.mrb[0].mxu0 %v2429
        %v2639 = vpop.f32.mrb[0].mxu0
        %v2640 = vadd.f32 0.0, %v2639
        %v2641 = vpop.f32.mrb[0].mxu0
        %2642 = vmatprep.mubr.f32.mxu0 0.0
        %2643 = vmatmul.mubr.f32.gmra.mrb[0].mxu0 %v2432
        %v2644 = vpop.f32.mrb[0].mxu0
        %v2645 = vadd.f32 0.0, %v2644
        %v2646 = vpop.f32.mrb[0].mxu0
        %2647 = vmatprep.mubr.f32.mxu0 0.0
        %2648 = vmatmul.mubr.f32.gmra.mrb[0].mxu0 %v2435
        %v2649 = vpop.f32.mrb[0].mxu0
        %v2650 = vadd.f32 0.0, %v2649
        %v2651 = vpop.f32.mrb[0].mxu0
        %2652 = vmatprep.mubr.f32.mxu0 0.0
        %2653 = vmatmul.mubr.f32.gmra.mrb[0].mxu0 %v2438
        %v2654 = vpop.f32.mrb[0].mxu0
        %v2655 = vadd.f32 0.0, %v2654
        %v2656 = vpop.f32.mrb[0].mxu0
        %2657 = vmatprep.mubr.f32.mxu0 0.0
        %2658 = vmatmul.mubr.f32.gmra.mrb[0].mxu0 %v2441
        %v2659 = vpop.f32.mrb[0].mxu0
        %v2660 = vadd.f32 0.0, %v2659
        %v2661 = vpop.f32.mrb[0].mxu0
        %2662 = vmatprep.mubr.f32.mxu0 0.0
        %2663 = vmatmul.mubr.f32.gmra.mrb[0].mxu0 %v2444
        %v2664 = vpop.f32.mrb[0].mxu0
        %v2665 = vadd.f32 0.0, %v2664
        %v2666 = vpop.f32.mrb[0].mxu0
        %2667 = vmatprep.mubr.f32.mxu0 0.0
        %2668 = vmatmul.mubr.f32.gmra.mrb[0].mxu0 %v2447
        %v2669 = vpop.f32.mrb[0].mxu0
        %v2670 = vadd.f32 0.0, %v2669
        %v2671 = vpop.f32.mrb[0].mxu0
        %2672 = vmatprep.mubr.f32.mxu0 0.0
        %2673 = vmatmul.mubr.f32.gmra.mrb[0].mxu0 %v2450
        %v2674 = vpop.f32.mrb[0].mxu0
        %v2675 = vadd.f32 0.0, %v2674
        %v2676 = vpop.f32.mrb[0].mxu0
        %2677 = vmatprep.mubr.f32.mxu0 0.0
        %2678 = vmatmul.mubr.f32.gmra.mrb[0].mxu0 %v2453
        %v2679 = vpop.f32.mrb[0].mxu0
        %v2680 = vadd.f32 0.0, %v2679
        %v2681 = vpop.f32.mrb[0].mxu0
        %2682 = vdwg.mxu0
        %v2683 = vadd.f32 %v2293, %v2525
        %v2684 = vadd.f32 %v2294, %v2530
        %v2685 = vadd.f32 %v2295, %v2535
        %v2686 = vadd.f32 %v2296, %v2540
        %v2687 = vadd.f32 %v2297, %v2545
        %v2688 = vadd.f32 %v2298, %v2550
        %v2689 = vadd.f32 %v2299, %v2555
        %v2690 = vadd.f32 %v2300, %v2560
        %v2691 = vadd.f32 %v2301, %v2565
        %v2692 = vadd.f32 %v2302, %v2570
        %v2693 = vadd.f32 %v2303, %v2575
        %v2694 = vadd.f32 %v2304, %v2580
        %v2695 = vadd.f32 %v2305, %v2585
        %v2696 = vadd.f32 %v2306, %v2590
        %v2697 = vadd.f32 %v2307, %v2595
        %v2698 = vadd.f32 %v2308, %v2600
        %v2699 = vadd.f32 %v2309, %v2605
        %v2700 = vadd.f32 %v2310, %v2610
        %v2701 = vadd.f32 %v2311, %v2615
        %v2702 = vadd.f32 %v2312, %v2620
        %v2703 = vadd.f32 %v2313, %v2625
        %v2704 = vadd.f32 %v2314, %v2630
        %v2705 = vadd.f32 %v2315, %v2635
        %v2706 = vadd.f32 %v2316, %v2640
        %v2707 = vadd.f32 %v2317, %v2645
        %v2708 = vadd.f32 %v2318, %v2650
        %v2709 = vadd.f32 %v2319, %v2655
        %v2710 = vadd.f32 %v2320, %v2660
        %v2711 = vadd.f32 %v2321, %v2665
        %v2712 = vadd.f32 %v2322, %v2670
        %v2713 = vadd.f32 %v2323, %v2675
        %v2714 = vadd.f32 %v2324, %v2680
        %s2715 = scalar_lea.vmem %s368, 48 [#allocation2]
        %v2716 = vld [vmem:[%s2715] sm:$0xff]
        %v2717 = vld [vmem:[%s2715 + $0x8] sm:$0xff]
        %v2718 = vld [vmem:[%s2715 + $0x18] sm:$0xff]
        %v2719 = vld [vmem:[%s2715 + $0x20] sm:$0xff]
        %v2720 = vld [vmem:[%s2715 + $0x30] sm:$0xff]
        %v2721 = vld [vmem:[%s2715 + $0x38] sm:$0xff]
        %v2722 = vld [vmem:[%s2715 + $0x48] sm:$0xff]
        %v2723 = vld [vmem:[%s2715 + $0x50] sm:$0xff]
        %v2724 = vld [vmem:[%s2715 + $0x60] sm:$0xff]
        %v2725 = vld [vmem:[%s2715 + $0x68] sm:$0xff]
        %v2726 = vld [vmem:[%s2715 + $0x78] sm:$0xff]
        %v2727 = vld [vmem:[%s2715 + $0x80] sm:$0xff]
        %v2728 = vld [vmem:[%s2715 + $0x90] sm:$0xff]
        %v2729 = vld [vmem:[%s2715 + $0x98] sm:$0xff]
        %v2730 = vld [vmem:[%s2715 + $0xa8] sm:$0xff]
        %v2731 = vld [vmem:[%s2715 + $0xb0] sm:$0xff]
        %v2732 = vld [vmem:[%s2715 + $0xc0] sm:$0xff]
        %v2733 = vld [vmem:[%s2715 + $0xc8] sm:$0xff]
        %v2734 = vld [vmem:[%s2715 + $0xd8] sm:$0xff]
        %v2735 = vld [vmem:[%s2715 + $0xe0] sm:$0xff]
        %v2736 = vld [vmem:[%s2715 + $0xf0] sm:$0xff]
        %v2737 = vld [vmem:[%s2715 + $0xf8] sm:$0xff]
        %v2738 = vld [vmem:[%s2715 + $0x108] sm:$0xff]
        %v2739 = vld [vmem:[%s2715 + $0x110] sm:$0xff]
        %v2740 = vld [vmem:[%s2715 + $0x120] sm:$0xff]
        %v2741 = vld [vmem:[%s2715 + $0x128] sm:$0xff]
        %v2742 = vld [vmem:[%s2715 + $0x138] sm:$0xff]
        %v2743 = vld [vmem:[%s2715 + $0x140] sm:$0xff]
        %v2744 = vld [vmem:[%s2715 + $0x150] sm:$0xff]
        %v2745 = vld [vmem:[%s2715 + $0x158] sm:$0xff]
        %v2746 = vld [vmem:[%s2715 + $0x168] sm:$0xff]
        %v2747 = vld [vmem:[%s2715 + $0x170] sm:$0xff]
        %s2748 = scalar_lea.vmem [#allocation5], 24
        %v2749 = vld [vmem:[%s2748] sm:$0xf]
        %v2751 = vsel %vm504, %v2716, 0
        %v2754 = vsel %vm504, %v2717, 0
        %v2757 = vsel %vm504, %v2718, 0
        %v2760 = vsel %vm504, %v2719, 0
        %v2763 = vsel %vm504, %v2720, 0
        %v2766 = vsel %vm504, %v2721, 0
        %v2769 = vsel %vm504, %v2722, 0
        %v2772 = vsel %vm504, %v2723, 0
        %v2775 = vsel %vm504, %v2724, 0
        %v2778 = vsel %vm504, %v2725, 0
        %v2781 = vsel %vm504, %v2726, 0
        %v2784 = vsel %vm504, %v2727, 0
        %v2787 = vsel %vm504, %v2728, 0
        %v2790 = vsel %vm504, %v2729, 0
        %v2793 = vsel %vm504, %v2730, 0
        %v2796 = vsel %vm504, %v2731, 0
        %v2799 = vsel %vm504, %v2732, 0
        %v2802 = vsel %vm504, %v2733, 0
        %v2805 = vsel %vm504, %v2734, 0
        %v2808 = vsel %vm504, %v2735, 0
        %v2811 = vsel %vm504, %v2736, 0
        %v2814 = vsel %vm504, %v2737, 0
        %v2817 = vsel %vm504, %v2738, 0
        %v2820 = vsel %vm504, %v2739, 0
        %v2823 = vsel %vm504, %v2740, 0
        %v2826 = vsel %vm504, %v2741, 0
        %v2829 = vsel %vm504, %v2742, 0
        %v2832 = vsel %vm504, %v2743, 0
        %v2835 = vsel %vm504, %v2744, 0
        %v2838 = vsel %vm504, %v2745, 0
        %v2841 = vsel %vm504, %v2746, 0
        %v2844 = vsel %vm504, %v2747, 0
        %v2847 = vsel %vm601, %v2749, 0
        %2849 = vmatprep.subr.mxu0 0.0
        %2850 = vmatpush1.msra.mxu0 %v2847
        %2851 = vmatprep.subr.mxu0 0.0
        %2852 = vmatpush1.msra.mxu0 0.0
        %2853 = vmatprep.subr.mxu0 0.0
        %2854 = vmatpush1.msra.mxu0 0.0
        %2855 = vmatprep.subr.mxu0 0.0
        %2856 = vmatpush1.msra.mxu0 0.0
        %2857 = vmatprep.subr.mxu0 0.0
        %2858 = vmatpush1.msra.mxu0 0.0
        %2859 = vmatprep.subr.mxu0 0.0
        %2860 = vmatpush1.msra.mxu0 0.0
        %2861 = vmatprep.subr.mxu0 0.0
        %2862 = vmatpush1.msra.mxu0 0.0
        %2863 = vmatprep.subr.mxu0 0.0
        %2864 = vmatpush1.msra.mxu0 0.0
        %2865 = vmatprep.subr.mxu0 0.0
        %2866 = vmatpush1.msra.mxu0 0.0
        %2867 = vmatprep.subr.mxu0 0.0
        %2868 = vmatpush1.msra.mxu0 0.0
        %2869 = vmatprep.subr.mxu0 0.0
        %2870 = vmatpush1.msra.mxu0 0.0
        %2871 = vmatprep.subr.mxu0 0.0
        %2872 = vmatpush1.msra.mxu0 0.0
        %2873 = vmatprep.subr.mxu0 0.0
        %2874 = vmatpush1.msra.mxu0 0.0
        %2875 = vmatprep.subr.mxu0 0.0
        %2876 = vmatpush1.msra.mxu0 0.0
        %2877 = vmatprep.subr.mxu0 0.0
        %2878 = vmatpush1.msra.mxu0 0.0
        %2879 = vmatprep.subr.mxu0 0.0
        %2880 = vmatpush1.msra.mxu0 0.0
        %2881 = vmatprep.subr.mxu0 0.0
        %2882 = vmatpush1.msra.mxu0 0.0
        %2883 = vmatprep.subr.mxu0 0.0
        %2884 = vmatpush1.msra.mxu0 0.0
        %2885 = vmatprep.subr.mxu0 0.0
        %2886 = vmatpush1.msra.mxu0 0.0
        %2887 = vmatprep.subr.mxu0 0.0
        %2888 = vmatpush1.msra.mxu0 0.0
        %2889 = vmatprep.subr.mxu0 0.0
        %2890 = vmatpush1.msra.mxu0 0.0
        %2891 = vmatprep.subr.mxu0 0.0
        %2892 = vmatpush1.msra.mxu0 0.0
        %2893 = vmatprep.subr.mxu0 0.0
        %2894 = vmatpush1.msra.mxu0 0.0
        %2895 = vmatprep.subr.mxu0 0.0
        %2896 = vmatpush1.msra.mxu0 0.0
        %2897 = vmatprep.subr.mxu0 0.0
        %2898 = vmatpush1.msra.mxu0 0.0
        %2899 = vmatprep.subr.mxu0 0.0
        %2900 = vmatpush1.msra.mxu0 0.0
        %2901 = vmatprep.subr.mxu0 0.0
        %2902 = vmatpush1.msra.mxu0 0.0
        %2903 = vmatprep.subr.mxu0 0.0
        %2904 = vmatpush1.msra.mxu0 0.0
        %2905 = vmatprep.subr.mxu0 0.0
        %2906 = vmatpush1.msra.mxu0 0.0
        %2907 = vmatprep.subr.mxu0 0.0
        %2908 = vmatpush1.msra.mxu0 0.0
        %2909 = vmatprep.subr.mxu0 0.0
        %2910 = vmatpush1.msra.mxu0 0.0
        %2911 = vmatprep.subr.mxu0 0.0
        %2912 = vmatpush1.msra.mxu0 0.0
        %2913 = vmatprep.mubr.f32.mxu0 0.0
        %2914 = vmatmul.mubr.f32.gmra.mrb[0].mxu0 %v2751
        %v2915 = vpop.f32.mrb[0].mxu0
        %v2916 = vadd.f32 0.0, %v2915
        %v2917 = vpop.f32.mrb[0].mxu0
        %2918 = vmatprep.mubr.f32.mxu0 0.0
        %2919 = vmatmul.mubr.f32.gmra.mrb[0].mxu0 %v2754
        %v2920 = vpop.f32.mrb[0].mxu0
        %v2921 = vadd.f32 0.0, %v2920
        %v2922 = vpop.f32.mrb[0].mxu0
        %2923 = vmatprep.mubr.f32.mxu0 0.0
        %2924 = vmatmul.mubr.f32.gmra.mrb[0].mxu0 %v2757
        %v2925 = vpop.f32.mrb[0].mxu0
        %v2926 = vadd.f32 0.0, %v2925
        %v2927 = vpop.f32.mrb[0].mxu0
        %2928 = vmatprep.mubr.f32.mxu0 0.0
        %2929 = vmatmul.mubr.f32.gmra.mrb[0].mxu0 %v2760
        %v2930 = vpop.f32.mrb[0].mxu0
        %v2931 = vadd.f32 0.0, %v2930
        %v2932 = vpop.f32.mrb[0].mxu0
        %2933 = vmatprep.mubr.f32.mxu0 0.0
        %2934 = vmatmul.mubr.f32.gmra.mrb[0].mxu0 %v2763
        %v2935 = vpop.f32.mrb[0].mxu0
        %v2936 = vadd.f32 0.0, %v2935
        %v2937 = vpop.f32.mrb[0].mxu0
        %2938 = vmatprep.mubr.f32.mxu0 0.0
        %2939 = vmatmul.mubr.f32.gmra.mrb[0].mxu0 %v2766
        %v2940 = vpop.f32.mrb[0].mxu0
        %v2941 = vadd.f32 0.0, %v2940
        %v2942 = vpop.f32.mrb[0].mxu0
        %2943 = vmatprep.mubr.f32.mxu0 0.0
        %2944 = vmatmul.mubr.f32.gmra.mrb[0].mxu0 %v2769
        %v2945 = vpop.f32.mrb[0].mxu0
        %v2946 = vadd.f32 0.0, %v2945
        %v2947 = vpop.f32.mrb[0].mxu0
        %2948 = vmatprep.mubr.f32.mxu0 0.0
        %2949 = vmatmul.mubr.f32.gmra.mrb[0].mxu0 %v2772
        %v2950 = vpop.f32.mrb[0].mxu0
        %v2951 = vadd.f32 0.0, %v2950
        %v2952 = vpop.f32.mrb[0].mxu0
        %2953 = vmatprep.mubr.f32.mxu0 0.0
        %2954 = vmatmul.mubr.f32.gmra.mrb[0].mxu0 %v2775
        %v2955 = vpop.f32.mrb[0].mxu0
        %v2956 = vadd.f32 0.0, %v2955
        %v2957 = vpop.f32.mrb[0].mxu0
        %2958 = vmatprep.mubr.f32.mxu0 0.0
        %2959 = vmatmul.mubr.f32.gmra.mrb[0].mxu0 %v2778
        %v2960 = vpop.f32.mrb[0].mxu0
        %v2961 = vadd.f32 0.0, %v2960
        %v2962 = vpop.f32.mrb[0].mxu0
        %2963 = vmatprep.mubr.f32.mxu0 0.0
        %2964 = vmatmul.mubr.f32.gmra.mrb[0].mxu0 %v2781
        %v2965 = vpop.f32.mrb[0].mxu0
        %v2966 = vadd.f32 0.0, %v2965
        %v2967 = vpop.f32.mrb[0].mxu0
        %2968 = vmatprep.mubr.f32.mxu0 0.0
        %2969 = vmatmul.mubr.f32.gmra.mrb[0].mxu0 %v2784
        %v2970 = vpop.f32.mrb[0].mxu0
        %v2971 = vadd.f32 0.0, %v2970
        %v2972 = vpop.f32.mrb[0].mxu0
        %2973 = vmatprep.mubr.f32.mxu0 0.0
        %2974 = vmatmul.mubr.f32.gmra.mrb[0].mxu0 %v2787
        %v2975 = vpop.f32.mrb[0].mxu0
        %v2976 = vadd.f32 0.0, %v2975
        %v2977 = vpop.f32.mrb[0].mxu0
        %2978 = vmatprep.mubr.f32.mxu0 0.0
        %2979 = vmatmul.mubr.f32.gmra.mrb[0].mxu0 %v2790
        %v2980 = vpop.f32.mrb[0].mxu0
        %v2981 = vadd.f32 0.0, %v2980
        %v2982 = vpop.f32.mrb[0].mxu0
        %2983 = vmatprep.mubr.f32.mxu0 0.0
        %2984 = vmatmul.mubr.f32.gmra.mrb[0].mxu0 %v2793
        %v2985 = vpop.f32.mrb[0].mxu0
        %v2986 = vadd.f32 0.0, %v2985
        %v2987 = vpop.f32.mrb[0].mxu0
        %2988 = vmatprep.mubr.f32.mxu0 0.0
        %2989 = vmatmul.mubr.f32.gmra.mrb[0].mxu0 %v2796
        %v2990 = vpop.f32.mrb[0].mxu0
        %v2991 = vadd.f32 0.0, %v2990
        %v2992 = vpop.f32.mrb[0].mxu0
        %2993 = vmatprep.mubr.f32.mxu0 0.0
        %2994 = vmatmul.mubr.f32.gmra.mrb[0].mxu0 %v2799
        %v2995 = vpop.f32.mrb[0].mxu0
        %v2996 = vadd.f32 0.0, %v2995
        %v2997 = vpop.f32.mrb[0].mxu0
        %2998 = vmatprep.mubr.f32.mxu0 0.0
        %2999 = vmatmul.mubr.f32.gmra.mrb[0].mxu0 %v2802
        %v3000 = vpop.f32.mrb[0].mxu0
        %v3001 = vadd.f32 0.0, %v3000
        %v3002 = vpop.f32.mrb[0].mxu0
        %3003 = vmatprep.mubr.f32.mxu0 0.0
        %3004 = vmatmul.mubr.f32.gmra.mrb[0].mxu0 %v2805
        %v3005 = vpop.f32.mrb[0].mxu0
        %v3006 = vadd.f32 0.0, %v3005
        %v3007 = vpop.f32.mrb[0].mxu0
        %3008 = vmatprep.mubr.f32.mxu0 0.0
        %3009 = vmatmul.mubr.f32.gmra.mrb[0].mxu0 %v2808
        %v3010 = vpop.f32.mrb[0].mxu0
        %v3011 = vadd.f32 0.0, %v3010
        %v3012 = vpop.f32.mrb[0].mxu0
        %3013 = vmatprep.mubr.f32.mxu0 0.0
        %3014 = vmatmul.mubr.f32.gmra.mrb[0].mxu0 %v2811
        %v3015 = vpop.f32.mrb[0].mxu0
        %v3016 = vadd.f32 0.0, %v3015
        %v3017 = vpop.f32.mrb[0].mxu0
        %3018 = vmatprep.mubr.f32.mxu0 0.0
        %3019 = vmatmul.mubr.f32.gmra.mrb[0].mxu0 %v2814
        %v3020 = vpop.f32.mrb[0].mxu0
        %v3021 = vadd.f32 0.0, %v3020
        %v3022 = vpop.f32.mrb[0].mxu0
        %3023 = vmatprep.mubr.f32.mxu0 0.0
        %3024 = vmatmul.mubr.f32.gmra.mrb[0].mxu0 %v2817
        %v3025 = vpop.f32.mrb[0].mxu0
        %v3026 = vadd.f32 0.0, %v3025
        %v3027 = vpop.f32.mrb[0].mxu0
        %3028 = vmatprep.mubr.f32.mxu0 0.0
        %3029 = vmatmul.mubr.f32.gmra.mrb[0].mxu0 %v2820
        %v3030 = vpop.f32.mrb[0].mxu0
        %v3031 = vadd.f32 0.0, %v3030
        %v3032 = vpop.f32.mrb[0].mxu0
        %3033 = vmatprep.mubr.f32.mxu0 0.0
        %3034 = vmatmul.mubr.f32.gmra.mrb[0].mxu0 %v2823
        %v3035 = vpop.f32.mrb[0].mxu0
        %v3036 = vadd.f32 0.0, %v3035
        %v3037 = vpop.f32.mrb[0].mxu0
        %3038 = vmatprep.mubr.f32.mxu0 0.0
        %3039 = vmatmul.mubr.f32.gmra.mrb[0].mxu0 %v2826
        %v3040 = vpop.f32.mrb[0].mxu0
        %v3041 = vadd.f32 0.0, %v3040
        %v3042 = vpop.f32.mrb[0].mxu0
        %3043 = vmatprep.mubr.f32.mxu0 0.0
        %3044 = vmatmul.mubr.f32.gmra.mrb[0].mxu0 %v2829
        %v3045 = vpop.f32.mrb[0].mxu0
        %v3046 = vadd.f32 0.0, %v3045
        %v3047 = vpop.f32.mrb[0].mxu0
        %3048 = vmatprep.mubr.f32.mxu0 0.0
        %3049 = vmatmul.mubr.f32.gmra.mrb[0].mxu0 %v2832
        %v3050 = vpop.f32.mrb[0].mxu0
        %v3051 = vadd.f32 0.0, %v3050
        %v3052 = vpop.f32.mrb[0].mxu0
        %3053 = vmatprep.mubr.f32.mxu0 0.0
        %3054 = vmatmul.mubr.f32.gmra.mrb[0].mxu0 %v2835
        %v3055 = vpop.f32.mrb[0].mxu0
        %v3056 = vadd.f32 0.0, %v3055
        %v3057 = vpop.f32.mrb[0].mxu0
        %3058 = vmatprep.mubr.f32.mxu0 0.0
        %3059 = vmatmul.mubr.f32.gmra.mrb[0].mxu0 %v2838
        %v3060 = vpop.f32.mrb[0].mxu0
        %v3061 = vadd.f32 0.0, %v3060
        %v3062 = vpop.f32.mrb[0].mxu0
        %3063 = vmatprep.mubr.f32.mxu0 0.0
        %3064 = vmatmul.mubr.f32.gmra.mrb[0].mxu0 %v2841
        %v3065 = vpop.f32.mrb[0].mxu0
        %v3066 = vadd.f32 0.0, %v3065
        %v3067 = vpop.f32.mrb[0].mxu0
        %3068 = vmatprep.mubr.f32.mxu0 0.0
        %3069 = vmatmul.mubr.f32.gmra.mrb[0].mxu0 %v2844
        %v3070 = vpop.f32.mrb[0].mxu0
        %v3071 = vadd.f32 0.0, %v3070
        %v3072 = vpop.f32.mrb[0].mxu0
        %3073 = vdwg.mxu0
        %v3074 = vadd.f32 %v2683, %v2916
        %v3075 = vadd.f32 %v2684, %v2921
        %v3076 = vadd.f32 %v2685, %v2926
        %v3077 = vadd.f32 %v2686, %v2931
        %v3078 = vadd.f32 %v2687, %v2936
        %v3079 = vadd.f32 %v2688, %v2941
        %v3080 = vadd.f32 %v2689, %v2946
        %v3081 = vadd.f32 %v2690, %v2951
        %v3082 = vadd.f32 %v2691, %v2956
        %v3083 = vadd.f32 %v2692, %v2961
        %v3084 = vadd.f32 %v2693, %v2966
        %v3085 = vadd.f32 %v2694, %v2971
        %v3086 = vadd.f32 %v2695, %v2976
        %v3087 = vadd.f32 %v2696, %v2981
        %v3088 = vadd.f32 %v2697, %v2986
        %v3089 = vadd.f32 %v2698, %v2991
        %v3090 = vadd.f32 %v2699, %v2996
        %v3091 = vadd.f32 %v2700, %v3001
        %v3092 = vadd.f32 %v2701, %v3006
        %v3093 = vadd.f32 %v2702, %v3011
        %v3094 = vadd.f32 %v2703, %v3016
        %v3095 = vadd.f32 %v2704, %v3021
        %v3096 = vadd.f32 %v2705, %v3026
        %v3097 = vadd.f32 %v2706, %v3031
        %v3098 = vadd.f32 %v2707, %v3036
        %v3099 = vadd.f32 %v2708, %v3041
        %v3100 = vadd.f32 %v2709, %v3046
        %v3101 = vadd.f32 %v2710, %v3051
        %v3102 = vadd.f32 %v2711, %v3056
        %v3103 = vadd.f32 %v2712, %v3061
        %v3104 = vadd.f32 %v2713, %v3066
        %v3105 = vadd.f32 %v2714, %v3071
        %v3106 = vld [vmem:[%s2715 + $0x1] sm:$0xff]
        %v3107 = vld [vmem:[%s2715 + $0x9] sm:$0xff]
        %v3108 = vld [vmem:[%s2715 + $0x19] sm:$0xff]
        %v3109 = vld [vmem:[%s2715 + $0x21] sm:$0xff]
        %v3110 = vld [vmem:[%s2715 + $0x31] sm:$0xff]
        %v3111 = vld [vmem:[%s2715 + $0x39] sm:$0xff]
        %v3112 = vld [vmem:[%s2715 + $0x49] sm:$0xff]
        %v3113 = vld [vmem:[%s2715 + $0x51] sm:$0xff]
        %v3114 = vld [vmem:[%s2715 + $0x61] sm:$0xff]
        %v3115 = vld [vmem:[%s2715 + $0x69] sm:$0xff]
        %v3116 = vld [vmem:[%s2715 + $0x79] sm:$0xff]
        %v3117 = vld [vmem:[%s2715 + $0x81] sm:$0xff]
        %v3118 = vld [vmem:[%s2715 + $0x91] sm:$0xff]
        %v3119 = vld [vmem:[%s2715 + $0x99] sm:$0xff]
        %v3120 = vld [vmem:[%s2715 + $0xa9] sm:$0xff]
        %v3121 = vld [vmem:[%s2715 + $0xb1] sm:$0xff]
        %v3122 = vld [vmem:[%s2715 + $0xc1] sm:$0xff]
        %v3123 = vld [vmem:[%s2715 + $0xc9] sm:$0xff]
        %v3124 = vld [vmem:[%s2715 + $0xd9] sm:$0xff]
        %v3125 = vld [vmem:[%s2715 + $0xe1] sm:$0xff]
        %v3126 = vld [vmem:[%s2715 + $0xf1] sm:$0xff]
        %v3127 = vld [vmem:[%s2715 + $0xf9] sm:$0xff]
        %v3128 = vld [vmem:[%s2715 + $0x109] sm:$0xff]
        %v3129 = vld [vmem:[%s2715 + $0x111] sm:$0xff]
        %v3130 = vld [vmem:[%s2715 + $0x121] sm:$0xff]
        %v3131 = vld [vmem:[%s2715 + $0x129] sm:$0xff]
        %v3132 = vld [vmem:[%s2715 + $0x139] sm:$0xff]
        %v3133 = vld [vmem:[%s2715 + $0x141] sm:$0xff]
        %v3134 = vld [vmem:[%s2715 + $0x151] sm:$0xff]
        %v3135 = vld [vmem:[%s2715 + $0x159] sm:$0xff]
        %v3136 = vld [vmem:[%s2715 + $0x169] sm:$0xff]
        %v3137 = vld [vmem:[%s2715 + $0x171] sm:$0xff]
        %s3138 = scalar_lea.vmem [#allocation5], 28
        %v3139 = vld [vmem:[%s3138] sm:$0xf]
        %v3141 = vsel %vm504, %v3106, 0
        %v3144 = vsel %vm504, %v3107, 0
        %v3147 = vsel %vm504, %v3108, 0
        %v3150 = vsel %vm504, %v3109, 0
        %v3153 = vsel %vm504, %v3110, 0
        %v3156 = vsel %vm504, %v3111, 0
        %v3159 = vsel %vm504, %v3112, 0
        %v3162 = vsel %vm504, %v3113, 0
        %v3165 = vsel %vm504, %v3114, 0
        %v3168 = vsel %vm504, %v3115, 0
        %v3171 = vsel %vm504, %v3116, 0
        %v3174 = vsel %vm504, %v3117, 0
        %v3177 = vsel %vm504, %v3118, 0
        %v3180 = vsel %vm504, %v3119, 0
        %v3183 = vsel %vm504, %v3120, 0
        %v3186 = vsel %vm504, %v3121, 0
        %v3189 = vsel %vm504, %v3122, 0
        %v3192 = vsel %vm504, %v3123, 0
        %v3195 = vsel %vm504, %v3124, 0
        %v3198 = vsel %vm504, %v3125, 0
        %v3201 = vsel %vm504, %v3126, 0
        %v3204 = vsel %vm504, %v3127, 0
        %v3207 = vsel %vm504, %v3128, 0
        %v3210 = vsel %vm504, %v3129, 0
        %v3213 = vsel %vm504, %v3130, 0
        %v3216 = vsel %vm504, %v3131, 0
        %v3219 = vsel %vm504, %v3132, 0
        %v3222 = vsel %vm504, %v3133, 0
        %v3225 = vsel %vm504, %v3134, 0
        %v3228 = vsel %vm504, %v3135, 0
        %v3231 = vsel %vm504, %v3136, 0
        %v3234 = vsel %vm504, %v3137, 0
        %v3237 = vsel %vm601, %v3139, 0
        %3239 = vmatprep.subr.mxu0 0.0
        %3240 = vmatpush1.msra.mxu0 %v3237
        %3241 = vmatprep.subr.mxu0 0.0
        %3242 = vmatpush1.msra.mxu0 0.0
        %3243 = vmatprep.subr.mxu0 0.0
        %3244 = vmatpush1.msra.mxu0 0.0
        %3245 = vmatprep.subr.mxu0 0.0
        %3246 = vmatpush1.msra.mxu0 0.0
        %3247 = vmatprep.subr.mxu0 0.0
        %3248 = vmatpush1.msra.mxu0 0.0
        %3249 = vmatprep.subr.mxu0 0.0
        %3250 = vmatpush1.msra.mxu0 0.0
        %3251 = vmatprep.subr.mxu0 0.0
        %3252 = vmatpush1.msra.mxu0 0.0
        %3253 = vmatprep.subr.mxu0 0.0
        %3254 = vmatpush1.msra.mxu0 0.0
        %3255 = vmatprep.subr.mxu0 0.0
        %3256 = vmatpush1.msra.mxu0 0.0
        %3257 = vmatprep.subr.mxu0 0.0
        %3258 = vmatpush1.msra.mxu0 0.0
        %3259 = vmatprep.subr.mxu0 0.0
        %3260 = vmatpush1.msra.mxu0 0.0
        %3261 = vmatprep.subr.mxu0 0.0
        %3262 = vmatpush1.msra.mxu0 0.0
        %3263 = vmatprep.subr.mxu0 0.0
        %3264 = vmatpush1.msra.mxu0 0.0
        %3265 = vmatprep.subr.mxu0 0.0
        %3266 = vmatpush1.msra.mxu0 0.0
        %3267 = vmatprep.subr.mxu0 0.0
        %3268 = vmatpush1.msra.mxu0 0.0
        %3269 = vmatprep.subr.mxu0 0.0
        %3270 = vmatpush1.msra.mxu0 0.0
        %3271 = vmatprep.subr.mxu0 0.0
        %3272 = vmatpush1.msra.mxu0 0.0
        %3273 = vmatprep.subr.mxu0 0.0
        %3274 = vmatpush1.msra.mxu0 0.0
        %3275 = vmatprep.subr.mxu0 0.0
        %3276 = vmatpush1.msra.mxu0 0.0
        %3277 = vmatprep.subr.mxu0 0.0
        %3278 = vmatpush1.msra.mxu0 0.0
        %3279 = vmatprep.subr.mxu0 0.0
        %3280 = vmatpush1.msra.mxu0 0.0
        %3281 = vmatprep.subr.mxu0 0.0
        %3282 = vmatpush1.msra.mxu0 0.0
        %3283 = vmatprep.subr.mxu0 0.0
        %3284 = vmatpush1.msra.mxu0 0.0
        %3285 = vmatprep.subr.mxu0 0.0
        %3286 = vmatpush1.msra.mxu0 0.0
        %3287 = vmatprep.subr.mxu0 0.0
        %3288 = vmatpush1.msra.mxu0 0.0
        %3289 = vmatprep.subr.mxu0 0.0
        %3290 = vmatpush1.msra.mxu0 0.0
        %3291 = vmatprep.subr.mxu0 0.0
        %3292 = vmatpush1.msra.mxu0 0.0
        %3293 = vmatprep.subr.mxu0 0.0
        %3294 = vmatpush1.msra.mxu0 0.0
        %3295 = vmatprep.subr.mxu0 0.0
        %3296 = vmatpush1.msra.mxu0 0.0
        %3297 = vmatprep.subr.mxu0 0.0
        %3298 = vmatpush1.msra.mxu0 0.0
        %3299 = vmatprep.subr.mxu0 0.0
        %3300 = vmatpush1.msra.mxu0 0.0
        %3301 = vmatprep.subr.mxu0 0.0
        %3302 = vmatpush1.msra.mxu0 0.0
        %3303 = vmatprep.mubr.f32.mxu0 0.0
        %3304 = vmatmul.mubr.f32.gmra.mrb[0].mxu0 %v3141
        %v3305 = vpop.f32.mrb[0].mxu0
        %v3306 = vadd.f32 0.0, %v3305
        %v3307 = vpop.f32.mrb[0].mxu0
        %3308 = vmatprep.mubr.f32.mxu0 0.0
        %3309 = vmatmul.mubr.f32.gmra.mrb[0].mxu0 %v3144
        %v3310 = vpop.f32.mrb[0].mxu0
        %v3311 = vadd.f32 0.0, %v3310
        %v3312 = vpop.f32.mrb[0].mxu0
        %3313 = vmatprep.mubr.f32.mxu0 0.0
        %3314 = vmatmul.mubr.f32.gmra.mrb[0].mxu0 %v3147
        %v3315 = vpop.f32.mrb[0].mxu0
        %v3316 = vadd.f32 0.0, %v3315
        %v3317 = vpop.f32.mrb[0].mxu0
        %3318 = vmatprep.mubr.f32.mxu0 0.0
        %3319 = vmatmul.mubr.f32.gmra.mrb[0].mxu0 %v3150
        %v3320 = vpop.f32.mrb[0].mxu0
        %v3321 = vadd.f32 0.0, %v3320
        %v3322 = vpop.f32.mrb[0].mxu0
        %3323 = vmatprep.mubr.f32.mxu0 0.0
        %3324 = vmatmul.mubr.f32.gmra.mrb[0].mxu0 %v3153
        %v3325 = vpop.f32.mrb[0].mxu0
        %v3326 = vadd.f32 0.0, %v3325
        %v3327 = vpop.f32.mrb[0].mxu0
        %3328 = vmatprep.mubr.f32.mxu0 0.0
        %3329 = vmatmul.mubr.f32.gmra.mrb[0].mxu0 %v3156
        %v3330 = vpop.f32.mrb[0].mxu0
        %v3331 = vadd.f32 0.0, %v3330
        %v3332 = vpop.f32.mrb[0].mxu0
        %3333 = vmatprep.mubr.f32.mxu0 0.0
        %3334 = vmatmul.mubr.f32.gmra.mrb[0].mxu0 %v3159
        %v3335 = vpop.f32.mrb[0].mxu0
        %v3336 = vadd.f32 0.0, %v3335
        %v3337 = vpop.f32.mrb[0].mxu0
        %3338 = vmatprep.mubr.f32.mxu0 0.0
        %3339 = vmatmul.mubr.f32.gmra.mrb[0].mxu0 %v3162
        %v3340 = vpop.f32.mrb[0].mxu0
        %v3341 = vadd.f32 0.0, %v3340
        %v3342 = vpop.f32.mrb[0].mxu0
        %3343 = vmatprep.mubr.f32.mxu0 0.0
        %3344 = vmatmul.mubr.f32.gmra.mrb[0].mxu0 %v3165
        %v3345 = vpop.f32.mrb[0].mxu0
        %v3346 = vadd.f32 0.0, %v3345
        %v3347 = vpop.f32.mrb[0].mxu0
        %3348 = vmatprep.mubr.f32.mxu0 0.0
        %3349 = vmatmul.mubr.f32.gmra.mrb[0].mxu0 %v3168
        %v3350 = vpop.f32.mrb[0].mxu0
        %v3351 = vadd.f32 0.0, %v3350
        %v3352 = vpop.f32.mrb[0].mxu0
        %3353 = vmatprep.mubr.f32.mxu0 0.0
        %3354 = vmatmul.mubr.f32.gmra.mrb[0].mxu0 %v3171
        %v3355 = vpop.f32.mrb[0].mxu0
        %v3356 = vadd.f32 0.0, %v3355
        %v3357 = vpop.f32.mrb[0].mxu0
        %3358 = vmatprep.mubr.f32.mxu0 0.0
        %3359 = vmatmul.mubr.f32.gmra.mrb[0].mxu0 %v3174
        %v3360 = vpop.f32.mrb[0].mxu0
        %v3361 = vadd.f32 0.0, %v3360
        %v3362 = vpop.f32.mrb[0].mxu0
        %3363 = vmatprep.mubr.f32.mxu0 0.0
        %3364 = vmatmul.mubr.f32.gmra.mrb[0].mxu0 %v3177
        %v3365 = vpop.f32.mrb[0].mxu0
        %v3366 = vadd.f32 0.0, %v3365
        %v3367 = vpop.f32.mrb[0].mxu0
        %3368 = vmatprep.mubr.f32.mxu0 0.0
        %3369 = vmatmul.mubr.f32.gmra.mrb[0].mxu0 %v3180
        %v3370 = vpop.f32.mrb[0].mxu0
        %v3371 = vadd.f32 0.0, %v3370
        %v3372 = vpop.f32.mrb[0].mxu0
        %3373 = vmatprep.mubr.f32.mxu0 0.0
        %3374 = vmatmul.mubr.f32.gmra.mrb[0].mxu0 %v3183
        %v3375 = vpop.f32.mrb[0].mxu0
        %v3376 = vadd.f32 0.0, %v3375
        %v3377 = vpop.f32.mrb[0].mxu0
        %3378 = vmatprep.mubr.f32.mxu0 0.0
        %3379 = vmatmul.mubr.f32.gmra.mrb[0].mxu0 %v3186
        %v3380 = vpop.f32.mrb[0].mxu0
        %v3381 = vadd.f32 0.0, %v3380
        %v3382 = vpop.f32.mrb[0].mxu0
        %3383 = vmatprep.mubr.f32.mxu0 0.0
        %3384 = vmatmul.mubr.f32.gmra.mrb[0].mxu0 %v3189
        %v3385 = vpop.f32.mrb[0].mxu0
        %v3386 = vadd.f32 0.0, %v3385
        %v3387 = vpop.f32.mrb[0].mxu0
        %3388 = vmatprep.mubr.f32.mxu0 0.0
        %3389 = vmatmul.mubr.f32.gmra.mrb[0].mxu0 %v3192
        %v3390 = vpop.f32.mrb[0].mxu0
        %v3391 = vadd.f32 0.0, %v3390
        %v3392 = vpop.f32.mrb[0].mxu0
        %3393 = vmatprep.mubr.f32.mxu0 0.0
        %3394 = vmatmul.mubr.f32.gmra.mrb[0].mxu0 %v3195
        %v3395 = vpop.f32.mrb[0].mxu0
        %v3396 = vadd.f32 0.0, %v3395
        %v3397 = vpop.f32.mrb[0].mxu0
        %3398 = vmatprep.mubr.f32.mxu0 0.0
        %3399 = vmatmul.mubr.f32.gmra.mrb[0].mxu0 %v3198
        %v3400 = vpop.f32.mrb[0].mxu0
        %v3401 = vadd.f32 0.0, %v3400
        %v3402 = vpop.f32.mrb[0].mxu0
        %3403 = vmatprep.mubr.f32.mxu0 0.0
        %3404 = vmatmul.mubr.f32.gmra.mrb[0].mxu0 %v3201
        %v3405 = vpop.f32.mrb[0].mxu0
        %v3406 = vadd.f32 0.0, %v3405
        %v3407 = vpop.f32.mrb[0].mxu0
        %3408 = vmatprep.mubr.f32.mxu0 0.0
        %3409 = vmatmul.mubr.f32.gmra.mrb[0].mxu0 %v3204
        %v3410 = vpop.f32.mrb[0].mxu0
        %v3411 = vadd.f32 0.0, %v3410
        %v3412 = vpop.f32.mrb[0].mxu0
        %3413 = vmatprep.mubr.f32.mxu0 0.0
        %3414 = vmatmul.mubr.f32.gmra.mrb[0].mxu0 %v3207
        %v3415 = vpop.f32.mrb[0].mxu0
        %v3416 = vadd.f32 0.0, %v3415
        %v3417 = vpop.f32.mrb[0].mxu0
        %3418 = vmatprep.mubr.f32.mxu0 0.0
        %3419 = vmatmul.mubr.f32.gmra.mrb[0].mxu0 %v3210
        %v3420 = vpop.f32.mrb[0].mxu0
        %v3421 = vadd.f32 0.0, %v3420
        %v3422 = vpop.f32.mrb[0].mxu0
        %3423 = vmatprep.mubr.f32.mxu0 0.0
        %3424 = vmatmul.mubr.f32.gmra.mrb[0].mxu0 %v3213
        %v3425 = vpop.f32.mrb[0].mxu0
        %v3426 = vadd.f32 0.0, %v3425
        %v3427 = vpop.f32.mrb[0].mxu0
        %3428 = vmatprep.mubr.f32.mxu0 0.0
        %3429 = vmatmul.mubr.f32.gmra.mrb[0].mxu0 %v3216
        %v3430 = vpop.f32.mrb[0].mxu0
        %v3431 = vadd.f32 0.0, %v3430
        %v3432 = vpop.f32.mrb[0].mxu0
        %3433 = vmatprep.mubr.f32.mxu0 0.0
        %3434 = vmatmul.mubr.f32.gmra.mrb[0].mxu0 %v3219
        %v3435 = vpop.f32.mrb[0].mxu0
        %v3436 = vadd.f32 0.0, %v3435
        %v3437 = vpop.f32.mrb[0].mxu0
        %3438 = vmatprep.mubr.f32.mxu0 0.0
        %3439 = vmatmul.mubr.f32.gmra.mrb[0].mxu0 %v3222
        %v3440 = vpop.f32.mrb[0].mxu0
        %v3441 = vadd.f32 0.0, %v3440
        %v3442 = vpop.f32.mrb[0].mxu0
        %3443 = vmatprep.mubr.f32.mxu0 0.0
        %3444 = vmatmul.mubr.f32.gmra.mrb[0].mxu0 %v3225
        %v3445 = vpop.f32.mrb[0].mxu0
        %v3446 = vadd.f32 0.0, %v3445
        %v3447 = vpop.f32.mrb[0].mxu0
        %3448 = vmatprep.mubr.f32.mxu0 0.0
        %3449 = vmatmul.mubr.f32.gmra.mrb[0].mxu0 %v3228
        %v3450 = vpop.f32.mrb[0].mxu0
        %v3451 = vadd.f32 0.0, %v3450
        %v3452 = vpop.f32.mrb[0].mxu0
        %3453 = vmatprep.mubr.f32.mxu0 0.0
        %3454 = vmatmul.mubr.f32.gmra.mrb[0].mxu0 %v3231
        %v3455 = vpop.f32.mrb[0].mxu0
        %v3456 = vadd.f32 0.0, %v3455
        %v3457 = vpop.f32.mrb[0].mxu0
        %3458 = vmatprep.mubr.f32.mxu0 0.0
        %3459 = vmatmul.mubr.f32.gmra.mrb[0].mxu0 %v3234
        %v3460 = vpop.f32.mrb[0].mxu0
        %v3461 = vadd.f32 0.0, %v3460
        %v3462 = vpop.f32.mrb[0].mxu0
        %3463 = vdwg.mxu0
        %v3464 = vadd.f32 %v3074, %v3306
        %v3465 = vadd.f32 %v3075, %v3311
        %v3466 = vadd.f32 %v3076, %v3316
        %v3467 = vadd.f32 %v3077, %v3321
        %v3468 = vadd.f32 %v3078, %v3326
        %v3469 = vadd.f32 %v3079, %v3331
        %v3470 = vadd.f32 %v3080, %v3336
        %v3471 = vadd.f32 %v3081, %v3341
        %v3472 = vadd.f32 %v3082, %v3346
        %v3473 = vadd.f32 %v3083, %v3351
        %v3474 = vadd.f32 %v3084, %v3356
        %v3475 = vadd.f32 %v3085, %v3361
        %v3476 = vadd.f32 %v3086, %v3366
        %v3477 = vadd.f32 %v3087, %v3371
        %v3478 = vadd.f32 %v3088, %v3376
        %v3479 = vadd.f32 %v3089, %v3381
        %v3480 = vadd.f32 %v3090, %v3386
        %v3481 = vadd.f32 %v3091, %v3391
        %v3482 = vadd.f32 %v3092, %v3396
        %v3483 = vadd.f32 %v3093, %v3401
        %v3484 = vadd.f32 %v3094, %v3406
        %v3485 = vadd.f32 %v3095, %v3411
        %v3486 = vadd.f32 %v3096, %v3416
        %v3487 = vadd.f32 %v3097, %v3421
        %v3488 = vadd.f32 %v3098, %v3426
        %v3489 = vadd.f32 %v3099, %v3431
        %v3490 = vadd.f32 %v3100, %v3436
        %v3491 = vadd.f32 %v3101, %v3441
        %v3492 = vadd.f32 %v3102, %v3446
        %v3493 = vadd.f32 %v3103, %v3451
        %v3494 = vadd.f32 %v3104, %v3456
        %v3495 = vadd.f32 %v3105, %v3461
        %v3496 = vld [vmem:[%s2715 + $0x2] sm:$0xff]
        %v3497 = vld [vmem:[%s2715 + $0xa] sm:$0xff]
        %v3498 = vld [vmem:[%s2715 + $0x1a] sm:$0xff]
        %v3499 = vld [vmem:[%s2715 + $0x22] sm:$0xff]
        %v3500 = vld [vmem:[%s2715 + $0x32] sm:$0xff]
        %v3501 = vld [vmem:[%s2715 + $0x3a] sm:$0xff]
        %v3502 = vld [vmem:[%s2715 + $0x4a] sm:$0xff]
        %v3503 = vld [vmem:[%s2715 + $0x52] sm:$0xff]
        %v3504 = vld [vmem:[%s2715 + $0x62] sm:$0xff]
        %v3505 = vld [vmem:[%s2715 + $0x6a] sm:$0xff]
        %v3506 = vld [vmem:[%s2715 + $0x7a] sm:$0xff]
        %v3507 = vld [vmem:[%s2715 + $0x82] sm:$0xff]
        %v3508 = vld [vmem:[%s2715 + $0x92] sm:$0xff]
        %v3509 = vld [vmem:[%s2715 + $0x9a] sm:$0xff]
        %v3510 = vld [vmem:[%s2715 + $0xaa] sm:$0xff]
        %v3511 = vld [vmem:[%s2715 + $0xb2] sm:$0xff]
        %v3512 = vld [vmem:[%s2715 + $0xc2] sm:$0xff]
        %v3513 = vld [vmem:[%s2715 + $0xca] sm:$0xff]
        %v3514 = vld [vmem:[%s2715 + $0xda] sm:$0xff]
        %v3515 = vld [vmem:[%s2715 + $0xe2] sm:$0xff]
        %v3516 = vld [vmem:[%s2715 + $0xf2] sm:$0xff]
        %v3517 = vld [vmem:[%s2715 + $0xfa] sm:$0xff]
        %v3518 = vld [vmem:[%s2715 + $0x10a] sm:$0xff]
        %v3519 = vld [vmem:[%s2715 + $0x112] sm:$0xff]
        %v3520 = vld [vmem:[%s2715 + $0x122] sm:$0xff]
        %v3521 = vld [vmem:[%s2715 + $0x12a] sm:$0xff]
        %v3522 = vld [vmem:[%s2715 + $0x13a] sm:$0xff]
        %v3523 = vld [vmem:[%s2715 + $0x142] sm:$0xff]
        %v3524 = vld [vmem:[%s2715 + $0x152] sm:$0xff]
        %v3525 = vld [vmem:[%s2715 + $0x15a] sm:$0xff]
        %v3526 = vld [vmem:[%s2715 + $0x16a] sm:$0xff]
        %v3527 = vld [vmem:[%s2715 + $0x172] sm:$0xff]
        %s3528 = scalar_lea.vmem [#allocation5], 32
        %v3529 = vld [vmem:[%s3528] sm:$0xf]
        %v3531 = vsel %vm504, %v3496, 0
        %v3534 = vsel %vm504, %v3497, 0
        %v3537 = vsel %vm504, %v3498, 0
        %v3540 = vsel %vm504, %v3499, 0
        %v3543 = vsel %vm504, %v3500, 0
        %v3546 = vsel %vm504, %v3501, 0
        %v3549 = vsel %vm504, %v3502, 0
        %v3552 = vsel %vm504, %v3503, 0
        %v3555 = vsel %vm504, %v3504, 0
        %v3558 = vsel %vm504, %v3505, 0
        %v3561 = vsel %vm504, %v3506, 0
        %v3564 = vsel %vm504, %v3507, 0
        %v3567 = vsel %vm504, %v3508, 0
        %v3570 = vsel %vm504, %v3509, 0
        %v3573 = vsel %vm504, %v3510, 0
        %v3576 = vsel %vm504, %v3511, 0
        %v3579 = vsel %vm504, %v3512, 0
        %v3582 = vsel %vm504, %v3513, 0
        %v3585 = vsel %vm504, %v3514, 0
        %v3588 = vsel %vm504, %v3515, 0
        %v3591 = vsel %vm504, %v3516, 0
        %v3594 = vsel %vm504, %v3517, 0
        %v3597 = vsel %vm504, %v3518, 0
        %v3600 = vsel %vm504, %v3519, 0
        %v3603 = vsel %vm504, %v3520, 0
        %v3606 = vsel %vm504, %v3521, 0
        %v3609 = vsel %vm504, %v3522, 0
        %v3612 = vsel %vm504, %v3523, 0
        %v3615 = vsel %vm504, %v3524, 0
        %v3618 = vsel %vm504, %v3525, 0
        %v3621 = vsel %vm504, %v3526, 0
        %v3624 = vsel %vm504, %v3527, 0
        %v3627 = vsel %vm601, %v3529, 0
        %3629 = vmatprep.subr.mxu0 0.0
        %3630 = vmatpush1.msra.mxu0 %v3627
        %3631 = vmatprep.subr.mxu0 0.0
        %3632 = vmatpush1.msra.mxu0 0.0
        %3633 = vmatprep.subr.mxu0 0.0
        %3634 = vmatpush1.msra.mxu0 0.0
        %3635 = vmatprep.subr.mxu0 0.0
        %3636 = vmatpush1.msra.mxu0 0.0
        %3637 = vmatprep.subr.mxu0 0.0
        %3638 = vmatpush1.msra.mxu0 0.0
        %3639 = vmatprep.subr.mxu0 0.0
        %3640 = vmatpush1.msra.mxu0 0.0
        %3641 = vmatprep.subr.mxu0 0.0
        %3642 = vmatpush1.msra.mxu0 0.0
        %3643 = vmatprep.subr.mxu0 0.0
        %3644 = vmatpush1.msra.mxu0 0.0
        %3645 = vmatprep.subr.mxu0 0.0
        %3646 = vmatpush1.msra.mxu0 0.0
        %3647 = vmatprep.subr.mxu0 0.0
        %3648 = vmatpush1.msra.mxu0 0.0
        %3649 = vmatprep.subr.mxu0 0.0
        %3650 = vmatpush1.msra.mxu0 0.0
        %3651 = vmatprep.subr.mxu0 0.0
        %3652 = vmatpush1.msra.mxu0 0.0
        %3653 = vmatprep.subr.mxu0 0.0
        %3654 = vmatpush1.msra.mxu0 0.0
        %3655 = vmatprep.subr.mxu0 0.0
        %3656 = vmatpush1.msra.mxu0 0.0
        %3657 = vmatprep.subr.mxu0 0.0
        %3658 = vmatpush1.msra.mxu0 0.0
        %3659 = vmatprep.subr.mxu0 0.0
        %3660 = vmatpush1.msra.mxu0 0.0
        %3661 = vmatprep.subr.mxu0 0.0
        %3662 = vmatpush1.msra.mxu0 0.0
        %3663 = vmatprep.subr.mxu0 0.0
        %3664 = vmatpush1.msra.mxu0 0.0
        %3665 = vmatprep.subr.mxu0 0.0
        %3666 = vmatpush1.msra.mxu0 0.0
        %3667 = vmatprep.subr.mxu0 0.0
        %3668 = vmatpush1.msra.mxu0 0.0
        %3669 = vmatprep.subr.mxu0 0.0
        %3670 = vmatpush1.msra.mxu0 0.0
        %3671 = vmatprep.subr.mxu0 0.0
        %3672 = vmatpush1.msra.mxu0 0.0
        %3673 = vmatprep.subr.mxu0 0.0
        %3674 = vmatpush1.msra.mxu0 0.0
        %3675 = vmatprep.subr.mxu0 0.0
        %3676 = vmatpush1.msra.mxu0 0.0
        %3677 = vmatprep.subr.mxu0 0.0
        %3678 = vmatpush1.msra.mxu0 0.0
        %3679 = vmatprep.subr.mxu0 0.0
        %3680 = vmatpush1.msra.mxu0 0.0
        %3681 = vmatprep.subr.mxu0 0.0
        %3682 = vmatpush1.msra.mxu0 0.0
        %3683 = vmatprep.subr.mxu0 0.0
        %3684 = vmatpush1.msra.mxu0 0.0
        %3685 = vmatprep.subr.mxu0 0.0
        %3686 = vmatpush1.msra.mxu0 0.0
        %3687 = vmatprep.subr.mxu0 0.0
        %3688 = vmatpush1.msra.mxu0 0.0
        %3689 = vmatprep.subr.mxu0 0.0
        %3690 = vmatpush1.msra.mxu0 0.0
        %3691 = vmatprep.subr.mxu0 0.0
        %3692 = vmatpush1.msra.mxu0 0.0
        %3693 = vmatprep.mubr.f32.mxu0 0.0
        %3694 = vmatmul.mubr.f32.gmra.mrb[0].mxu0 %v3531
        %v3695 = vpop.f32.mrb[0].mxu0
        %v3696 = vadd.f32 0.0, %v3695
        %v3697 = vpop.f32.mrb[0].mxu0
        %3698 = vmatprep.mubr.f32.mxu0 0.0
        %3699 = vmatmul.mubr.f32.gmra.mrb[0].mxu0 %v3534
        %v3700 = vpop.f32.mrb[0].mxu0
        %v3701 = vadd.f32 0.0, %v3700
        %v3702 = vpop.f32.mrb[0].mxu0
        %3703 = vmatprep.mubr.f32.mxu0 0.0
        %3704 = vmatmul.mubr.f32.gmra.mrb[0].mxu0 %v3537
        %v3705 = vpop.f32.mrb[0].mxu0
        %v3706 = vadd.f32 0.0, %v3705
        %v3707 = vpop.f32.mrb[0].mxu0
        %3708 = vmatprep.mubr.f32.mxu0 0.0
        %3709 = vmatmul.mubr.f32.gmra.mrb[0].mxu0 %v3540
        %v3710 = vpop.f32.mrb[0].mxu0
        %v3711 = vadd.f32 0.0, %v3710
        %v3712 = vpop.f32.mrb[0].mxu0
        %3713 = vmatprep.mubr.f32.mxu0 0.0
        %3714 = vmatmul.mubr.f32.gmra.mrb[0].mxu0 %v3543
        %v3715 = vpop.f32.mrb[0].mxu0
        %v3716 = vadd.f32 0.0, %v3715
        %v3717 = vpop.f32.mrb[0].mxu0
        %3718 = vmatprep.mubr.f32.mxu0 0.0
        %3719 = vmatmul.mubr.f32.gmra.mrb[0].mxu0 %v3546
        %v3720 = vpop.f32.mrb[0].mxu0
        %v3721 = vadd.f32 0.0, %v3720
        %v3722 = vpop.f32.mrb[0].mxu0
        %3723 = vmatprep.mubr.f32.mxu0 0.0
        %3724 = vmatmul.mubr.f32.gmra.mrb[0].mxu0 %v3549
        %v3725 = vpop.f32.mrb[0].mxu0
        %v3726 = vadd.f32 0.0, %v3725
        %v3727 = vpop.f32.mrb[0].mxu0
        %3728 = vmatprep.mubr.f32.mxu0 0.0
        %3729 = vmatmul.mubr.f32.gmra.mrb[0].mxu0 %v3552
        %v3730 = vpop.f32.mrb[0].mxu0
        %v3731 = vadd.f32 0.0, %v3730
        %v3732 = vpop.f32.mrb[0].mxu0
        %3733 = vmatprep.mubr.f32.mxu0 0.0
        %3734 = vmatmul.mubr.f32.gmra.mrb[0].mxu0 %v3555
        %v3735 = vpop.f32.mrb[0].mxu0
        %v3736 = vadd.f32 0.0, %v3735
        %v3737 = vpop.f32.mrb[0].mxu0
        %3738 = vmatprep.mubr.f32.mxu0 0.0
        %3739 = vmatmul.mubr.f32.gmra.mrb[0].mxu0 %v3558
        %v3740 = vpop.f32.mrb[0].mxu0
        %v3741 = vadd.f32 0.0, %v3740
        %v3742 = vpop.f32.mrb[0].mxu0
        %3743 = vmatprep.mubr.f32.mxu0 0.0
        %3744 = vmatmul.mubr.f32.gmra.mrb[0].mxu0 %v3561
        %v3745 = vpop.f32.mrb[0].mxu0
        %v3746 = vadd.f32 0.0, %v3745
        %v3747 = vpop.f32.mrb[0].mxu0
        %3748 = vmatprep.mubr.f32.mxu0 0.0
        %3749 = vmatmul.mubr.f32.gmra.mrb[0].mxu0 %v3564
        %v3750 = vpop.f32.mrb[0].mxu0
        %v3751 = vadd.f32 0.0, %v3750
        %v3752 = vpop.f32.mrb[0].mxu0
        %3753 = vmatprep.mubr.f32.mxu0 0.0
        %3754 = vmatmul.mubr.f32.gmra.mrb[0].mxu0 %v3567
        %v3755 = vpop.f32.mrb[0].mxu0
        %v3756 = vadd.f32 0.0, %v3755
        %v3757 = vpop.f32.mrb[0].mxu0
        %3758 = vmatprep.mubr.f32.mxu0 0.0
        %3759 = vmatmul.mubr.f32.gmra.mrb[0].mxu0 %v3570
        %v3760 = vpop.f32.mrb[0].mxu0
        %v3761 = vadd.f32 0.0, %v3760
        %v3762 = vpop.f32.mrb[0].mxu0
        %3763 = vmatprep.mubr.f32.mxu0 0.0
        %3764 = vmatmul.mubr.f32.gmra.mrb[0].mxu0 %v3573
        %v3765 = vpop.f32.mrb[0].mxu0
        %v3766 = vadd.f32 0.0, %v3765
        %v3767 = vpop.f32.mrb[0].mxu0
        %3768 = vmatprep.mubr.f32.mxu0 0.0
        %3769 = vmatmul.mubr.f32.gmra.mrb[0].mxu0 %v3576
        %v3770 = vpop.f32.mrb[0].mxu0
        %v3771 = vadd.f32 0.0, %v3770
        %v3772 = vpop.f32.mrb[0].mxu0
        %3773 = vmatprep.mubr.f32.mxu0 0.0
        %3774 = vmatmul.mubr.f32.gmra.mrb[0].mxu0 %v3579
        %v3775 = vpop.f32.mrb[0].mxu0
        %v3776 = vadd.f32 0.0, %v3775
        %v3777 = vpop.f32.mrb[0].mxu0
        %3778 = vmatprep.mubr.f32.mxu0 0.0
        %3779 = vmatmul.mubr.f32.gmra.mrb[0].mxu0 %v3582
        %v3780 = vpop.f32.mrb[0].mxu0
        %v3781 = vadd.f32 0.0, %v3780
        %v3782 = vpop.f32.mrb[0].mxu0
        %3783 = vmatprep.mubr.f32.mxu0 0.0
        %3784 = vmatmul.mubr.f32.gmra.mrb[0].mxu0 %v3585
        %v3785 = vpop.f32.mrb[0].mxu0
        %v3786 = vadd.f32 0.0, %v3785
        %v3787 = vpop.f32.mrb[0].mxu0
        %3788 = vmatprep.mubr.f32.mxu0 0.0
        %3789 = vmatmul.mubr.f32.gmra.mrb[0].mxu0 %v3588
        %v3790 = vpop.f32.mrb[0].mxu0
        %v3791 = vadd.f32 0.0, %v3790
        %v3792 = vpop.f32.mrb[0].mxu0
        %3793 = vmatprep.mubr.f32.mxu0 0.0
        %3794 = vmatmul.mubr.f32.gmra.mrb[0].mxu0 %v3591
        %v3795 = vpop.f32.mrb[0].mxu0
        %v3796 = vadd.f32 0.0, %v3795
        %v3797 = vpop.f32.mrb[0].mxu0
        %3798 = vmatprep.mubr.f32.mxu0 0.0
        %3799 = vmatmul.mubr.f32.gmra.mrb[0].mxu0 %v3594
        %v3800 = vpop.f32.mrb[0].mxu0
        %v3801 = vadd.f32 0.0, %v3800
        %v3802 = vpop.f32.mrb[0].mxu0
        %3803 = vmatprep.mubr.f32.mxu0 0.0
        %3804 = vmatmul.mubr.f32.gmra.mrb[0].mxu0 %v3597
        %v3805 = vpop.f32.mrb[0].mxu0
        %v3806 = vadd.f32 0.0, %v3805
        %v3807 = vpop.f32.mrb[0].mxu0
        %3808 = vmatprep.mubr.f32.mxu0 0.0
        %3809 = vmatmul.mubr.f32.gmra.mrb[0].mxu0 %v3600
        %v3810 = vpop.f32.mrb[0].mxu0
        %v3811 = vadd.f32 0.0, %v3810
        %v3812 = vpop.f32.mrb[0].mxu0
        %3813 = vmatprep.mubr.f32.mxu0 0.0
        %3814 = vmatmul.mubr.f32.gmra.mrb[0].mxu0 %v3603
        %v3815 = vpop.f32.mrb[0].mxu0
        %v3816 = vadd.f32 0.0, %v3815
        %v3817 = vpop.f32.mrb[0].mxu0
        %3818 = vmatprep.mubr.f32.mxu0 0.0
        %3819 = vmatmul.mubr.f32.gmra.mrb[0].mxu0 %v3606
        %v3820 = vpop.f32.mrb[0].mxu0
        %v3821 = vadd.f32 0.0, %v3820
        %v3822 = vpop.f32.mrb[0].mxu0
        %3823 = vmatprep.mubr.f32.mxu0 0.0
        %3824 = vmatmul.mubr.f32.gmra.mrb[0].mxu0 %v3609
        %v3825 = vpop.f32.mrb[0].mxu0
        %v3826 = vadd.f32 0.0, %v3825
        %v3827 = vpop.f32.mrb[0].mxu0
        %3828 = vmatprep.mubr.f32.mxu0 0.0
        %3829 = vmatmul.mubr.f32.gmra.mrb[0].mxu0 %v3612
        %v3830 = vpop.f32.mrb[0].mxu0
        %v3831 = vadd.f32 0.0, %v3830
        %v3832 = vpop.f32.mrb[0].mxu0
        %3833 = vmatprep.mubr.f32.mxu0 0.0
        %3834 = vmatmul.mubr.f32.gmra.mrb[0].mxu0 %v3615
        %v3835 = vpop.f32.mrb[0].mxu0
        %v3836 = vadd.f32 0.0, %v3835
        %v3837 = vpop.f32.mrb[0].mxu0
        %3838 = vmatprep.mubr.f32.mxu0 0.0
        %3839 = vmatmul.mubr.f32.gmra.mrb[0].mxu0 %v3618
        %v3840 = vpop.f32.mrb[0].mxu0
        %v3841 = vadd.f32 0.0, %v3840
        %v3842 = vpop.f32.mrb[0].mxu0
        %3843 = vmatprep.mubr.f32.mxu0 0.0
        %3844 = vmatmul.mubr.f32.gmra.mrb[0].mxu0 %v3621
        %v3845 = vpop.f32.mrb[0].mxu0
        %v3846 = vadd.f32 0.0, %v3845
        %v3847 = vpop.f32.mrb[0].mxu0
        %3848 = vmatprep.mubr.f32.mxu0 0.0
        %3849 = vmatmul.mubr.f32.gmra.mrb[0].mxu0 %v3624
        %v3850 = vpop.f32.mrb[0].mxu0
        %v3851 = vadd.f32 0.0, %v3850
        %v3852 = vpop.f32.mrb[0].mxu0
        %3853 = vdwg.mxu0
        %v3854 = vadd.f32 %v3464, %v3696
        %v3855 = vadd.f32 %v3465, %v3701
        %v3856 = vadd.f32 %v3466, %v3706
        %v3857 = vadd.f32 %v3467, %v3711
        %v3858 = vadd.f32 %v3468, %v3716
        %v3859 = vadd.f32 %v3469, %v3721
        %v3860 = vadd.f32 %v3470, %v3726
        %v3861 = vadd.f32 %v3471, %v3731
        %v3862 = vadd.f32 %v3472, %v3736
        %v3863 = vadd.f32 %v3473, %v3741
        %v3864 = vadd.f32 %v3474, %v3746
        %v3865 = vadd.f32 %v3475, %v3751
        %v3866 = vadd.f32 %v3476, %v3756
        %v3867 = vadd.f32 %v3477, %v3761
        %v3868 = vadd.f32 %v3478, %v3766
        %v3869 = vadd.f32 %v3479, %v3771
        %v3870 = vadd.f32 %v3480, %v3776
        %v3871 = vadd.f32 %v3481, %v3781
        %v3872 = vadd.f32 %v3482, %v3786
        %v3873 = vadd.f32 %v3483, %v3791
        %v3874 = vadd.f32 %v3484, %v3796
        %v3875 = vadd.f32 %v3485, %v3801
        %v3876 = vadd.f32 %v3486, %v3806
        %v3877 = vadd.f32 %v3487, %v3811
        %v3878 = vadd.f32 %v3488, %v3816
        %v3879 = vadd.f32 %v3489, %v3821
        %v3880 = vadd.f32 %v3490, %v3826
        %v3881 = vadd.f32 %v3491, %v3831
        %v3882 = vadd.f32 %v3492, %v3836
        %v3883 = vadd.f32 %v3493, %v3841
        %v3884 = vadd.f32 %v3494, %v3846
        %v3885 = vadd.f32 %v3495, %v3851
        %v3886 = vld [vmem:[#allocation7] sm:$0x1]
        %v3888 = vlaneseq
        %v3889 = vshrl.u32 %v3888, 7
        %v3890 = vsub.s32 0, %v3889
        %v3891 = vrot.slane %v3886, %v3890
        %v3893 = vadd.f32 %v3854, %v3891
        %v3894 = vadd.f32 %v3855, %v3891
        %v3895 = vadd.f32 %v3856, %v3891
        %v3896 = vadd.f32 %v3857, %v3891
        %v3897 = vadd.f32 %v3858, %v3891
        %v3898 = vadd.f32 %v3859, %v3891
        %v3899 = vadd.f32 %v3860, %v3891
        %v3900 = vadd.f32 %v3861, %v3891
        %v3901 = vadd.f32 %v3862, %v3891
        %v3902 = vadd.f32 %v3863, %v3891
        %v3903 = vadd.f32 %v3864, %v3891
        %v3904 = vadd.f32 %v3865, %v3891
        %v3905 = vadd.f32 %v3866, %v3891
        %v3906 = vadd.f32 %v3867, %v3891
        %v3907 = vadd.f32 %v3868, %v3891
        %v3908 = vadd.f32 %v3869, %v3891
        %v3909 = vadd.f32 %v3870, %v3891
        %v3910 = vadd.f32 %v3871, %v3891
        %v3911 = vadd.f32 %v3872, %v3891
        %v3912 = vadd.f32 %v3873, %v3891
        %v3913 = vadd.f32 %v3874, %v3891
        %v3914 = vadd.f32 %v3875, %v3891
        %v3915 = vadd.f32 %v3876, %v3891
        %v3916 = vadd.f32 %v3877, %v3891
        %v3917 = vadd.f32 %v3878, %v3891
        %v3918 = vadd.f32 %v3879, %v3891
        %v3919 = vadd.f32 %v3880, %v3891
        %v3920 = vadd.f32 %v3881, %v3891
        %v3921 = vadd.f32 %v3882, %v3891
        %v3922 = vadd.f32 %v3883, %v3891
        %v3923 = vadd.f32 %v3884, %v3891
        %v3924 = vadd.f32 %v3885, %v3891
        %v3925 = vadd.f32 %v3893, %v3894
        %v3926 = vadd.f32 %v3925, %v3895
        %v3927 = vadd.f32 %v3926, %v3896
        %v3928 = vadd.f32 %v3927, %v3897
        %v3929 = vadd.f32 %v3928, %v3898
        %v3930 = vadd.f32 %v3929, %v3899
        %v3931 = vadd.f32 %v3930, %v3900
        %v3932 = vadd.f32 %v3931, %v3901
        %v3933 = vadd.f32 %v3932, %v3902
        %v3934 = vadd.f32 %v3933, %v3903
        %v3935 = vadd.f32 %v3934, %v3904
        %v3936 = vadd.f32 %v3935, %v3905
        %v3937 = vadd.f32 %v3936, %v3906
        %v3938 = vadd.f32 %v3937, %v3907
        %v3939 = vadd.f32 %v3938, %v3908
        %v3940 = vadd.f32 %v3939, %v3909
        %v3941 = vadd.f32 %v3940, %v3910
        %v3942 = vadd.f32 %v3941, %v3911
        %v3943 = vadd.f32 %v3942, %v3912
        %v3944 = vadd.f32 %v3943, %v3913
        %v3945 = vadd.f32 %v3944, %v3914
        %v3946 = vadd.f32 %v3945, %v3915
        %v3947 = vadd.f32 %v3946, %v3916
        %v3948 = vadd.f32 %v3947, %v3917
        %v3949 = vadd.f32 %v3948, %v3918
        %v3950 = vadd.f32 %v3949, %v3919
        %v3951 = vadd.f32 %v3950, %v3920
        %v3952 = vadd.f32 %v3951, %v3921
        %v3953 = vadd.f32 %v3952, %v3922
        %v3954 = vadd.f32 %v3953, %v3923
        %v3955 = vadd.f32 %v3954, %v3924
        %v3956 = vrot.slane %v3955, 4
        %v3957 = vadd.f32 %v3955, %v3956
        %v3958 = vrot.slane %v3957, 2
        %v3959 = vadd.f32 %v3957, %v3958
        %v3960 = vrot.slane %v3959, 1
        %v3961 = vadd.f32 %v3959, %v3960
        %v3962 = vmul.f32 %v3893, %v3893
        %v3963 = vmul.f32 %v3894, %v3894
        %v3964 = vmul.f32 %v3895, %v3895
        %v3965 = vmul.f32 %v3896, %v3896
        %v3966 = vmul.f32 %v3897, %v3897
        %v3967 = vmul.f32 %v3898, %v3898
        %v3968 = vmul.f32 %v3899, %v3899
        %v3969 = vmul.f32 %v3900, %v3900
        %v3970 = vmul.f32 %v3901, %v3901
        %v3971 = vmul.f32 %v3902, %v3902
        %v3972 = vmul.f32 %v3903, %v3903
        %v3973 = vmul.f32 %v3904, %v3904
        %v3974 = vmul.f32 %v3905, %v3905
        %v3975 = vmul.f32 %v3906, %v3906
        %v3976 = vmul.f32 %v3907, %v3907
        %v3977 = vmul.f32 %v3908, %v3908
        %v3978 = vmul.f32 %v3909, %v3909
        %v3979 = vmul.f32 %v3910, %v3910
        %v3980 = vmul.f32 %v3911, %v3911
        %v3981 = vmul.f32 %v3912, %v3912
        %v3982 = vmul.f32 %v3913, %v3913
        %v3983 = vmul.f32 %v3914, %v3914
        %v3984 = vmul.f32 %v3915, %v3915
        %v3985 = vmul.f32 %v3916, %v3916
        %v3986 = vmul.f32 %v3917, %v3917
        %v3987 = vmul.f32 %v3918, %v3918
        %v3988 = vmul.f32 %v3919, %v3919
        %v3989 = vmul.f32 %v3920, %v3920
        %v3990 = vmul.f32 %v3921, %v3921
        %v3991 = vmul.f32 %v3922, %v3922
        %v3992 = vmul.f32 %v3923, %v3923
        %v3993 = vmul.f32 %v3924, %v3924
        %v3994 = vadd.f32 %v3962, %v3963
        %v3995 = vadd.f32 %v3994, %v3964
        %v3996 = vadd.f32 %v3995, %v3965
        %v3997 = vadd.f32 %v3996, %v3966
        %v3998 = vadd.f32 %v3997, %v3967
        %v3999 = vadd.f32 %v3998, %v3968
        %v4000 = vadd.f32 %v3999, %v3969
        %v4001 = vadd.f32 %v4000, %v3970
        %v4002 = vadd.f32 %v4001, %v3971
        %v4003 = vadd.f32 %v4002, %v3972
        %v4004 = vadd.f32 %v4003, %v3973
        %v4005 = vadd.f32 %v4004, %v3974
        %v4006 = vadd.f32 %v4005, %v3975
        %v4007 = vadd.f32 %v4006, %v3976
        %v4008 = vadd.f32 %v4007, %v3977
        %v4009 = vadd.f32 %v4008, %v3978
        %v4010 = vadd.f32 %v4009, %v3979
        %v4011 = vadd.f32 %v4010, %v3980
        %v4012 = vadd.f32 %v4011, %v3981
        %v4013 = vadd.f32 %v4012, %v3982
        %v4014 = vadd.f32 %v4013, %v3983
        %v4015 = vadd.f32 %v4014, %v3984
        %v4016 = vadd.f32 %v4015, %v3985
        %v4017 = vadd.f32 %v4016, %v3986
        %v4018 = vadd.f32 %v4017, %v3987
        %v4019 = vadd.f32 %v4018, %v3988
        %v4020 = vadd.f32 %v4019, %v3989
        %v4021 = vadd.f32 %v4020, %v3990
        %v4022 = vadd.f32 %v4021, %v3991
        %v4023 = vadd.f32 %v4022, %v3992
        %v4024 = vadd.f32 %v4023, %v3993
        %v4025 = vrot.slane %v4024, 4
        %v4026 = vadd.f32 %v4024, %v4025
        %v4027 = vrot.slane %v4026, 2
        %v4028 = vadd.f32 %v4026, %v4027
        %v4029 = vrot.slane %v4028, 1
        %v4030 = vadd.f32 %v4028, %v4029
        %vm4031 = vcmask 1040384
        %v4032 = vsel %vm4031, %v3961, %v4030
        %v4033 = vld [vmem:[#allocation13] sm:$0xff]
        %v4034 = vld [vmem:[#allocation13 + $0x8] sm:$0xff]
        %v4035 = vld [vmem:[#allocation13 + $0x10] sm:$0xff]
        %v4036 = vld [vmem:[#allocation13 + $0x18] sm:$0xff]
        %v4037 = vld [vmem:[#allocation13 + $0x20] sm:$0xff]
        %v4038 = vld [vmem:[#allocation13 + $0x28] sm:$0xff]
        %v4039 = vld [vmem:[#allocation13 + $0x30] sm:$0xff]
        %v4040 = vld [vmem:[#allocation13 + $0x38] sm:$0xff]
        %v4041 = vld [vmem:[#allocation13 + $0x40] sm:$0xff]
        %v4042 = vld [vmem:[#allocation13 + $0x48] sm:$0xff]
        %v4043 = vld [vmem:[#allocation13 + $0x50] sm:$0xff]
        %v4044 = vld [vmem:[#allocation13 + $0x58] sm:$0xff]
        %v4045 = vld [vmem:[#allocation13 + $0x60] sm:$0xff]
        %v4046 = vld [vmem:[#allocation13 + $0x68] sm:$0xff]
        %v4047 = vld [vmem:[#allocation13 + $0x70] sm:$0xff]
        %v4048 = vld [vmem:[#allocation13 + $0x78] sm:$0xff]
        %v4049 = vld [vmem:[#allocation14] sm:$0x1]
        %vm4050 = vcmp.lt.s32.totalorder %v4049, 8
        %4051 = vset.pattern.permute.xlu0 0
        %4052 = vperm.xlu0 %4051, %v4033
        %v4053 = vpop.permute.xlu0 %4052
        %4054 = vset.pattern.permute.xlu0 0
        %4055 = vperm.xlu0 %4054, %v4034
        %v4056 = vpop.permute.xlu0 %4055
        %4057 = vset.pattern.permute.xlu0 0
        %4058 = vperm.xlu0 %4057, %v4035
        %v4059 = vpop.permute.xlu0 %4058
        %4060 = vset.pattern.permute.xlu0 0
        %4061 = vperm.xlu0 %4060, %v4036
        %v4062 = vpop.permute.xlu0 %4061
        %4063 = vset.pattern.permute.xlu0 0
        %4064 = vperm.xlu0 %4063, %v4037
        %v4065 = vpop.permute.xlu0 %4064
        %4066 = vset.pattern.permute.xlu0 0
        %4067 = vperm.xlu0 %4066, %v4038
        %v4068 = vpop.permute.xlu0 %4067
        %4069 = vset.pattern.permute.xlu0 0
        %4070 = vperm.xlu0 %4069, %v4039
        %v4071 = vpop.permute.xlu0 %4070
        %4072 = vset.pattern.permute.xlu0 0
        %4073 = vperm.xlu0 %4072, %v4040
        %v4074 = vpop.permute.xlu0 %4073
        %4075 = vset.pattern.permute.xlu0 0
        %4076 = vperm.xlu0 %4075, %v4041
        %v4077 = vpop.permute.xlu0 %4076
        %4078 = vset.pattern.permute.xlu0 0
        %4079 = vperm.xlu0 %4078, %v4042
        %v4080 = vpop.permute.xlu0 %4079
        %4081 = vset.pattern.permute.xlu0 0
        %4082 = vperm.xlu0 %4081, %v4043
        %v4083 = vpop.permute.xlu0 %4082
        %4084 = vset.pattern.permute.xlu0 0
        %4085 = vperm.xlu0 %4084, %v4044
        %v4086 = vpop.permute.xlu0 %4085
        %4087 = vset.pattern.permute.xlu0 0
        %4088 = vperm.xlu0 %4087, %v4045
        %v4089 = vpop.permute.xlu0 %4088
        %4090 = vset.pattern.permute.xlu0 0
        %4091 = vperm.xlu0 %4090, %v4046
        %v4092 = vpop.permute.xlu0 %4091
        %4093 = vset.pattern.permute.xlu0 0
        %4094 = vperm.xlu0 %4093, %v4047
        %v4095 = vpop.permute.xlu0 %4094
        %4096 = vset.pattern.permute.xlu0 0
        %4097 = vperm.xlu0 %4096, %v4048
        %v4098 = vpop.permute.xlu0 %4097
        %v4099 = vlaneseq
        %v4100 = vshrl.u32 %v4099, 7
        %v4101 = vsub.s32 0, %v4100
        %v4102 = vrot.slane %v4049, %v4101
        %vm4103 = vcmp.eq.s32.totalorder %v4053, %v4102
        %vm4104 = vcmp.eq.s32.totalorder %v4056, %v4102
        %vm4105 = vcmp.eq.s32.totalorder %v4059, %v4102
        %vm4106 = vcmp.eq.s32.totalorder %v4062, %v4102
        %vm4107 = vcmp.eq.s32.totalorder %v4065, %v4102
        %vm4108 = vcmp.eq.s32.totalorder %v4068, %v4102
        %vm4109 = vcmp.eq.s32.totalorder %v4071, %v4102
        %vm4110 = vcmp.eq.s32.totalorder %v4074, %v4102
        %vm4111 = vcmp.eq.s32.totalorder %v4077, %v4102
        %vm4112 = vcmp.eq.s32.totalorder %v4080, %v4102
        %vm4113 = vcmp.eq.s32.totalorder %v4083, %v4102
        %vm4114 = vcmp.eq.s32.totalorder %v4086, %v4102
        %vm4115 = vcmp.eq.s32.totalorder %v4089, %v4102
        %vm4116 = vcmp.eq.s32.totalorder %v4092, %v4102
        %vm4117 = vcmp.eq.s32.totalorder %v4095, %v4102
        %vm4118 = vcmp.eq.s32.totalorder %v4098, %v4102
        %v4119 = vsel %vm4050, 1, 0
        %v4120 = vlaneseq
        %v4121 = vshrl.u32 %v4120, 7
        %v4122 = vsub.s32 0, %v4121
        %v4123 = vrot.slane %v4119, %v4122
        %vm4124 = vcmp.eq.s32.totalorder %v4123, 1
        %vm4125 = vmand %vm4103, %vm4124
        %vm4126 = vmand %vm4104, %vm4124
        %vm4127 = vmand %vm4105, %vm4124
        %vm4128 = vmand %vm4106, %vm4124
        %vm4129 = vmand %vm4107, %vm4124
        %vm4130 = vmand %vm4108, %vm4124
        %vm4131 = vmand %vm4109, %vm4124
        %vm4132 = vmand %vm4110, %vm4124
        %vm4133 = vmand %vm4111, %vm4124
        %vm4134 = vmand %vm4112, %vm4124
        %vm4135 = vmand %vm4113, %vm4124
        %vm4136 = vmand %vm4114, %vm4124
        %vm4137 = vmand %vm4115, %vm4124
        %vm4138 = vmand %vm4116, %vm4124
        %vm4139 = vmand %vm4117, %vm4124
        %vm4140 = vmand %vm4118, %vm4124
        %vm4141 = vcmp.lt.s32.totalorder %v4033, 8
        %vm4142 = vcmp.lt.s32.totalorder %v4034, 8
        %vm4143 = vcmp.lt.s32.totalorder %v4035, 8
        %vm4144 = vcmp.lt.s32.totalorder %v4036, 8
        %vm4145 = vcmp.lt.s32.totalorder %v4037, 8
        %vm4146 = vcmp.lt.s32.totalorder %v4038, 8
        %vm4147 = vcmp.lt.s32.totalorder %v4039, 8
        %vm4148 = vcmp.lt.s32.totalorder %v4040, 8
        %vm4149 = vcmp.lt.s32.totalorder %v4041, 8
        %vm4150 = vcmp.lt.s32.totalorder %v4042, 8
        %vm4151 = vcmp.lt.s32.totalorder %v4043, 8
        %vm4152 = vcmp.lt.s32.totalorder %v4044, 8
        %vm4153 = vcmp.lt.s32.totalorder %v4045, 8
        %vm4154 = vcmp.lt.s32.totalorder %v4046, 8
        %vm4155 = vcmp.lt.s32.totalorder %v4047, 8
        %vm4156 = vcmp.lt.s32.totalorder %v4048, 8
        %v4157 = vsel %vm4141, 1, 0
        %v4158 = vsel %vm4142, 1, 0
        %v4159 = vsel %vm4143, 1, 0
        %v4160 = vsel %vm4144, 1, 0
        %v4161 = vsel %vm4145, 1, 0
        %v4162 = vsel %vm4146, 1, 0
        %v4163 = vsel %vm4147, 1, 0
        %v4164 = vsel %vm4148, 1, 0
        %v4165 = vsel %vm4149, 1, 0
        %v4166 = vsel %vm4150, 1, 0
        %v4167 = vsel %vm4151, 1, 0
        %v4168 = vsel %vm4152, 1, 0
        %v4169 = vsel %vm4153, 1, 0
        %v4170 = vsel %vm4154, 1, 0
        %v4171 = vsel %vm4155, 1, 0
        %v4172 = vsel %vm4156, 1, 0
        %4173 = vset.pattern.permute.xlu0 0
        %4174 = vperm.xlu0 %4173, %v4157
        %v4175 = vpop.permute.xlu0 %4174
        %4176 = vset.pattern.permute.xlu0 0
        %4177 = vperm.xlu0 %4176, %v4158
        %v4178 = vpop.permute.xlu0 %4177
        %4179 = vset.pattern.permute.xlu0 0
        %4180 = vperm.xlu0 %4179, %v4159
        %v4181 = vpop.permute.xlu0 %4180
        %4182 = vset.pattern.permute.xlu0 0
        %4183 = vperm.xlu0 %4182, %v4160
        %v4184 = vpop.permute.xlu0 %4183
        %4185 = vset.pattern.permute.xlu0 0
        %4186 = vperm.xlu0 %4185, %v4161
        %v4187 = vpop.permute.xlu0 %4186
        %4188 = vset.pattern.permute.xlu0 0
        %4189 = vperm.xlu0 %4188, %v4162
        %v4190 = vpop.permute.xlu0 %4189
        %4191 = vset.pattern.permute.xlu0 0
        %4192 = vperm.xlu0 %4191, %v4163
        %v4193 = vpop.permute.xlu0 %4192
        %4194 = vset.pattern.permute.xlu0 0
        %4195 = vperm.xlu0 %4194, %v4164
        %v4196 = vpop.permute.xlu0 %4195
        %4197 = vset.pattern.permute.xlu0 0
        %4198 = vperm.xlu0 %4197, %v4165
        %v4199 = vpop.permute.xlu0 %4198
        %4200 = vset.pattern.permute.xlu0 0
        %4201 = vperm.xlu0 %4200, %v4166
        %v4202 = vpop.permute.xlu0 %4201
        %4203 = vset.pattern.permute.xlu0 0
        %4204 = vperm.xlu0 %4203, %v4167
        %v4205 = vpop.permute.xlu0 %4204
        %4206 = vset.pattern.permute.xlu0 0
        %4207 = vperm.xlu0 %4206, %v4168
        %v4208 = vpop.permute.xlu0 %4207
        %4209 = vset.pattern.permute.xlu0 0
        %4210 = vperm.xlu0 %4209, %v4169
        %v4211 = vpop.permute.xlu0 %4210
        %4212 = vset.pattern.permute.xlu0 0
        %4213 = vperm.xlu0 %4212, %v4170
        %v4214 = vpop.permute.xlu0 %4213
        %4215 = vset.pattern.permute.xlu0 0
        %4216 = vperm.xlu0 %4215, %v4171
        %v4217 = vpop.permute.xlu0 %4216
        %4218 = vset.pattern.permute.xlu0 0
        %4219 = vperm.xlu0 %4218, %v4172
        %v4220 = vpop.permute.xlu0 %4219
        %vm4221 = vcmp.eq.s32.totalorder %v4175, 1
        %vm4222 = vcmp.eq.s32.totalorder %v4178, 1
        %vm4223 = vcmp.eq.s32.totalorder %v4181, 1
        %vm4224 = vcmp.eq.s32.totalorder %v4184, 1
        %vm4225 = vcmp.eq.s32.totalorder %v4187, 1
        %vm4226 = vcmp.eq.s32.totalorder %v4190, 1
        %vm4227 = vcmp.eq.s32.totalorder %v4193, 1
        %vm4228 = vcmp.eq.s32.totalorder %v4196, 1
        %vm4229 = vcmp.eq.s32.totalorder %v4199, 1
        %vm4230 = vcmp.eq.s32.totalorder %v4202, 1
        %vm4231 = vcmp.eq.s32.totalorder %v4205, 1
        %vm4232 = vcmp.eq.s32.totalorder %v4208, 1
        %vm4233 = vcmp.eq.s32.totalorder %v4211, 1
        %vm4234 = vcmp.eq.s32.totalorder %v4214, 1
        %vm4235 = vcmp.eq.s32.totalorder %v4217, 1
        %vm4236 = vcmp.eq.s32.totalorder %v4220, 1
        %vm4237 = vmand %vm4125, %vm4221
        %vm4238 = vmand %vm4126, %vm4222
        %vm4239 = vmand %vm4127, %vm4223
        %vm4240 = vmand %vm4128, %vm4224
        %vm4241 = vmand %vm4129, %vm4225
        %vm4242 = vmand %vm4130, %vm4226
        %vm4243 = vmand %vm4131, %vm4227
        %vm4244 = vmand %vm4132, %vm4228
        %vm4245 = vmand %vm4133, %vm4229
        %vm4246 = vmand %vm4134, %vm4230
        %vm4247 = vmand %vm4135, %vm4231
        %vm4248 = vmand %vm4136, %vm4232
        %vm4249 = vmand %vm4137, %vm4233
        %vm4250 = vmand %vm4138, %vm4234
        %vm4251 = vmand %vm4139, %vm4235
        %vm4252 = vmand %vm4140, %vm4236
        %v4253 = vsel %vm4237, 1, 0
        %v4254 = vsel %vm4238, 1, 0
        %v4255 = vsel %vm4239, 1, 0
        %v4256 = vsel %vm4240, 1, 0
        %v4257 = vsel %vm4241, 1, 0
        %v4258 = vsel %vm4242, 1, 0
        %v4259 = vsel %vm4243, 1, 0
        %v4260 = vsel %vm4244, 1, 0
        %v4261 = vsel %vm4245, 1, 0
        %v4262 = vsel %vm4246, 1, 0
        %v4263 = vsel %vm4247, 1, 0
        %v4264 = vsel %vm4248, 1, 0
        %v4265 = vsel %vm4249, 1, 0
        %v4266 = vsel %vm4250, 1, 0
        %v4267 = vsel %vm4251, 1, 0
        %v4268 = vsel %vm4252, 1, 0
        %v4269 = vcvt.s32.f32 %v4253
        %v4270 = vcvt.s32.f32 %v4254
        %v4271 = vcvt.s32.f32 %v4255
        %v4272 = vcvt.s32.f32 %v4256
        %v4273 = vcvt.s32.f32 %v4257
        %v4274 = vcvt.s32.f32 %v4258
        %v4275 = vcvt.s32.f32 %v4259
        %v4276 = vcvt.s32.f32 %v4260
        %v4277 = vcvt.s32.f32 %v4261
        %v4278 = vcvt.s32.f32 %v4262
        %v4279 = vcvt.s32.f32 %v4263
        %v4280 = vcvt.s32.f32 %v4264
        %v4281 = vcvt.s32.f32 %v4265
        %v4282 = vcvt.s32.f32 %v4266
        %v4283 = vcvt.s32.f32 %v4267
        %v4284 = vcvt.s32.f32 %v4268
        %4285 = vmatprep.subr.mxu0 0.0
        %4286 = vmatpush1.msra.mxu0 %v4269
        %4287 = vmatprep.subr.mxu0 0.0
        %4288 = vmatpush1.msra.mxu0 %v4270
        %4289 = vmatprep.subr.mxu0 0.0
        %4290 = vmatpush1.msra.mxu0 %v4271
        %4291 = vmatprep.subr.mxu0 0.0
        %4292 = vmatpush1.msra.mxu0 %v4272
        %4293 = vmatprep.subr.mxu0 0.0
        %4294 = vmatpush1.msra.mxu0 %v4273
        %4295 = vmatprep.subr.mxu0 0.0
        %4296 = vmatpush1.msra.mxu0 %v4274
        %4297 = vmatprep.subr.mxu0 0.0
        %4298 = vmatpush1.msra.mxu0 %v4275
        %4299 = vmatprep.subr.mxu0 0.0
        %4300 = vmatpush1.msra.mxu0 %v4276
        %4301 = vmatprep.subr.mxu0 0.0
        %4302 = vmatpush1.msra.mxu0 %v4277
        %4303 = vmatprep.subr.mxu0 0.0
        %4304 = vmatpush1.msra.mxu0 %v4278
        %4305 = vmatprep.subr.mxu0 0.0
        %4306 = vmatpush1.msra.mxu0 %v4279
        %4307 = vmatprep.subr.mxu0 0.0
        %4308 = vmatpush1.msra.mxu0 %v4280
        %4309 = vmatprep.subr.mxu0 0.0
        %4310 = vmatpush1.msra.mxu0 %v4281
        %4311 = vmatprep.subr.mxu0 0.0
        %4312 = vmatpush1.msra.mxu0 %v4282
        %4313 = vmatprep.subr.mxu0 0.0
        %4314 = vmatpush1.msra.mxu0 %v4283
        %4315 = vmatprep.subr.mxu0 0.0
        %4316 = vmatpush1.msra.mxu0 %v4284
        %4317 = vmatprep.subr.mxu0 0.0
        %4318 = vmatpush1.msra.mxu0 0.0
        %4319 = vmatprep.subr.mxu0 0.0
        %4320 = vmatpush1.msra.mxu0 0.0
        %4321 = vmatprep.subr.mxu0 0.0
        %4322 = vmatpush1.msra.mxu0 0.0
        %4323 = vmatprep.subr.mxu0 0.0
        %4324 = vmatpush1.msra.mxu0 0.0
        %4325 = vmatprep.subr.mxu0 0.0
        %4326 = vmatpush1.msra.mxu0 0.0
        %4327 = vmatprep.subr.mxu0 0.0
        %4328 = vmatpush1.msra.mxu0 0.0
        %4329 = vmatprep.subr.mxu0 0.0
        %4330 = vmatpush1.msra.mxu0 0.0
        %4331 = vmatprep.subr.mxu0 0.0
        %4332 = vmatpush1.msra.mxu0 0.0
        %4333 = vmatprep.subr.mxu0 0.0
        %4334 = vmatpush1.msra.mxu0 0.0
        %4335 = vmatprep.subr.mxu0 0.0
        %4336 = vmatpush1.msra.mxu0 0.0
        %4337 = vmatprep.subr.mxu0 0.0
        %4338 = vmatpush1.msra.mxu0 0.0
        %4339 = vmatprep.subr.mxu0 0.0
        %4340 = vmatpush1.msra.mxu0 0.0
        %4341 = vmatprep.subr.mxu0 0.0
        %4342 = vmatpush1.msra.mxu0 0.0
        %4343 = vmatprep.subr.mxu0 0.0
        %4344 = vmatpush1.msra.mxu0 0.0
        %4345 = vmatprep.subr.mxu0 0.0
        %4346 = vmatpush1.msra.mxu0 0.0
        %4347 = vmatprep.subr.mxu0 0.0
        %4348 = vmatpush1.msra.mxu0 0.0
        %4349 = vmatprep.mubr.f32.mxu0 0.0
        %4350 = vmatmul.mubr.f32.gmra.mrb[0].mxu0 %v4032
        %v4351 = vpop.f32.mrb[0].mxu0
        %v4352 = vadd.f32 0.0, %v4351
        %v4353 = vpop.f32.mrb[0].mxu0
        %4354 = vdwg.mxu0
        %v4355 = vmul.f32 %v4352, 0.00390625
        %v4356 = vmul.f32 %v4355, %v4355
        %v4358 = vrot.slane %v4356, 7
        %v4360 = vsub.f32 %v4355, %v4358
        %v4361 = vadd.f32 %v4360, 1e-05
        %v4362 = vrsqrt.pop %v4361
        %v4363 = vlaneseq
        %v4364 = vshrl.u32 %v4363, 7
        %v4365 = vsub.s32 0, %v4364
        %v4366 = vrot.slane %v4355, %v4365
        %v4367 = vsub.f32 %v3893, %v4366
        %v4368 = vsub.f32 %v3894, %v4366
        %v4369 = vsub.f32 %v3895, %v4366
        %v4370 = vsub.f32 %v3896, %v4366
        %v4371 = vsub.f32 %v3897, %v4366
        %v4372 = vsub.f32 %v3898, %v4366
        %v4373 = vsub.f32 %v3899, %v4366
        %v4374 = vsub.f32 %v3900, %v4366
        %v4375 = vsub.f32 %v3901, %v4366
        %v4376 = vsub.f32 %v3902, %v4366
        %v4377 = vsub.f32 %v3903, %v4366
        %v4378 = vsub.f32 %v3904, %v4366
        %v4379 = vsub.f32 %v3905, %v4366
        %v4380 = vsub.f32 %v3906, %v4366
        %v4381 = vsub.f32 %v3907, %v4366
        %v4382 = vsub.f32 %v3908, %v4366
        %v4383 = vsub.f32 %v3909, %v4366
        %v4384 = vsub.f32 %v3910, %v4366
        %v4385 = vsub.f32 %v3911, %v4366
        %v4386 = vsub.f32 %v3912, %v4366
        %v4387 = vsub.f32 %v3913, %v4366
        %v4388 = vsub.f32 %v3914, %v4366
        %v4389 = vsub.f32 %v3915, %v4366
        %v4390 = vsub.f32 %v3916, %v4366
        %v4391 = vsub.f32 %v3917, %v4366
        %v4392 = vsub.f32 %v3918, %v4366
        %v4393 = vsub.f32 %v3919, %v4366
        %v4394 = vsub.f32 %v3920, %v4366
        %v4395 = vsub.f32 %v3921, %v4366
        %v4396 = vsub.f32 %v3922, %v4366
        %v4397 = vsub.f32 %v3923, %v4366
        %v4398 = vsub.f32 %v3924, %v4366
        %v4399 = vlaneseq
        %v4400 = vshrl.u32 %v4399, 7
        %v4401 = vsub.s32 1, %v4400
        %v4402 = vrot.slane %v4362, %v4401
        %v4403 = vmul.f32 %v4367, %v4402
        %v4404 = vmul.f32 %v4368, %v4402
        %v4405 = vmul.f32 %v4369, %v4402
        %v4406 = vmul.f32 %v4370, %v4402
        %v4407 = vmul.f32 %v4371, %v4402
        %v4408 = vmul.f32 %v4372, %v4402
        %v4409 = vmul.f32 %v4373, %v4402
        %v4410 = vmul.f32 %v4374, %v4402
        %v4411 = vmul.f32 %v4375, %v4402
        %v4412 = vmul.f32 %v4376, %v4402
        %v4413 = vmul.f32 %v4377, %v4402
        %v4414 = vmul.f32 %v4378, %v4402
        %v4415 = vmul.f32 %v4379, %v4402
        %v4416 = vmul.f32 %v4380, %v4402
        %v4417 = vmul.f32 %v4381, %v4402
        %v4418 = vmul.f32 %v4382, %v4402
        %v4419 = vmul.f32 %v4383, %v4402
        %v4420 = vmul.f32 %v4384, %v4402
        %v4421 = vmul.f32 %v4385, %v4402
        %v4422 = vmul.f32 %v4386, %v4402
        %v4423 = vmul.f32 %v4387, %v4402
        %v4424 = vmul.f32 %v4388, %v4402
        %v4425 = vmul.f32 %v4389, %v4402
        %v4426 = vmul.f32 %v4390, %v4402
        %v4427 = vmul.f32 %v4391, %v4402
        %v4428 = vmul.f32 %v4392, %v4402
        %v4429 = vmul.f32 %v4393, %v4402
        %v4430 = vmul.f32 %v4394, %v4402
        %v4431 = vmul.f32 %v4395, %v4402
        %v4432 = vmul.f32 %v4396, %v4402
        %v4433 = vmul.f32 %v4397, %v4402
        %v4434 = vmul.f32 %v4398, %v4402
        %v4435 = vld [vmem:[#allocation10] sm:$0x1]
        %v4437 = vlaneseq
        %v4438 = vshrl.u32 %v4437, 7
        %v4439 = vsub.s32 0, %v4438
        %v4440 = vrot.slane %v4435, %v4439
        %v4442 = vmul.f32 %v4403, %v4440
        %v4443 = vmul.f32 %v4404, %v4440
        %v4444 = vmul.f32 %v4405, %v4440
        %v4445 = vmul.f32 %v4406, %v4440
        %v4446 = vmul.f32 %v4407, %v4440
        %v4447 = vmul.f32 %v4408, %v4440
        %v4448 = vmul.f32 %v4409, %v4440
        %v4449 = vmul.f32 %v4410, %v4440
        %v4450 = vmul.f32 %v4411, %v4440
        %v4451 = vmul.f32 %v4412, %v4440
        %v4452 = vmul.f32 %v4413, %v4440
        %v4453 = vmul.f32 %v4414, %v4440
        %v4454 = vmul.f32 %v4415, %v4440
        %v4455 = vmul.f32 %v4416, %v4440
        %v4456 = vmul.f32 %v4417, %v4440
        %v4457 = vmul.f32 %v4418, %v4440
        %v4458 = vmul.f32 %v4419, %v4440
        %v4459 = vmul.f32 %v4420, %v4440
        %v4460 = vmul.f32 %v4421, %v4440
        %v4461 = vmul.f32 %v4422, %v4440
        %v4462 = vmul.f32 %v4423, %v4440
        %v4463 = vmul.f32 %v4424, %v4440
        %v4464 = vmul.f32 %v4425, %v4440
        %v4465 = vmul.f32 %v4426, %v4440
        %v4466 = vmul.f32 %v4427, %v4440
        %v4467 = vmul.f32 %v4428, %v4440
        %v4468 = vmul.f32 %v4429, %v4440
        %v4469 = vmul.f32 %v4430, %v4440
        %v4470 = vmul.f32 %v4431, %v4440
        %v4471 = vmul.f32 %v4432, %v4440
        %v4472 = vmul.f32 %v4433, %v4440
        %v4473 = vmul.f32 %v4434, %v4440
        %v4474 = vld [vmem:[#allocation11] sm:$0x1]
        %v4476 = vlaneseq
        %v4477 = vshrl.u32 %v4476, 7
        %v4478 = vsub.s32 0, %v4477
        %v4479 = vrot.slane %v4474, %v4478
        %v4481 = vadd.f32 %v4442, %v4479
        %v4482 = vadd.f32 %v4443, %v4479
        %v4483 = vadd.f32 %v4444, %v4479
        %v4484 = vadd.f32 %v4445, %v4479
        %v4485 = vadd.f32 %v4446, %v4479
        %v4486 = vadd.f32 %v4447, %v4479
        %v4487 = vadd.f32 %v4448, %v4479
        %v4488 = vadd.f32 %v4449, %v4479
        %v4489 = vadd.f32 %v4450, %v4479
        %v4490 = vadd.f32 %v4451, %v4479
        %v4491 = vadd.f32 %v4452, %v4479
        %v4492 = vadd.f32 %v4453, %v4479
        %v4493 = vadd.f32 %v4454, %v4479
        %v4494 = vadd.f32 %v4455, %v4479
        %v4495 = vadd.f32 %v4456, %v4479
        %v4496 = vadd.f32 %v4457, %v4479
        %v4497 = vadd.f32 %v4458, %v4479
        %v4498 = vadd.f32 %v4459, %v4479
        %v4499 = vadd.f32 %v4460, %v4479
        %v4500 = vadd.f32 %v4461, %v4479
        %v4501 = vadd.f32 %v4462, %v4479
        %v4502 = vadd.f32 %v4463, %v4479
        %v4503 = vadd.f32 %v4464, %v4479
        %v4504 = vadd.f32 %v4465, %v4479
        %v4505 = vadd.f32 %v4466, %v4479
        %v4506 = vadd.f32 %v4467, %v4479
        %v4507 = vadd.f32 %v4468, %v4479
        %v4508 = vadd.f32 %v4469, %v4479
        %v4509 = vadd.f32 %v4470, %v4479
        %v4510 = vadd.f32 %v4471, %v4479
        %v4511 = vadd.f32 %v4472, %v4479
        %v4512 = vadd.f32 %v4473, %v4479
        %v4513 = vxor.u32 %v4481, 2147483648
        %v4514 = vxor.u32 %v4482, 2147483648
        %v4515 = vxor.u32 %v4483, 2147483648
        %v4516 = vxor.u32 %v4484, 2147483648
        %v4517 = vxor.u32 %v4485, 2147483648
        %v4518 = vxor.u32 %v4486, 2147483648
        %v4519 = vxor.u32 %v4487, 2147483648
        %v4520 = vxor.u32 %v4488, 2147483648
        %v4521 = vxor.u32 %v4489, 2147483648
        %v4522 = vxor.u32 %v4490, 2147483648
        %v4523 = vxor.u32 %v4491, 2147483648
        %v4524 = vxor.u32 %v4492, 2147483648
        %v4525 = vxor.u32 %v4493, 2147483648
        %v4526 = vxor.u32 %v4494, 2147483648
        %v4527 = vxor.u32 %v4495, 2147483648
        %v4528 = vxor.u32 %v4496, 2147483648
        %v4529 = vxor.u32 %v4497, 2147483648
        %v4530 = vxor.u32 %v4498, 2147483648
        %v4531 = vxor.u32 %v4499, 2147483648
        %v4532 = vxor.u32 %v4500, 2147483648
        %v4533 = vxor.u32 %v4501, 2147483648
        %v4534 = vxor.u32 %v4502, 2147483648
        %v4535 = vxor.u32 %v4503, 2147483648
        %v4536 = vxor.u32 %v4504, 2147483648
        %v4537 = vxor.u32 %v4505, 2147483648
        %v4538 = vxor.u32 %v4506, 2147483648
        %v4539 = vxor.u32 %v4507, 2147483648
        %v4540 = vxor.u32 %v4508, 2147483648
        %v4541 = vxor.u32 %v4509, 2147483648
        %v4542 = vxor.u32 %v4510, 2147483648
        %v4543 = vxor.u32 %v4511, 2147483648
        %v4544 = vxor.u32 %v4512, 2147483648
        %v4545 = vmul.f32 %v4513, 1.442695
        %v4546 = vpow.pop %v4545
        %v4547 = vmul.f32 %v4514, 1.442695
        %v4548 = vpow.pop %v4547
        %v4549 = vmul.f32 %v4515, 1.442695
        %v4550 = vpow.pop %v4549
        %v4551 = vmul.f32 %v4516, 1.442695
        %v4552 = vpow.pop %v4551
        %v4553 = vmul.f32 %v4517, 1.442695
        %v4554 = vpow.pop %v4553
        %v4555 = vmul.f32 %v4518, 1.442695
        %v4556 = vpow.pop %v4555
        %v4557 = vmul.f32 %v4519, 1.442695
        %v4558 = vpow.pop %v4557
        %v4559 = vmul.f32 %v4520, 1.442695
        %v4560 = vpow.pop %v4559
        %v4561 = vmul.f32 %v4521, 1.442695
        %v4562 = vpow.pop %v4561
        %v4563 = vmul.f32 %v4522, 1.442695
        %v4564 = vpow.pop %v4563
        %v4565 = vmul.f32 %v4523, 1.442695
        %v4566 = vpow.pop %v4565
        %v4567 = vmul.f32 %v4524, 1.442695
        %v4568 = vpow.pop %v4567
        %v4569 = vmul.f32 %v4525, 1.442695
        %v4570 = vpow.pop %v4569
        %v4571 = vmul.f32 %v4526, 1.442695
        %v4572 = vpow.pop %v4571
        %v4573 = vmul.f32 %v4527, 1.442695
        %v4574 = vpow.pop %v4573
        %v4575 = vmul.f32 %v4528, 1.442695
        %v4576 = vpow.pop %v4575
        %v4577 = vmul.f32 %v4529, 1.442695
        %v4578 = vpow.pop %v4577
        %v4579 = vmul.f32 %v4530, 1.442695
        %v4580 = vpow.pop %v4579
        %v4581 = vmul.f32 %v4531, 1.442695
        %v4582 = vpow.pop %v4581
        %v4583 = vmul.f32 %v4532, 1.442695
        %v4584 = vpow.pop %v4583
        %v4585 = vmul.f32 %v4533, 1.442695
        %v4586 = vpow.pop %v4585
        %v4587 = vmul.f32 %v4534, 1.442695
        %v4588 = vpow.pop %v4587
        %v4589 = vmul.f32 %v4535, 1.442695
        %v4590 = vpow.pop %v4589
        %v4591 = vmul.f32 %v4536, 1.442695
        %v4592 = vpow.pop %v4591
        %v4593 = vmul.f32 %v4537, 1.442695
        %v4594 = vpow.pop %v4593
        %v4595 = vmul.f32 %v4538, 1.442695
        %v4596 = vpow.pop %v4595
        %v4597 = vmul.f32 %v4539, 1.442695
        %v4598 = vpow.pop %v4597
        %v4599 = vmul.f32 %v4540, 1.442695
        %v4600 = vpow.pop %v4599
        %v4601 = vmul.f32 %v4541, 1.442695
        %v4602 = vpow.pop %v4601
        %v4603 = vmul.f32 %v4542, 1.442695
        %v4604 = vpow.pop %v4603
        %v4605 = vmul.f32 %v4543, 1.442695
        %v4606 = vpow.pop %v4605
        %v4607 = vmul.f32 %v4544, 1.442695
        %v4608 = vpow.pop %v4607
        %v4609 = vadd.f32 %v4546, 1.0
        %v4610 = vadd.f32 %v4548, 1.0
        %v4611 = vadd.f32 %v4550, 1.0
        %v4612 = vadd.f32 %v4552, 1.0
        %v4613 = vadd.f32 %v4554, 1.0
        %v4614 = vadd.f32 %v4556, 1.0
        %v4615 = vadd.f32 %v4558, 1.0
        %v4616 = vadd.f32 %v4560, 1.0
        %v4617 = vadd.f32 %v4562, 1.0
        %v4618 = vadd.f32 %v4564, 1.0
        %v4619 = vadd.f32 %v4566, 1.0
        %v4620 = vadd.f32 %v4568, 1.0
        %v4621 = vadd.f32 %v4570, 1.0
        %v4622 = vadd.f32 %v4572, 1.0
        %v4623 = vadd.f32 %v4574, 1.0
        %v4624 = vadd.f32 %v4576, 1.0
        %v4625 = vadd.f32 %v4578, 1.0
        %v4626 = vadd.f32 %v4580, 1.0
        %v4627 = vadd.f32 %v4582, 1.0
        %v4628 = vadd.f32 %v4584, 1.0
        %v4629 = vadd.f32 %v4586, 1.0
        %v4630 = vadd.f32 %v4588, 1.0
        %v4631 = vadd.f32 %v4590, 1.0
        %v4632 = vadd.f32 %v4592, 1.0
        %v4633 = vadd.f32 %v4594, 1.0
        %v4634 = vadd.f32 %v4596, 1.0
        %v4635 = vadd.f32 %v4598, 1.0
        %v4636 = vadd.f32 %v4600, 1.0
        %v4637 = vadd.f32 %v4602, 1.0
        %v4638 = vadd.f32 %v4604, 1.0
        %v4639 = vadd.f32 %v4606, 1.0
        %v4640 = vadd.f32 %v4608, 1.0
        %v4641 = vrcp.pop %v4609
        %v4642 = vmul.f32 1.0, %v4641
        %v4643 = vrcp.pop %v4610
        %v4644 = vmul.f32 1.0, %v4643
        %v4645 = vrcp.pop %v4611
        %v4646 = vmul.f32 1.0, %v4645
        %v4647 = vrcp.pop %v4612
        %v4648 = vmul.f32 1.0, %v4647
        %v4649 = vrcp.pop %v4613
        %v4650 = vmul.f32 1.0, %v4649
        %v4651 = vrcp.pop %v4614
        %v4652 = vmul.f32 1.0, %v4651
        %v4653 = vrcp.pop %v4615
        %v4654 = vmul.f32 1.0, %v4653
        %v4655 = vrcp.pop %v4616
        %v4656 = vmul.f32 1.0, %v4655
        %v4657 = vrcp.pop %v4617
        %v4658 = vmul.f32 1.0, %v4657
        %v4659 = vrcp.pop %v4618
        %v4660 = vmul.f32 1.0, %v4659
        %v4661 = vrcp.pop %v4619
        %v4662 = vmul.f32 1.0, %v4661
        %v4663 = vrcp.pop %v4620
        %v4664 = vmul.f32 1.0, %v4663
        %v4665 = vrcp.pop %v4621
        %v4666 = vmul.f32 1.0, %v4665
        %v4667 = vrcp.pop %v4622
        %v4668 = vmul.f32 1.0, %v4667
        %v4669 = vrcp.pop %v4623
        %v4670 = vmul.f32 1.0, %v4669
        %v4671 = vrcp.pop %v4624
        %v4672 = vmul.f32 1.0, %v4671
        %v4673 = vrcp.pop %v4625
        %v4674 = vmul.f32 1.0, %v4673
        %v4675 = vrcp.pop %v4626
        %v4676 = vmul.f32 1.0, %v4675
        %v4677 = vrcp.pop %v4627
        %v4678 = vmul.f32 1.0, %v4677
        %v4679 = vrcp.pop %v4628
        %v4680 = vmul.f32 1.0, %v4679
        %v4681 = vrcp.pop %v4629
        %v4682 = vmul.f32 1.0, %v4681
        %v4683 = vrcp.pop %v4630
        %v4684 = vmul.f32 1.0, %v4683
        %v4685 = vrcp.pop %v4631
        %v4686 = vmul.f32 1.0, %v4685
        %v4687 = vrcp.pop %v4632
        %v4688 = vmul.f32 1.0, %v4687
        %v4689 = vrcp.pop %v4633
        %v4690 = vmul.f32 1.0, %v4689
        %v4691 = vrcp.pop %v4634
        %v4692 = vmul.f32 1.0, %v4691
        %v4693 = vrcp.pop %v4635
        %v4694 = vmul.f32 1.0, %v4693
        %v4695 = vrcp.pop %v4636
        %v4696 = vmul.f32 1.0, %v4695
        %v4697 = vrcp.pop %v4637
        %v4698 = vmul.f32 1.0, %v4697
        %v4699 = vrcp.pop %v4638
        %v4700 = vmul.f32 1.0, %v4699
        %v4701 = vrcp.pop %v4639
        %v4702 = vmul.f32 1.0, %v4701
        %v4703 = vrcp.pop %v4640
        %v4704 = vmul.f32 1.0, %v4703
        %v4705 = vmul.f32 %v4481, %v4642
        %v4706 = vmul.f32 %v4482, %v4644
        %v4707 = vmul.f32 %v4483, %v4646
        %v4708 = vmul.f32 %v4484, %v4648
        %v4709 = vmul.f32 %v4485, %v4650
        %v4710 = vmul.f32 %v4486, %v4652
        %v4711 = vmul.f32 %v4487, %v4654
        %v4712 = vmul.f32 %v4488, %v4656
        %v4713 = vmul.f32 %v4489, %v4658
        %v4714 = vmul.f32 %v4490, %v4660
        %v4715 = vmul.f32 %v4491, %v4662
        %v4716 = vmul.f32 %v4492, %v4664
        %v4717 = vmul.f32 %v4493, %v4666
        %v4718 = vmul.f32 %v4494, %v4668
        %v4719 = vmul.f32 %v4495, %v4670
        %v4720 = vmul.f32 %v4496, %v4672
        %v4721 = vmul.f32 %v4497, %v4674
        %v4722 = vmul.f32 %v4498, %v4676
        %v4723 = vmul.f32 %v4499, %v4678
        %v4724 = vmul.f32 %v4500, %v4680
        %v4725 = vmul.f32 %v4501, %v4682
        %v4726 = vmul.f32 %v4502, %v4684
        %v4727 = vmul.f32 %v4503, %v4686
        %v4728 = vmul.f32 %v4504, %v4688
        %v4729 = vmul.f32 %v4505, %v4690
        %v4730 = vmul.f32 %v4506, %v4692
        %v4731 = vmul.f32 %v4507, %v4694
        %v4732 = vmul.f32 %v4508, %v4696
        %v4733 = vmul.f32 %v4509, %v4698
        %v4734 = vmul.f32 %v4510, %v4700
        %v4735 = vmul.f32 %v4511, %v4702
        %v4736 = vmul.f32 %v4512, %v4704
        %v4737 = vld [vmem:[%s384] sm:$0x1]
        %v4739 = vlaneseq
        %v4740 = vshrl.u32 %v4739, 7
        %v4741 = vsub.s32 0, %v4740
        %v4742 = vrot.slane %v4737, %v4741
        %v4744 = vadd.f32 %v4705, %v4742
        %v4745 = vadd.f32 %v4706, %v4742
        %v4746 = vadd.f32 %v4707, %v4742
        %v4747 = vadd.f32 %v4708, %v4742
        %v4748 = vadd.f32 %v4709, %v4742
        %v4749 = vadd.f32 %v4710, %v4742
        %v4750 = vadd.f32 %v4711, %v4742
        %v4751 = vadd.f32 %v4712, %v4742
        %v4752 = vadd.f32 %v4713, %v4742
        %v4753 = vadd.f32 %v4714, %v4742
        %v4754 = vadd.f32 %v4715, %v4742
        %v4755 = vadd.f32 %v4716, %v4742
        %v4756 = vadd.f32 %v4717, %v4742
        %v4757 = vadd.f32 %v4718, %v4742
        %v4758 = vadd.f32 %v4719, %v4742
        %v4759 = vadd.f32 %v4720, %v4742
        %v4760 = vadd.f32 %v4721, %v4742
        %v4761 = vadd.f32 %v4722, %v4742
        %v4762 = vadd.f32 %v4723, %v4742
        %v4763 = vadd.f32 %v4724, %v4742
        %v4764 = vadd.f32 %v4725, %v4742
        %v4765 = vadd.f32 %v4726, %v4742
        %v4766 = vadd.f32 %v4727, %v4742
        %v4767 = vadd.f32 %v4728, %v4742
        %v4768 = vadd.f32 %v4729, %v4742
        %v4769 = vadd.f32 %v4730, %v4742
        %v4770 = vadd.f32 %v4731, %v4742
        %v4771 = vadd.f32 %v4732, %v4742
        %v4772 = vadd.f32 %v4733, %v4742
        %v4773 = vadd.f32 %v4734, %v4742
        %v4774 = vadd.f32 %v4735, %v4742
        %v4775 = vadd.f32 %v4736, %v4742
        %v4776 = vsel %vm4124, %v4744, 0.0
        %v4777 = vsel %vm4124, %v4745, 0.0
        %v4778 = vsel %vm4124, %v4746, 0.0
        %v4779 = vsel %vm4124, %v4747, 0.0
        %v4780 = vsel %vm4124, %v4748, 0.0
        %v4781 = vsel %vm4124, %v4749, 0.0
        %v4782 = vsel %vm4124, %v4750, 0.0
        %v4783 = vsel %vm4124, %v4751, 0.0
        %v4784 = vsel %vm4124, %v4752, 0.0
        %v4785 = vsel %vm4124, %v4753, 0.0
        %v4786 = vsel %vm4124, %v4754, 0.0
        %v4787 = vsel %vm4124, %v4755, 0.0
        %v4788 = vsel %vm4124, %v4756, 0.0
        %v4789 = vsel %vm4124, %v4757, 0.0
        %v4790 = vsel %vm4124, %v4758, 0.0
        %v4791 = vsel %vm4124, %v4759, 0.0
        %v4792 = vsel %vm4124, %v4760, 0.0
        %v4793 = vsel %vm4124, %v4761, 0.0
        %v4794 = vsel %vm4124, %v4762, 0.0
        %v4795 = vsel %vm4124, %v4763, 0.0
        %v4796 = vsel %vm4124, %v4764, 0.0
        %v4797 = vsel %vm4124, %v4765, 0.0
        %v4798 = vsel %vm4124, %v4766, 0.0
        %v4799 = vsel %vm4124, %v4767, 0.0
        %v4800 = vsel %vm4124, %v4768, 0.0
        %v4801 = vsel %vm4124, %v4769, 0.0
        %v4802 = vsel %vm4124, %v4770, 0.0
        %v4803 = vsel %vm4124, %v4771, 0.0
        %v4804 = vsel %vm4124, %v4772, 0.0
        %v4805 = vsel %vm4124, %v4773, 0.0
        %v4806 = vsel %vm4124, %v4774, 0.0
        %v4807 = vsel %vm4124, %v4775, 0.0
        %4808 = vst [vmem:[%s436] sm:$0xff] %v4776
        %4809 = vst [vmem:[%s436 + $0x8] sm:$0xff] %v4777
        %4810 = vst [vmem:[%s436 + $0x10] sm:$0xff] %v4778
        %4811 = vst [vmem:[%s436 + $0x18] sm:$0xff] %v4779
        %4812 = vst [vmem:[%s436 + $0x20] sm:$0xff] %v4780
        %4813 = vst [vmem:[%s436 + $0x28] sm:$0xff] %v4781
        %4814 = vst [vmem:[%s436 + $0x30] sm:$0xff] %v4782
        %4815 = vst [vmem:[%s436 + $0x38] sm:$0xff] %v4783
        %4816 = vst [vmem:[%s436 + $0x40] sm:$0xff] %v4784
        %4817 = vst [vmem:[%s436 + $0x48] sm:$0xff] %v4785
        %4818 = vst [vmem:[%s436 + $0x50] sm:$0xff] %v4786
        %4819 = vst [vmem:[%s436 + $0x58] sm:$0xff] %v4787
        %4820 = vst [vmem:[%s436 + $0x60] sm:$0xff] %v4788
        %4821 = vst [vmem:[%s436 + $0x68] sm:$0xff] %v4789
        %4822 = vst [vmem:[%s436 + $0x70] sm:$0xff] %v4790
        %4823 = vst [vmem:[%s436 + $0x78] sm:$0xff] %v4791
        %4824 = vst [vmem:[%s436 + $0x80] sm:$0xff] %v4792
        %4825 = vst [vmem:[%s436 + $0x88] sm:$0xff] %v4793
        %4826 = vst [vmem:[%s436 + $0x90] sm:$0xff] %v4794
        %4827 = vst [vmem:[%s436 + $0x98] sm:$0xff] %v4795
        %4828 = vst [vmem:[%s436 + $0xa0] sm:$0xff] %v4796
        %4829 = vst [vmem:[%s436 + $0xa8] sm:$0xff] %v4797
        %4830 = vst [vmem:[%s436 + $0xb0] sm:$0xff] %v4798
        %4831 = vst [vmem:[%s436 + $0xb8] sm:$0xff] %v4799
        %4832 = vst [vmem:[%s436 + $0xc0] sm:$0xff] %v4800
        %4833 = vst [vmem:[%s436 + $0xc8] sm:$0xff] %v4801
        %4834 = vst [vmem:[%s436 + $0xd0] sm:$0xff] %v4802
        %4835 = vst [vmem:[%s436 + $0xd8] sm:$0xff] %v4803
        %4836 = vst [vmem:[%s436 + $0xe0] sm:$0xff] %v4804
        %4837 = vst [vmem:[%s436 + $0xe8] sm:$0xff] %v4805
        %4838 = vst [vmem:[%s436 + $0xf0] sm:$0xff] %v4806
        %4839 = vst [vmem:[%s436 + $0xf8] sm:$0xff] %v4807
        %s4840 = sand.u32 %s217, 1
        %s4841 = scalar_lea.sflag [#allocation4], %s4840
        %s4842 = sand.u32 %s217, 1
        %s4843 = smul.addr %s4842, 256
        %s4844 = scalar_lea.vmem [#allocation16], %s4843
        // Predicated region
        $region85: #{residual_block_forward.5} parent=51 // pred_check
          %p4845 = pneg %p227
        $region86: #{residual_block_forward.5} parent=51 // pred_check_branch
          %4847 = sbr.rel (%p4845) target = $region88
        $region87: #{residual_block_forward.5} parent=51 // pred_region
          %s4849 = ssub.s32 4096, 4096
          %4850 = vsyncadd %s4841, %s4849
          %s4851 = smul.addr %s31, 32
          %s4852 = smul.addr %s4851, 128
          %s4853 = scalar_lea.hbm %s8, %s4852
          %s4854 = sshll.u32 %s4844, 4
          %s4855 = int_to_ptr.vmem [resolvable:$true] %s4854
          %4860 = dma.vmem_to_hbm [thread:$0]  %s4855, 4096, %s4853, %s4841, 128, 128, 8
        $region88: #{residual_block_forward.5} parent=51 // pred_fallthru
          _
      $region52: #{residual_block_forward.5} parent=5 // pred_fallthru
        _
      %p4861 = scmp.le.s32.totalorder 2, %s26
      // Predicated region
      $region89: #{residual_block_forward.5} parent=5 // pred_check
        %p4862 = pneg %p4861
      $region90: #{residual_block_forward.5} parent=5 // pred_check_branch
        %4864 = sbr.rel (%p4862) target = $region92
      $region91: #{residual_block_forward.5} parent=5 // pred_region
        %s4865 = ssub.s32 %s26, 2
        // Predicated region
        $region93: #{residual_block_forward.5} parent=91 // pred_check
          %p4866 = pneg %p233
        $region94: #{residual_block_forward.5} parent=91 // pred_check_branch
          %4868 = sbr.rel (%p4866) target = $region96
        $region95: #{residual_block_forward.5} parent=91 // pred_region
          %s4869 = sand.u32 %s218, 1
          %s4870 = scalar_lea.sflag [#allocation4], %s4869
          %s4871 = sand.u32 %s218, 1
          %s4872 = smul.addr %s4871, 256
          %s4873 = scalar_lea.vmem [#allocation16], %s4872
          %4874 = dma.done %s4870, 4096
        $region96: #{residual_block_forward.5} parent=91 // pred_fallthru
          _
      $region92: #{residual_block_forward.5} parent=5 // pred_fallthru
        _
    $region6: #{residual_block_forward.5} parent=1 // loop_footer
      %s30 = sadd.s32 1, %s26
    $region7: #{residual_block_forward.5} parent=1 // loop_footer_branch
      %25 = sbr.rel target = $region3
    $region8: #{residual_block_forward.5} parent=1 // loop_exit
      _
    %4875 = vsyncpa [#allocation3], 1
    %s4876 = scalar_lea.sflag [#allocation3], 1
    %4877 = vsyncpa %s4876, 1
    %4878 = vsyncpa [#allocation6], 1
    %4879 = vsyncpa [#allocation9], 1
    %s4880 = scalar_lea.sflag [#allocation9], 1
    %4881 = vsyncpa %s4880, 1
    %4882 = vsyncpa [#allocation12], 1
    %4883 = vsyncpa [#allocation15], 1
    %4884 = vsyncpa [#allocation4], 1
    %s4885 = scalar_lea.sflag [#allocation4], 1
    %4886 = vsyncpa %s4885, 1

// kernel: residual_block_forward.7
$region0: #{residual_block_forward.7}
  #allocation0 [shape = 'u32[]', space=smem, size = 0x4, offset = 0x4, fixed_abs, tag = 'smem constant byte address 0x4 - core index']
  #allocation1 [shape = 'u32[144,128]{1,0:T(1,128)}', space=vmem, size = 0x12000, scoped, tag = 'internal scratch']
  %s0 = inlined_call_operand.hbm [shape: f32[2,18,18,128], index: 0, kind: input, shape index: {}]
  %s1 = inlined_call_operand.hbm [shape: f32[9,128,128], index: 1, kind: input, shape index: {}]
  %s2 = inlined_call_operand.hbm [shape: f32[1,128], index: 2, kind: input, shape index: {}]
  %s3 = inlined_call_operand.hbm [shape: f32[2,256,128], index: 3, kind: input, shape index: {}]
  %s4 = inlined_call_operand.hbm [shape: f32[1,128], index: 4, kind: input, shape index: {}]
  %s5 = inlined_call_operand.hbm [shape: f32[1,128], index: 5, kind: input, shape index: {}]
  %s6 = inlined_call_operand.hbm [shape: s32[128,1], index: 6, kind: input, shape index: {}]
  %s7 = inlined_call_operand.hbm [shape: s32[1,128], index: 7, kind: input, shape index: {}]
  %s8 = inlined_call_operand.hbm [shape: f32[2,256,128], index: 8, kind: output, shape index: {}]
  %s9 = sld [smem:[#allocation0]]
  $region97: #{residual_block_forward.7} parent=0
    _
  %s11 = ssub.s32 1, %s9
  %s12 = scalar_select 0, %s11, %s9
  $region1: #{residual_block_forward.7} parent=0
    #allocation2 [shape = 'u8[442368]{0}', space=vmem, size = 0x6c000, scoped, tag = 'input window, operand 0']
    #allocation3 [shape = 's32[2]{0}', space=sflag, size = 0x8, scoped, tag = 'scoped memory for residual_block_forward.7']
    #allocation4 [shape = 's32[2]{0}', space=sflag, size = 0x8, scoped, tag = 'scoped memory for residual_block_forward.7']
    #allocation5 [shape = 'u8[589824]{0}', space=vmem, size = 0x90000, scoped, tag = 'input window, operand 1, single buffered']
    #allocation6 [shape = 's32[1]{0}', space=sflag, size = 0x4, scoped, tag = 'scoped memory for residual_block_forward.7']
    #allocation7 [shape = 'u8[512]{0}', space=vmem, size = 0x400, scoped, tag = 'input window, operand 2, single buffered']
    #allocation8 [shape = 'u8[262144]{0}', space=vmem, size = 0x40000, scoped, tag = 'input window, operand 3']
    #allocation9 [shape = 's32[2]{0}', space=sflag, size = 0x8, scoped, tag = 'scoped memory for residual_block_forward.7']
    #allocation10 [shape = 'u8[512]{0}', space=vmem, size = 0x400, scoped, tag = 'input window, operand 4, single buffered']
    #allocation11 [shape = 'u8[512]{0}', space=vmem, size = 0x400, scoped, tag = 'input window, operand 5, single buffered']
    #allocation12 [shape = 's32[1]{0}', space=sflag, size = 0x4, scoped, tag = 'scoped memory for residual_block_forward.7']
    #allocation13 [shape = 'u8[65536]{0}', space=vmem, size = 0x10000, scoped, tag = 'input window, operand 6, single buffered']
    #allocation14 [shape = 'u8[512]{0}', space=vmem, size = 0x400, scoped, tag = 'input window, operand 7, single buffered']
    #allocation15 [shape = 's32[1]{0}', space=sflag, size = 0x4, scoped, tag = 'scoped memory for residual_block_forward.7']
    #allocation16 [shape = 'u8[262144]{0}', space=vmem, size = 0x40000, scoped, tag = 'output window, operand 0']
    %13 = vsyncpa [#allocation3], 0
    %s14 = scalar_lea.sflag [#allocation3], 1
    %15 = vsyncpa %s14, 0
    %16 = vsyncpa [#allocation6], 0
    %17 = vsyncpa [#allocation9], 0
    %s18 = scalar_lea.sflag [#allocation9], 1
    %19 = vsyncpa %s18, 0
    %20 = vsyncpa [#allocation12], 0
    %21 = vsyncpa [#allocation15], 0
    %22 = vsyncpa [#allocation4], 0
    %s23 = scalar_lea.sflag [#allocation4], 1
    %24 = vsyncpa %s23, 0
    loop: start=0, step=1, limit=4
    $region2: #{residual_block_forward.7} parent=1 // loop_pre_header
      _
    $region3: #{residual_block_forward.7} parent=1 // loop_header
      %s26 = sphi 0, %s30
      %p27 = scmp.ge.s32.totalorder %s26, 4
      %s36 = sphi 0, %s38
      %s39 = sphi 0, %s36
      %s40 = sphi 0, %s39
      %s56 = sphi 0, %s40
      %s60 = sphi 0, %s60
      %s62 = sphi 0, %s60
      %s63 = sphi 0, %s62
      %s77 = sphi 0, %s63
      %s81 = sphi 0, %s81
      %s83 = sphi 0, %s81
      %s84 = sphi 0, %s83
      %s98 = sphi 0, %s84
      %s104 = sphi 0, %s106
      %s107 = sphi 0, %s104
      %s108 = sphi 0, %s107
      %s124 = sphi 0, %s108
      %s128 = sphi 0, %s128
      %s130 = sphi 0, %s128
      %s131 = sphi 0, %s130
      %s145 = sphi 0, %s131
      %s149 = sphi 0, %s149
      %s151 = sphi 0, %s149
      %s152 = sphi 0, %s151
      %s166 = sphi 0, %s152
      %s170 = sphi 0, %s170
      %s172 = sphi 0, %s170
      %s173 = sphi 0, %s172
      %s187 = sphi 0, %s173
      %s191 = sphi 0, %s191
      %s193 = sphi 0, %s191
      %s194 = sphi 0, %s193
      %s208 = sphi 0, %s194
      %s214 = sphi 0, %s216
      %s217 = sphi 0, %s214
      %s218 = sphi 0, %s217
      %s234 = sphi 0, %s218
    $region4: #{residual_block_forward.7} parent=1 // loop_header_branch
      %29 = sbr.rel (%p27) target = $region8
    $region5: #{residual_block_forward.7} parent=1 // loop_body
      %s31 = ssub.s32 %s26, 1
      %s32 = ssub.s32 %s26, 2
      %s33 = sadd.s32 %s26, 1
      %s34 = ssub.s32 %s26, %s33
      %p35 = scmp.eq.s32.totalorder %s34, 0
      %s37 = sadd.s32 %s36, 1
      %s38 = scalar_select %p35, %s36, %s37
      %p41 = pneg %p35
      %p42 = scmp.eq.s32.totalorder %s26, 1
      %p43 = por %p41, %p42
      %p44 = scmp.ne.s32.totalorder %s36, %s39
      %p45 = scmp.eq.s32.totalorder %s26, 0
      %p46 = por %p44, %p45
      %p47 = scmp.ne.s32.totalorder %s36, %s39
      %p48 = scmp.eq.s32.totalorder %s31, 1
      %p49 = por %p47, %p48
      %p50 = scmp.ne.s32.totalorder %s39, %s40
      %p51 = scmp.eq.s32.totalorder %s31, 0
      %p52 = por %p50, %p51
      %p53 = scmp.ne.s32.totalorder %s39, %s40
      %p54 = scmp.eq.s32.totalorder %s32, 1
      %p55 = por %p53, %p54
      %p57 = scmp.ne.s32.totalorder %s40, %s56
      %p58 = scmp.eq.s32.totalorder %s32, 0
      %p59 = por %p57, %p58
      %s61 = sadd.s32 %s60, 1
      %p64 = scmp.eq.s32.totalorder %s26, 1
      %p65 = scmp.ne.s32.totalorder %s60, %s62
      %p66 = scmp.eq.s32.totalorder %s26, 0
      %p67 = por %p65, %p66
      %p68 = scmp.ne.s32.totalorder %s60, %s62
      %p69 = scmp.eq.s32.totalorder %s31, 1
      %p70 = por %p68, %p69
      %p71 = scmp.ne.s32.totalorder %s62, %s63
      %p72 = scmp.eq.s32.totalorder %s31, 0
      %p73 = por %p71, %p72
      %p74 = scmp.ne.s32.totalorder %s62, %s63
      %p75 = scmp.eq.s32.totalorder %s32, 1
      %p76 = por %p74, %p75
      %p78 = scmp.ne.s32.totalorder %s63, %s77
      %p79 = scmp.eq.s32.totalorder %s32, 0
      %p80 = por %p78, %p79
      %s82 = sadd.s32 %s81, 1
      %p85 = scmp.eq.s32.totalorder %s26, 1
      %p86 = scmp.ne.s32.totalorder %s81, %s83
      %p87 = scmp.eq.s32.totalorder %s26, 0
      %p88 = por %p86, %p87
      %p89 = scmp.ne.s32.totalorder %s81, %s83
      %p90 = scmp.eq.s32.totalorder %s31, 1
      %p91 = por %p89, %p90
      %p92 = scmp.ne.s32.totalorder %s83, %s84
      %p93 = scmp.eq.s32.totalorder %s31, 0
      %p94 = por %p92, %p93
      %p95 = scmp.ne.s32.totalorder %s83, %s84
      %p96 = scmp.eq.s32.totalorder %s32, 1
      %p97 = por %p95, %p96
      %p99 = scmp.ne.s32.totalorder %s84, %s98
      %p100 = scmp.eq.s32.totalorder %s32, 0
      %p101 = por %p99, %p100
      %s102 = ssub.s32 %s26, %s33
      %p103 = scmp.eq.s32.totalorder %s102, 0
      %s105 = sadd.s32 %s104, 1
      %s106 = scalar_select %p103, %s104, %s105
      %p109 = pneg %p103
      %p110 = scmp.eq.s32.totalorder %s26, 1
      %p111 = por %p109, %p110
      %p112 = scmp.ne.s32.totalorder %s104, %s107
      %p113 = scmp.eq.s32.totalorder %s26, 0
      %p114 = por %p112, %p113
      %p115 = scmp.ne.s32.totalorder %s104, %s107
      %p116 = scmp.eq.s32.totalorder %s31, 1
      %p117 = por %p115, %p116
      %p118 = scmp.ne.s32.totalorder %s107, %s108
      %p119 = scmp.eq.s32.totalorder %s31, 0
      %p120 = por %p118, %p119
      %p121 = scmp.ne.s32.totalorder %s107, %s108
      %p122 = scmp.eq.s32.totalorder %s32, 1
      %p123 = por %p121, %p122
      %p125 = scmp.ne.s32.totalorder %s108, %s124
      %p126 = scmp.eq.s32.totalorder %s32, 0
      %p127 = por %p125, %p126
      %s129 = sadd.s32 %s128, 1
      %p132 = scmp.eq.s32.totalorder %s26, 1
      %p133 = scmp.ne.s32.totalorder %s128, %s130
      %p134 = scmp.eq.s32.totalorder %s26, 0
      %p135 = por %p133, %p134
      %p136 = scmp.ne.s32.totalorder %s128, %s130
      %p137 = scmp.eq.s32.totalorder %s31, 1
      %p138 = por %p136, %p137
      %p139 = scmp.ne.s32.totalorder %s130, %s131
      %p140 = scmp.eq.s32.totalorder %s31, 0
      %p141 = por %p139, %p140
      %p142 = scmp.ne.s32.totalorder %s130, %s131
      %p143 = scmp.eq.s32.totalorder %s32, 1
      %p144 = por %p142, %p143
      %p146 = scmp.ne.s32.totalorder %s131, %s145
      %p147 = scmp.eq.s32.totalorder %s32, 0
      %p148 = por %p146, %p147
      %s150 = sadd.s32 %s149, 1
      %p153 = scmp.eq.s32.totalorder %s26, 1
      %p154 = scmp.ne.s32.totalorder %s149, %s151
      %p155 = scmp.eq.s32.totalorder %s26, 0
      %p156 = por %p154, %p155
      %p157 = scmp.ne.s32.totalorder %s149, %s151
      %p158 = scmp.eq.s32.totalorder %s31, 1
      %p159 = por %p157, %p158
      %p160 = scmp.ne.s32.totalorder %s151, %s152
      %p161 = scmp.eq.s32.totalorder %s31, 0
      %p162 = por %p160, %p161
      %p163 = scmp.ne.s32.totalorder %s151, %s152
      %p164 = scmp.eq.s32.totalorder %s32, 1
      %p165 = por %p163, %p164
      %p167 = scmp.ne.s32.totalorder %s152, %s166
      %p168 = scmp.eq.s32.totalorder %s32, 0
      %p169 = por %p167, %p168
      %s171 = sadd.s32 %s170, 1
      %p174 = scmp.eq.s32.totalorder %s26, 1
      %p175 = scmp.ne.s32.totalorder %s170, %s172
      %p176 = scmp.eq.s32.totalorder %s26, 0
      %p177 = por %p175, %p176
      %p178 = scmp.ne.s32.totalorder %s170, %s172
      %p179 = scmp.eq.s32.totalorder %s31, 1
      %p180 = por %p178, %p179
      %p181 = scmp.ne.s32.totalorder %s172, %s173
      %p182 = scmp.eq.s32.totalorder %s31, 0
      %p183 = por %p181, %p182
      %p184 = scmp.ne.s32.totalorder %s172, %s173
      %p185 = scmp.eq.s32.totalorder %s32, 1
      %p186 = por %p184, %p185
      %p188 = scmp.ne.s32.totalorder %s173, %s187
      %p189 = scmp.eq.s32.totalorder %s32, 0
      %p190 = por %p188, %p189
      %s192 = sadd.s32 %s191, 1
      %p195 = scmp.eq.s32.totalorder %s26, 1
      %p196 = scmp.ne.s32.totalorder %s191, %s193
      %p197 = scmp.eq.s32.totalorder %s26, 0
      %p198 = por %p196, %p197
      %p199 = scmp.ne.s32.totalorder %s191, %s193
      %p200 = scmp.eq.s32.totalorder %s31, 1
      %p201 = por %p199, %p200
      %p202 = scmp.ne.s32.totalorder %s193, %s194
      %p203 = scmp.eq.s32.totalorder %s31, 0
      %p204 = por %p202, %p203
      %p205 = scmp.ne.s32.totalorder %s193, %s194
      %p206 = scmp.eq.s32.totalorder %s32, 1
      %p207 = por %p205, %p206
      %p209 = scmp.ne.s32.totalorder %s194, %s208
      %p210 = scmp.eq.s32.totalorder %s32, 0
      %p211 = por %p209, %p210
      %s212 = ssub.s32 %s26, %s33
      %p213 = scmp.eq.s32.totalorder %s212, 0
      %s215 = sadd.s32 %s214, 1
      %s216 = scalar_select %p213, %s214, %s215
      %p219 = pneg %p213
      %p220 = scmp.eq.s32.totalorder %s26, 1
      %p221 = por %p219, %p220
      %p222 = scmp.ne.s32.totalorder %s214, %s217
      %p223 = scmp.eq.s32.totalorder %s26, 0
      %p224 = por %p222, %p223
      %p225 = scmp.ne.s32.totalorder %s214, %s217
      %p226 = scmp.eq.s32.totalorder %s31, 1
      %p227 = por %p225, %p226
      %p228 = scmp.ne.s32.totalorder %s217, %s218
      %p229 = scmp.eq.s32.totalorder %s31, 0
      %p230 = por %p228, %p229
      %p231 = scmp.ne.s32.totalorder %s217, %s218
      %p232 = scmp.eq.s32.totalorder %s32, 1
      %p233 = por %p231, %p232
      %p235 = scmp.ne.s32.totalorder %s218, %s234
      %p236 = scmp.eq.s32.totalorder %s32, 0
      %p237 = por %p235, %p236
      %p238 = scmp.le.s32.totalorder 1, %s26
      %p239 = scmp.lt.s32.totalorder %s26, 3
      %p240 = pnand %p238, %p239
      %p241 = pneg %p240
      // Predicated region
      $region9: #{residual_block_forward.7} parent=5 // pred_check
        _
      $region10: #{residual_block_forward.7} parent=5 // pred_check_branch
        %243 = sbr.rel (%p240) target = $region12
      $region11: #{residual_block_forward.7} parent=5 // pred_region
        %s244 = ssub.s32 %s26, 1
        // Predicated region
        $region13: #{residual_block_forward.7} parent=11 // pred_check
          %p245 = pneg %p73
        $region14: #{residual_block_forward.7} parent=11 // pred_check_branch
          %247 = sbr.rel (%p245) target = $region16
        $region15: #{residual_block_forward.7} parent=11 // pred_region
          %s249 = ssub.s32 18432, 18432
          %250 = vsyncadd [#allocation6], %s249
          %s251 = sshll.u32 [#allocation5], 4
          %s252 = int_to_ptr.vmem [resolvable:$true] %s251
          %257 = dma.hbm_to_vmem [thread:$0]  %s1, 18432, %s252, [#allocation6], 128, 128, 8
        $region16: #{residual_block_forward.7} parent=11 // pred_fallthru
          _
        // Predicated region
        $region17: #{residual_block_forward.7} parent=11 // pred_check
          %p258 = pneg %p94
        $region18: #{residual_block_forward.7} parent=11 // pred_check_branch
          %260 = sbr.rel (%p258) target = $region20
        $region19: #{residual_block_forward.7} parent=11 // pred_region
          %s262 = ssub.s32 16, 16
          %263 = vsyncadd [#allocation6], %s262
          %s265 = sshll.u32 [#allocation7], 4
          %s266 = int_to_ptr.vmem [resolvable:$true] %s265
          %268 = dma.hbm_to_vmem [thread:$0]  %s2, 16, %s266, [#allocation6]
        $region20: #{residual_block_forward.7} parent=11 // pred_fallthru
          _
        // Predicated region
        $region21: #{residual_block_forward.7} parent=11 // pred_check
          %p269 = pneg %p141
        $region22: #{residual_block_forward.7} parent=11 // pred_check_branch
          %271 = sbr.rel (%p269) target = $region24
        $region23: #{residual_block_forward.7} parent=11 // pred_region
          %s273 = ssub.s32 16, 16
          %274 = vsyncadd [#allocation9], %s273
          %s276 = sshll.u32 [#allocation10], 4
          %s277 = int_to_ptr.vmem [resolvable:$true] %s276
          %279 = dma.hbm_to_vmem [thread:$0]  %s4, 16, %s277, [#allocation9]
        $region24: #{residual_block_forward.7} parent=11 // pred_fallthru
          _
        // Predicated region
        $region25: #{residual_block_forward.7} parent=11 // pred_check
          %p280 = pneg %p162
        $region26: #{residual_block_forward.7} parent=11 // pred_check_branch
          %282 = sbr.rel (%p280) target = $region28
        $region27: #{residual_block_forward.7} parent=11 // pred_region
          %s284 = ssub.s32 16, 16
          %285 = vsyncadd [#allocation12], %s284
          %s287 = sshll.u32 [#allocation11], 4
          %s288 = int_to_ptr.vmem [resolvable:$true] %s287
          %290 = dma.hbm_to_vmem [thread:$0]  %s5, 16, %s288, [#allocation12]
        $region28: #{residual_block_forward.7} parent=11 // pred_fallthru
          _
        // Predicated region
        $region29: #{residual_block_forward.7} parent=11 // pred_check
          %p291 = pneg %p183
        $region30: #{residual_block_forward.7} parent=11 // pred_check_branch
          %293 = sbr.rel (%p291) target = $region32
        $region31: #{residual_block_forward.7} parent=11 // pred_region
          %s295 = ssub.s32 2048, 2048
          %296 = vsyncadd [#allocation12], %s295
          %s297 = sshll.u32 [#allocation13], 4
          %s298 = int_to_ptr.vmem [resolvable:$true] %s297
          %303 = dma.hbm_to_vmem [thread:$0]  %s6, 2048, %s298, [#allocation12], 128, 128, 8
        $region32: #{residual_block_forward.7} parent=11 // pred_fallthru
          _
        // Predicated region
        $region33: #{residual_block_forward.7} parent=11 // pred_check
          %p304 = pneg %p204
        $region34: #{residual_block_forward.7} parent=11 // pred_check_branch
          %306 = sbr.rel (%p304) target = $region36
        $region35: #{residual_block_forward.7} parent=11 // pred_region
          %s308 = ssub.s32 16, 16
          %309 = vsyncadd [#allocation15], %s308
          %s311 = sshll.u32 [#allocation14], 4
          %s312 = int_to_ptr.vmem [resolvable:$true] %s311
          %314 = dma.hbm_to_vmem [thread:$0]  %s7, 16, %s312, [#allocation15]
        $region36: #{residual_block_forward.7} parent=11 // pred_fallthru
          _
      $region12: #{residual_block_forward.7} parent=5 // pred_fallthru
        _
      %p315 = scmp.lt.s32.totalorder %s26, 2
      // Predicated region
      $region37: #{residual_block_forward.7} parent=5 // pred_check
        %p316 = pneg %p315
      $region38: #{residual_block_forward.7} parent=5 // pred_check_branch
        %318 = sbr.rel (%p316) target = $region40
      $region39: #{residual_block_forward.7} parent=5 // pred_region
        // Predicated region
        $region41: #{residual_block_forward.7} parent=39 // pred_check
          %p319 = pneg %p46
        $region42: #{residual_block_forward.7} parent=39 // pred_check_branch
          %321 = sbr.rel (%p319) target = $region44
        $region43: #{residual_block_forward.7} parent=39 // pred_region
          %s322 = sand.u32 %s36, 1
          %s323 = scalar_lea.sflag [#allocation3], %s322
          %s324 = sand.u32 %s36, 1
          %s325 = smul.addr %s324, 432
          %s326 = scalar_lea.vmem [#allocation2], %s325
          %s328 = ssub.s32 6912, 6912
          %329 = vsyncadd %s323, %s328
          %s330 = smul.addr %s26, 54
          %s331 = smul.addr %s330, 128
          %s332 = scalar_lea.hbm %s0, %s331
          %s333 = sshll.u32 %s326, 4
          %s334 = int_to_ptr.vmem [resolvable:$true] %s333
          %339 = dma.hbm_to_vmem [thread:$0]  %s332, 6912, %s334, %s323, 128, 128, 8
        $region44: #{residual_block_forward.7} parent=39 // pred_fallthru
          _
        // Predicated region
        $region45: #{residual_block_forward.7} parent=39 // pred_check
          %p340 = pneg %p114
        $region46: #{residual_block_forward.7} parent=39 // pred_check_branch
          %342 = sbr.rel (%p340) target = $region48
        $region47: #{residual_block_forward.7} parent=39 // pred_region
          %s343 = sand.u32 %s26, 1
          %s344 = scalar_lea.sflag [#allocation9], %s343
          %s345 = sand.u32 %s104, 1
          %s346 = smul.addr %s345, 256
          %s347 = scalar_lea.vmem [#allocation8], %s346
          %s349 = ssub.s32 4096, 4096
          %350 = vsyncadd %s344, %s349
          %s351 = smul.addr %s26, 32
          %s352 = smul.addr %s351, 128
          %s353 = scalar_lea.hbm %s3, %s352
          %s354 = sshll.u32 %s347, 4
          %s355 = int_to_ptr.vmem [resolvable:$true] %s354
          %360 = dma.hbm_to_vmem [thread:$0]  %s353, 4096, %s355, %s344, 128, 128, 8
        $region48: #{residual_block_forward.7} parent=39 // pred_fallthru
          _
      $region40: #{residual_block_forward.7} parent=5 // pred_fallthru
        _
      %p361 = scmp.le.s32.totalorder 1, %s26
      %p362 = scmp.lt.s32.totalorder %s26, 3
      %p363 = pnand %p361, %p362
      %p364 = pneg %p363
      // Predicated region
      $region49: #{residual_block_forward.7} parent=5 // pred_check
        _
      $region50: #{residual_block_forward.7} parent=5 // pred_check_branch
        %366 = sbr.rel (%p363) target = $region52
      $region51: #{residual_block_forward.7} parent=5 // pred_region
        %s367 = ssub.s32 %s26, 1
        %s368 = sand.u32 %s39, 1
        %s369 = scalar_lea.sflag [#allocation3], %s368
        %s370 = sand.u32 %s39, 1
        %s371 = smul.addr %s370, 432
        %s372 = scalar_lea.vmem [#allocation2], %s371
        // Predicated region
        $region53: #{residual_block_forward.7} parent=51 // pred_check
          %p373 = pneg %p52
        $region54: #{residual_block_forward.7} parent=51 // pred_check_branch
          %375 = sbr.rel (%p373) target = $region56
        $region55: #{residual_block_forward.7} parent=51 // pred_region
          %376 = dma.done %s369, 6912
        $region56: #{residual_block_forward.7} parent=51 // pred_fallthru
          _
        // Predicated region
        $region57: #{residual_block_forward.7} parent=51 // pred_check
          %p377 = pneg %p73
        $region58: #{residual_block_forward.7} parent=51 // pred_check_branch
          %379 = sbr.rel (%p377) target = $region60
        $region59: #{residual_block_forward.7} parent=51 // pred_region
          %380 = dma.done [#allocation6], 18432
        $region60: #{residual_block_forward.7} parent=51 // pred_fallthru
          _
        // Predicated region
        $region61: #{residual_block_forward.7} parent=51 // pred_check
          %p381 = pneg %p94
        $region62: #{residual_block_forward.7} parent=51 // pred_check_branch
          %383 = sbr.rel (%p381) target = $region64
        $region63: #{residual_block_forward.7} parent=51 // pred_region
          %384 = dma.done [#allocation6], 16
        $region64: #{residual_block_forward.7} parent=51 // pred_fallthru
          _
        %s385 = sand.u32 %s31, 1
        %s386 = scalar_lea.sflag [#allocation9], %s385
        %s387 = sand.u32 %s107, 1
        %s388 = smul.addr %s387, 256
        %s389 = scalar_lea.vmem [#allocation8], %s388
        // Predicated region
        $region65: #{residual_block_forward.7} parent=51 // pred_check
          %p390 = pneg %p120
        $region66: #{residual_block_forward.7} parent=51 // pred_check_branch
          %392 = sbr.rel (%p390) target = $region68
        $region67: #{residual_block_forward.7} parent=51 // pred_region
          %393 = dma.done %s386, 4096
        $region68: #{residual_block_forward.7} parent=51 // pred_fallthru
          _
        // Predicated region
        $region69: #{residual_block_forward.7} parent=51 // pred_check
          %p394 = pneg %p141
        $region70: #{residual_block_forward.7} parent=51 // pred_check_branch
          %396 = sbr.rel (%p394) target = $region72
        $region71: #{residual_block_forward.7} parent=51 // pred_region
          %397 = dma.done [#allocation9], 16
        $region72: #{residual_block_forward.7} parent=51 // pred_fallthru
          _
        // Predicated region
        $region73: #{residual_block_forward.7} parent=51 // pred_check
          %p398 = pneg %p162
        $region74: #{residual_block_forward.7} parent=51 // pred_check_branch
          %400 = sbr.rel (%p398) target = $region76
        $region75: #{residual_block_forward.7} parent=51 // pred_region
          %401 = dma.done [#allocation12], 16
        $region76: #{residual_block_forward.7} parent=51 // pred_fallthru
          _
        // Predicated region
        $region77: #{residual_block_forward.7} parent=51 // pred_check
          %p402 = pneg %p183
        $region78: #{residual_block_forward.7} parent=51 // pred_check_branch
          %404 = sbr.rel (%p402) target = $region80
        $region79: #{residual_block_forward.7} parent=51 // pred_region
          %405 = dma.done [#allocation12], 2048
        $region80: #{residual_block_forward.7} parent=51 // pred_fallthru
          _
        // Predicated region
        $region81: #{residual_block_forward.7} parent=51 // pred_check
          %p406 = pneg %p204
        $region82: #{residual_block_forward.7} parent=51 // pred_check_branch
          %408 = sbr.rel (%p406) target = $region84
        $region83: #{residual_block_forward.7} parent=51 // pred_region
          %409 = dma.done [#allocation15], 16
        $region84: #{residual_block_forward.7} parent=51 // pred_fallthru
          _
        %s410 = sand.u32 %s39, 1
        %s411 = scalar_lea.sflag [#allocation3], %s410
        %s412 = sand.u32 %s39, 1
        %s413 = smul.addr %s412, 432
        %s414 = scalar_lea.vmem [#allocation2], %s413
        %p415 = pneg %p52
        %p416 = pneg %p49
        %p417 = pneg %p73
        %p418 = pneg %p70
        %p419 = pneg %p94
        %p420 = pneg %p91
        %s421 = sand.u32 %s31, 1
        %s422 = scalar_lea.sflag [#allocation9], %s421
        %s423 = sand.u32 %s107, 1
        %s424 = smul.addr %s423, 256
        %s425 = scalar_lea.vmem [#allocation8], %s424
        %p426 = pneg %p120
        %p427 = pneg %p117
        %p428 = pneg %p141
        %p429 = pneg %p138
        %p430 = pneg %p162
        %p431 = pneg %p159
        %p432 = pneg %p183
        %p433 = pneg %p180
        %p434 = pneg %p204
        %p435 = pneg %p201
        %p436 = pneg %p230
        %p437 = pneg %p227
        %s438 = sand.u32 %s217, 1
        %s439 = scalar_lea.sflag [#allocation4], %s438
        %s440 = sand.u32 %s217, 1
        %s441 = smul.addr %s440, 256
        %s442 = scalar_lea.vmem [#allocation16], %s441
        %v443 = vld [vmem:[%s372] sm:$0xff]
        %v444 = vld [vmem:[%s372 + $0x8] sm:$0xff]
        %v445 = vld [vmem:[%s372 + $0x18] sm:$0xff]
        %v446 = vld [vmem:[%s372 + $0x20] sm:$0xff]
        %v447 = vld [vmem:[%s372 + $0x30] sm:$0xff]
        %v448 = vld [vmem:[%s372 + $0x38] sm:$0xff]
        %v449 = vld [vmem:[%s372 + $0x48] sm:$0xff]
        %v450 = vld [vmem:[%s372 + $0x50] sm:$0xff]
        %v451 = vld [vmem:[%s372 + $0x60] sm:$0xff]
        %v452 = vld [vmem:[%s372 + $0x68] sm:$0xff]
        %v453 = vld [vmem:[%s372 + $0x78] sm:$0xff]
        %v454 = vld [vmem:[%s372 + $0x80] sm:$0xff]
        %v455 = vld [vmem:[%s372 + $0x90] sm:$0xff]
        %v456 = vld [vmem:[%s372 + $0x98] sm:$0xff]
        %v457 = vld [vmem:[%s372 + $0xa8] sm:$0xff]
        %v458 = vld [vmem:[%s372 + $0xb0] sm:$0xff]
        %v459 = vld [vmem:[%s372 + $0xc0] sm:$0xff]
        %v460 = vld [vmem:[%s372 + $0xc8] sm:$0xff]
        %v461 = vld [vmem:[%s372 + $0xd8] sm:$0xff]
        %v462 = vld [vmem:[%s372 + $0xe0] sm:$0xff]
        %v463 = vld [vmem:[%s372 + $0xf0] sm:$0xff]
        %v464 = vld [vmem:[%s372 + $0xf8] sm:$0xff]
        %v465 = vld [vmem:[%s372 + $0x108] sm:$0xff]
        %v466 = vld [vmem:[%s372 + $0x110] sm:$0xff]
        %v467 = vld [vmem:[%s372 + $0x120] sm:$0xff]
        %v468 = vld [vmem:[%s372 + $0x128] sm:$0xff]
        %v469 = vld [vmem:[%s372 + $0x138] sm:$0xff]
        %v470 = vld [vmem:[%s372 + $0x140] sm:$0xff]
        %v471 = vld [vmem:[%s372 + $0x150] sm:$0xff]
        %v472 = vld [vmem:[%s372 + $0x158] sm:$0xff]
        %v473 = vld [vmem:[%s372 + $0x168] sm:$0xff]
        %v474 = vld [vmem:[%s372 + $0x170] sm:$0xff]
        %v475 = vld [vmem:[#allocation5] sm:$0xff]
        %v476 = vld [vmem:[#allocation5 + $0x8] sm:$0xff]
        %v477 = vld [vmem:[#allocation5 + $0x10] sm:$0xff]
        %v478 = vld [vmem:[#allocation5 + $0x18] sm:$0xff]
        %v479 = vld [vmem:[#allocation5 + $0x20] sm:$0xff]
        %v480 = vld [vmem:[#allocation5 + $0x28] sm:$0xff]
        %v481 = vld [vmem:[#allocation5 + $0x30] sm:$0xff]
        %v482 = vld [vmem:[#allocation5 + $0x38] sm:$0xff]
        %v483 = vld [vmem:[#allocation5 + $0x40] sm:$0xff]
        %v484 = vld [vmem:[#allocation5 + $0x48] sm:$0xff]
        %v485 = vld [vmem:[#allocation5 + $0x50] sm:$0xff]
        %v486 = vld [vmem:[#allocation5 + $0x58] sm:$0xff]
        %v487 = vld [vmem:[#allocation5 + $0x60] sm:$0xff]
        %v488 = vld [vmem:[#allocation5 + $0x68] sm:$0xff]
        %v489 = vld [vmem:[#allocation5 + $0x70] sm:$0xff]
        %v490 = vld [vmem:[#allocation5 + $0x78] sm:$0xff]
        %v491 = vld [vmem:[%s372 + $0x1] sm:$0xff]
        %v492 = vld [vmem:[%s372 + $0x9] sm:$0xff]
        %v493 = vld [vmem:[%s372 + $0x19] sm:$0xff]
        %v494 = vld [vmem:[%s372 + $0x21] sm:$0xff]
        %v495 = vld [vmem:[%s372 + $0x31] sm:$0xff]
        %v496 = vld [vmem:[%s372 + $0x39] sm:$0xff]
        %v497 = vld [vmem:[%s372 + $0x49] sm:$0xff]
        %v498 = vld [vmem:[%s372 + $0x51] sm:$0xff]
        %v499 = vld [vmem:[%s372 + $0x61] sm:$0xff]
        %v500 = vld [vmem:[%s372 + $0x69] sm:$0xff]
        %v501 = vld [vmem:[%s372 + $0x79] sm:$0xff]
        %v502 = vld [vmem:[%s372 + $0x81] sm:$0xff]
        %v503 = vld [vmem:[%s372 + $0x91] sm:$0xff]
        %v504 = vld [vmem:[%s372 + $0x99] sm:$0xff]
        %v505 = vld [vmem:[%s372 + $0xa9] sm:$0xff]
        %v506 = vld [vmem:[%s372 + $0xb1] sm:$0xff]
        %v507 = vld [vmem:[%s372 + $0xc1] sm:$0xff]
        %v508 = vld [vmem:[%s372 + $0xc9] sm:$0xff]
        %v509 = vld [vmem:[%s372 + $0xd9] sm:$0xff]
        %v510 = vld [vmem:[%s372 + $0xe1] sm:$0xff]
        %v511 = vld [vmem:[%s372 + $0xf1] sm:$0xff]
        %v512 = vld [vmem:[%s372 + $0xf9] sm:$0xff]
        %v513 = vld [vmem:[%s372 + $0x109] sm:$0xff]
        %v514 = vld [vmem:[%s372 + $0x111] sm:$0xff]
        %v515 = vld [vmem:[%s372 + $0x121] sm:$0xff]
        %v516 = vld [vmem:[%s372 + $0x129] sm:$0xff]
        %v517 = vld [vmem:[%s372 + $0x139] sm:$0xff]
        %v518 = vld [vmem:[%s372 + $0x141] sm:$0xff]
        %v519 = vld [vmem:[%s372 + $0x151] sm:$0xff]
        %v520 = vld [vmem:[%s372 + $0x159] sm:$0xff]
        %v521 = vld [vmem:[%s372 + $0x169] sm:$0xff]
        %v522 = vld [vmem:[%s372 + $0x171] sm:$0xff]
        %s523 = scalar_lea.vmem [#allocation5], 128
        %v524 = vld [vmem:[%s523] sm:$0xff]
        %v525 = vld [vmem:[%s523 + $0x8] sm:$0xff]
        %v526 = vld [vmem:[%s523 + $0x10] sm:$0xff]
        %v527 = vld [vmem:[%s523 + $0x18] sm:$0xff]
        %v528 = vld [vmem:[%s523 + $0x20] sm:$0xff]
        %v529 = vld [vmem:[%s523 + $0x28] sm:$0xff]
        %v530 = vld [vmem:[%s523 + $0x30] sm:$0xff]
        %v531 = vld [vmem:[%s523 + $0x38] sm:$0xff]
        %v532 = vld [vmem:[%s523 + $0x40] sm:$0xff]
        %v533 = vld [vmem:[%s523 + $0x48] sm:$0xff]
        %v534 = vld [vmem:[%s523 + $0x50] sm:$0xff]
        %v535 = vld [vmem:[%s523 + $0x58] sm:$0xff]
        %v536 = vld [vmem:[%s523 + $0x60] sm:$0xff]
        %v537 = vld [vmem:[%s523 + $0x68] sm:$0xff]
        %v538 = vld [vmem:[%s523 + $0x70] sm:$0xff]
        %v539 = vld [vmem:[%s523 + $0x78] sm:$0xff]
        %540 = vmatprep.subr.mxu0 0.0
        %541 = vmatpush1.msra.mxu0 %v524
        %542 = vmatprep.subr.mxu0 0.0
        %543 = vmatpush1.msra.mxu0 %v525
        %544 = vmatprep.subr.mxu0 0.0
        %545 = vmatpush1.msra.mxu0 %v526
        %546 = vmatprep.subr.mxu0 0.0
        %547 = vmatpush1.msra.mxu0 %v527
        %548 = vmatprep.subr.mxu0 0.0
        %549 = vmatpush1.msra.mxu0 %v528
        %550 = vmatprep.subr.mxu0 0.0
        %551 = vmatpush1.msra.mxu0 %v529
        %552 = vmatprep.subr.mxu0 0.0
        %553 = vmatpush1.msra.mxu0 %v530
        %554 = vmatprep.subr.mxu0 0.0
        %555 = vmatpush1.msra.mxu0 %v531
        %556 = vmatprep.subr.mxu0 0.0
        %557 = vmatpush1.msra.mxu0 %v532
        %558 = vmatprep.subr.mxu0 0.0
        %559 = vmatpush1.msra.mxu0 %v533
        %560 = vmatprep.subr.mxu0 0.0
        %561 = vmatpush1.msra.mxu0 %v534
        %562 = vmatprep.subr.mxu0 0.0
        %563 = vmatpush1.msra.mxu0 %v535
        %564 = vmatprep.subr.mxu0 0.0
        %565 = vmatpush1.msra.mxu0 %v536
        %566 = vmatprep.subr.mxu0 0.0
        %567 = vmatpush1.msra.mxu0 %v537
        %568 = vmatprep.subr.mxu0 0.0
        %569 = vmatpush1.msra.mxu0 %v538
        %570 = vmatprep.subr.mxu0 0.0
        %571 = vmatpush1.msra.mxu0 %v539
        %572 = vmatprep.subr.mxu0 0.0
        %573 = vmatpush1.msra.mxu0 0.0
        %574 = vmatprep.subr.mxu0 0.0
        %575 = vmatpush1.msra.mxu0 0.0
        %576 = vmatprep.subr.mxu0 0.0
        %577 = vmatpush1.msra.mxu0 0.0
        %578 = vmatprep.subr.mxu0 0.0
        %579 = vmatpush1.msra.mxu0 0.0
        %580 = vmatprep.subr.mxu0 0.0
        %581 = vmatpush1.msra.mxu0 0.0
        %582 = vmatprep.subr.mxu0 0.0
        %583 = vmatpush1.msra.mxu0 0.0
        %584 = vmatprep.subr.mxu0 0.0
        %585 = vmatpush1.msra.mxu0 0.0
        %586 = vmatprep.subr.mxu0 0.0
        %587 = vmatpush1.msra.mxu0 0.0
        %588 = vmatprep.subr.mxu0 0.0
        %589 = vmatpush1.msra.mxu0 0.0
        %590 = vmatprep.subr.mxu0 0.0
        %591 = vmatpush1.msra.mxu0 0.0
        %592 = vmatprep.subr.mxu0 0.0
        %593 = vmatpush1.msra.mxu0 0.0
        %594 = vmatprep.subr.mxu0 0.0
        %595 = vmatpush1.msra.mxu0 0.0
        %596 = vmatprep.subr.mxu0 0.0
        %597 = vmatpush1.msra.mxu0 0.0
        %598 = vmatprep.subr.mxu0 0.0
        %599 = vmatpush1.msra.mxu0 0.0
        %600 = vmatprep.subr.mxu0 0.0
        %601 = vmatpush1.msra.mxu0 0.0
        %602 = vmatprep.subr.mxu0 0.0
        %603 = vmatpush1.msra.mxu0 0.0
        %604 = vmatprep.mubr.f32.mxu0 0.0
        %605 = vmatmul.mubr.f32.gmra.mrb[0].mxu0 %v491
        %v606 = vpop.f32.mrb[0].mxu0
        %v607 = vadd.f32 0.0, %v606
        %v608 = vpop.f32.mrb[0].mxu0
        %609 = vmatprep.mubr.f32.mxu0 0.0
        %610 = vmatmul.mubr.f32.gmra.mrb[0].mxu0 %v492
        %v611 = vpop.f32.mrb[0].mxu0
        %v612 = vadd.f32 0.0, %v611
        %v613 = vpop.f32.mrb[0].mxu0
        %614 = vmatprep.mubr.f32.mxu0 0.0
        %615 = vmatmul.mubr.f32.gmra.mrb[0].mxu0 %v493
        %v616 = vpop.f32.mrb[0].mxu0
        %v617 = vadd.f32 0.0, %v616
        %v618 = vpop.f32.mrb[0].mxu0
        %619 = vmatprep.mubr.f32.mxu0 0.0
        %620 = vmatmul.mubr.f32.gmra.mrb[0].mxu0 %v494
        %v621 = vpop.f32.mrb[0].mxu0
        %v622 = vadd.f32 0.0, %v621
        %v623 = vpop.f32.mrb[0].mxu0
        %624 = vmatprep.mubr.f32.mxu0 0.0
        %625 = vmatmul.mubr.f32.gmra.mrb[0].mxu0 %v495
        %v626 = vpop.f32.mrb[0].mxu0
        %v627 = vadd.f32 0.0, %v626
        %v628 = vpop.f32.mrb[0].mxu0
        %629 = vmatprep.mubr.f32.mxu0 0.0
        %630 = vmatmul.mubr.f32.gmra.mrb[0].mxu0 %v496
        %v631 = vpop.f32.mrb[0].mxu0
        %v632 = vadd.f32 0.0, %v631
        %v633 = vpop.f32.mrb[0].mxu0
        %634 = vmatprep.mubr.f32.mxu0 0.0
        %635 = vmatmul.mubr.f32.gmra.mrb[0].mxu0 %v497
        %v636 = vpop.f32.mrb[0].mxu0
        %v637 = vadd.f32 0.0, %v636
        %v638 = vpop.f32.mrb[0].mxu0
        %639 = vmatprep.mubr.f32.mxu0 0.0
        %640 = vmatmul.mubr.f32.gmra.mrb[0].mxu0 %v498
        %v641 = vpop.f32.mrb[0].mxu0
        %v642 = vadd.f32 0.0, %v641
        %v643 = vpop.f32.mrb[0].mxu0
        %644 = vmatprep.mubr.f32.mxu0 0.0
        %645 = vmatmul.mubr.f32.gmra.mrb[0].mxu0 %v499
        %v646 = vpop.f32.mrb[0].mxu0
        %v647 = vadd.f32 0.0, %v646
        %v648 = vpop.f32.mrb[0].mxu0
        %649 = vmatprep.mubr.f32.mxu0 0.0
        %650 = vmatmul.mubr.f32.gmra.mrb[0].mxu0 %v500
        %v651 = vpop.f32.mrb[0].mxu0
        %v652 = vadd.f32 0.0, %v651
        %v653 = vpop.f32.mrb[0].mxu0
        %654 = vmatprep.mubr.f32.mxu0 0.0
        %655 = vmatmul.mubr.f32.gmra.mrb[0].mxu0 %v501
        %v656 = vpop.f32.mrb[0].mxu0
        %v657 = vadd.f32 0.0, %v656
        %v658 = vpop.f32.mrb[0].mxu0
        %659 = vmatprep.mubr.f32.mxu0 0.0
        %660 = vmatmul.mubr.f32.gmra.mrb[0].mxu0 %v502
        %v661 = vpop.f32.mrb[0].mxu0
        %v662 = vadd.f32 0.0, %v661
        %v663 = vpop.f32.mrb[0].mxu0
        %664 = vmatprep.mubr.f32.mxu0 0.0
        %665 = vmatmul.mubr.f32.gmra.mrb[0].mxu0 %v503
        %v666 = vpop.f32.mrb[0].mxu0
        %v667 = vadd.f32 0.0, %v666
        %v668 = vpop.f32.mrb[0].mxu0
        %669 = vmatprep.mubr.f32.mxu0 0.0
        %670 = vmatmul.mubr.f32.gmra.mrb[0].mxu0 %v504
        %v671 = vpop.f32.mrb[0].mxu0
        %v672 = vadd.f32 0.0, %v671
        %v673 = vpop.f32.mrb[0].mxu0
        %674 = vmatprep.mubr.f32.mxu0 0.0
        %675 = vmatmul.mubr.f32.gmra.mrb[0].mxu0 %v505
        %v676 = vpop.f32.mrb[0].mxu0
        %v677 = vadd.f32 0.0, %v676
        %v678 = vpop.f32.mrb[0].mxu0
        %679 = vmatprep.mubr.f32.mxu0 0.0
        %680 = vmatmul.mubr.f32.gmra.mrb[0].mxu0 %v506
        %v681 = vpop.f32.mrb[0].mxu0
        %v682 = vadd.f32 0.0, %v681
        %v683 = vpop.f32.mrb[0].mxu0
        %684 = vmatprep.mubr.f32.mxu0 0.0
        %685 = vmatmul.mubr.f32.gmra.mrb[0].mxu0 %v507
        %v686 = vpop.f32.mrb[0].mxu0
        %v687 = vadd.f32 0.0, %v686
        %v688 = vpop.f32.mrb[0].mxu0
        %689 = vmatprep.mubr.f32.mxu0 0.0
        %690 = vmatmul.mubr.f32.gmra.mrb[0].mxu0 %v508
        %v691 = vpop.f32.mrb[0].mxu0
        %v692 = vadd.f32 0.0, %v691
        %v693 = vpop.f32.mrb[0].mxu0
        %694 = vmatprep.mubr.f32.mxu0 0.0
        %695 = vmatmul.mubr.f32.gmra.mrb[0].mxu0 %v509
        %v696 = vpop.f32.mrb[0].mxu0
        %v697 = vadd.f32 0.0, %v696
        %v698 = vpop.f32.mrb[0].mxu0
        %699 = vmatprep.mubr.f32.mxu0 0.0
        %700 = vmatmul.mubr.f32.gmra.mrb[0].mxu0 %v510
        %v701 = vpop.f32.mrb[0].mxu0
        %v702 = vadd.f32 0.0, %v701
        %v703 = vpop.f32.mrb[0].mxu0
        %704 = vmatprep.mubr.f32.mxu0 0.0
        %705 = vmatmul.mubr.f32.gmra.mrb[0].mxu0 %v511
        %v706 = vpop.f32.mrb[0].mxu0
        %v707 = vadd.f32 0.0, %v706
        %v708 = vpop.f32.mrb[0].mxu0
        %709 = vmatprep.mubr.f32.mxu0 0.0
        %710 = vmatmul.mubr.f32.gmra.mrb[0].mxu0 %v512
        %v711 = vpop.f32.mrb[0].mxu0
        %v712 = vadd.f32 0.0, %v711
        %v713 = vpop.f32.mrb[0].mxu0
        %714 = vmatprep.mubr.f32.mxu0 0.0
        %715 = vmatmul.mubr.f32.gmra.mrb[0].mxu0 %v513
        %v716 = vpop.f32.mrb[0].mxu0
        %v717 = vadd.f32 0.0, %v716
        %v718 = vpop.f32.mrb[0].mxu0
        %719 = vmatprep.mubr.f32.mxu0 0.0
        %720 = vmatmul.mubr.f32.gmra.mrb[0].mxu0 %v514
        %v721 = vpop.f32.mrb[0].mxu0
        %v722 = vadd.f32 0.0, %v721
        %v723 = vpop.f32.mrb[0].mxu0
        %724 = vmatprep.mubr.f32.mxu0 0.0
        %725 = vmatmul.mubr.f32.gmra.mrb[0].mxu0 %v515
        %v726 = vpop.f32.mrb[0].mxu0
        %v727 = vadd.f32 0.0, %v726
        %v728 = vpop.f32.mrb[0].mxu0
        %729 = vmatprep.mubr.f32.mxu0 0.0
        %730 = vmatmul.mubr.f32.gmra.mrb[0].mxu0 %v516
        %v731 = vpop.f32.mrb[0].mxu0
        %v732 = vadd.f32 0.0, %v731
        %v733 = vpop.f32.mrb[0].mxu0
        %734 = vmatprep.mubr.f32.mxu0 0.0
        %735 = vmatmul.mubr.f32.gmra.mrb[0].mxu0 %v517
        %v736 = vpop.f32.mrb[0].mxu0
        %v737 = vadd.f32 0.0, %v736
        %v738 = vpop.f32.mrb[0].mxu0
        %739 = vmatprep.mubr.f32.mxu0 0.0
        %740 = vmatmul.mubr.f32.gmra.mrb[0].mxu0 %v518
        %v741 = vpop.f32.mrb[0].mxu0
        %v742 = vadd.f32 0.0, %v741
        %v743 = vpop.f32.mrb[0].mxu0
        %744 = vmatprep.mubr.f32.mxu0 0.0
        %745 = vmatmul.mubr.f32.gmra.mrb[0].mxu0 %v519
        %v746 = vpop.f32.mrb[0].mxu0
        %v747 = vadd.f32 0.0, %v746
        %v748 = vpop.f32.mrb[0].mxu0
        %749 = vmatprep.mubr.f32.mxu0 0.0
        %750 = vmatmul.mubr.f32.gmra.mrb[0].mxu0 %v520
        %v751 = vpop.f32.mrb[0].mxu0
        %v752 = vadd.f32 0.0, %v751
        %v753 = vpop.f32.mrb[0].mxu0
        %754 = vmatprep.mubr.f32.mxu0 0.0
        %755 = vmatmul.mubr.f32.gmra.mrb[0].mxu0 %v521
        %v756 = vpop.f32.mrb[0].mxu0
        %v757 = vadd.f32 0.0, %v756
        %v758 = vpop.f32.mrb[0].mxu0
        %759 = vmatprep.mubr.f32.mxu0 0.0
        %760 = vmatmul.mubr.f32.gmra.mrb[0].mxu0 %v522
        %v761 = vpop.f32.mrb[0].mxu0
        %v762 = vadd.f32 0.0, %v761
        %v763 = vpop.f32.mrb[0].mxu0
        %764 = vdwg.mxu0
        %765 = vmatprep.subr.mxu0 0.0
        %766 = vmatpush1.msra.mxu0 %v475
        %767 = vmatprep.subr.mxu0 0.0
        %768 = vmatpush1.msra.mxu0 %v476
        %769 = vmatprep.subr.mxu0 0.0
        %770 = vmatpush1.msra.mxu0 %v477
        %771 = vmatprep.subr.mxu0 0.0
        %772 = vmatpush1.msra.mxu0 %v478
        %773 = vmatprep.subr.mxu0 0.0
        %774 = vmatpush1.msra.mxu0 %v479
        %775 = vmatprep.subr.mxu0 0.0
        %776 = vmatpush1.msra.mxu0 %v480
        %777 = vmatprep.subr.mxu0 0.0
        %778 = vmatpush1.msra.mxu0 %v481
        %779 = vmatprep.subr.mxu0 0.0
        %780 = vmatpush1.msra.mxu0 %v482
        %781 = vmatprep.subr.mxu0 0.0
        %782 = vmatpush1.msra.mxu0 %v483
        %783 = vmatprep.subr.mxu0 0.0
        %784 = vmatpush1.msra.mxu0 %v484
        %785 = vmatprep.subr.mxu0 0.0
        %786 = vmatpush1.msra.mxu0 %v485
        %787 = vmatprep.subr.mxu0 0.0
        %788 = vmatpush1.msra.mxu0 %v486
        %789 = vmatprep.subr.mxu0 0.0
        %790 = vmatpush1.msra.mxu0 %v487
        %791 = vmatprep.subr.mxu0 0.0
        %792 = vmatpush1.msra.mxu0 %v488
        %793 = vmatprep.subr.mxu0 0.0
        %794 = vmatpush1.msra.mxu0 %v489
        %795 = vmatprep.subr.mxu0 0.0
        %796 = vmatpush1.msra.mxu0 %v490
        %797 = vmatprep.subr.mxu0 0.0
        %798 = vmatpush1.msra.mxu0 0.0
        %799 = vmatprep.subr.mxu0 0.0
        %800 = vmatpush1.msra.mxu0 0.0
        %801 = vmatprep.subr.mxu0 0.0
        %802 = vmatpush1.msra.mxu0 0.0
        %803 = vmatprep.subr.mxu0 0.0
        %804 = vmatpush1.msra.mxu0 0.0
        %805 = vmatprep.subr.mxu0 0.0
        %806 = vmatpush1.msra.mxu0 0.0
        %807 = vmatprep.subr.mxu0 0.0
        %808 = vmatpush1.msra.mxu0 0.0
        %809 = vmatprep.subr.mxu0 0.0
        %810 = vmatpush1.msra.mxu0 0.0
        %811 = vmatprep.subr.mxu0 0.0
        %812 = vmatpush1.msra.mxu0 0.0
        %813 = vmatprep.subr.mxu0 0.0
        %814 = vmatpush1.msra.mxu0 0.0
        %815 = vmatprep.subr.mxu0 0.0
        %816 = vmatpush1.msra.mxu0 0.0
        %817 = vmatprep.subr.mxu0 0.0
        %818 = vmatpush1.msra.mxu0 0.0
        %819 = vmatprep.subr.mxu0 0.0
        %820 = vmatpush1.msra.mxu0 0.0
        %821 = vmatprep.subr.mxu0 0.0
        %822 = vmatpush1.msra.mxu0 0.0
        %823 = vmatprep.subr.mxu0 0.0
        %824 = vmatpush1.msra.mxu0 0.0
        %825 = vmatprep.subr.mxu0 0.0
        %826 = vmatpush1.msra.mxu0 0.0
        %827 = vmatprep.subr.mxu0 0.0
        %828 = vmatpush1.msra.mxu0 0.0
        %829 = vmatprep.mubr.f32.mxu0 0.0
        %830 = vmatmul.mubr.f32.gmra.mrb[0].mxu0 %v443
        %v831 = vpop.f32.mrb[0].mxu0
        %v832 = vadd.f32 %v607, %v831
        %v833 = vpop.f32.mrb[0].mxu0
        %834 = vmatprep.mubr.f32.mxu0 0.0
        %835 = vmatmul.mubr.f32.gmra.mrb[0].mxu0 %v444
        %v836 = vpop.f32.mrb[0].mxu0
        %v837 = vadd.f32 %v612, %v836
        %v838 = vpop.f32.mrb[0].mxu0
        %839 = vmatprep.mubr.f32.mxu0 0.0
        %840 = vmatmul.mubr.f32.gmra.mrb[0].mxu0 %v445
        %v841 = vpop.f32.mrb[0].mxu0
        %v842 = vadd.f32 %v617, %v841
        %v843 = vpop.f32.mrb[0].mxu0
        %844 = vmatprep.mubr.f32.mxu0 0.0
        %845 = vmatmul.mubr.f32.gmra.mrb[0].mxu0 %v446
        %v846 = vpop.f32.mrb[0].mxu0
        %v847 = vadd.f32 %v622, %v846
        %v848 = vpop.f32.mrb[0].mxu0
        %849 = vmatprep.mubr.f32.mxu0 0.0
        %850 = vmatmul.mubr.f32.gmra.mrb[0].mxu0 %v447
        %v851 = vpop.f32.mrb[0].mxu0
        %v852 = vadd.f32 %v627, %v851
        %v853 = vpop.f32.mrb[0].mxu0
        %854 = vmatprep.mubr.f32.mxu0 0.0
        %855 = vmatmul.mubr.f32.gmra.mrb[0].mxu0 %v448
        %v856 = vpop.f32.mrb[0].mxu0
        %v857 = vadd.f32 %v632, %v856
        %v858 = vpop.f32.mrb[0].mxu0
        %859 = vmatprep.mubr.f32.mxu0 0.0
        %860 = vmatmul.mubr.f32.gmra.mrb[0].mxu0 %v449
        %v861 = vpop.f32.mrb[0].mxu0
        %v862 = vadd.f32 %v637, %v861
        %v863 = vpop.f32.mrb[0].mxu0
        %864 = vmatprep.mubr.f32.mxu0 0.0
        %865 = vmatmul.mubr.f32.gmra.mrb[0].mxu0 %v450
        %v866 = vpop.f32.mrb[0].mxu0
        %v867 = vadd.f32 %v642, %v866
        %v868 = vpop.f32.mrb[0].mxu0
        %869 = vmatprep.mubr.f32.mxu0 0.0
        %870 = vmatmul.mubr.f32.gmra.mrb[0].mxu0 %v451
        %v871 = vpop.f32.mrb[0].mxu0
        %v872 = vadd.f32 %v647, %v871
        %v873 = vpop.f32.mrb[0].mxu0
        %874 = vmatprep.mubr.f32.mxu0 0.0
        %875 = vmatmul.mubr.f32.gmra.mrb[0].mxu0 %v452
        %v876 = vpop.f32.mrb[0].mxu0
        %v877 = vadd.f32 %v652, %v876
        %v878 = vpop.f32.mrb[0].mxu0
        %879 = vmatprep.mubr.f32.mxu0 0.0
        %880 = vmatmul.mubr.f32.gmra.mrb[0].mxu0 %v453
        %v881 = vpop.f32.mrb[0].mxu0
        %v882 = vadd.f32 %v657, %v881
        %v883 = vpop.f32.mrb[0].mxu0
        %884 = vmatprep.mubr.f32.mxu0 0.0
        %885 = vmatmul.mubr.f32.gmra.mrb[0].mxu0 %v454
        %v886 = vpop.f32.mrb[0].mxu0
        %v887 = vadd.f32 %v662, %v886
        %v888 = vpop.f32.mrb[0].mxu0
        %889 = vmatprep.mubr.f32.mxu0 0.0
        %890 = vmatmul.mubr.f32.gmra.mrb[0].mxu0 %v455
        %v891 = vpop.f32.mrb[0].mxu0
        %v892 = vadd.f32 %v667, %v891
        %v893 = vpop.f32.mrb[0].mxu0
        %894 = vmatprep.mubr.f32.mxu0 0.0
        %895 = vmatmul.mubr.f32.gmra.mrb[0].mxu0 %v456
        %v896 = vpop.f32.mrb[0].mxu0
        %v897 = vadd.f32 %v672, %v896
        %v898 = vpop.f32.mrb[0].mxu0
        %899 = vmatprep.mubr.f32.mxu0 0.0
        %900 = vmatmul.mubr.f32.gmra.mrb[0].mxu0 %v457
        %v901 = vpop.f32.mrb[0].mxu0
        %v902 = vadd.f32 %v677, %v901
        %v903 = vpop.f32.mrb[0].mxu0
        %904 = vmatprep.mubr.f32.mxu0 0.0
        %905 = vmatmul.mubr.f32.gmra.mrb[0].mxu0 %v458
        %v906 = vpop.f32.mrb[0].mxu0
        %v907 = vadd.f32 %v682, %v906
        %v908 = vpop.f32.mrb[0].mxu0
        %909 = vmatprep.mubr.f32.mxu0 0.0
        %910 = vmatmul.mubr.f32.gmra.mrb[0].mxu0 %v459
        %v911 = vpop.f32.mrb[0].mxu0
        %v912 = vadd.f32 %v687, %v911
        %v913 = vpop.f32.mrb[0].mxu0
        %914 = vmatprep.mubr.f32.mxu0 0.0
        %915 = vmatmul.mubr.f32.gmra.mrb[0].mxu0 %v460
        %v916 = vpop.f32.mrb[0].mxu0
        %v917 = vadd.f32 %v692, %v916
        %v918 = vpop.f32.mrb[0].mxu0
        %919 = vmatprep.mubr.f32.mxu0 0.0
        %920 = vmatmul.mubr.f32.gmra.mrb[0].mxu0 %v461
        %v921 = vpop.f32.mrb[0].mxu0
        %v922 = vadd.f32 %v697, %v921
        %v923 = vpop.f32.mrb[0].mxu0
        %924 = vmatprep.mubr.f32.mxu0 0.0
        %925 = vmatmul.mubr.f32.gmra.mrb[0].mxu0 %v462
        %v926 = vpop.f32.mrb[0].mxu0
        %v927 = vadd.f32 %v702, %v926
        %v928 = vpop.f32.mrb[0].mxu0
        %929 = vmatprep.mubr.f32.mxu0 0.0
        %930 = vmatmul.mubr.f32.gmra.mrb[0].mxu0 %v463
        %v931 = vpop.f32.mrb[0].mxu0
        %v932 = vadd.f32 %v707, %v931
        %v933 = vpop.f32.mrb[0].mxu0
        %934 = vmatprep.mubr.f32.mxu0 0.0
        %935 = vmatmul.mubr.f32.gmra.mrb[0].mxu0 %v464
        %v936 = vpop.f32.mrb[0].mxu0
        %v937 = vadd.f32 %v712, %v936
        %v938 = vpop.f32.mrb[0].mxu0
        %939 = vmatprep.mubr.f32.mxu0 0.0
        %940 = vmatmul.mubr.f32.gmra.mrb[0].mxu0 %v465
        %v941 = vpop.f32.mrb[0].mxu0
        %v942 = vadd.f32 %v717, %v941
        %v943 = vpop.f32.mrb[0].mxu0
        %944 = vmatprep.mubr.f32.mxu0 0.0
        %945 = vmatmul.mubr.f32.gmra.mrb[0].mxu0 %v466
        %v946 = vpop.f32.mrb[0].mxu0
        %v947 = vadd.f32 %v722, %v946
        %v948 = vpop.f32.mrb[0].mxu0
        %949 = vmatprep.mubr.f32.mxu0 0.0
        %950 = vmatmul.mubr.f32.gmra.mrb[0].mxu0 %v467
        %v951 = vpop.f32.mrb[0].mxu0
        %v952 = vadd.f32 %v727, %v951
        %v953 = vpop.f32.mrb[0].mxu0
        %954 = vmatprep.mubr.f32.mxu0 0.0
        %955 = vmatmul.mubr.f32.gmra.mrb[0].mxu0 %v468
        %v956 = vpop.f32.mrb[0].mxu0
        %v957 = vadd.f32 %v732, %v956
        %v958 = vpop.f32.mrb[0].mxu0
        %959 = vmatprep.mubr.f32.mxu0 0.0
        %960 = vmatmul.mubr.f32.gmra.mrb[0].mxu0 %v469
        %v961 = vpop.f32.mrb[0].mxu0
        %v962 = vadd.f32 %v737, %v961
        %v963 = vpop.f32.mrb[0].mxu0
        %964 = vmatprep.mubr.f32.mxu0 0.0
        %965 = vmatmul.mubr.f32.gmra.mrb[0].mxu0 %v470
        %v966 = vpop.f32.mrb[0].mxu0
        %v967 = vadd.f32 %v742, %v966
        %v968 = vpop.f32.mrb[0].mxu0
        %969 = vmatprep.mubr.f32.mxu0 0.0
        %970 = vmatmul.mubr.f32.gmra.mrb[0].mxu0 %v471
        %v971 = vpop.f32.mrb[0].mxu0
        %v972 = vadd.f32 %v747, %v971
        %v973 = vpop.f32.mrb[0].mxu0
        %974 = vmatprep.mubr.f32.mxu0 0.0
        %975 = vmatmul.mubr.f32.gmra.mrb[0].mxu0 %v472
        %v976 = vpop.f32.mrb[0].mxu0
        %v977 = vadd.f32 %v752, %v976
        %v978 = vpop.f32.mrb[0].mxu0
        %979 = vmatprep.mubr.f32.mxu0 0.0
        %980 = vmatmul.mubr.f32.gmra.mrb[0].mxu0 %v473
        %v981 = vpop.f32.mrb[0].mxu0
        %v982 = vadd.f32 %v757, %v981
        %v983 = vpop.f32.mrb[0].mxu0
        %984 = vmatprep.mubr.f32.mxu0 0.0
        %985 = vmatmul.mubr.f32.gmra.mrb[0].mxu0 %v474
        %v986 = vpop.f32.mrb[0].mxu0
        %v987 = vadd.f32 %v762, %v986
        %v988 = vpop.f32.mrb[0].mxu0
        %989 = vdwg.mxu0
        %v990 = vld [vmem:[%s372 + $0x2] sm:$0xff]
        %v991 = vld [vmem:[%s372 + $0xa] sm:$0xff]
        %v992 = vld [vmem:[%s372 + $0x1a] sm:$0xff]
        %v993 = vld [vmem:[%s372 + $0x22] sm:$0xff]
        %v994 = vld [vmem:[%s372 + $0x32] sm:$0xff]
        %v995 = vld [vmem:[%s372 + $0x3a] sm:$0xff]
        %v996 = vld [vmem:[%s372 + $0x4a] sm:$0xff]
        %v997 = vld [vmem:[%s372 + $0x52] sm:$0xff]
        %v998 = vld [vmem:[%s372 + $0x62] sm:$0xff]
        %v999 = vld [vmem:[%s372 + $0x6a] sm:$0xff]
        %v1000 = vld [vmem:[%s372 + $0x7a] sm:$0xff]
        %v1001 = vld [vmem:[%s372 + $0x82] sm:$0xff]
        %v1002 = vld [vmem:[%s372 + $0x92] sm:$0xff]
        %v1003 = vld [vmem:[%s372 + $0x9a] sm:$0xff]
        %v1004 = vld [vmem:[%s372 + $0xaa] sm:$0xff]
        %v1005 = vld [vmem:[%s372 + $0xb2] sm:$0xff]
        %v1006 = vld [vmem:[%s372 + $0xc2] sm:$0xff]
        %v1007 = vld [vmem:[%s372 + $0xca] sm:$0xff]
        %v1008 = vld [vmem:[%s372 + $0xda] sm:$0xff]
        %v1009 = vld [vmem:[%s372 + $0xe2] sm:$0xff]
        %v1010 = vld [vmem:[%s372 + $0xf2] sm:$0xff]
        %v1011 = vld [vmem:[%s372 + $0xfa] sm:$0xff]
        %v1012 = vld [vmem:[%s372 + $0x10a] sm:$0xff]
        %v1013 = vld [vmem:[%s372 + $0x112] sm:$0xff]
        %v1014 = vld [vmem:[%s372 + $0x122] sm:$0xff]
        %v1015 = vld [vmem:[%s372 + $0x12a] sm:$0xff]
        %v1016 = vld [vmem:[%s372 + $0x13a] sm:$0xff]
        %v1017 = vld [vmem:[%s372 + $0x142] sm:$0xff]
        %v1018 = vld [vmem:[%s372 + $0x152] sm:$0xff]
        %v1019 = vld [vmem:[%s372 + $0x15a] sm:$0xff]
        %v1020 = vld [vmem:[%s372 + $0x16a] sm:$0xff]
        %v1021 = vld [vmem:[%s372 + $0x172] sm:$0xff]
        %s1022 = scalar_lea.vmem [#allocation5], 256
        %v1023 = vld [vmem:[%s1022] sm:$0xff]
        %v1024 = vld [vmem:[%s1022 + $0x8] sm:$0xff]
        %v1025 = vld [vmem:[%s1022 + $0x10] sm:$0xff]
        %v1026 = vld [vmem:[%s1022 + $0x18] sm:$0xff]
        %v1027 = vld [vmem:[%s1022 + $0x20] sm:$0xff]
        %v1028 = vld [vmem:[%s1022 + $0x28] sm:$0xff]
        %v1029 = vld [vmem:[%s1022 + $0x30] sm:$0xff]
        %v1030 = vld [vmem:[%s1022 + $0x38] sm:$0xff]
        %v1031 = vld [vmem:[%s1022 + $0x40] sm:$0xff]
        %v1032 = vld [vmem:[%s1022 + $0x48] sm:$0xff]
        %v1033 = vld [vmem:[%s1022 + $0x50] sm:$0xff]
        %v1034 = vld [vmem:[%s1022 + $0x58] sm:$0xff]
        %v1035 = vld [vmem:[%s1022 + $0x60] sm:$0xff]
        %v1036 = vld [vmem:[%s1022 + $0x68] sm:$0xff]
        %v1037 = vld [vmem:[%s1022 + $0x70] sm:$0xff]
        %v1038 = vld [vmem:[%s1022 + $0x78] sm:$0xff]
        %1039 = vmatprep.subr.mxu0 0.0
        %1040 = vmatpush1.msra.mxu0 %v1023
        %1041 = vmatprep.subr.mxu0 0.0
        %1042 = vmatpush1.msra.mxu0 %v1024
        %1043 = vmatprep.subr.mxu0 0.0
        %1044 = vmatpush1.msra.mxu0 %v1025
        %1045 = vmatprep.subr.mxu0 0.0
        %1046 = vmatpush1.msra.mxu0 %v1026
        %1047 = vmatprep.subr.mxu0 0.0
        %1048 = vmatpush1.msra.mxu0 %v1027
        %1049 = vmatprep.subr.mxu0 0.0
        %1050 = vmatpush1.msra.mxu0 %v1028
        %1051 = vmatprep.subr.mxu0 0.0
        %1052 = vmatpush1.msra.mxu0 %v1029
        %1053 = vmatprep.subr.mxu0 0.0
        %1054 = vmatpush1.msra.mxu0 %v1030
        %1055 = vmatprep.subr.mxu0 0.0
        %1056 = vmatpush1.msra.mxu0 %v1031
        %1057 = vmatprep.subr.mxu0 0.0
        %1058 = vmatpush1.msra.mxu0 %v1032
        %1059 = vmatprep.subr.mxu0 0.0
        %1060 = vmatpush1.msra.mxu0 %v1033
        %1061 = vmatprep.subr.mxu0 0.0
        %1062 = vmatpush1.msra.mxu0 %v1034
        %1063 = vmatprep.subr.mxu0 0.0
        %1064 = vmatpush1.msra.mxu0 %v1035
        %1065 = vmatprep.subr.mxu0 0.0
        %1066 = vmatpush1.msra.mxu0 %v1036
        %1067 = vmatprep.subr.mxu0 0.0
        %1068 = vmatpush1.msra.mxu0 %v1037
        %1069 = vmatprep.subr.mxu0 0.0
        %1070 = vmatpush1.msra.mxu0 %v1038
        %1071 = vmatprep.subr.mxu0 0.0
        %1072 = vmatpush1.msra.mxu0 0.0
        %1073 = vmatprep.subr.mxu0 0.0
        %1074 = vmatpush1.msra.mxu0 0.0
        %1075 = vmatprep.subr.mxu0 0.0
        %1076 = vmatpush1.msra.mxu0 0.0
        %1077 = vmatprep.subr.mxu0 0.0
        %1078 = vmatpush1.msra.mxu0 0.0
        %1079 = vmatprep.subr.mxu0 0.0
        %1080 = vmatpush1.msra.mxu0 0.0
        %1081 = vmatprep.subr.mxu0 0.0
        %1082 = vmatpush1.msra.mxu0 0.0
        %1083 = vmatprep.subr.mxu0 0.0
        %1084 = vmatpush1.msra.mxu0 0.0
        %1085 = vmatprep.subr.mxu0 0.0
        %1086 = vmatpush1.msra.mxu0 0.0
        %1087 = vmatprep.subr.mxu0 0.0
        %1088 = vmatpush1.msra.mxu0 0.0
        %1089 = vmatprep.subr.mxu0 0.0
        %1090 = vmatpush1.msra.mxu0 0.0
        %1091 = vmatprep.subr.mxu0 0.0
        %1092 = vmatpush1.msra.mxu0 0.0
        %1093 = vmatprep.subr.mxu0 0.0
        %1094 = vmatpush1.msra.mxu0 0.0
        %1095 = vmatprep.subr.mxu0 0.0
        %1096 = vmatpush1.msra.mxu0 0.0
        %1097 = vmatprep.subr.mxu0 0.0
        %1098 = vmatpush1.msra.mxu0 0.0
        %1099 = vmatprep.subr.mxu0 0.0
        %1100 = vmatpush1.msra.mxu0 0.0
        %1101 = vmatprep.subr.mxu0 0.0
        %1102 = vmatpush1.msra.mxu0 0.0
        %1103 = vmatprep.mubr.f32.mxu0 0.0
        %1104 = vmatmul.mubr.f32.gmra.mrb[0].mxu0 %v990
        %v1105 = vpop.f32.mrb[0].mxu0
        %v1106 = vadd.f32 0.0, %v1105
        %v1107 = vpop.f32.mrb[0].mxu0
        %1108 = vmatprep.mubr.f32.mxu0 0.0
        %1109 = vmatmul.mubr.f32.gmra.mrb[0].mxu0 %v991
        %v1110 = vpop.f32.mrb[0].mxu0
        %v1111 = vadd.f32 0.0, %v1110
        %v1112 = vpop.f32.mrb[0].mxu0
        %1113 = vmatprep.mubr.f32.mxu0 0.0
        %1114 = vmatmul.mubr.f32.gmra.mrb[0].mxu0 %v992
        %v1115 = vpop.f32.mrb[0].mxu0
        %v1116 = vadd.f32 0.0, %v1115
        %v1117 = vpop.f32.mrb[0].mxu0
        %1118 = vmatprep.mubr.f32.mxu0 0.0
        %1119 = vmatmul.mubr.f32.gmra.mrb[0].mxu0 %v993
        %v1120 = vpop.f32.mrb[0].mxu0
        %v1121 = vadd.f32 0.0, %v1120
        %v1122 = vpop.f32.mrb[0].mxu0
        %1123 = vmatprep.mubr.f32.mxu0 0.0
        %1124 = vmatmul.mubr.f32.gmra.mrb[0].mxu0 %v994
        %v1125 = vpop.f32.mrb[0].mxu0
        %v1126 = vadd.f32 0.0, %v1125
        %v1127 = vpop.f32.mrb[0].mxu0
        %1128 = vmatprep.mubr.f32.mxu0 0.0
        %1129 = vmatmul.mubr.f32.gmra.mrb[0].mxu0 %v995
        %v1130 = vpop.f32.mrb[0].mxu0
        %v1131 = vadd.f32 0.0, %v1130
        %v1132 = vpop.f32.mrb[0].mxu0
        %1133 = vmatprep.mubr.f32.mxu0 0.0
        %1134 = vmatmul.mubr.f32.gmra.mrb[0].mxu0 %v996
        %v1135 = vpop.f32.mrb[0].mxu0
        %v1136 = vadd.f32 0.0, %v1135
        %v1137 = vpop.f32.mrb[0].mxu0
        %1138 = vmatprep.mubr.f32.mxu0 0.0
        %1139 = vmatmul.mubr.f32.gmra.mrb[0].mxu0 %v997
        %v1140 = vpop.f32.mrb[0].mxu0
        %v1141 = vadd.f32 0.0, %v1140
        %v1142 = vpop.f32.mrb[0].mxu0
        %1143 = vmatprep.mubr.f32.mxu0 0.0
        %1144 = vmatmul.mubr.f32.gmra.mrb[0].mxu0 %v998
        %v1145 = vpop.f32.mrb[0].mxu0
        %v1146 = vadd.f32 0.0, %v1145
        %v1147 = vpop.f32.mrb[0].mxu0
        %1148 = vmatprep.mubr.f32.mxu0 0.0
        %1149 = vmatmul.mubr.f32.gmra.mrb[0].mxu0 %v999
        %v1150 = vpop.f32.mrb[0].mxu0
        %v1151 = vadd.f32 0.0, %v1150
        %v1152 = vpop.f32.mrb[0].mxu0
        %1153 = vmatprep.mubr.f32.mxu0 0.0
        %1154 = vmatmul.mubr.f32.gmra.mrb[0].mxu0 %v1000
        %v1155 = vpop.f32.mrb[0].mxu0
        %v1156 = vadd.f32 0.0, %v1155
        %v1157 = vpop.f32.mrb[0].mxu0
        %1158 = vmatprep.mubr.f32.mxu0 0.0
        %1159 = vmatmul.mubr.f32.gmra.mrb[0].mxu0 %v1001
        %v1160 = vpop.f32.mrb[0].mxu0
        %v1161 = vadd.f32 0.0, %v1160
        %v1162 = vpop.f32.mrb[0].mxu0
        %1163 = vmatprep.mubr.f32.mxu0 0.0
        %1164 = vmatmul.mubr.f32.gmra.mrb[0].mxu0 %v1002
        %v1165 = vpop.f32.mrb[0].mxu0
        %v1166 = vadd.f32 0.0, %v1165
        %v1167 = vpop.f32.mrb[0].mxu0
        %1168 = vmatprep.mubr.f32.mxu0 0.0
        %1169 = vmatmul.mubr.f32.gmra.mrb[0].mxu0 %v1003
        %v1170 = vpop.f32.mrb[0].mxu0
        %v1171 = vadd.f32 0.0, %v1170
        %v1172 = vpop.f32.mrb[0].mxu0
        %1173 = vmatprep.mubr.f32.mxu0 0.0
        %1174 = vmatmul.mubr.f32.gmra.mrb[0].mxu0 %v1004
        %v1175 = vpop.f32.mrb[0].mxu0
        %v1176 = vadd.f32 0.0, %v1175
        %v1177 = vpop.f32.mrb[0].mxu0
        %1178 = vmatprep.mubr.f32.mxu0 0.0
        %1179 = vmatmul.mubr.f32.gmra.mrb[0].mxu0 %v1005
        %v1180 = vpop.f32.mrb[0].mxu0
        %v1181 = vadd.f32 0.0, %v1180
        %v1182 = vpop.f32.mrb[0].mxu0
        %1183 = vmatprep.mubr.f32.mxu0 0.0
        %1184 = vmatmul.mubr.f32.gmra.mrb[0].mxu0 %v1006
        %v1185 = vpop.f32.mrb[0].mxu0
        %v1186 = vadd.f32 0.0, %v1185
        %v1187 = vpop.f32.mrb[0].mxu0
        %1188 = vmatprep.mubr.f32.mxu0 0.0
        %1189 = vmatmul.mubr.f32.gmra.mrb[0].mxu0 %v1007
        %v1190 = vpop.f32.mrb[0].mxu0
        %v1191 = vadd.f32 0.0, %v1190
        %v1192 = vpop.f32.mrb[0].mxu0
        %1193 = vmatprep.mubr.f32.mxu0 0.0
        %1194 = vmatmul.mubr.f32.gmra.mrb[0].mxu0 %v1008
        %v1195 = vpop.f32.mrb[0].mxu0
        %v1196 = vadd.f32 0.0, %v1195
        %v1197 = vpop.f32.mrb[0].mxu0
        %1198 = vmatprep.mubr.f32.mxu0 0.0
        %1199 = vmatmul.mubr.f32.gmra.mrb[0].mxu0 %v1009
        %v1200 = vpop.f32.mrb[0].mxu0
        %v1201 = vadd.f32 0.0, %v1200
        %v1202 = vpop.f32.mrb[0].mxu0
        %1203 = vmatprep.mubr.f32.mxu0 0.0
        %1204 = vmatmul.mubr.f32.gmra.mrb[0].mxu0 %v1010
        %v1205 = vpop.f32.mrb[0].mxu0
        %v1206 = vadd.f32 0.0, %v1205
        %v1207 = vpop.f32.mrb[0].mxu0
        %1208 = vmatprep.mubr.f32.mxu0 0.0
        %1209 = vmatmul.mubr.f32.gmra.mrb[0].mxu0 %v1011
        %v1210 = vpop.f32.mrb[0].mxu0
        %v1211 = vadd.f32 0.0, %v1210
        %v1212 = vpop.f32.mrb[0].mxu0
        %1213 = vmatprep.mubr.f32.mxu0 0.0
        %1214 = vmatmul.mubr.f32.gmra.mrb[0].mxu0 %v1012
        %v1215 = vpop.f32.mrb[0].mxu0
        %v1216 = vadd.f32 0.0, %v1215
        %v1217 = vpop.f32.mrb[0].mxu0
        %1218 = vmatprep.mubr.f32.mxu0 0.0
        %1219 = vmatmul.mubr.f32.gmra.mrb[0].mxu0 %v1013
        %v1220 = vpop.f32.mrb[0].mxu0
        %v1221 = vadd.f32 0.0, %v1220
        %v1222 = vpop.f32.mrb[0].mxu0
        %1223 = vmatprep.mubr.f32.mxu0 0.0
        %1224 = vmatmul.mubr.f32.gmra.mrb[0].mxu0 %v1014
        %v1225 = vpop.f32.mrb[0].mxu0
        %v1226 = vadd.f32 0.0, %v1225
        %v1227 = vpop.f32.mrb[0].mxu0
        %1228 = vmatprep.mubr.f32.mxu0 0.0
        %1229 = vmatmul.mubr.f32.gmra.mrb[0].mxu0 %v1015
        %v1230 = vpop.f32.mrb[0].mxu0
        %v1231 = vadd.f32 0.0, %v1230
        %v1232 = vpop.f32.mrb[0].mxu0
        %1233 = vmatprep.mubr.f32.mxu0 0.0
        %1234 = vmatmul.mubr.f32.gmra.mrb[0].mxu0 %v1016
        %v1235 = vpop.f32.mrb[0].mxu0
        %v1236 = vadd.f32 0.0, %v1235
        %v1237 = vpop.f32.mrb[0].mxu0
        %1238 = vmatprep.mubr.f32.mxu0 0.0
        %1239 = vmatmul.mubr.f32.gmra.mrb[0].mxu0 %v1017
        %v1240 = vpop.f32.mrb[0].mxu0
        %v1241 = vadd.f32 0.0, %v1240
        %v1242 = vpop.f32.mrb[0].mxu0
        %1243 = vmatprep.mubr.f32.mxu0 0.0
        %1244 = vmatmul.mubr.f32.gmra.mrb[0].mxu0 %v1018
        %v1245 = vpop.f32.mrb[0].mxu0
        %v1246 = vadd.f32 0.0, %v1245
        %v1247 = vpop.f32.mrb[0].mxu0
        %1248 = vmatprep.mubr.f32.mxu0 0.0
        %1249 = vmatmul.mubr.f32.gmra.mrb[0].mxu0 %v1019
        %v1250 = vpop.f32.mrb[0].mxu0
        %v1251 = vadd.f32 0.0, %v1250
        %v1252 = vpop.f32.mrb[0].mxu0
        %1253 = vmatprep.mubr.f32.mxu0 0.0
        %1254 = vmatmul.mubr.f32.gmra.mrb[0].mxu0 %v1020
        %v1255 = vpop.f32.mrb[0].mxu0
        %v1256 = vadd.f32 0.0, %v1255
        %v1257 = vpop.f32.mrb[0].mxu0
        %1258 = vmatprep.mubr.f32.mxu0 0.0
        %1259 = vmatmul.mubr.f32.gmra.mrb[0].mxu0 %v1021
        %v1260 = vpop.f32.mrb[0].mxu0
        %v1261 = vadd.f32 0.0, %v1260
        %v1262 = vpop.f32.mrb[0].mxu0
        %1263 = vdwg.mxu0
        %v1264 = vadd.f32 %v832, %v1106
        %v1265 = vadd.f32 %v837, %v1111
        %v1266 = vadd.f32 %v842, %v1116
        %v1267 = vadd.f32 %v847, %v1121
        %v1268 = vadd.f32 %v852, %v1126
        %v1269 = vadd.f32 %v857, %v1131
        %v1270 = vadd.f32 %v862, %v1136
        %v1271 = vadd.f32 %v867, %v1141
        %v1272 = vadd.f32 %v872, %v1146
        %v1273 = vadd.f32 %v877, %v1151
        %v1274 = vadd.f32 %v882, %v1156
        %v1275 = vadd.f32 %v887, %v1161
        %v1276 = vadd.f32 %v892, %v1166
        %v1277 = vadd.f32 %v897, %v1171
        %v1278 = vadd.f32 %v902, %v1176
        %v1279 = vadd.f32 %v907, %v1181
        %v1280 = vadd.f32 %v912, %v1186
        %v1281 = vadd.f32 %v917, %v1191
        %v1282 = vadd.f32 %v922, %v1196
        %v1283 = vadd.f32 %v927, %v1201
        %v1284 = vadd.f32 %v932, %v1206
        %v1285 = vadd.f32 %v937, %v1211
        %v1286 = vadd.f32 %v942, %v1216
        %v1287 = vadd.f32 %v947, %v1221
        %v1288 = vadd.f32 %v952, %v1226
        %v1289 = vadd.f32 %v957, %v1231
        %v1290 = vadd.f32 %v962, %v1236
        %v1291 = vadd.f32 %v967, %v1241
        %v1292 = vadd.f32 %v972, %v1246
        %v1293 = vadd.f32 %v977, %v1251
        %v1294 = vadd.f32 %v982, %v1256
        %v1295 = vadd.f32 %v987, %v1261
        %s1296 = scalar_lea.vmem %s372, 24 [#allocation2]
        %v1297 = vld [vmem:[%s1296] sm:$0xff]
        %v1298 = vld [vmem:[%s1296 + $0x8] sm:$0xff]
        %v1299 = vld [vmem:[%s1296 + $0x18] sm:$0xff]
        %v1300 = vld [vmem:[%s1296 + $0x20] sm:$0xff]
        %v1301 = vld [vmem:[%s1296 + $0x30] sm:$0xff]
        %v1302 = vld [vmem:[%s1296 + $0x38] sm:$0xff]
        %v1303 = vld [vmem:[%s1296 + $0x48] sm:$0xff]
        %v1304 = vld [vmem:[%s1296 + $0x50] sm:$0xff]
        %v1305 = vld [vmem:[%s1296 + $0x60] sm:$0xff]
        %v1306 = vld [vmem:[%s1296 + $0x68] sm:$0xff]
        %v1307 = vld [vmem:[%s1296 + $0x78] sm:$0xff]
        %v1308 = vld [vmem:[%s1296 + $0x80] sm:$0xff]
        %v1309 = vld [vmem:[%s1296 + $0x90] sm:$0xff]
        %v1310 = vld [vmem:[%s1296 + $0x98] sm:$0xff]
        %v1311 = vld [vmem:[%s1296 + $0xa8] sm:$0xff]
        %v1312 = vld [vmem:[%s1296 + $0xb0] sm:$0xff]
        %v1313 = vld [vmem:[%s1296 + $0xc0] sm:$0xff]
        %v1314 = vld [vmem:[%s1296 + $0xc8] sm:$0xff]
        %v1315 = vld [vmem:[%s1296 + $0xd8] sm:$0xff]
        %v1316 = vld [vmem:[%s1296 + $0xe0] sm:$0xff]
        %v1317 = vld [vmem:[%s1296 + $0xf0] sm:$0xff]
        %v1318 = vld [vmem:[%s1296 + $0xf8] sm:$0xff]
        %v1319 = vld [vmem:[%s1296 + $0x108] sm:$0xff]
        %v1320 = vld [vmem:[%s1296 + $0x110] sm:$0xff]
        %v1321 = vld [vmem:[%s1296 + $0x120] sm:$0xff]
        %v1322 = vld [vmem:[%s1296 + $0x128] sm:$0xff]
        %v1323 = vld [vmem:[%s1296 + $0x138] sm:$0xff]
        %v1324 = vld [vmem:[%s1296 + $0x140] sm:$0xff]
        %v1325 = vld [vmem:[%s1296 + $0x150] sm:$0xff]
        %v1326 = vld [vmem:[%s1296 + $0x158] sm:$0xff]
        %v1327 = vld [vmem:[%s1296 + $0x168] sm:$0xff]
        %v1328 = vld [vmem:[%s1296 + $0x170] sm:$0xff]
        %s1329 = scalar_lea.vmem [#allocation5], 384
        %v1330 = vld [vmem:[%s1329] sm:$0xff]
        %v1331 = vld [vmem:[%s1329 + $0x8] sm:$0xff]
        %v1332 = vld [vmem:[%s1329 + $0x10] sm:$0xff]
        %v1333 = vld [vmem:[%s1329 + $0x18] sm:$0xff]
        %v1334 = vld [vmem:[%s1329 + $0x20] sm:$0xff]
        %v1335 = vld [vmem:[%s1329 + $0x28] sm:$0xff]
        %v1336 = vld [vmem:[%s1329 + $0x30] sm:$0xff]
        %v1337 = vld [vmem:[%s1329 + $0x38] sm:$0xff]
        %v1338 = vld [vmem:[%s1329 + $0x40] sm:$0xff]
        %v1339 = vld [vmem:[%s1329 + $0x48] sm:$0xff]
        %v1340 = vld [vmem:[%s1329 + $0x50] sm:$0xff]
        %v1341 = vld [vmem:[%s1329 + $0x58] sm:$0xff]
        %v1342 = vld [vmem:[%s1329 + $0x60] sm:$0xff]
        %v1343 = vld [vmem:[%s1329 + $0x68] sm:$0xff]
        %v1344 = vld [vmem:[%s1329 + $0x70] sm:$0xff]
        %v1345 = vld [vmem:[%s1329 + $0x78] sm:$0xff]
        %1346 = vmatprep.subr.mxu0 0.0
        %1347 = vmatpush1.msra.mxu0 %v1330
        %1348 = vmatprep.subr.mxu0 0.0
        %1349 = vmatpush1.msra.mxu0 %v1331
        %1350 = vmatprep.subr.mxu0 0.0
        %1351 = vmatpush1.msra.mxu0 %v1332
        %1352 = vmatprep.subr.mxu0 0.0
        %1353 = vmatpush1.msra.mxu0 %v1333
        %1354 = vmatprep.subr.mxu0 0.0
        %1355 = vmatpush1.msra.mxu0 %v1334
        %1356 = vmatprep.subr.mxu0 0.0
        %1357 = vmatpush1.msra.mxu0 %v1335
        %1358 = vmatprep.subr.mxu0 0.0
        %1359 = vmatpush1.msra.mxu0 %v1336
        %1360 = vmatprep.subr.mxu0 0.0
        %1361 = vmatpush1.msra.mxu0 %v1337
        %1362 = vmatprep.subr.mxu0 0.0
        %1363 = vmatpush1.msra.mxu0 %v1338
        %1364 = vmatprep.subr.mxu0 0.0
        %1365 = vmatpush1.msra.mxu0 %v1339
        %1366 = vmatprep.subr.mxu0 0.0
        %1367 = vmatpush1.msra.mxu0 %v1340
        %1368 = vmatprep.subr.mxu0 0.0
        %1369 = vmatpush1.msra.mxu0 %v1341
        %1370 = vmatprep.subr.mxu0 0.0
        %1371 = vmatpush1.msra.mxu0 %v1342
        %1372 = vmatprep.subr.mxu0 0.0
        %1373 = vmatpush1.msra.mxu0 %v1343
        %1374 = vmatprep.subr.mxu0 0.0
        %1375 = vmatpush1.msra.mxu0 %v1344
        %1376 = vmatprep.subr.mxu0 0.0
        %1377 = vmatpush1.msra.mxu0 %v1345
        %1378 = vmatprep.subr.mxu0 0.0
        %1379 = vmatpush1.msra.mxu0 0.0
        %1380 = vmatprep.subr.mxu0 0.0
        %1381 = vmatpush1.msra.mxu0 0.0
        %1382 = vmatprep.subr.mxu0 0.0
        %1383 = vmatpush1.msra.mxu0 0.0
        %1384 = vmatprep.subr.mxu0 0.0
        %1385 = vmatpush1.msra.mxu0 0.0
        %1386 = vmatprep.subr.mxu0 0.0
        %1387 = vmatpush1.msra.mxu0 0.0
        %1388 = vmatprep.subr.mxu0 0.0
        %1389 = vmatpush1.msra.mxu0 0.0
        %1390 = vmatprep.subr.mxu0 0.0
        %1391 = vmatpush1.msra.mxu0 0.0
        %1392 = vmatprep.subr.mxu0 0.0
        %1393 = vmatpush1.msra.mxu0 0.0
        %1394 = vmatprep.subr.mxu0 0.0
        %1395 = vmatpush1.msra.mxu0 0.0
        %1396 = vmatprep.subr.mxu0 0.0
        %1397 = vmatpush1.msra.mxu0 0.0
        %1398 = vmatprep.subr.mxu0 0.0
        %1399 = vmatpush1.msra.mxu0 0.0
        %1400 = vmatprep.subr.mxu0 0.0
        %1401 = vmatpush1.msra.mxu0 0.0
        %1402 = vmatprep.subr.mxu0 0.0
        %1403 = vmatpush1.msra.mxu0 0.0
        %1404 = vmatprep.subr.mxu0 0.0
        %1405 = vmatpush1.msra.mxu0 0.0
        %1406 = vmatprep.subr.mxu0 0.0
        %1407 = vmatpush1.msra.mxu0 0.0
        %1408 = vmatprep.subr.mxu0 0.0
        %1409 = vmatpush1.msra.mxu0 0.0
        %1410 = vmatprep.mubr.f32.mxu0 0.0
        %1411 = vmatmul.mubr.f32.gmra.mrb[0].mxu0 %v1297
        %v1412 = vpop.f32.mrb[0].mxu0
        %v1413 = vadd.f32 0.0, %v1412
        %v1414 = vpop.f32.mrb[0].mxu0
        %1415 = vmatprep.mubr.f32.mxu0 0.0
        %1416 = vmatmul.mubr.f32.gmra.mrb[0].mxu0 %v1298
        %v1417 = vpop.f32.mrb[0].mxu0
        %v1418 = vadd.f32 0.0, %v1417
        %v1419 = vpop.f32.mrb[0].mxu0
        %1420 = vmatprep.mubr.f32.mxu0 0.0
        %1421 = vmatmul.mubr.f32.gmra.mrb[0].mxu0 %v1299
        %v1422 = vpop.f32.mrb[0].mxu0
        %v1423 = vadd.f32 0.0, %v1422
        %v1424 = vpop.f32.mrb[0].mxu0
        %1425 = vmatprep.mubr.f32.mxu0 0.0
        %1426 = vmatmul.mubr.f32.gmra.mrb[0].mxu0 %v1300
        %v1427 = vpop.f32.mrb[0].mxu0
        %v1428 = vadd.f32 0.0, %v1427
        %v1429 = vpop.f32.mrb[0].mxu0
        %1430 = vmatprep.mubr.f32.mxu0 0.0
        %1431 = vmatmul.mubr.f32.gmra.mrb[0].mxu0 %v1301
        %v1432 = vpop.f32.mrb[0].mxu0
        %v1433 = vadd.f32 0.0, %v1432
        %v1434 = vpop.f32.mrb[0].mxu0
        %1435 = vmatprep.mubr.f32.mxu0 0.0
        %1436 = vmatmul.mubr.f32.gmra.mrb[0].mxu0 %v1302
        %v1437 = vpop.f32.mrb[0].mxu0
        %v1438 = vadd.f32 0.0, %v1437
        %v1439 = vpop.f32.mrb[0].mxu0
        %1440 = vmatprep.mubr.f32.mxu0 0.0
        %1441 = vmatmul.mubr.f32.gmra.mrb[0].mxu0 %v1303
        %v1442 = vpop.f32.mrb[0].mxu0
        %v1443 = vadd.f32 0.0, %v1442
        %v1444 = vpop.f32.mrb[0].mxu0
        %1445 = vmatprep.mubr.f32.mxu0 0.0
        %1446 = vmatmul.mubr.f32.gmra.mrb[0].mxu0 %v1304
        %v1447 = vpop.f32.mrb[0].mxu0
        %v1448 = vadd.f32 0.0, %v1447
        %v1449 = vpop.f32.mrb[0].mxu0
        %1450 = vmatprep.mubr.f32.mxu0 0.0
        %1451 = vmatmul.mubr.f32.gmra.mrb[0].mxu0 %v1305
        %v1452 = vpop.f32.mrb[0].mxu0
        %v1453 = vadd.f32 0.0, %v1452
        %v1454 = vpop.f32.mrb[0].mxu0
        %1455 = vmatprep.mubr.f32.mxu0 0.0
        %1456 = vmatmul.mubr.f32.gmra.mrb[0].mxu0 %v1306
        %v1457 = vpop.f32.mrb[0].mxu0
        %v1458 = vadd.f32 0.0, %v1457
        %v1459 = vpop.f32.mrb[0].mxu0
        %1460 = vmatprep.mubr.f32.mxu0 0.0
        %1461 = vmatmul.mubr.f32.gmra.mrb[0].mxu0 %v1307
        %v1462 = vpop.f32.mrb[0].mxu0
        %v1463 = vadd.f32 0.0, %v1462
        %v1464 = vpop.f32.mrb[0].mxu0
        %1465 = vmatprep.mubr.f32.mxu0 0.0
        %1466 = vmatmul.mubr.f32.gmra.mrb[0].mxu0 %v1308
        %v1467 = vpop.f32.mrb[0].mxu0
        %v1468 = vadd.f32 0.0, %v1467
        %v1469 = vpop.f32.mrb[0].mxu0
        %1470 = vmatprep.mubr.f32.mxu0 0.0
        %1471 = vmatmul.mubr.f32.gmra.mrb[0].mxu0 %v1309
        %v1472 = vpop.f32.mrb[0].mxu0
        %v1473 = vadd.f32 0.0, %v1472
        %v1474 = vpop.f32.mrb[0].mxu0
        %1475 = vmatprep.mubr.f32.mxu0 0.0
        %1476 = vmatmul.mubr.f32.gmra.mrb[0].mxu0 %v1310
        %v1477 = vpop.f32.mrb[0].mxu0
        %v1478 = vadd.f32 0.0, %v1477
        %v1479 = vpop.f32.mrb[0].mxu0
        %1480 = vmatprep.mubr.f32.mxu0 0.0
        %1481 = vmatmul.mubr.f32.gmra.mrb[0].mxu0 %v1311
        %v1482 = vpop.f32.mrb[0].mxu0
        %v1483 = vadd.f32 0.0, %v1482
        %v1484 = vpop.f32.mrb[0].mxu0
        %1485 = vmatprep.mubr.f32.mxu0 0.0
        %1486 = vmatmul.mubr.f32.gmra.mrb[0].mxu0 %v1312
        %v1487 = vpop.f32.mrb[0].mxu0
        %v1488 = vadd.f32 0.0, %v1487
        %v1489 = vpop.f32.mrb[0].mxu0
        %1490 = vmatprep.mubr.f32.mxu0 0.0
        %1491 = vmatmul.mubr.f32.gmra.mrb[0].mxu0 %v1313
        %v1492 = vpop.f32.mrb[0].mxu0
        %v1493 = vadd.f32 0.0, %v1492
        %v1494 = vpop.f32.mrb[0].mxu0
        %1495 = vmatprep.mubr.f32.mxu0 0.0
        %1496 = vmatmul.mubr.f32.gmra.mrb[0].mxu0 %v1314
        %v1497 = vpop.f32.mrb[0].mxu0
        %v1498 = vadd.f32 0.0, %v1497
        %v1499 = vpop.f32.mrb[0].mxu0
        %1500 = vmatprep.mubr.f32.mxu0 0.0
        %1501 = vmatmul.mubr.f32.gmra.mrb[0].mxu0 %v1315
        %v1502 = vpop.f32.mrb[0].mxu0
        %v1503 = vadd.f32 0.0, %v1502
        %v1504 = vpop.f32.mrb[0].mxu0
        %1505 = vmatprep.mubr.f32.mxu0 0.0
        %1506 = vmatmul.mubr.f32.gmra.mrb[0].mxu0 %v1316
        %v1507 = vpop.f32.mrb[0].mxu0
        %v1508 = vadd.f32 0.0, %v1507
        %v1509 = vpop.f32.mrb[0].mxu0
        %1510 = vmatprep.mubr.f32.mxu0 0.0
        %1511 = vmatmul.mubr.f32.gmra.mrb[0].mxu0 %v1317
        %v1512 = vpop.f32.mrb[0].mxu0
        %v1513 = vadd.f32 0.0, %v1512
        %v1514 = vpop.f32.mrb[0].mxu0
        %1515 = vmatprep.mubr.f32.mxu0 0.0
        %1516 = vmatmul.mubr.f32.gmra.mrb[0].mxu0 %v1318
        %v1517 = vpop.f32.mrb[0].mxu0
        %v1518 = vadd.f32 0.0, %v1517
        %v1519 = vpop.f32.mrb[0].mxu0
        %1520 = vmatprep.mubr.f32.mxu0 0.0
        %1521 = vmatmul.mubr.f32.gmra.mrb[0].mxu0 %v1319
        %v1522 = vpop.f32.mrb[0].mxu0
        %v1523 = vadd.f32 0.0, %v1522
        %v1524 = vpop.f32.mrb[0].mxu0
        %1525 = vmatprep.mubr.f32.mxu0 0.0
        %1526 = vmatmul.mubr.f32.gmra.mrb[0].mxu0 %v1320
        %v1527 = vpop.f32.mrb[0].mxu0
        %v1528 = vadd.f32 0.0, %v1527
        %v1529 = vpop.f32.mrb[0].mxu0
        %1530 = vmatprep.mubr.f32.mxu0 0.0
        %1531 = vmatmul.mubr.f32.gmra.mrb[0].mxu0 %v1321
        %v1532 = vpop.f32.mrb[0].mxu0
        %v1533 = vadd.f32 0.0, %v1532
        %v1534 = vpop.f32.mrb[0].mxu0
        %1535 = vmatprep.mubr.f32.mxu0 0.0
        %1536 = vmatmul.mubr.f32.gmra.mrb[0].mxu0 %v1322
        %v1537 = vpop.f32.mrb[0].mxu0
        %v1538 = vadd.f32 0.0, %v1537
        %v1539 = vpop.f32.mrb[0].mxu0
        %1540 = vmatprep.mubr.f32.mxu0 0.0
        %1541 = vmatmul.mubr.f32.gmra.mrb[0].mxu0 %v1323
        %v1542 = vpop.f32.mrb[0].mxu0
        %v1543 = vadd.f32 0.0, %v1542
        %v1544 = vpop.f32.mrb[0].mxu0
        %1545 = vmatprep.mubr.f32.mxu0 0.0
        %1546 = vmatmul.mubr.f32.gmra.mrb[0].mxu0 %v1324
        %v1547 = vpop.f32.mrb[0].mxu0
        %v1548 = vadd.f32 0.0, %v1547
        %v1549 = vpop.f32.mrb[0].mxu0
        %1550 = vmatprep.mubr.f32.mxu0 0.0
        %1551 = vmatmul.mubr.f32.gmra.mrb[0].mxu0 %v1325
        %v1552 = vpop.f32.mrb[0].mxu0
        %v1553 = vadd.f32 0.0, %v1552
        %v1554 = vpop.f32.mrb[0].mxu0
        %1555 = vmatprep.mubr.f32.mxu0 0.0
        %1556 = vmatmul.mubr.f32.gmra.mrb[0].mxu0 %v1326
        %v1557 = vpop.f32.mrb[0].mxu0
        %v1558 = vadd.f32 0.0, %v1557
        %v1559 = vpop.f32.mrb[0].mxu0
        %1560 = vmatprep.mubr.f32.mxu0 0.0
        %1561 = vmatmul.mubr.f32.gmra.mrb[0].mxu0 %v1327
        %v1562 = vpop.f32.mrb[0].mxu0
        %v1563 = vadd.f32 0.0, %v1562
        %v1564 = vpop.f32.mrb[0].mxu0
        %1565 = vmatprep.mubr.f32.mxu0 0.0
        %1566 = vmatmul.mubr.f32.gmra.mrb[0].mxu0 %v1328
        %v1567 = vpop.f32.mrb[0].mxu0
        %v1568 = vadd.f32 0.0, %v1567
        %v1569 = vpop.f32.mrb[0].mxu0
        %1570 = vdwg.mxu0
        %v1571 = vadd.f32 %v1264, %v1413
        %v1572 = vadd.f32 %v1265, %v1418
        %v1573 = vadd.f32 %v1266, %v1423
        %v1574 = vadd.f32 %v1267, %v1428
        %v1575 = vadd.f32 %v1268, %v1433
        %v1576 = vadd.f32 %v1269, %v1438
        %v1577 = vadd.f32 %v1270, %v1443
        %v1578 = vadd.f32 %v1271, %v1448
        %v1579 = vadd.f32 %v1272, %v1453
        %v1580 = vadd.f32 %v1273, %v1458
        %v1581 = vadd.f32 %v1274, %v1463
        %v1582 = vadd.f32 %v1275, %v1468
        %v1583 = vadd.f32 %v1276, %v1473
        %v1584 = vadd.f32 %v1277, %v1478
        %v1585 = vadd.f32 %v1278, %v1483
        %v1586 = vadd.f32 %v1279, %v1488
        %v1587 = vadd.f32 %v1280, %v1493
        %v1588 = vadd.f32 %v1281, %v1498
        %v1589 = vadd.f32 %v1282, %v1503
        %v1590 = vadd.f32 %v1283, %v1508
        %v1591 = vadd.f32 %v1284, %v1513
        %v1592 = vadd.f32 %v1285, %v1518
        %v1593 = vadd.f32 %v1286, %v1523
        %v1594 = vadd.f32 %v1287, %v1528
        %v1595 = vadd.f32 %v1288, %v1533
        %v1596 = vadd.f32 %v1289, %v1538
        %v1597 = vadd.f32 %v1290, %v1543
        %v1598 = vadd.f32 %v1291, %v1548
        %v1599 = vadd.f32 %v1292, %v1553
        %v1600 = vadd.f32 %v1293, %v1558
        %v1601 = vadd.f32 %v1294, %v1563
        %v1602 = vadd.f32 %v1295, %v1568
        %v1603 = vld [vmem:[%s1296 + $0x1] sm:$0xff]
        %v1604 = vld [vmem:[%s1296 + $0x9] sm:$0xff]
        %v1605 = vld [vmem:[%s1296 + $0x19] sm:$0xff]
        %v1606 = vld [vmem:[%s1296 + $0x21] sm:$0xff]
        %v1607 = vld [vmem:[%s1296 + $0x31] sm:$0xff]
        %v1608 = vld [vmem:[%s1296 + $0x39] sm:$0xff]
        %v1609 = vld [vmem:[%s1296 + $0x49] sm:$0xff]
        %v1610 = vld [vmem:[%s1296 + $0x51] sm:$0xff]
        %v1611 = vld [vmem:[%s1296 + $0x61] sm:$0xff]
        %v1612 = vld [vmem:[%s1296 + $0x69] sm:$0xff]
        %v1613 = vld [vmem:[%s1296 + $0x79] sm:$0xff]
        %v1614 = vld [vmem:[%s1296 + $0x81] sm:$0xff]
        %v1615 = vld [vmem:[%s1296 + $0x91] sm:$0xff]
        %v1616 = vld [vmem:[%s1296 + $0x99] sm:$0xff]
        %v1617 = vld [vmem:[%s1296 + $0xa9] sm:$0xff]
        %v1618 = vld [vmem:[%s1296 + $0xb1] sm:$0xff]
        %v1619 = vld [vmem:[%s1296 + $0xc1] sm:$0xff]
        %v1620 = vld [vmem:[%s1296 + $0xc9] sm:$0xff]
        %v1621 = vld [vmem:[%s1296 + $0xd9] sm:$0xff]
        %v1622 = vld [vmem:[%s1296 + $0xe1] sm:$0xff]
        %v1623 = vld [vmem:[%s1296 + $0xf1] sm:$0xff]
        %v1624 = vld [vmem:[%s1296 + $0xf9] sm:$0xff]
        %v1625 = vld [vmem:[%s1296 + $0x109] sm:$0xff]
        %v1626 = vld [vmem:[%s1296 + $0x111] sm:$0xff]
        %v1627 = vld [vmem:[%s1296 + $0x121] sm:$0xff]
        %v1628 = vld [vmem:[%s1296 + $0x129] sm:$0xff]
        %v1629 = vld [vmem:[%s1296 + $0x139] sm:$0xff]
        %v1630 = vld [vmem:[%s1296 + $0x141] sm:$0xff]
        %v1631 = vld [vmem:[%s1296 + $0x151] sm:$0xff]
        %v1632 = vld [vmem:[%s1296 + $0x159] sm:$0xff]
        %v1633 = vld [vmem:[%s1296 + $0x169] sm:$0xff]
        %v1634 = vld [vmem:[%s1296 + $0x171] sm:$0xff]
        %s1635 = scalar_lea.vmem [#allocation5], 512
        %v1636 = vld [vmem:[%s1635] sm:$0xff]
        %v1637 = vld [vmem:[%s1635 + $0x8] sm:$0xff]
        %v1638 = vld [vmem:[%s1635 + $0x10] sm:$0xff]
        %v1639 = vld [vmem:[%s1635 + $0x18] sm:$0xff]
        %v1640 = vld [vmem:[%s1635 + $0x20] sm:$0xff]
        %v1641 = vld [vmem:[%s1635 + $0x28] sm:$0xff]
        %v1642 = vld [vmem:[%s1635 + $0x30] sm:$0xff]
        %v1643 = vld [vmem:[%s1635 + $0x38] sm:$0xff]
        %v1644 = vld [vmem:[%s1635 + $0x40] sm:$0xff]
        %v1645 = vld [vmem:[%s1635 + $0x48] sm:$0xff]
        %v1646 = vld [vmem:[%s1635 + $0x50] sm:$0xff]
        %v1647 = vld [vmem:[%s1635 + $0x58] sm:$0xff]
        %v1648 = vld [vmem:[%s1635 + $0x60] sm:$0xff]
        %v1649 = vld [vmem:[%s1635 + $0x68] sm:$0xff]
        %v1650 = vld [vmem:[%s1635 + $0x70] sm:$0xff]
        %v1651 = vld [vmem:[%s1635 + $0x78] sm:$0xff]
        %1652 = vmatprep.subr.mxu0 0.0
        %1653 = vmatpush1.msra.mxu0 %v1636
        %1654 = vmatprep.subr.mxu0 0.0
        %1655 = vmatpush1.msra.mxu0 %v1637
        %1656 = vmatprep.subr.mxu0 0.0
        %1657 = vmatpush1.msra.mxu0 %v1638
        %1658 = vmatprep.subr.mxu0 0.0
        %1659 = vmatpush1.msra.mxu0 %v1639
        %1660 = vmatprep.subr.mxu0 0.0
        %1661 = vmatpush1.msra.mxu0 %v1640
        %1662 = vmatprep.subr.mxu0 0.0
        %1663 = vmatpush1.msra.mxu0 %v1641
        %1664 = vmatprep.subr.mxu0 0.0
        %1665 = vmatpush1.msra.mxu0 %v1642
        %1666 = vmatprep.subr.mxu0 0.0
        %1667 = vmatpush1.msra.mxu0 %v1643
        %1668 = vmatprep.subr.mxu0 0.0
        %1669 = vmatpush1.msra.mxu0 %v1644
        %1670 = vmatprep.subr.mxu0 0.0
        %1671 = vmatpush1.msra.mxu0 %v1645
        %1672 = vmatprep.subr.mxu0 0.0
        %1673 = vmatpush1.msra.mxu0 %v1646
        %1674 = vmatprep.subr.mxu0 0.0
        %1675 = vmatpush1.msra.mxu0 %v1647
        %1676 = vmatprep.subr.mxu0 0.0
        %1677 = vmatpush1.msra.mxu0 %v1648
        %1678 = vmatprep.subr.mxu0 0.0
        %1679 = vmatpush1.msra.mxu0 %v1649
        %1680 = vmatprep.subr.mxu0 0.0
        %1681 = vmatpush1.msra.mxu0 %v1650
        %1682 = vmatprep.subr.mxu0 0.0
        %1683 = vmatpush1.msra.mxu0 %v1651
        %1684 = vmatprep.subr.mxu0 0.0
        %1685 = vmatpush1.msra.mxu0 0.0
        %1686 = vmatprep.subr.mxu0 0.0
        %1687 = vmatpush1.msra.mxu0 0.0
        %1688 = vmatprep.subr.mxu0 0.0
        %1689 = vmatpush1.msra.mxu0 0.0
        %1690 = vmatprep.subr.mxu0 0.0
        %1691 = vmatpush1.msra.mxu0 0.0
        %1692 = vmatprep.subr.mxu0 0.0
        %1693 = vmatpush1.msra.mxu0 0.0
        %1694 = vmatprep.subr.mxu0 0.0
        %1695 = vmatpush1.msra.mxu0 0.0
        %1696 = vmatprep.subr.mxu0 0.0
        %1697 = vmatpush1.msra.mxu0 0.0
        %1698 = vmatprep.subr.mxu0 0.0
        %1699 = vmatpush1.msra.mxu0 0.0
        %1700 = vmatprep.subr.mxu0 0.0
        %1701 = vmatpush1.msra.mxu0 0.0
        %1702 = vmatprep.subr.mxu0 0.0
        %1703 = vmatpush1.msra.mxu0 0.0
        %1704 = vmatprep.subr.mxu0 0.0
        %1705 = vmatpush1.msra.mxu0 0.0
        %1706 = vmatprep.subr.mxu0 0.0
        %1707 = vmatpush1.msra.mxu0 0.0
        %1708 = vmatprep.subr.mxu0 0.0
        %1709 = vmatpush1.msra.mxu0 0.0
        %1710 = vmatprep.subr.mxu0 0.0
        %1711 = vmatpush1.msra.mxu0 0.0
        %1712 = vmatprep.subr.mxu0 0.0
        %1713 = vmatpush1.msra.mxu0 0.0
        %1714 = vmatprep.subr.mxu0 0.0
        %1715 = vmatpush1.msra.mxu0 0.0
        %1716 = vmatprep.mubr.f32.mxu0 0.0
        %1717 = vmatmul.mubr.f32.gmra.mrb[0].mxu0 %v1603
        %v1718 = vpop.f32.mrb[0].mxu0
        %v1719 = vadd.f32 0.0, %v1718
        %v1720 = vpop.f32.mrb[0].mxu0
        %1721 = vmatprep.mubr.f32.mxu0 0.0
        %1722 = vmatmul.mubr.f32.gmra.mrb[0].mxu0 %v1604
        %v1723 = vpop.f32.mrb[0].mxu0
        %v1724 = vadd.f32 0.0, %v1723
        %v1725 = vpop.f32.mrb[0].mxu0
        %1726 = vmatprep.mubr.f32.mxu0 0.0
        %1727 = vmatmul.mubr.f32.gmra.mrb[0].mxu0 %v1605
        %v1728 = vpop.f32.mrb[0].mxu0
        %v1729 = vadd.f32 0.0, %v1728
        %v1730 = vpop.f32.mrb[0].mxu0
        %1731 = vmatprep.mubr.f32.mxu0 0.0
        %1732 = vmatmul.mubr.f32.gmra.mrb[0].mxu0 %v1606
        %v1733 = vpop.f32.mrb[0].mxu0
        %v1734 = vadd.f32 0.0, %v1733
        %v1735 = vpop.f32.mrb[0].mxu0
        %1736 = vmatprep.mubr.f32.mxu0 0.0
        %1737 = vmatmul.mubr.f32.gmra.mrb[0].mxu0 %v1607
        %v1738 = vpop.f32.mrb[0].mxu0
        %v1739 = vadd.f32 0.0, %v1738
        %v1740 = vpop.f32.mrb[0].mxu0
        %1741 = vmatprep.mubr.f32.mxu0 0.0
        %1742 = vmatmul.mubr.f32.gmra.mrb[0].mxu0 %v1608
        %v1743 = vpop.f32.mrb[0].mxu0
        %v1744 = vadd.f32 0.0, %v1743
        %v1745 = vpop.f32.mrb[0].mxu0
        %1746 = vmatprep.mubr.f32.mxu0 0.0
        %1747 = vmatmul.mubr.f32.gmra.mrb[0].mxu0 %v1609
        %v1748 = vpop.f32.mrb[0].mxu0
        %v1749 = vadd.f32 0.0, %v1748
        %v1750 = vpop.f32.mrb[0].mxu0
        %1751 = vmatprep.mubr.f32.mxu0 0.0
        %1752 = vmatmul.mubr.f32.gmra.mrb[0].mxu0 %v1610
        %v1753 = vpop.f32.mrb[0].mxu0
        %v1754 = vadd.f32 0.0, %v1753
        %v1755 = vpop.f32.mrb[0].mxu0
        %1756 = vmatprep.mubr.f32.mxu0 0.0
        %1757 = vmatmul.mubr.f32.gmra.mrb[0].mxu0 %v1611
        %v1758 = vpop.f32.mrb[0].mxu0
        %v1759 = vadd.f32 0.0, %v1758
        %v1760 = vpop.f32.mrb[0].mxu0
        %1761 = vmatprep.mubr.f32.mxu0 0.0
        %1762 = vmatmul.mubr.f32.gmra.mrb[0].mxu0 %v1612
        %v1763 = vpop.f32.mrb[0].mxu0
        %v1764 = vadd.f32 0.0, %v1763
        %v1765 = vpop.f32.mrb[0].mxu0
        %1766 = vmatprep.mubr.f32.mxu0 0.0
        %1767 = vmatmul.mubr.f32.gmra.mrb[0].mxu0 %v1613
        %v1768 = vpop.f32.mrb[0].mxu0
        %v1769 = vadd.f32 0.0, %v1768
        %v1770 = vpop.f32.mrb[0].mxu0
        %1771 = vmatprep.mubr.f32.mxu0 0.0
        %1772 = vmatmul.mubr.f32.gmra.mrb[0].mxu0 %v1614
        %v1773 = vpop.f32.mrb[0].mxu0
        %v1774 = vadd.f32 0.0, %v1773
        %v1775 = vpop.f32.mrb[0].mxu0
        %1776 = vmatprep.mubr.f32.mxu0 0.0
        %1777 = vmatmul.mubr.f32.gmra.mrb[0].mxu0 %v1615
        %v1778 = vpop.f32.mrb[0].mxu0
        %v1779 = vadd.f32 0.0, %v1778
        %v1780 = vpop.f32.mrb[0].mxu0
        %1781 = vmatprep.mubr.f32.mxu0 0.0
        %1782 = vmatmul.mubr.f32.gmra.mrb[0].mxu0 %v1616
        %v1783 = vpop.f32.mrb[0].mxu0
        %v1784 = vadd.f32 0.0, %v1783
        %v1785 = vpop.f32.mrb[0].mxu0
        %1786 = vmatprep.mubr.f32.mxu0 0.0
        %1787 = vmatmul.mubr.f32.gmra.mrb[0].mxu0 %v1617
        %v1788 = vpop.f32.mrb[0].mxu0
        %v1789 = vadd.f32 0.0, %v1788
        %v1790 = vpop.f32.mrb[0].mxu0
        %1791 = vmatprep.mubr.f32.mxu0 0.0
        %1792 = vmatmul.mubr.f32.gmra.mrb[0].mxu0 %v1618
        %v1793 = vpop.f32.mrb[0].mxu0
        %v1794 = vadd.f32 0.0, %v1793
        %v1795 = vpop.f32.mrb[0].mxu0
        %1796 = vmatprep.mubr.f32.mxu0 0.0
        %1797 = vmatmul.mubr.f32.gmra.mrb[0].mxu0 %v1619
        %v1798 = vpop.f32.mrb[0].mxu0
        %v1799 = vadd.f32 0.0, %v1798
        %v1800 = vpop.f32.mrb[0].mxu0
        %1801 = vmatprep.mubr.f32.mxu0 0.0
        %1802 = vmatmul.mubr.f32.gmra.mrb[0].mxu0 %v1620
        %v1803 = vpop.f32.mrb[0].mxu0
        %v1804 = vadd.f32 0.0, %v1803
        %v1805 = vpop.f32.mrb[0].mxu0
        %1806 = vmatprep.mubr.f32.mxu0 0.0
        %1807 = vmatmul.mubr.f32.gmra.mrb[0].mxu0 %v1621
        %v1808 = vpop.f32.mrb[0].mxu0
        %v1809 = vadd.f32 0.0, %v1808
        %v1810 = vpop.f32.mrb[0].mxu0
        %1811 = vmatprep.mubr.f32.mxu0 0.0
        %1812 = vmatmul.mubr.f32.gmra.mrb[0].mxu0 %v1622
        %v1813 = vpop.f32.mrb[0].mxu0
        %v1814 = vadd.f32 0.0, %v1813
        %v1815 = vpop.f32.mrb[0].mxu0
        %1816 = vmatprep.mubr.f32.mxu0 0.0
        %1817 = vmatmul.mubr.f32.gmra.mrb[0].mxu0 %v1623
        %v1818 = vpop.f32.mrb[0].mxu0
        %v1819 = vadd.f32 0.0, %v1818
        %v1820 = vpop.f32.mrb[0].mxu0
        %1821 = vmatprep.mubr.f32.mxu0 0.0
        %1822 = vmatmul.mubr.f32.gmra.mrb[0].mxu0 %v1624
        %v1823 = vpop.f32.mrb[0].mxu0
        %v1824 = vadd.f32 0.0, %v1823
        %v1825 = vpop.f32.mrb[0].mxu0
        %1826 = vmatprep.mubr.f32.mxu0 0.0
        %1827 = vmatmul.mubr.f32.gmra.mrb[0].mxu0 %v1625
        %v1828 = vpop.f32.mrb[0].mxu0
        %v1829 = vadd.f32 0.0, %v1828
        %v1830 = vpop.f32.mrb[0].mxu0
        %1831 = vmatprep.mubr.f32.mxu0 0.0
        %1832 = vmatmul.mubr.f32.gmra.mrb[0].mxu0 %v1626
        %v1833 = vpop.f32.mrb[0].mxu0
        %v1834 = vadd.f32 0.0, %v1833
        %v1835 = vpop.f32.mrb[0].mxu0
        %1836 = vmatprep.mubr.f32.mxu0 0.0
        %1837 = vmatmul.mubr.f32.gmra.mrb[0].mxu0 %v1627
        %v1838 = vpop.f32.mrb[0].mxu0
        %v1839 = vadd.f32 0.0, %v1838
        %v1840 = vpop.f32.mrb[0].mxu0
        %1841 = vmatprep.mubr.f32.mxu0 0.0
        %1842 = vmatmul.mubr.f32.gmra.mrb[0].mxu0 %v1628
        %v1843 = vpop.f32.mrb[0].mxu0
        %v1844 = vadd.f32 0.0, %v1843
        %v1845 = vpop.f32.mrb[0].mxu0
        %1846 = vmatprep.mubr.f32.mxu0 0.0
        %1847 = vmatmul.mubr.f32.gmra.mrb[0].mxu0 %v1629
        %v1848 = vpop.f32.mrb[0].mxu0
        %v1849 = vadd.f32 0.0, %v1848
        %v1850 = vpop.f32.mrb[0].mxu0
        %1851 = vmatprep.mubr.f32.mxu0 0.0
        %1852 = vmatmul.mubr.f32.gmra.mrb[0].mxu0 %v1630
        %v1853 = vpop.f32.mrb[0].mxu0
        %v1854 = vadd.f32 0.0, %v1853
        %v1855 = vpop.f32.mrb[0].mxu0
        %1856 = vmatprep.mubr.f32.mxu0 0.0
        %1857 = vmatmul.mubr.f32.gmra.mrb[0].mxu0 %v1631
        %v1858 = vpop.f32.mrb[0].mxu0
        %v1859 = vadd.f32 0.0, %v1858
        %v1860 = vpop.f32.mrb[0].mxu0
        %1861 = vmatprep.mubr.f32.mxu0 0.0
        %1862 = vmatmul.mubr.f32.gmra.mrb[0].mxu0 %v1632
        %v1863 = vpop.f32.mrb[0].mxu0
        %v1864 = vadd.f32 0.0, %v1863
        %v1865 = vpop.f32.mrb[0].mxu0
        %1866 = vmatprep.mubr.f32.mxu0 0.0
        %1867 = vmatmul.mubr.f32.gmra.mrb[0].mxu0 %v1633
        %v1868 = vpop.f32.mrb[0].mxu0
        %v1869 = vadd.f32 0.0, %v1868
        %v1870 = vpop.f32.mrb[0].mxu0
        %1871 = vmatprep.mubr.f32.mxu0 0.0
        %1872 = vmatmul.mubr.f32.gmra.mrb[0].mxu0 %v1634
        %v1873 = vpop.f32.mrb[0].mxu0
        %v1874 = vadd.f32 0.0, %v1873
        %v1875 = vpop.f32.mrb[0].mxu0
        %1876 = vdwg.mxu0
        %v1877 = vadd.f32 %v1571, %v1719
        %v1878 = vadd.f32 %v1572, %v1724
        %v1879 = vadd.f32 %v1573, %v1729
        %v1880 = vadd.f32 %v1574, %v1734
        %v1881 = vadd.f32 %v1575, %v1739
        %v1882 = vadd.f32 %v1576, %v1744
        %v1883 = vadd.f32 %v1577, %v1749
        %v1884 = vadd.f32 %v1578, %v1754
        %v1885 = vadd.f32 %v1579, %v1759
        %v1886 = vadd.f32 %v1580, %v1764
        %v1887 = vadd.f32 %v1581, %v1769
        %v1888 = vadd.f32 %v1582, %v1774
        %v1889 = vadd.f32 %v1583, %v1779
        %v1890 = vadd.f32 %v1584, %v1784
        %v1891 = vadd.f32 %v1585, %v1789
        %v1892 = vadd.f32 %v1586, %v1794
        %v1893 = vadd.f32 %v1587, %v1799
        %v1894 = vadd.f32 %v1588, %v1804
        %v1895 = vadd.f32 %v1589, %v1809
        %v1896 = vadd.f32 %v1590, %v1814
        %v1897 = vadd.f32 %v1591, %v1819
        %v1898 = vadd.f32 %v1592, %v1824
        %v1899 = vadd.f32 %v1593, %v1829
        %v1900 = vadd.f32 %v1594, %v1834
        %v1901 = vadd.f32 %v1595, %v1839
        %v1902 = vadd.f32 %v1596, %v1844
        %v1903 = vadd.f32 %v1597, %v1849
        %v1904 = vadd.f32 %v1598, %v1854
        %v1905 = vadd.f32 %v1599, %v1859
        %v1906 = vadd.f32 %v1600, %v1864
        %v1907 = vadd.f32 %v1601, %v1869
        %v1908 = vadd.f32 %v1602, %v1874
        %v1909 = vld [vmem:[%s1296 + $0x2] sm:$0xff]
        %v1910 = vld [vmem:[%s1296 + $0xa] sm:$0xff]
        %v1911 = vld [vmem:[%s1296 + $0x1a] sm:$0xff]
        %v1912 = vld [vmem:[%s1296 + $0x22] sm:$0xff]
        %v1913 = vld [vmem:[%s1296 + $0x32] sm:$0xff]
        %v1914 = vld [vmem:[%s1296 + $0x3a] sm:$0xff]
        %v1915 = vld [vmem:[%s1296 + $0x4a] sm:$0xff]
        %v1916 = vld [vmem:[%s1296 + $0x52] sm:$0xff]
        %v1917 = vld [vmem:[%s1296 + $0x62] sm:$0xff]
        %v1918 = vld [vmem:[%s1296 + $0x6a] sm:$0xff]
        %v1919 = vld [vmem:[%s1296 + $0x7a] sm:$0xff]
        %v1920 = vld [vmem:[%s1296 + $0x82] sm:$0xff]
        %v1921 = vld [vmem:[%s1296 + $0x92] sm:$0xff]
        %v1922 = vld [vmem:[%s1296 + $0x9a] sm:$0xff]
        %v1923 = vld [vmem:[%s1296 + $0xaa] sm:$0xff]
        %v1924 = vld [vmem:[%s1296 + $0xb2] sm:$0xff]
        %v1925 = vld [vmem:[%s1296 + $0xc2] sm:$0xff]
        %v1926 = vld [vmem:[%s1296 + $0xca] sm:$0xff]
        %v1927 = vld [vmem:[%s1296 + $0xda] sm:$0xff]
        %v1928 = vld [vmem:[%s1296 + $0xe2] sm:$0xff]
        %v1929 = vld [vmem:[%s1296 + $0xf2] sm:$0xff]
        %v1930 = vld [vmem:[%s1296 + $0xfa] sm:$0xff]
        %v1931 = vld [vmem:[%s1296 + $0x10a] sm:$0xff]
        %v1932 = vld [vmem:[%s1296 + $0x112] sm:$0xff]
        %v1933 = vld [vmem:[%s1296 + $0x122] sm:$0xff]
        %v1934 = vld [vmem:[%s1296 + $0x12a] sm:$0xff]
        %v1935 = vld [vmem:[%s1296 + $0x13a] sm:$0xff]
        %v1936 = vld [vmem:[%s1296 + $0x142] sm:$0xff]
        %v1937 = vld [vmem:[%s1296 + $0x152] sm:$0xff]
        %v1938 = vld [vmem:[%s1296 + $0x15a] sm:$0xff]
        %v1939 = vld [vmem:[%s1296 + $0x16a] sm:$0xff]
        %v1940 = vld [vmem:[%s1296 + $0x172] sm:$0xff]
        %s1941 = scalar_lea.vmem [#allocation5], 640
        %v1942 = vld [vmem:[%s1941] sm:$0xff]
        %v1943 = vld [vmem:[%s1941 + $0x8] sm:$0xff]
        %v1944 = vld [vmem:[%s1941 + $0x10] sm:$0xff]
        %v1945 = vld [vmem:[%s1941 + $0x18] sm:$0xff]
        %v1946 = vld [vmem:[%s1941 + $0x20] sm:$0xff]
        %v1947 = vld [vmem:[%s1941 + $0x28] sm:$0xff]
        %v1948 = vld [vmem:[%s1941 + $0x30] sm:$0xff]
        %v1949 = vld [vmem:[%s1941 + $0x38] sm:$0xff]
        %v1950 = vld [vmem:[%s1941 + $0x40] sm:$0xff]
        %v1951 = vld [vmem:[%s1941 + $0x48] sm:$0xff]
        %v1952 = vld [vmem:[%s1941 + $0x50] sm:$0xff]
        %v1953 = vld [vmem:[%s1941 + $0x58] sm:$0xff]
        %v1954 = vld [vmem:[%s1941 + $0x60] sm:$0xff]
        %v1955 = vld [vmem:[%s1941 + $0x68] sm:$0xff]
        %v1956 = vld [vmem:[%s1941 + $0x70] sm:$0xff]
        %v1957 = vld [vmem:[%s1941 + $0x78] sm:$0xff]
        %1958 = vmatprep.subr.mxu0 0.0
        %1959 = vmatpush1.msra.mxu0 %v1942
        %1960 = vmatprep.subr.mxu0 0.0
        %1961 = vmatpush1.msra.mxu0 %v1943
        %1962 = vmatprep.subr.mxu0 0.0
        %1963 = vmatpush1.msra.mxu0 %v1944
        %1964 = vmatprep.subr.mxu0 0.0
        %1965 = vmatpush1.msra.mxu0 %v1945
        %1966 = vmatprep.subr.mxu0 0.0
        %1967 = vmatpush1.msra.mxu0 %v1946
        %1968 = vmatprep.subr.mxu0 0.0
        %1969 = vmatpush1.msra.mxu0 %v1947
        %1970 = vmatprep.subr.mxu0 0.0
        %1971 = vmatpush1.msra.mxu0 %v1948
        %1972 = vmatprep.subr.mxu0 0.0
        %1973 = vmatpush1.msra.mxu0 %v1949
        %1974 = vmatprep.subr.mxu0 0.0
        %1975 = vmatpush1.msra.mxu0 %v1950
        %1976 = vmatprep.subr.mxu0 0.0
        %1977 = vmatpush1.msra.mxu0 %v1951
        %1978 = vmatprep.subr.mxu0 0.0
        %1979 = vmatpush1.msra.mxu0 %v1952
        %1980 = vmatprep.subr.mxu0 0.0
        %1981 = vmatpush1.msra.mxu0 %v1953
        %1982 = vmatprep.subr.mxu0 0.0
        %1983 = vmatpush1.msra.mxu0 %v1954
        %1984 = vmatprep.subr.mxu0 0.0
        %1985 = vmatpush1.msra.mxu0 %v1955
        %1986 = vmatprep.subr.mxu0 0.0
        %1987 = vmatpush1.msra.mxu0 %v1956
        %1988 = vmatprep.subr.mxu0 0.0
        %1989 = vmatpush1.msra.mxu0 %v1957
        %1990 = vmatprep.subr.mxu0 0.0
        %1991 = vmatpush1.msra.mxu0 0.0
        %1992 = vmatprep.subr.mxu0 0.0
        %1993 = vmatpush1.msra.mxu0 0.0
        %1994 = vmatprep.subr.mxu0 0.0
        %1995 = vmatpush1.msra.mxu0 0.0
        %1996 = vmatprep.subr.mxu0 0.0
        %1997 = vmatpush1.msra.mxu0 0.0
        %1998 = vmatprep.subr.mxu0 0.0
        %1999 = vmatpush1.msra.mxu0 0.0
        %2000 = vmatprep.subr.mxu0 0.0
        %2001 = vmatpush1.msra.mxu0 0.0
        %2002 = vmatprep.subr.mxu0 0.0
        %2003 = vmatpush1.msra.mxu0 0.0
        %2004 = vmatprep.subr.mxu0 0.0
        %2005 = vmatpush1.msra.mxu0 0.0
        %2006 = vmatprep.subr.mxu0 0.0
        %2007 = vmatpush1.msra.mxu0 0.0
        %2008 = vmatprep.subr.mxu0 0.0
        %2009 = vmatpush1.msra.mxu0 0.0
        %2010 = vmatprep.subr.mxu0 0.0
        %2011 = vmatpush1.msra.mxu0 0.0
        %2012 = vmatprep.subr.mxu0 0.0
        %2013 = vmatpush1.msra.mxu0 0.0
        %2014 = vmatprep.subr.mxu0 0.0
        %2015 = vmatpush1.msra.mxu0 0.0
        %2016 = vmatprep.subr.mxu0 0.0
        %2017 = vmatpush1.msra.mxu0 0.0
        %2018 = vmatprep.subr.mxu0 0.0
        %2019 = vmatpush1.msra.mxu0 0.0
        %2020 = vmatprep.subr.mxu0 0.0
        %2021 = vmatpush1.msra.mxu0 0.0
        %2022 = vmatprep.mubr.f32.mxu0 0.0
        %2023 = vmatmul.mubr.f32.gmra.mrb[0].mxu0 %v1909
        %v2024 = vpop.f32.mrb[0].mxu0
        %v2025 = vadd.f32 0.0, %v2024
        %v2026 = vpop.f32.mrb[0].mxu0
        %2027 = vmatprep.mubr.f32.mxu0 0.0
        %2028 = vmatmul.mubr.f32.gmra.mrb[0].mxu0 %v1910
        %v2029 = vpop.f32.mrb[0].mxu0
        %v2030 = vadd.f32 0.0, %v2029
        %v2031 = vpop.f32.mrb[0].mxu0
        %2032 = vmatprep.mubr.f32.mxu0 0.0
        %2033 = vmatmul.mubr.f32.gmra.mrb[0].mxu0 %v1911
        %v2034 = vpop.f32.mrb[0].mxu0
        %v2035 = vadd.f32 0.0, %v2034
        %v2036 = vpop.f32.mrb[0].mxu0
        %2037 = vmatprep.mubr.f32.mxu0 0.0
        %2038 = vmatmul.mubr.f32.gmra.mrb[0].mxu0 %v1912
        %v2039 = vpop.f32.mrb[0].mxu0
        %v2040 = vadd.f32 0.0, %v2039
        %v2041 = vpop.f32.mrb[0].mxu0
        %2042 = vmatprep.mubr.f32.mxu0 0.0
        %2043 = vmatmul.mubr.f32.gmra.mrb[0].mxu0 %v1913
        %v2044 = vpop.f32.mrb[0].mxu0
        %v2045 = vadd.f32 0.0, %v2044
        %v2046 = vpop.f32.mrb[0].mxu0
        %2047 = vmatprep.mubr.f32.mxu0 0.0
        %2048 = vmatmul.mubr.f32.gmra.mrb[0].mxu0 %v1914
        %v2049 = vpop.f32.mrb[0].mxu0
        %v2050 = vadd.f32 0.0, %v2049
        %v2051 = vpop.f32.mrb[0].mxu0
        %2052 = vmatprep.mubr.f32.mxu0 0.0
        %2053 = vmatmul.mubr.f32.gmra.mrb[0].mxu0 %v1915
        %v2054 = vpop.f32.mrb[0].mxu0
        %v2055 = vadd.f32 0.0, %v2054
        %v2056 = vpop.f32.mrb[0].mxu0
        %2057 = vmatprep.mubr.f32.mxu0 0.0
        %2058 = vmatmul.mubr.f32.gmra.mrb[0].mxu0 %v1916
        %v2059 = vpop.f32.mrb[0].mxu0
        %v2060 = vadd.f32 0.0, %v2059
        %v2061 = vpop.f32.mrb[0].mxu0
        %2062 = vmatprep.mubr.f32.mxu0 0.0
        %2063 = vmatmul.mubr.f32.gmra.mrb[0].mxu0 %v1917
        %v2064 = vpop.f32.mrb[0].mxu0
        %v2065 = vadd.f32 0.0, %v2064
        %v2066 = vpop.f32.mrb[0].mxu0
        %2067 = vmatprep.mubr.f32.mxu0 0.0
        %2068 = vmatmul.mubr.f32.gmra.mrb[0].mxu0 %v1918
        %v2069 = vpop.f32.mrb[0].mxu0
        %v2070 = vadd.f32 0.0, %v2069
        %v2071 = vpop.f32.mrb[0].mxu0
        %2072 = vmatprep.mubr.f32.mxu0 0.0
        %2073 = vmatmul.mubr.f32.gmra.mrb[0].mxu0 %v1919
        %v2074 = vpop.f32.mrb[0].mxu0
        %v2075 = vadd.f32 0.0, %v2074
        %v2076 = vpop.f32.mrb[0].mxu0
        %2077 = vmatprep.mubr.f32.mxu0 0.0
        %2078 = vmatmul.mubr.f32.gmra.mrb[0].mxu0 %v1920
        %v2079 = vpop.f32.mrb[0].mxu0
        %v2080 = vadd.f32 0.0, %v2079
        %v2081 = vpop.f32.mrb[0].mxu0
        %2082 = vmatprep.mubr.f32.mxu0 0.0
        %2083 = vmatmul.mubr.f32.gmra.mrb[0].mxu0 %v1921
        %v2084 = vpop.f32.mrb[0].mxu0
        %v2085 = vadd.f32 0.0, %v2084
        %v2086 = vpop.f32.mrb[0].mxu0
        %2087 = vmatprep.mubr.f32.mxu0 0.0
        %2088 = vmatmul.mubr.f32.gmra.mrb[0].mxu0 %v1922
        %v2089 = vpop.f32.mrb[0].mxu0
        %v2090 = vadd.f32 0.0, %v2089
        %v2091 = vpop.f32.mrb[0].mxu0
        %2092 = vmatprep.mubr.f32.mxu0 0.0
        %2093 = vmatmul.mubr.f32.gmra.mrb[0].mxu0 %v1923
        %v2094 = vpop.f32.mrb[0].mxu0
        %v2095 = vadd.f32 0.0, %v2094
        %v2096 = vpop.f32.mrb[0].mxu0
        %2097 = vmatprep.mubr.f32.mxu0 0.0
        %2098 = vmatmul.mubr.f32.gmra.mrb[0].mxu0 %v1924
        %v2099 = vpop.f32.mrb[0].mxu0
        %v2100 = vadd.f32 0.0, %v2099
        %v2101 = vpop.f32.mrb[0].mxu0
        %2102 = vmatprep.mubr.f32.mxu0 0.0
        %2103 = vmatmul.mubr.f32.gmra.mrb[0].mxu0 %v1925
        %v2104 = vpop.f32.mrb[0].mxu0
        %v2105 = vadd.f32 0.0, %v2104
        %v2106 = vpop.f32.mrb[0].mxu0
        %2107 = vmatprep.mubr.f32.mxu0 0.0
        %2108 = vmatmul.mubr.f32.gmra.mrb[0].mxu0 %v1926
        %v2109 = vpop.f32.mrb[0].mxu0
        %v2110 = vadd.f32 0.0, %v2109
        %v2111 = vpop.f32.mrb[0].mxu0
        %2112 = vmatprep.mubr.f32.mxu0 0.0
        %2113 = vmatmul.mubr.f32.gmra.mrb[0].mxu0 %v1927
        %v2114 = vpop.f32.mrb[0].mxu0
        %v2115 = vadd.f32 0.0, %v2114
        %v2116 = vpop.f32.mrb[0].mxu0
        %2117 = vmatprep.mubr.f32.mxu0 0.0
        %2118 = vmatmul.mubr.f32.gmra.mrb[0].mxu0 %v1928
        %v2119 = vpop.f32.mrb[0].mxu0
        %v2120 = vadd.f32 0.0, %v2119
        %v2121 = vpop.f32.mrb[0].mxu0
        %2122 = vmatprep.mubr.f32.mxu0 0.0
        %2123 = vmatmul.mubr.f32.gmra.mrb[0].mxu0 %v1929
        %v2124 = vpop.f32.mrb[0].mxu0
        %v2125 = vadd.f32 0.0, %v2124
        %v2126 = vpop.f32.mrb[0].mxu0
        %2127 = vmatprep.mubr.f32.mxu0 0.0
        %2128 = vmatmul.mubr.f32.gmra.mrb[0].mxu0 %v1930
        %v2129 = vpop.f32.mrb[0].mxu0
        %v2130 = vadd.f32 0.0, %v2129
        %v2131 = vpop.f32.mrb[0].mxu0
        %2132 = vmatprep.mubr.f32.mxu0 0.0
        %2133 = vmatmul.mubr.f32.gmra.mrb[0].mxu0 %v1931
        %v2134 = vpop.f32.mrb[0].mxu0
        %v2135 = vadd.f32 0.0, %v2134
        %v2136 = vpop.f32.mrb[0].mxu0
        %2137 = vmatprep.mubr.f32.mxu0 0.0
        %2138 = vmatmul.mubr.f32.gmra.mrb[0].mxu0 %v1932
        %v2139 = vpop.f32.mrb[0].mxu0
        %v2140 = vadd.f32 0.0, %v2139
        %v2141 = vpop.f32.mrb[0].mxu0
        %2142 = vmatprep.mubr.f32.mxu0 0.0
        %2143 = vmatmul.mubr.f32.gmra.mrb[0].mxu0 %v1933
        %v2144 = vpop.f32.mrb[0].mxu0
        %v2145 = vadd.f32 0.0, %v2144
        %v2146 = vpop.f32.mrb[0].mxu0
        %2147 = vmatprep.mubr.f32.mxu0 0.0
        %2148 = vmatmul.mubr.f32.gmra.mrb[0].mxu0 %v1934
        %v2149 = vpop.f32.mrb[0].mxu0
        %v2150 = vadd.f32 0.0, %v2149
        %v2151 = vpop.f32.mrb[0].mxu0
        %2152 = vmatprep.mubr.f32.mxu0 0.0
        %2153 = vmatmul.mubr.f32.gmra.mrb[0].mxu0 %v1935
        %v2154 = vpop.f32.mrb[0].mxu0
        %v2155 = vadd.f32 0.0, %v2154
        %v2156 = vpop.f32.mrb[0].mxu0
        %2157 = vmatprep.mubr.f32.mxu0 0.0
        %2158 = vmatmul.mubr.f32.gmra.mrb[0].mxu0 %v1936
        %v2159 = vpop.f32.mrb[0].mxu0
        %v2160 = vadd.f32 0.0, %v2159
        %v2161 = vpop.f32.mrb[0].mxu0
        %2162 = vmatprep.mubr.f32.mxu0 0.0
        %2163 = vmatmul.mubr.f32.gmra.mrb[0].mxu0 %v1937
        %v2164 = vpop.f32.mrb[0].mxu0
        %v2165 = vadd.f32 0.0, %v2164
        %v2166 = vpop.f32.mrb[0].mxu0
        %2167 = vmatprep.mubr.f32.mxu0 0.0
        %2168 = vmatmul.mubr.f32.gmra.mrb[0].mxu0 %v1938
        %v2169 = vpop.f32.mrb[0].mxu0
        %v2170 = vadd.f32 0.0, %v2169
        %v2171 = vpop.f32.mrb[0].mxu0
        %2172 = vmatprep.mubr.f32.mxu0 0.0
        %2173 = vmatmul.mubr.f32.gmra.mrb[0].mxu0 %v1939
        %v2174 = vpop.f32.mrb[0].mxu0
        %v2175 = vadd.f32 0.0, %v2174
        %v2176 = vpop.f32.mrb[0].mxu0
        %2177 = vmatprep.mubr.f32.mxu0 0.0
        %2178 = vmatmul.mubr.f32.gmra.mrb[0].mxu0 %v1940
        %v2179 = vpop.f32.mrb[0].mxu0
        %v2180 = vadd.f32 0.0, %v2179
        %v2181 = vpop.f32.mrb[0].mxu0
        %2182 = vdwg.mxu0
        %v2183 = vadd.f32 %v1877, %v2025
        %v2184 = vadd.f32 %v1878, %v2030
        %v2185 = vadd.f32 %v1879, %v2035
        %v2186 = vadd.f32 %v1880, %v2040
        %v2187 = vadd.f32 %v1881, %v2045
        %v2188 = vadd.f32 %v1882, %v2050
        %v2189 = vadd.f32 %v1883, %v2055
        %v2190 = vadd.f32 %v1884, %v2060
        %v2191 = vadd.f32 %v1885, %v2065
        %v2192 = vadd.f32 %v1886, %v2070
        %v2193 = vadd.f32 %v1887, %v2075
        %v2194 = vadd.f32 %v1888, %v2080
        %v2195 = vadd.f32 %v1889, %v2085
        %v2196 = vadd.f32 %v1890, %v2090
        %v2197 = vadd.f32 %v1891, %v2095
        %v2198 = vadd.f32 %v1892, %v2100
        %v2199 = vadd.f32 %v1893, %v2105
        %v2200 = vadd.f32 %v1894, %v2110
        %v2201 = vadd.f32 %v1895, %v2115
        %v2202 = vadd.f32 %v1896, %v2120
        %v2203 = vadd.f32 %v1897, %v2125
        %v2204 = vadd.f32 %v1898, %v2130
        %v2205 = vadd.f32 %v1899, %v2135
        %v2206 = vadd.f32 %v1900, %v2140
        %v2207 = vadd.f32 %v1901, %v2145
        %v2208 = vadd.f32 %v1902, %v2150
        %v2209 = vadd.f32 %v1903, %v2155
        %v2210 = vadd.f32 %v1904, %v2160
        %v2211 = vadd.f32 %v1905, %v2165
        %v2212 = vadd.f32 %v1906, %v2170
        %v2213 = vadd.f32 %v1907, %v2175
        %v2214 = vadd.f32 %v1908, %v2180
        %s2215 = scalar_lea.vmem %s372, 48 [#allocation2]
        %v2216 = vld [vmem:[%s2215] sm:$0xff]
        %v2217 = vld [vmem:[%s2215 + $0x8] sm:$0xff]
        %v2218 = vld [vmem:[%s2215 + $0x18] sm:$0xff]
        %v2219 = vld [vmem:[%s2215 + $0x20] sm:$0xff]
        %v2220 = vld [vmem:[%s2215 + $0x30] sm:$0xff]
        %v2221 = vld [vmem:[%s2215 + $0x38] sm:$0xff]
        %v2222 = vld [vmem:[%s2215 + $0x48] sm:$0xff]
        %v2223 = vld [vmem:[%s2215 + $0x50] sm:$0xff]
        %v2224 = vld [vmem:[%s2215 + $0x60] sm:$0xff]
        %v2225 = vld [vmem:[%s2215 + $0x68] sm:$0xff]
        %v2226 = vld [vmem:[%s2215 + $0x78] sm:$0xff]
        %v2227 = vld [vmem:[%s2215 + $0x80] sm:$0xff]
        %v2228 = vld [vmem:[%s2215 + $0x90] sm:$0xff]
        %v2229 = vld [vmem:[%s2215 + $0x98] sm:$0xff]
        %v2230 = vld [vmem:[%s2215 + $0xa8] sm:$0xff]
        %v2231 = vld [vmem:[%s2215 + $0xb0] sm:$0xff]
        %v2232 = vld [vmem:[%s2215 + $0xc0] sm:$0xff]
        %v2233 = vld [vmem:[%s2215 + $0xc8] sm:$0xff]
        %v2234 = vld [vmem:[%s2215 + $0xd8] sm:$0xff]
        %v2235 = vld [vmem:[%s2215 + $0xe0] sm:$0xff]
        %v2236 = vld [vmem:[%s2215 + $0xf0] sm:$0xff]
        %v2237 = vld [vmem:[%s2215 + $0xf8] sm:$0xff]
        %v2238 = vld [vmem:[%s2215 + $0x108] sm:$0xff]
        %v2239 = vld [vmem:[%s2215 + $0x110] sm:$0xff]
        %v2240 = vld [vmem:[%s2215 + $0x120] sm:$0xff]
        %v2241 = vld [vmem:[%s2215 + $0x128] sm:$0xff]
        %v2242 = vld [vmem:[%s2215 + $0x138] sm:$0xff]
        %v2243 = vld [vmem:[%s2215 + $0x140] sm:$0xff]
        %v2244 = vld [vmem:[%s2215 + $0x150] sm:$0xff]
        %v2245 = vld [vmem:[%s2215 + $0x158] sm:$0xff]
        %v2246 = vld [vmem:[%s2215 + $0x168] sm:$0xff]
        %v2247 = vld [vmem:[%s2215 + $0x170] sm:$0xff]
        %s2248 = scalar_lea.vmem [#allocation5], 768
        %v2249 = vld [vmem:[%s2248] sm:$0xff]
        %v2250 = vld [vmem:[%s2248 + $0x8] sm:$0xff]
        %v2251 = vld [vmem:[%s2248 + $0x10] sm:$0xff]
        %v2252 = vld [vmem:[%s2248 + $0x18] sm:$0xff]
        %v2253 = vld [vmem:[%s2248 + $0x20] sm:$0xff]
        %v2254 = vld [vmem:[%s2248 + $0x28] sm:$0xff]
        %v2255 = vld [vmem:[%s2248 + $0x30] sm:$0xff]
        %v2256 = vld [vmem:[%s2248 + $0x38] sm:$0xff]
        %v2257 = vld [vmem:[%s2248 + $0x40] sm:$0xff]
        %v2258 = vld [vmem:[%s2248 + $0x48] sm:$0xff]
        %v2259 = vld [vmem:[%s2248 + $0x50] sm:$0xff]
        %v2260 = vld [vmem:[%s2248 + $0x58] sm:$0xff]
        %v2261 = vld [vmem:[%s2248 + $0x60] sm:$0xff]
        %v2262 = vld [vmem:[%s2248 + $0x68] sm:$0xff]
        %v2263 = vld [vmem:[%s2248 + $0x70] sm:$0xff]
        %v2264 = vld [vmem:[%s2248 + $0x78] sm:$0xff]
        %2265 = vmatprep.subr.mxu0 0.0
        %2266 = vmatpush1.msra.mxu0 %v2249
        %2267 = vmatprep.subr.mxu0 0.0
        %2268 = vmatpush1.msra.mxu0 %v2250
        %2269 = vmatprep.subr.mxu0 0.0
        %2270 = vmatpush1.msra.mxu0 %v2251
        %2271 = vmatprep.subr.mxu0 0.0
        %2272 = vmatpush1.msra.mxu0 %v2252
        %2273 = vmatprep.subr.mxu0 0.0
        %2274 = vmatpush1.msra.mxu0 %v2253
        %2275 = vmatprep.subr.mxu0 0.0
        %2276 = vmatpush1.msra.mxu0 %v2254
        %2277 = vmatprep.subr.mxu0 0.0
        %2278 = vmatpush1.msra.mxu0 %v2255
        %2279 = vmatprep.subr.mxu0 0.0
        %2280 = vmatpush1.msra.mxu0 %v2256
        %2281 = vmatprep.subr.mxu0 0.0
        %2282 = vmatpush1.msra.mxu0 %v2257
        %2283 = vmatprep.subr.mxu0 0.0
        %2284 = vmatpush1.msra.mxu0 %v2258
        %2285 = vmatprep.subr.mxu0 0.0
        %2286 = vmatpush1.msra.mxu0 %v2259
        %2287 = vmatprep.subr.mxu0 0.0
        %2288 = vmatpush1.msra.mxu0 %v2260
        %2289 = vmatprep.subr.mxu0 0.0
        %2290 = vmatpush1.msra.mxu0 %v2261
        %2291 = vmatprep.subr.mxu0 0.0
        %2292 = vmatpush1.msra.mxu0 %v2262
        %2293 = vmatprep.subr.mxu0 0.0
        %2294 = vmatpush1.msra.mxu0 %v2263
        %2295 = vmatprep.subr.mxu0 0.0
        %2296 = vmatpush1.msra.mxu0 %v2264
        %2297 = vmatprep.subr.mxu0 0.0
        %2298 = vmatpush1.msra.mxu0 0.0
        %2299 = vmatprep.subr.mxu0 0.0
        %2300 = vmatpush1.msra.mxu0 0.0
        %2301 = vmatprep.subr.mxu0 0.0
        %2302 = vmatpush1.msra.mxu0 0.0
        %2303 = vmatprep.subr.mxu0 0.0
        %2304 = vmatpush1.msra.mxu0 0.0
        %2305 = vmatprep.subr.mxu0 0.0
        %2306 = vmatpush1.msra.mxu0 0.0
        %2307 = vmatprep.subr.mxu0 0.0
        %2308 = vmatpush1.msra.mxu0 0.0
        %2309 = vmatprep.subr.mxu0 0.0
        %2310 = vmatpush1.msra.mxu0 0.0
        %2311 = vmatprep.subr.mxu0 0.0
        %2312 = vmatpush1.msra.mxu0 0.0
        %2313 = vmatprep.subr.mxu0 0.0
        %2314 = vmatpush1.msra.mxu0 0.0
        %2315 = vmatprep.subr.mxu0 0.0
        %2316 = vmatpush1.msra.mxu0 0.0
        %2317 = vmatprep.subr.mxu0 0.0
        %2318 = vmatpush1.msra.mxu0 0.0
        %2319 = vmatprep.subr.mxu0 0.0
        %2320 = vmatpush1.msra.mxu0 0.0
        %2321 = vmatprep.subr.mxu0 0.0
        %2322 = vmatpush1.msra.mxu0 0.0
        %2323 = vmatprep.subr.mxu0 0.0
        %2324 = vmatpush1.msra.mxu0 0.0
        %2325 = vmatprep.subr.mxu0 0.0
        %2326 = vmatpush1.msra.mxu0 0.0
        %2327 = vmatprep.subr.mxu0 0.0
        %2328 = vmatpush1.msra.mxu0 0.0
        %2329 = vmatprep.mubr.f32.mxu0 0.0
        %2330 = vmatmul.mubr.f32.gmra.mrb[0].mxu0 %v2216
        %v2331 = vpop.f32.mrb[0].mxu0
        %v2332 = vadd.f32 0.0, %v2331
        %v2333 = vpop.f32.mrb[0].mxu0
        %2334 = vmatprep.mubr.f32.mxu0 0.0
        %2335 = vmatmul.mubr.f32.gmra.mrb[0].mxu0 %v2217
        %v2336 = vpop.f32.mrb[0].mxu0
        %v2337 = vadd.f32 0.0, %v2336
        %v2338 = vpop.f32.mrb[0].mxu0
        %2339 = vmatprep.mubr.f32.mxu0 0.0
        %2340 = vmatmul.mubr.f32.gmra.mrb[0].mxu0 %v2218
        %v2341 = vpop.f32.mrb[0].mxu0
        %v2342 = vadd.f32 0.0, %v2341
        %v2343 = vpop.f32.mrb[0].mxu0
        %2344 = vmatprep.mubr.f32.mxu0 0.0
        %2345 = vmatmul.mubr.f32.gmra.mrb[0].mxu0 %v2219
        %v2346 = vpop.f32.mrb[0].mxu0
        %v2347 = vadd.f32 0.0, %v2346
        %v2348 = vpop.f32.mrb[0].mxu0
        %2349 = vmatprep.mubr.f32.mxu0 0.0
        %2350 = vmatmul.mubr.f32.gmra.mrb[0].mxu0 %v2220
        %v2351 = vpop.f32.mrb[0].mxu0
        %v2352 = vadd.f32 0.0, %v2351
        %v2353 = vpop.f32.mrb[0].mxu0
        %2354 = vmatprep.mubr.f32.mxu0 0.0
        %2355 = vmatmul.mubr.f32.gmra.mrb[0].mxu0 %v2221
        %v2356 = vpop.f32.mrb[0].mxu0
        %v2357 = vadd.f32 0.0, %v2356
        %v2358 = vpop.f32.mrb[0].mxu0
        %2359 = vmatprep.mubr.f32.mxu0 0.0
        %2360 = vmatmul.mubr.f32.gmra.mrb[0].mxu0 %v2222
        %v2361 = vpop.f32.mrb[0].mxu0
        %v2362 = vadd.f32 0.0, %v2361
        %v2363 = vpop.f32.mrb[0].mxu0
        %2364 = vmatprep.mubr.f32.mxu0 0.0
        %2365 = vmatmul.mubr.f32.gmra.mrb[0].mxu0 %v2223
        %v2366 = vpop.f32.mrb[0].mxu0
        %v2367 = vadd.f32 0.0, %v2366
        %v2368 = vpop.f32.mrb[0].mxu0
        %2369 = vmatprep.mubr.f32.mxu0 0.0
        %2370 = vmatmul.mubr.f32.gmra.mrb[0].mxu0 %v2224
        %v2371 = vpop.f32.mrb[0].mxu0
        %v2372 = vadd.f32 0.0, %v2371
        %v2373 = vpop.f32.mrb[0].mxu0
        %2374 = vmatprep.mubr.f32.mxu0 0.0
        %2375 = vmatmul.mubr.f32.gmra.mrb[0].mxu0 %v2225
        %v2376 = vpop.f32.mrb[0].mxu0
        %v2377 = vadd.f32 0.0, %v2376
        %v2378 = vpop.f32.mrb[0].mxu0
        %2379 = vmatprep.mubr.f32.mxu0 0.0
        %2380 = vmatmul.mubr.f32.gmra.mrb[0].mxu0 %v2226
        %v2381 = vpop.f32.mrb[0].mxu0
        %v2382 = vadd.f32 0.0, %v2381
        %v2383 = vpop.f32.mrb[0].mxu0
        %2384 = vmatprep.mubr.f32.mxu0 0.0
        %2385 = vmatmul.mubr.f32.gmra.mrb[0].mxu0 %v2227
        %v2386 = vpop.f32.mrb[0].mxu0
        %v2387 = vadd.f32 0.0, %v2386
        %v2388 = vpop.f32.mrb[0].mxu0
        %2389 = vmatprep.mubr.f32.mxu0 0.0
        %2390 = vmatmul.mubr.f32.gmra.mrb[0].mxu0 %v2228
        %v2391 = vpop.f32.mrb[0].mxu0
        %v2392 = vadd.f32 0.0, %v2391
        %v2393 = vpop.f32.mrb[0].mxu0
        %2394 = vmatprep.mubr.f32.mxu0 0.0
        %2395 = vmatmul.mubr.f32.gmra.mrb[0].mxu0 %v2229
        %v2396 = vpop.f32.mrb[0].mxu0
        %v2397 = vadd.f32 0.0, %v2396
        %v2398 = vpop.f32.mrb[0].mxu0
        %2399 = vmatprep.mubr.f32.mxu0 0.0
        %2400 = vmatmul.mubr.f32.gmra.mrb[0].mxu0 %v2230
        %v2401 = vpop.f32.mrb[0].mxu0
        %v2402 = vadd.f32 0.0, %v2401
        %v2403 = vpop.f32.mrb[0].mxu0
        %2404 = vmatprep.mubr.f32.mxu0 0.0
        %2405 = vmatmul.mubr.f32.gmra.mrb[0].mxu0 %v2231
        %v2406 = vpop.f32.mrb[0].mxu0
        %v2407 = vadd.f32 0.0, %v2406
        %v2408 = vpop.f32.mrb[0].mxu0
        %2409 = vmatprep.mubr.f32.mxu0 0.0
        %2410 = vmatmul.mubr.f32.gmra.mrb[0].mxu0 %v2232
        %v2411 = vpop.f32.mrb[0].mxu0
        %v2412 = vadd.f32 0.0, %v2411
        %v2413 = vpop.f32.mrb[0].mxu0
        %2414 = vmatprep.mubr.f32.mxu0 0.0
        %2415 = vmatmul.mubr.f32.gmra.mrb[0].mxu0 %v2233
        %v2416 = vpop.f32.mrb[0].mxu0
        %v2417 = vadd.f32 0.0, %v2416
        %v2418 = vpop.f32.mrb[0].mxu0
        %2419 = vmatprep.mubr.f32.mxu0 0.0
        %2420 = vmatmul.mubr.f32.gmra.mrb[0].mxu0 %v2234
        %v2421 = vpop.f32.mrb[0].mxu0
        %v2422 = vadd.f32 0.0, %v2421
        %v2423 = vpop.f32.mrb[0].mxu0
        %2424 = vmatprep.mubr.f32.mxu0 0.0
        %2425 = vmatmul.mubr.f32.gmra.mrb[0].mxu0 %v2235
        %v2426 = vpop.f32.mrb[0].mxu0
        %v2427 = vadd.f32 0.0, %v2426
        %v2428 = vpop.f32.mrb[0].mxu0
        %2429 = vmatprep.mubr.f32.mxu0 0.0
        %2430 = vmatmul.mubr.f32.gmra.mrb[0].mxu0 %v2236
        %v2431 = vpop.f32.mrb[0].mxu0
        %v2432 = vadd.f32 0.0, %v2431
        %v2433 = vpop.f32.mrb[0].mxu0
        %2434 = vmatprep.mubr.f32.mxu0 0.0
        %2435 = vmatmul.mubr.f32.gmra.mrb[0].mxu0 %v2237
        %v2436 = vpop.f32.mrb[0].mxu0
        %v2437 = vadd.f32 0.0, %v2436
        %v2438 = vpop.f32.mrb[0].mxu0
        %2439 = vmatprep.mubr.f32.mxu0 0.0
        %2440 = vmatmul.mubr.f32.gmra.mrb[0].mxu0 %v2238
        %v2441 = vpop.f32.mrb[0].mxu0
        %v2442 = vadd.f32 0.0, %v2441
        %v2443 = vpop.f32.mrb[0].mxu0
        %2444 = vmatprep.mubr.f32.mxu0 0.0
        %2445 = vmatmul.mubr.f32.gmra.mrb[0].mxu0 %v2239
        %v2446 = vpop.f32.mrb[0].mxu0
        %v2447 = vadd.f32 0.0, %v2446
        %v2448 = vpop.f32.mrb[0].mxu0
        %2449 = vmatprep.mubr.f32.mxu0 0.0
        %2450 = vmatmul.mubr.f32.gmra.mrb[0].mxu0 %v2240
        %v2451 = vpop.f32.mrb[0].mxu0
        %v2452 = vadd.f32 0.0, %v2451
        %v2453 = vpop.f32.mrb[0].mxu0
        %2454 = vmatprep.mubr.f32.mxu0 0.0
        %2455 = vmatmul.mubr.f32.gmra.mrb[0].mxu0 %v2241
        %v2456 = vpop.f32.mrb[0].mxu0
        %v2457 = vadd.f32 0.0, %v2456
        %v2458 = vpop.f32.mrb[0].mxu0
        %2459 = vmatprep.mubr.f32.mxu0 0.0
        %2460 = vmatmul.mubr.f32.gmra.mrb[0].mxu0 %v2242
        %v2461 = vpop.f32.mrb[0].mxu0
        %v2462 = vadd.f32 0.0, %v2461
        %v2463 = vpop.f32.mrb[0].mxu0
        %2464 = vmatprep.mubr.f32.mxu0 0.0
        %2465 = vmatmul.mubr.f32.gmra.mrb[0].mxu0 %v2243
        %v2466 = vpop.f32.mrb[0].mxu0
        %v2467 = vadd.f32 0.0, %v2466
        %v2468 = vpop.f32.mrb[0].mxu0
        %2469 = vmatprep.mubr.f32.mxu0 0.0
        %2470 = vmatmul.mubr.f32.gmra.mrb[0].mxu0 %v2244
        %v2471 = vpop.f32.mrb[0].mxu0
        %v2472 = vadd.f32 0.0, %v2471
        %v2473 = vpop.f32.mrb[0].mxu0
        %2474 = vmatprep.mubr.f32.mxu0 0.0
        %2475 = vmatmul.mubr.f32.gmra.mrb[0].mxu0 %v2245
        %v2476 = vpop.f32.mrb[0].mxu0
        %v2477 = vadd.f32 0.0, %v2476
        %v2478 = vpop.f32.mrb[0].mxu0
        %2479 = vmatprep.mubr.f32.mxu0 0.0
        %2480 = vmatmul.mubr.f32.gmra.mrb[0].mxu0 %v2246
        %v2481 = vpop.f32.mrb[0].mxu0
        %v2482 = vadd.f32 0.0, %v2481
        %v2483 = vpop.f32.mrb[0].mxu0
        %2484 = vmatprep.mubr.f32.mxu0 0.0
        %2485 = vmatmul.mubr.f32.gmra.mrb[0].mxu0 %v2247
        %v2486 = vpop.f32.mrb[0].mxu0
        %v2487 = vadd.f32 0.0, %v2486
        %v2488 = vpop.f32.mrb[0].mxu0
        %2489 = vdwg.mxu0
        %v2490 = vadd.f32 %v2183, %v2332
        %v2491 = vadd.f32 %v2184, %v2337
        %v2492 = vadd.f32 %v2185, %v2342
        %v2493 = vadd.f32 %v2186, %v2347
        %v2494 = vadd.f32 %v2187, %v2352
        %v2495 = vadd.f32 %v2188, %v2357
        %v2496 = vadd.f32 %v2189, %v2362
        %v2497 = vadd.f32 %v2190, %v2367
        %v2498 = vadd.f32 %v2191, %v2372
        %v2499 = vadd.f32 %v2192, %v2377
        %v2500 = vadd.f32 %v2193, %v2382
        %v2501 = vadd.f32 %v2194, %v2387
        %v2502 = vadd.f32 %v2195, %v2392
        %v2503 = vadd.f32 %v2196, %v2397
        %v2504 = vadd.f32 %v2197, %v2402
        %v2505 = vadd.f32 %v2198, %v2407
        %v2506 = vadd.f32 %v2199, %v2412
        %v2507 = vadd.f32 %v2200, %v2417
        %v2508 = vadd.f32 %v2201, %v2422
        %v2509 = vadd.f32 %v2202, %v2427
        %v2510 = vadd.f32 %v2203, %v2432
        %v2511 = vadd.f32 %v2204, %v2437
        %v2512 = vadd.f32 %v2205, %v2442
        %v2513 = vadd.f32 %v2206, %v2447
        %v2514 = vadd.f32 %v2207, %v2452
        %v2515 = vadd.f32 %v2208, %v2457
        %v2516 = vadd.f32 %v2209, %v2462
        %v2517 = vadd.f32 %v2210, %v2467
        %v2518 = vadd.f32 %v2211, %v2472
        %v2519 = vadd.f32 %v2212, %v2477
        %v2520 = vadd.f32 %v2213, %v2482
        %v2521 = vadd.f32 %v2214, %v2487
        %v2522 = vld [vmem:[%s2215 + $0x1] sm:$0xff]
        %v2523 = vld [vmem:[%s2215 + $0x9] sm:$0xff]
        %v2524 = vld [vmem:[%s2215 + $0x19] sm:$0xff]
        %v2525 = vld [vmem:[%s2215 + $0x21] sm:$0xff]
        %v2526 = vld [vmem:[%s2215 + $0x31] sm:$0xff]
        %v2527 = vld [vmem:[%s2215 + $0x39] sm:$0xff]
        %v2528 = vld [vmem:[%s2215 + $0x49] sm:$0xff]
        %v2529 = vld [vmem:[%s2215 + $0x51] sm:$0xff]
        %v2530 = vld [vmem:[%s2215 + $0x61] sm:$0xff]
        %v2531 = vld [vmem:[%s2215 + $0x69] sm:$0xff]
        %v2532 = vld [vmem:[%s2215 + $0x79] sm:$0xff]
        %v2533 = vld [vmem:[%s2215 + $0x81] sm:$0xff]
        %v2534 = vld [vmem:[%s2215 + $0x91] sm:$0xff]
        %v2535 = vld [vmem:[%s2215 + $0x99] sm:$0xff]
        %v2536 = vld [vmem:[%s2215 + $0xa9] sm:$0xff]
        %v2537 = vld [vmem:[%s2215 + $0xb1] sm:$0xff]
        %v2538 = vld [vmem:[%s2215 + $0xc1] sm:$0xff]
        %v2539 = vld [vmem:[%s2215 + $0xc9] sm:$0xff]
        %v2540 = vld [vmem:[%s2215 + $0xd9] sm:$0xff]
        %v2541 = vld [vmem:[%s2215 + $0xe1] sm:$0xff]
        %v2542 = vld [vmem:[%s2215 + $0xf1] sm:$0xff]
        %v2543 = vld [vmem:[%s2215 + $0xf9] sm:$0xff]
        %v2544 = vld [vmem:[%s2215 + $0x109] sm:$0xff]
        %v2545 = vld [vmem:[%s2215 + $0x111] sm:$0xff]
        %v2546 = vld [vmem:[%s2215 + $0x121] sm:$0xff]
        %v2547 = vld [vmem:[%s2215 + $0x129] sm:$0xff]
        %v2548 = vld [vmem:[%s2215 + $0x139] sm:$0xff]
        %v2549 = vld [vmem:[%s2215 + $0x141] sm:$0xff]
        %v2550 = vld [vmem:[%s2215 + $0x151] sm:$0xff]
        %v2551 = vld [vmem:[%s2215 + $0x159] sm:$0xff]
        %v2552 = vld [vmem:[%s2215 + $0x169] sm:$0xff]
        %v2553 = vld [vmem:[%s2215 + $0x171] sm:$0xff]
        %s2554 = scalar_lea.vmem [#allocation5], 896
        %v2555 = vld [vmem:[%s2554] sm:$0xff]
        %v2556 = vld [vmem:[%s2554 + $0x8] sm:$0xff]
        %v2557 = vld [vmem:[%s2554 + $0x10] sm:$0xff]
        %v2558 = vld [vmem:[%s2554 + $0x18] sm:$0xff]
        %v2559 = vld [vmem:[%s2554 + $0x20] sm:$0xff]
        %v2560 = vld [vmem:[%s2554 + $0x28] sm:$0xff]
        %v2561 = vld [vmem:[%s2554 + $0x30] sm:$0xff]
        %v2562 = vld [vmem:[%s2554 + $0x38] sm:$0xff]
        %v2563 = vld [vmem:[%s2554 + $0x40] sm:$0xff]
        %v2564 = vld [vmem:[%s2554 + $0x48] sm:$0xff]
        %v2565 = vld [vmem:[%s2554 + $0x50] sm:$0xff]
        %v2566 = vld [vmem:[%s2554 + $0x58] sm:$0xff]
        %v2567 = vld [vmem:[%s2554 + $0x60] sm:$0xff]
        %v2568 = vld [vmem:[%s2554 + $0x68] sm:$0xff]
        %v2569 = vld [vmem:[%s2554 + $0x70] sm:$0xff]
        %v2570 = vld [vmem:[%s2554 + $0x78] sm:$0xff]
        %2571 = vmatprep.subr.mxu0 0.0
        %2572 = vmatpush1.msra.mxu0 %v2555
        %2573 = vmatprep.subr.mxu0 0.0
        %2574 = vmatpush1.msra.mxu0 %v2556
        %2575 = vmatprep.subr.mxu0 0.0
        %2576 = vmatpush1.msra.mxu0 %v2557
        %2577 = vmatprep.subr.mxu0 0.0
        %2578 = vmatpush1.msra.mxu0 %v2558
        %2579 = vmatprep.subr.mxu0 0.0
        %2580 = vmatpush1.msra.mxu0 %v2559
        %2581 = vmatprep.subr.mxu0 0.0
        %2582 = vmatpush1.msra.mxu0 %v2560
        %2583 = vmatprep.subr.mxu0 0.0
        %2584 = vmatpush1.msra.mxu0 %v2561
        %2585 = vmatprep.subr.mxu0 0.0
        %2586 = vmatpush1.msra.mxu0 %v2562
        %2587 = vmatprep.subr.mxu0 0.0
        %2588 = vmatpush1.msra.mxu0 %v2563
        %2589 = vmatprep.subr.mxu0 0.0
        %2590 = vmatpush1.msra.mxu0 %v2564
        %2591 = vmatprep.subr.mxu0 0.0
        %2592 = vmatpush1.msra.mxu0 %v2565
        %2593 = vmatprep.subr.mxu0 0.0
        %2594 = vmatpush1.msra.mxu0 %v2566
        %2595 = vmatprep.subr.mxu0 0.0
        %2596 = vmatpush1.msra.mxu0 %v2567
        %2597 = vmatprep.subr.mxu0 0.0
        %2598 = vmatpush1.msra.mxu0 %v2568
        %2599 = vmatprep.subr.mxu0 0.0
        %2600 = vmatpush1.msra.mxu0 %v2569
        %2601 = vmatprep.subr.mxu0 0.0
        %2602 = vmatpush1.msra.mxu0 %v2570
        %2603 = vmatprep.subr.mxu0 0.0
        %2604 = vmatpush1.msra.mxu0 0.0
        %2605 = vmatprep.subr.mxu0 0.0
        %2606 = vmatpush1.msra.mxu0 0.0
        %2607 = vmatprep.subr.mxu0 0.0
        %2608 = vmatpush1.msra.mxu0 0.0
        %2609 = vmatprep.subr.mxu0 0.0
        %2610 = vmatpush1.msra.mxu0 0.0
        %2611 = vmatprep.subr.mxu0 0.0
        %2612 = vmatpush1.msra.mxu0 0.0
        %2613 = vmatprep.subr.mxu0 0.0
        %2614 = vmatpush1.msra.mxu0 0.0
        %2615 = vmatprep.subr.mxu0 0.0
        %2616 = vmatpush1.msra.mxu0 0.0
        %2617 = vmatprep.subr.mxu0 0.0
        %2618 = vmatpush1.msra.mxu0 0.0
        %2619 = vmatprep.subr.mxu0 0.0
        %2620 = vmatpush1.msra.mxu0 0.0
        %2621 = vmatprep.subr.mxu0 0.0
        %2622 = vmatpush1.msra.mxu0 0.0
        %2623 = vmatprep.subr.mxu0 0.0
        %2624 = vmatpush1.msra.mxu0 0.0
        %2625 = vmatprep.subr.mxu0 0.0
        %2626 = vmatpush1.msra.mxu0 0.0
        %2627 = vmatprep.subr.mxu0 0.0
        %2628 = vmatpush1.msra.mxu0 0.0
        %2629 = vmatprep.subr.mxu0 0.0
        %2630 = vmatpush1.msra.mxu0 0.0
        %2631 = vmatprep.subr.mxu0 0.0
        %2632 = vmatpush1.msra.mxu0 0.0
        %2633 = vmatprep.subr.mxu0 0.0
        %2634 = vmatpush1.msra.mxu0 0.0
        %2635 = vmatprep.mubr.f32.mxu0 0.0
        %2636 = vmatmul.mubr.f32.gmra.mrb[0].mxu0 %v2522
        %v2637 = vpop.f32.mrb[0].mxu0
        %v2638 = vadd.f32 0.0, %v2637
        %v2639 = vpop.f32.mrb[0].mxu0
        %2640 = vmatprep.mubr.f32.mxu0 0.0
        %2641 = vmatmul.mubr.f32.gmra.mrb[0].mxu0 %v2523
        %v2642 = vpop.f32.mrb[0].mxu0
        %v2643 = vadd.f32 0.0, %v2642
        %v2644 = vpop.f32.mrb[0].mxu0
        %2645 = vmatprep.mubr.f32.mxu0 0.0
        %2646 = vmatmul.mubr.f32.gmra.mrb[0].mxu0 %v2524
        %v2647 = vpop.f32.mrb[0].mxu0
        %v2648 = vadd.f32 0.0, %v2647
        %v2649 = vpop.f32.mrb[0].mxu0
        %2650 = vmatprep.mubr.f32.mxu0 0.0
        %2651 = vmatmul.mubr.f32.gmra.mrb[0].mxu0 %v2525
        %v2652 = vpop.f32.mrb[0].mxu0
        %v2653 = vadd.f32 0.0, %v2652
        %v2654 = vpop.f32.mrb[0].mxu0
        %2655 = vmatprep.mubr.f32.mxu0 0.0
        %2656 = vmatmul.mubr.f32.gmra.mrb[0].mxu0 %v2526
        %v2657 = vpop.f32.mrb[0].mxu0
        %v2658 = vadd.f32 0.0, %v2657
        %v2659 = vpop.f32.mrb[0].mxu0
        %2660 = vmatprep.mubr.f32.mxu0 0.0
        %2661 = vmatmul.mubr.f32.gmra.mrb[0].mxu0 %v2527
        %v2662 = vpop.f32.mrb[0].mxu0
        %v2663 = vadd.f32 0.0, %v2662
        %v2664 = vpop.f32.mrb[0].mxu0
        %2665 = vmatprep.mubr.f32.mxu0 0.0
        %2666 = vmatmul.mubr.f32.gmra.mrb[0].mxu0 %v2528
        %v2667 = vpop.f32.mrb[0].mxu0
        %v2668 = vadd.f32 0.0, %v2667
        %v2669 = vpop.f32.mrb[0].mxu0
        %2670 = vmatprep.mubr.f32.mxu0 0.0
        %2671 = vmatmul.mubr.f32.gmra.mrb[0].mxu0 %v2529
        %v2672 = vpop.f32.mrb[0].mxu0
        %v2673 = vadd.f32 0.0, %v2672
        %v2674 = vpop.f32.mrb[0].mxu0
        %2675 = vmatprep.mubr.f32.mxu0 0.0
        %2676 = vmatmul.mubr.f32.gmra.mrb[0].mxu0 %v2530
        %v2677 = vpop.f32.mrb[0].mxu0
        %v2678 = vadd.f32 0.0, %v2677
        %v2679 = vpop.f32.mrb[0].mxu0
        %2680 = vmatprep.mubr.f32.mxu0 0.0
        %2681 = vmatmul.mubr.f32.gmra.mrb[0].mxu0 %v2531
        %v2682 = vpop.f32.mrb[0].mxu0
        %v2683 = vadd.f32 0.0, %v2682
        %v2684 = vpop.f32.mrb[0].mxu0
        %2685 = vmatprep.mubr.f32.mxu0 0.0
        %2686 = vmatmul.mubr.f32.gmra.mrb[0].mxu0 %v2532
        %v2687 = vpop.f32.mrb[0].mxu0
        %v2688 = vadd.f32 0.0, %v2687
        %v2689 = vpop.f32.mrb[0].mxu0
        %2690 = vmatprep.mubr.f32.mxu0 0.0
        %2691 = vmatmul.mubr.f32.gmra.mrb[0].mxu0 %v2533
        %v2692 = vpop.f32.mrb[0].mxu0
        %v2693 = vadd.f32 0.0, %v2692
        %v2694 = vpop.f32.mrb[0].mxu0
        %2695 = vmatprep.mubr.f32.mxu0 0.0
        %2696 = vmatmul.mubr.f32.gmra.mrb[0].mxu0 %v2534
        %v2697 = vpop.f32.mrb[0].mxu0
        %v2698 = vadd.f32 0.0, %v2697
        %v2699 = vpop.f32.mrb[0].mxu0
        %2700 = vmatprep.mubr.f32.mxu0 0.0
        %2701 = vmatmul.mubr.f32.gmra.mrb[0].mxu0 %v2535
        %v2702 = vpop.f32.mrb[0].mxu0
        %v2703 = vadd.f32 0.0, %v2702
        %v2704 = vpop.f32.mrb[0].mxu0
        %2705 = vmatprep.mubr.f32.mxu0 0.0
        %2706 = vmatmul.mubr.f32.gmra.mrb[0].mxu0 %v2536
        %v2707 = vpop.f32.mrb[0].mxu0
        %v2708 = vadd.f32 0.0, %v2707
        %v2709 = vpop.f32.mrb[0].mxu0
        %2710 = vmatprep.mubr.f32.mxu0 0.0
        %2711 = vmatmul.mubr.f32.gmra.mrb[0].mxu0 %v2537
        %v2712 = vpop.f32.mrb[0].mxu0
        %v2713 = vadd.f32 0.0, %v2712
        %v2714 = vpop.f32.mrb[0].mxu0
        %2715 = vmatprep.mubr.f32.mxu0 0.0
        %2716 = vmatmul.mubr.f32.gmra.mrb[0].mxu0 %v2538
        %v2717 = vpop.f32.mrb[0].mxu0
        %v2718 = vadd.f32 0.0, %v2717
        %v2719 = vpop.f32.mrb[0].mxu0
        %2720 = vmatprep.mubr.f32.mxu0 0.0
        %2721 = vmatmul.mubr.f32.gmra.mrb[0].mxu0 %v2539
        %v2722 = vpop.f32.mrb[0].mxu0
        %v2723 = vadd.f32 0.0, %v2722
        %v2724 = vpop.f32.mrb[0].mxu0
        %2725 = vmatprep.mubr.f32.mxu0 0.0
        %2726 = vmatmul.mubr.f32.gmra.mrb[0].mxu0 %v2540
        %v2727 = vpop.f32.mrb[0].mxu0
        %v2728 = vadd.f32 0.0, %v2727
        %v2729 = vpop.f32.mrb[0].mxu0
        %2730 = vmatprep.mubr.f32.mxu0 0.0
        %2731 = vmatmul.mubr.f32.gmra.mrb[0].mxu0 %v2541
        %v2732 = vpop.f32.mrb[0].mxu0
        %v2733 = vadd.f32 0.0, %v2732
        %v2734 = vpop.f32.mrb[0].mxu0
        %2735 = vmatprep.mubr.f32.mxu0 0.0
        %2736 = vmatmul.mubr.f32.gmra.mrb[0].mxu0 %v2542
        %v2737 = vpop.f32.mrb[0].mxu0
        %v2738 = vadd.f32 0.0, %v2737
        %v2739 = vpop.f32.mrb[0].mxu0
        %2740 = vmatprep.mubr.f32.mxu0 0.0
        %2741 = vmatmul.mubr.f32.gmra.mrb[0].mxu0 %v2543
        %v2742 = vpop.f32.mrb[0].mxu0
        %v2743 = vadd.f32 0.0, %v2742
        %v2744 = vpop.f32.mrb[0].mxu0
        %2745 = vmatprep.mubr.f32.mxu0 0.0
        %2746 = vmatmul.mubr.f32.gmra.mrb[0].mxu0 %v2544
        %v2747 = vpop.f32.mrb[0].mxu0
        %v2748 = vadd.f32 0.0, %v2747
        %v2749 = vpop.f32.mrb[0].mxu0
        %2750 = vmatprep.mubr.f32.mxu0 0.0
        %2751 = vmatmul.mubr.f32.gmra.mrb[0].mxu0 %v2545
        %v2752 = vpop.f32.mrb[0].mxu0
        %v2753 = vadd.f32 0.0, %v2752
        %v2754 = vpop.f32.mrb[0].mxu0
        %2755 = vmatprep.mubr.f32.mxu0 0.0
        %2756 = vmatmul.mubr.f32.gmra.mrb[0].mxu0 %v2546
        %v2757 = vpop.f32.mrb[0].mxu0
        %v2758 = vadd.f32 0.0, %v2757
        %v2759 = vpop.f32.mrb[0].mxu0
        %2760 = vmatprep.mubr.f32.mxu0 0.0
        %2761 = vmatmul.mubr.f32.gmra.mrb[0].mxu0 %v2547
        %v2762 = vpop.f32.mrb[0].mxu0
        %v2763 = vadd.f32 0.0, %v2762
        %v2764 = vpop.f32.mrb[0].mxu0
        %2765 = vmatprep.mubr.f32.mxu0 0.0
        %2766 = vmatmul.mubr.f32.gmra.mrb[0].mxu0 %v2548
        %v2767 = vpop.f32.mrb[0].mxu0
        %v2768 = vadd.f32 0.0, %v2767
        %v2769 = vpop.f32.mrb[0].mxu0
        %2770 = vmatprep.mubr.f32.mxu0 0.0
        %2771 = vmatmul.mubr.f32.gmra.mrb[0].mxu0 %v2549
        %v2772 = vpop.f32.mrb[0].mxu0
        %v2773 = vadd.f32 0.0, %v2772
        %v2774 = vpop.f32.mrb[0].mxu0
        %2775 = vmatprep.mubr.f32.mxu0 0.0
        %2776 = vmatmul.mubr.f32.gmra.mrb[0].mxu0 %v2550
        %v2777 = vpop.f32.mrb[0].mxu0
        %v2778 = vadd.f32 0.0, %v2777
        %v2779 = vpop.f32.mrb[0].mxu0
        %2780 = vmatprep.mubr.f32.mxu0 0.0
        %2781 = vmatmul.mubr.f32.gmra.mrb[0].mxu0 %v2551
        %v2782 = vpop.f32.mrb[0].mxu0
        %v2783 = vadd.f32 0.0, %v2782
        %v2784 = vpop.f32.mrb[0].mxu0
        %2785 = vmatprep.mubr.f32.mxu0 0.0
        %2786 = vmatmul.mubr.f32.gmra.mrb[0].mxu0 %v2552
        %v2787 = vpop.f32.mrb[0].mxu0
        %v2788 = vadd.f32 0.0, %v2787
        %v2789 = vpop.f32.mrb[0].mxu0
        %2790 = vmatprep.mubr.f32.mxu0 0.0
        %2791 = vmatmul.mubr.f32.gmra.mrb[0].mxu0 %v2553
        %v2792 = vpop.f32.mrb[0].mxu0
        %v2793 = vadd.f32 0.0, %v2792
        %v2794 = vpop.f32.mrb[0].mxu0
        %2795 = vdwg.mxu0
        %v2796 = vadd.f32 %v2490, %v2638
        %v2797 = vadd.f32 %v2491, %v2643
        %v2798 = vadd.f32 %v2492, %v2648
        %v2799 = vadd.f32 %v2493, %v2653
        %v2800 = vadd.f32 %v2494, %v2658
        %v2801 = vadd.f32 %v2495, %v2663
        %v2802 = vadd.f32 %v2496, %v2668
        %v2803 = vadd.f32 %v2497, %v2673
        %v2804 = vadd.f32 %v2498, %v2678
        %v2805 = vadd.f32 %v2499, %v2683
        %v2806 = vadd.f32 %v2500, %v2688
        %v2807 = vadd.f32 %v2501, %v2693
        %v2808 = vadd.f32 %v2502, %v2698
        %v2809 = vadd.f32 %v2503, %v2703
        %v2810 = vadd.f32 %v2504, %v2708
        %v2811 = vadd.f32 %v2505, %v2713
        %v2812 = vadd.f32 %v2506, %v2718
        %v2813 = vadd.f32 %v2507, %v2723
        %v2814 = vadd.f32 %v2508, %v2728
        %v2815 = vadd.f32 %v2509, %v2733
        %v2816 = vadd.f32 %v2510, %v2738
        %v2817 = vadd.f32 %v2511, %v2743
        %v2818 = vadd.f32 %v2512, %v2748
        %v2819 = vadd.f32 %v2513, %v2753
        %v2820 = vadd.f32 %v2514, %v2758
        %v2821 = vadd.f32 %v2515, %v2763
        %v2822 = vadd.f32 %v2516, %v2768
        %v2823 = vadd.f32 %v2517, %v2773
        %v2824 = vadd.f32 %v2518, %v2778
        %v2825 = vadd.f32 %v2519, %v2783
        %v2826 = vadd.f32 %v2520, %v2788
        %v2827 = vadd.f32 %v2521, %v2793
        %v2828 = vld [vmem:[%s2215 + $0x2] sm:$0xff]
        %v2829 = vld [vmem:[%s2215 + $0xa] sm:$0xff]
        %v2830 = vld [vmem:[%s2215 + $0x1a] sm:$0xff]
        %v2831 = vld [vmem:[%s2215 + $0x22] sm:$0xff]
        %v2832 = vld [vmem:[%s2215 + $0x32] sm:$0xff]
        %v2833 = vld [vmem:[%s2215 + $0x3a] sm:$0xff]
        %v2834 = vld [vmem:[%s2215 + $0x4a] sm:$0xff]
        %v2835 = vld [vmem:[%s2215 + $0x52] sm:$0xff]
        %v2836 = vld [vmem:[%s2215 + $0x62] sm:$0xff]
        %v2837 = vld [vmem:[%s2215 + $0x6a] sm:$0xff]
        %v2838 = vld [vmem:[%s2215 + $0x7a] sm:$0xff]
        %v2839 = vld [vmem:[%s2215 + $0x82] sm:$0xff]
        %v2840 = vld [vmem:[%s2215 + $0x92] sm:$0xff]
        %v2841 = vld [vmem:[%s2215 + $0x9a] sm:$0xff]
        %v2842 = vld [vmem:[%s2215 + $0xaa] sm:$0xff]
        %v2843 = vld [vmem:[%s2215 + $0xb2] sm:$0xff]
        %v2844 = vld [vmem:[%s2215 + $0xc2] sm:$0xff]
        %v2845 = vld [vmem:[%s2215 + $0xca] sm:$0xff]
        %v2846 = vld [vmem:[%s2215 + $0xda] sm:$0xff]
        %v2847 = vld [vmem:[%s2215 + $0xe2] sm:$0xff]
        %v2848 = vld [vmem:[%s2215 + $0xf2] sm:$0xff]
        %v2849 = vld [vmem:[%s2215 + $0xfa] sm:$0xff]
        %v2850 = vld [vmem:[%s2215 + $0x10a] sm:$0xff]
        %v2851 = vld [vmem:[%s2215 + $0x112] sm:$0xff]
        %v2852 = vld [vmem:[%s2215 + $0x122] sm:$0xff]
        %v2853 = vld [vmem:[%s2215 + $0x12a] sm:$0xff]
        %v2854 = vld [vmem:[%s2215 + $0x13a] sm:$0xff]
        %v2855 = vld [vmem:[%s2215 + $0x142] sm:$0xff]
        %v2856 = vld [vmem:[%s2215 + $0x152] sm:$0xff]
        %v2857 = vld [vmem:[%s2215 + $0x15a] sm:$0xff]
        %v2858 = vld [vmem:[%s2215 + $0x16a] sm:$0xff]
        %v2859 = vld [vmem:[%s2215 + $0x172] sm:$0xff]
        %s2860 = scalar_lea.vmem [#allocation5], 1024
        %v2861 = vld [vmem:[%s2860] sm:$0xff]
        %v2862 = vld [vmem:[%s2860 + $0x8] sm:$0xff]
        %v2863 = vld [vmem:[%s2860 + $0x10] sm:$0xff]
        %v2864 = vld [vmem:[%s2860 + $0x18] sm:$0xff]
        %v2865 = vld [vmem:[%s2860 + $0x20] sm:$0xff]
        %v2866 = vld [vmem:[%s2860 + $0x28] sm:$0xff]
        %v2867 = vld [vmem:[%s2860 + $0x30] sm:$0xff]
        %v2868 = vld [vmem:[%s2860 + $0x38] sm:$0xff]
        %v2869 = vld [vmem:[%s2860 + $0x40] sm:$0xff]
        %v2870 = vld [vmem:[%s2860 + $0x48] sm:$0xff]
        %v2871 = vld [vmem:[%s2860 + $0x50] sm:$0xff]
        %v2872 = vld [vmem:[%s2860 + $0x58] sm:$0xff]
        %v2873 = vld [vmem:[%s2860 + $0x60] sm:$0xff]
        %v2874 = vld [vmem:[%s2860 + $0x68] sm:$0xff]
        %v2875 = vld [vmem:[%s2860 + $0x70] sm:$0xff]
        %v2876 = vld [vmem:[%s2860 + $0x78] sm:$0xff]
        %2877 = vmatprep.subr.mxu0 0.0
        %2878 = vmatpush1.msra.mxu0 %v2861
        %2879 = vmatprep.subr.mxu0 0.0
        %2880 = vmatpush1.msra.mxu0 %v2862
        %2881 = vmatprep.subr.mxu0 0.0
        %2882 = vmatpush1.msra.mxu0 %v2863
        %2883 = vmatprep.subr.mxu0 0.0
        %2884 = vmatpush1.msra.mxu0 %v2864
        %2885 = vmatprep.subr.mxu0 0.0
        %2886 = vmatpush1.msra.mxu0 %v2865
        %2887 = vmatprep.subr.mxu0 0.0
        %2888 = vmatpush1.msra.mxu0 %v2866
        %2889 = vmatprep.subr.mxu0 0.0
        %2890 = vmatpush1.msra.mxu0 %v2867
        %2891 = vmatprep.subr.mxu0 0.0
        %2892 = vmatpush1.msra.mxu0 %v2868
        %2893 = vmatprep.subr.mxu0 0.0
        %2894 = vmatpush1.msra.mxu0 %v2869
        %2895 = vmatprep.subr.mxu0 0.0
        %2896 = vmatpush1.msra.mxu0 %v2870
        %2897 = vmatprep.subr.mxu0 0.0
        %2898 = vmatpush1.msra.mxu0 %v2871
        %2899 = vmatprep.subr.mxu0 0.0
        %2900 = vmatpush1.msra.mxu0 %v2872
        %2901 = vmatprep.subr.mxu0 0.0
        %2902 = vmatpush1.msra.mxu0 %v2873
        %2903 = vmatprep.subr.mxu0 0.0
        %2904 = vmatpush1.msra.mxu0 %v2874
        %2905 = vmatprep.subr.mxu0 0.0
        %2906 = vmatpush1.msra.mxu0 %v2875
        %2907 = vmatprep.subr.mxu0 0.0
        %2908 = vmatpush1.msra.mxu0 %v2876
        %2909 = vmatprep.subr.mxu0 0.0
        %2910 = vmatpush1.msra.mxu0 0.0
        %2911 = vmatprep.subr.mxu0 0.0
        %2912 = vmatpush1.msra.mxu0 0.0
        %2913 = vmatprep.subr.mxu0 0.0
        %2914 = vmatpush1.msra.mxu0 0.0
        %2915 = vmatprep.subr.mxu0 0.0
        %2916 = vmatpush1.msra.mxu0 0.0
        %2917 = vmatprep.subr.mxu0 0.0
        %2918 = vmatpush1.msra.mxu0 0.0
        %2919 = vmatprep.subr.mxu0 0.0
        %2920 = vmatpush1.msra.mxu0 0.0
        %2921 = vmatprep.subr.mxu0 0.0
        %2922 = vmatpush1.msra.mxu0 0.0
        %2923 = vmatprep.subr.mxu0 0.0
        %2924 = vmatpush1.msra.mxu0 0.0
        %2925 = vmatprep.subr.mxu0 0.0
        %2926 = vmatpush1.msra.mxu0 0.0
        %2927 = vmatprep.subr.mxu0 0.0
        %2928 = vmatpush1.msra.mxu0 0.0
        %2929 = vmatprep.subr.mxu0 0.0
        %2930 = vmatpush1.msra.mxu0 0.0
        %2931 = vmatprep.subr.mxu0 0.0
        %2932 = vmatpush1.msra.mxu0 0.0
        %2933 = vmatprep.subr.mxu0 0.0
        %2934 = vmatpush1.msra.mxu0 0.0
        %2935 = vmatprep.subr.mxu0 0.0
        %2936 = vmatpush1.msra.mxu0 0.0
        %2937 = vmatprep.subr.mxu0 0.0
        %2938 = vmatpush1.msra.mxu0 0.0
        %2939 = vmatprep.subr.mxu0 0.0
        %2940 = vmatpush1.msra.mxu0 0.0
        %2941 = vmatprep.mubr.f32.mxu0 0.0
        %2942 = vmatmul.mubr.f32.gmra.mrb[0].mxu0 %v2828
        %v2943 = vpop.f32.mrb[0].mxu0
        %v2944 = vadd.f32 0.0, %v2943
        %v2945 = vpop.f32.mrb[0].mxu0
        %2946 = vmatprep.mubr.f32.mxu0 0.0
        %2947 = vmatmul.mubr.f32.gmra.mrb[0].mxu0 %v2829
        %v2948 = vpop.f32.mrb[0].mxu0
        %v2949 = vadd.f32 0.0, %v2948
        %v2950 = vpop.f32.mrb[0].mxu0
        %2951 = vmatprep.mubr.f32.mxu0 0.0
        %2952 = vmatmul.mubr.f32.gmra.mrb[0].mxu0 %v2830
        %v2953 = vpop.f32.mrb[0].mxu0
        %v2954 = vadd.f32 0.0, %v2953
        %v2955 = vpop.f32.mrb[0].mxu0
        %2956 = vmatprep.mubr.f32.mxu0 0.0
        %2957 = vmatmul.mubr.f32.gmra.mrb[0].mxu0 %v2831
        %v2958 = vpop.f32.mrb[0].mxu0
        %v2959 = vadd.f32 0.0, %v2958
        %v2960 = vpop.f32.mrb[0].mxu0
        %2961 = vmatprep.mubr.f32.mxu0 0.0
        %2962 = vmatmul.mubr.f32.gmra.mrb[0].mxu0 %v2832
        %v2963 = vpop.f32.mrb[0].mxu0
        %v2964 = vadd.f32 0.0, %v2963
        %v2965 = vpop.f32.mrb[0].mxu0
        %2966 = vmatprep.mubr.f32.mxu0 0.0
        %2967 = vmatmul.mubr.f32.gmra.mrb[0].mxu0 %v2833
        %v2968 = vpop.f32.mrb[0].mxu0
        %v2969 = vadd.f32 0.0, %v2968
        %v2970 = vpop.f32.mrb[0].mxu0
        %2971 = vmatprep.mubr.f32.mxu0 0.0
        %2972 = vmatmul.mubr.f32.gmra.mrb[0].mxu0 %v2834
        %v2973 = vpop.f32.mrb[0].mxu0
        %v2974 = vadd.f32 0.0, %v2973
        %v2975 = vpop.f32.mrb[0].mxu0
        %2976 = vmatprep.mubr.f32.mxu0 0.0
        %2977 = vmatmul.mubr.f32.gmra.mrb[0].mxu0 %v2835
        %v2978 = vpop.f32.mrb[0].mxu0
        %v2979 = vadd.f32 0.0, %v2978
        %v2980 = vpop.f32.mrb[0].mxu0
        %2981 = vmatprep.mubr.f32.mxu0 0.0
        %2982 = vmatmul.mubr.f32.gmra.mrb[0].mxu0 %v2836
        %v2983 = vpop.f32.mrb[0].mxu0
        %v2984 = vadd.f32 0.0, %v2983
        %v2985 = vpop.f32.mrb[0].mxu0
        %2986 = vmatprep.mubr.f32.mxu0 0.0
        %2987 = vmatmul.mubr.f32.gmra.mrb[0].mxu0 %v2837
        %v2988 = vpop.f32.mrb[0].mxu0
        %v2989 = vadd.f32 0.0, %v2988
        %v2990 = vpop.f32.mrb[0].mxu0
        %2991 = vmatprep.mubr.f32.mxu0 0.0
        %2992 = vmatmul.mubr.f32.gmra.mrb[0].mxu0 %v2838
        %v2993 = vpop.f32.mrb[0].mxu0
        %v2994 = vadd.f32 0.0, %v2993
        %v2995 = vpop.f32.mrb[0].mxu0
        %2996 = vmatprep.mubr.f32.mxu0 0.0
        %2997 = vmatmul.mubr.f32.gmra.mrb[0].mxu0 %v2839
        %v2998 = vpop.f32.mrb[0].mxu0
        %v2999 = vadd.f32 0.0, %v2998
        %v3000 = vpop.f32.mrb[0].mxu0
        %3001 = vmatprep.mubr.f32.mxu0 0.0
        %3002 = vmatmul.mubr.f32.gmra.mrb[0].mxu0 %v2840
        %v3003 = vpop.f32.mrb[0].mxu0
        %v3004 = vadd.f32 0.0, %v3003
        %v3005 = vpop.f32.mrb[0].mxu0
        %3006 = vmatprep.mubr.f32.mxu0 0.0
        %3007 = vmatmul.mubr.f32.gmra.mrb[0].mxu0 %v2841
        %v3008 = vpop.f32.mrb[0].mxu0
        %v3009 = vadd.f32 0.0, %v3008
        %v3010 = vpop.f32.mrb[0].mxu0
        %3011 = vmatprep.mubr.f32.mxu0 0.0
        %3012 = vmatmul.mubr.f32.gmra.mrb[0].mxu0 %v2842
        %v3013 = vpop.f32.mrb[0].mxu0
        %v3014 = vadd.f32 0.0, %v3013
        %v3015 = vpop.f32.mrb[0].mxu0
        %3016 = vmatprep.mubr.f32.mxu0 0.0
        %3017 = vmatmul.mubr.f32.gmra.mrb[0].mxu0 %v2843
        %v3018 = vpop.f32.mrb[0].mxu0
        %v3019 = vadd.f32 0.0, %v3018
        %v3020 = vpop.f32.mrb[0].mxu0
        %3021 = vmatprep.mubr.f32.mxu0 0.0
        %3022 = vmatmul.mubr.f32.gmra.mrb[0].mxu0 %v2844
        %v3023 = vpop.f32.mrb[0].mxu0
        %v3024 = vadd.f32 0.0, %v3023
        %v3025 = vpop.f32.mrb[0].mxu0
        %3026 = vmatprep.mubr.f32.mxu0 0.0
        %3027 = vmatmul.mubr.f32.gmra.mrb[0].mxu0 %v2845
        %v3028 = vpop.f32.mrb[0].mxu0
        %v3029 = vadd.f32 0.0, %v3028
        %v3030 = vpop.f32.mrb[0].mxu0
        %3031 = vmatprep.mubr.f32.mxu0 0.0
        %3032 = vmatmul.mubr.f32.gmra.mrb[0].mxu0 %v2846
        %v3033 = vpop.f32.mrb[0].mxu0
        %v3034 = vadd.f32 0.0, %v3033
        %v3035 = vpop.f32.mrb[0].mxu0
        %3036 = vmatprep.mubr.f32.mxu0 0.0
        %3037 = vmatmul.mubr.f32.gmra.mrb[0].mxu0 %v2847
        %v3038 = vpop.f32.mrb[0].mxu0
        %v3039 = vadd.f32 0.0, %v3038
        %v3040 = vpop.f32.mrb[0].mxu0
        %3041 = vmatprep.mubr.f32.mxu0 0.0
        %3042 = vmatmul.mubr.f32.gmra.mrb[0].mxu0 %v2848
        %v3043 = vpop.f32.mrb[0].mxu0
        %v3044 = vadd.f32 0.0, %v3043
        %v3045 = vpop.f32.mrb[0].mxu0
        %3046 = vmatprep.mubr.f32.mxu0 0.0
        %3047 = vmatmul.mubr.f32.gmra.mrb[0].mxu0 %v2849
        %v3048 = vpop.f32.mrb[0].mxu0
        %v3049 = vadd.f32 0.0, %v3048
        %v3050 = vpop.f32.mrb[0].mxu0
        %3051 = vmatprep.mubr.f32.mxu0 0.0
        %3052 = vmatmul.mubr.f32.gmra.mrb[0].mxu0 %v2850
        %v3053 = vpop.f32.mrb[0].mxu0
        %v3054 = vadd.f32 0.0, %v3053
        %v3055 = vpop.f32.mrb[0].mxu0
        %3056 = vmatprep.mubr.f32.mxu0 0.0
        %3057 = vmatmul.mubr.f32.gmra.mrb[0].mxu0 %v2851
        %v3058 = vpop.f32.mrb[0].mxu0
        %v3059 = vadd.f32 0.0, %v3058
        %v3060 = vpop.f32.mrb[0].mxu0
        %3061 = vmatprep.mubr.f32.mxu0 0.0
        %3062 = vmatmul.mubr.f32.gmra.mrb[0].mxu0 %v2852
        %v3063 = vpop.f32.mrb[0].mxu0
        %v3064 = vadd.f32 0.0, %v3063
        %v3065 = vpop.f32.mrb[0].mxu0
        %3066 = vmatprep.mubr.f32.mxu0 0.0
        %3067 = vmatmul.mubr.f32.gmra.mrb[0].mxu0 %v2853
        %v3068 = vpop.f32.mrb[0].mxu0
        %v3069 = vadd.f32 0.0, %v3068
        %v3070 = vpop.f32.mrb[0].mxu0
        %3071 = vmatprep.mubr.f32.mxu0 0.0
        %3072 = vmatmul.mubr.f32.gmra.mrb[0].mxu0 %v2854
        %v3073 = vpop.f32.mrb[0].mxu0
        %v3074 = vadd.f32 0.0, %v3073
        %v3075 = vpop.f32.mrb[0].mxu0
        %3076 = vmatprep.mubr.f32.mxu0 0.0
        %3077 = vmatmul.mubr.f32.gmra.mrb[0].mxu0 %v2855
        %v3078 = vpop.f32.mrb[0].mxu0
        %v3079 = vadd.f32 0.0, %v3078
        %v3080 = vpop.f32.mrb[0].mxu0
        %3081 = vmatprep.mubr.f32.mxu0 0.0
        %3082 = vmatmul.mubr.f32.gmra.mrb[0].mxu0 %v2856
        %v3083 = vpop.f32.mrb[0].mxu0
        %v3084 = vadd.f32 0.0, %v3083
        %v3085 = vpop.f32.mrb[0].mxu0
        %3086 = vmatprep.mubr.f32.mxu0 0.0
        %3087 = vmatmul.mubr.f32.gmra.mrb[0].mxu0 %v2857
        %v3088 = vpop.f32.mrb[0].mxu0
        %v3089 = vadd.f32 0.0, %v3088
        %v3090 = vpop.f32.mrb[0].mxu0
        %3091 = vmatprep.mubr.f32.mxu0 0.0
        %3092 = vmatmul.mubr.f32.gmra.mrb[0].mxu0 %v2858
        %v3093 = vpop.f32.mrb[0].mxu0
        %v3094 = vadd.f32 0.0, %v3093
        %v3095 = vpop.f32.mrb[0].mxu0
        %3096 = vmatprep.mubr.f32.mxu0 0.0
        %3097 = vmatmul.mubr.f32.gmra.mrb[0].mxu0 %v2859
        %v3098 = vpop.f32.mrb[0].mxu0
        %v3099 = vadd.f32 0.0, %v3098
        %v3100 = vpop.f32.mrb[0].mxu0
        %3101 = vdwg.mxu0
        %v3102 = vadd.f32 %v2796, %v2944
        %v3103 = vadd.f32 %v2797, %v2949
        %v3104 = vadd.f32 %v2798, %v2954
        %v3105 = vadd.f32 %v2799, %v2959
        %v3106 = vadd.f32 %v2800, %v2964
        %v3107 = vadd.f32 %v2801, %v2969
        %v3108 = vadd.f32 %v2802, %v2974
        %v3109 = vadd.f32 %v2803, %v2979
        %v3110 = vadd.f32 %v2804, %v2984
        %v3111 = vadd.f32 %v2805, %v2989
        %v3112 = vadd.f32 %v2806, %v2994
        %v3113 = vadd.f32 %v2807, %v2999
        %v3114 = vadd.f32 %v2808, %v3004
        %v3115 = vadd.f32 %v2809, %v3009
        %v3116 = vadd.f32 %v2810, %v3014
        %v3117 = vadd.f32 %v2811, %v3019
        %v3118 = vadd.f32 %v2812, %v3024
        %v3119 = vadd.f32 %v2813, %v3029
        %v3120 = vadd.f32 %v2814, %v3034
        %v3121 = vadd.f32 %v2815, %v3039
        %v3122 = vadd.f32 %v2816, %v3044
        %v3123 = vadd.f32 %v2817, %v3049
        %v3124 = vadd.f32 %v2818, %v3054
        %v3125 = vadd.f32 %v2819, %v3059
        %v3126 = vadd.f32 %v2820, %v3064
        %v3127 = vadd.f32 %v2821, %v3069
        %v3128 = vadd.f32 %v2822, %v3074
        %v3129 = vadd.f32 %v2823, %v3079
        %v3130 = vadd.f32 %v2824, %v3084
        %v3131 = vadd.f32 %v2825, %v3089
        %v3132 = vadd.f32 %v2826, %v3094
        %v3133 = vadd.f32 %v2827, %v3099
        %v3134 = vld [vmem:[#allocation7] sm:$0x1]
        %v3136 = vlaneseq
        %v3137 = vshrl.u32 %v3136, 7
        %v3138 = vsub.s32 0, %v3137
        %v3139 = vrot.slane %v3134, %v3138
        %v3141 = vadd.f32 %v3102, %v3139
        %v3142 = vadd.f32 %v3103, %v3139
        %v3143 = vadd.f32 %v3104, %v3139
        %v3144 = vadd.f32 %v3105, %v3139
        %v3145 = vadd.f32 %v3106, %v3139
        %v3146 = vadd.f32 %v3107, %v3139
        %v3147 = vadd.f32 %v3108, %v3139
        %v3148 = vadd.f32 %v3109, %v3139
        %v3149 = vadd.f32 %v3110, %v3139
        %v3150 = vadd.f32 %v3111, %v3139
        %v3151 = vadd.f32 %v3112, %v3139
        %v3152 = vadd.f32 %v3113, %v3139
        %v3153 = vadd.f32 %v3114, %v3139
        %v3154 = vadd.f32 %v3115, %v3139
        %v3155 = vadd.f32 %v3116, %v3139
        %v3156 = vadd.f32 %v3117, %v3139
        %v3157 = vadd.f32 %v3118, %v3139
        %v3158 = vadd.f32 %v3119, %v3139
        %v3159 = vadd.f32 %v3120, %v3139
        %v3160 = vadd.f32 %v3121, %v3139
        %v3161 = vadd.f32 %v3122, %v3139
        %v3162 = vadd.f32 %v3123, %v3139
        %v3163 = vadd.f32 %v3124, %v3139
        %v3164 = vadd.f32 %v3125, %v3139
        %v3165 = vadd.f32 %v3126, %v3139
        %v3166 = vadd.f32 %v3127, %v3139
        %v3167 = vadd.f32 %v3128, %v3139
        %v3168 = vadd.f32 %v3129, %v3139
        %v3169 = vadd.f32 %v3130, %v3139
        %v3170 = vadd.f32 %v3131, %v3139
        %v3171 = vadd.f32 %v3132, %v3139
        %v3172 = vadd.f32 %v3133, %v3139
        %v3173 = vadd.f32 %v3141, %v3142
        %v3174 = vadd.f32 %v3173, %v3143
        %v3175 = vadd.f32 %v3174, %v3144
        %v3176 = vadd.f32 %v3175, %v3145
        %v3177 = vadd.f32 %v3176, %v3146
        %v3178 = vadd.f32 %v3177, %v3147
        %v3179 = vadd.f32 %v3178, %v3148
        %v3180 = vadd.f32 %v3179, %v3149
        %v3181 = vadd.f32 %v3180, %v3150
        %v3182 = vadd.f32 %v3181, %v3151
        %v3183 = vadd.f32 %v3182, %v3152
        %v3184 = vadd.f32 %v3183, %v3153
        %v3185 = vadd.f32 %v3184, %v3154
        %v3186 = vadd.f32 %v3185, %v3155
        %v3187 = vadd.f32 %v3186, %v3156
        %v3188 = vadd.f32 %v3187, %v3157
        %v3189 = vadd.f32 %v3188, %v3158
        %v3190 = vadd.f32 %v3189, %v3159
        %v3191 = vadd.f32 %v3190, %v3160
        %v3192 = vadd.f32 %v3191, %v3161
        %v3193 = vadd.f32 %v3192, %v3162
        %v3194 = vadd.f32 %v3193, %v3163
        %v3195 = vadd.f32 %v3194, %v3164
        %v3196 = vadd.f32 %v3195, %v3165
        %v3197 = vadd.f32 %v3196, %v3166
        %v3198 = vadd.f32 %v3197, %v3167
        %v3199 = vadd.f32 %v3198, %v3168
        %v3200 = vadd.f32 %v3199, %v3169
        %v3201 = vadd.f32 %v3200, %v3170
        %v3202 = vadd.f32 %v3201, %v3171
        %v3203 = vadd.f32 %v3202, %v3172
        %v3204 = vrot.slane %v3203, 4
        %v3205 = vadd.f32 %v3203, %v3204
        %v3206 = vrot.slane %v3205, 2
        %v3207 = vadd.f32 %v3205, %v3206
        %v3208 = vrot.slane %v3207, 1
        %v3209 = vadd.f32 %v3207, %v3208
        %v3210 = vmul.f32 %v3141, %v3141
        %v3211 = vmul.f32 %v3142, %v3142
        %v3212 = vmul.f32 %v3143, %v3143
        %v3213 = vmul.f32 %v3144, %v3144
        %v3214 = vmul.f32 %v3145, %v3145
        %v3215 = vmul.f32 %v3146, %v3146
        %v3216 = vmul.f32 %v3147, %v3147
        %v3217 = vmul.f32 %v3148, %v3148
        %v3218 = vmul.f32 %v3149, %v3149
        %v3219 = vmul.f32 %v3150, %v3150
        %v3220 = vmul.f32 %v3151, %v3151
        %v3221 = vmul.f32 %v3152, %v3152
        %v3222 = vmul.f32 %v3153, %v3153
        %v3223 = vmul.f32 %v3154, %v3154
        %v3224 = vmul.f32 %v3155, %v3155
        %v3225 = vmul.f32 %v3156, %v3156
        %v3226 = vmul.f32 %v3157, %v3157
        %v3227 = vmul.f32 %v3158, %v3158
        %v3228 = vmul.f32 %v3159, %v3159
        %v3229 = vmul.f32 %v3160, %v3160
        %v3230 = vmul.f32 %v3161, %v3161
        %v3231 = vmul.f32 %v3162, %v3162
        %v3232 = vmul.f32 %v3163, %v3163
        %v3233 = vmul.f32 %v3164, %v3164
        %v3234 = vmul.f32 %v3165, %v3165
        %v3235 = vmul.f32 %v3166, %v3166
        %v3236 = vmul.f32 %v3167, %v3167
        %v3237 = vmul.f32 %v3168, %v3168
        %v3238 = vmul.f32 %v3169, %v3169
        %v3239 = vmul.f32 %v3170, %v3170
        %v3240 = vmul.f32 %v3171, %v3171
        %v3241 = vmul.f32 %v3172, %v3172
        %v3242 = vadd.f32 %v3210, %v3211
        %v3243 = vadd.f32 %v3242, %v3212
        %v3244 = vadd.f32 %v3243, %v3213
        %v3245 = vadd.f32 %v3244, %v3214
        %v3246 = vadd.f32 %v3245, %v3215
        %v3247 = vadd.f32 %v3246, %v3216
        %v3248 = vadd.f32 %v3247, %v3217
        %v3249 = vadd.f32 %v3248, %v3218
        %v3250 = vadd.f32 %v3249, %v3219
        %v3251 = vadd.f32 %v3250, %v3220
        %v3252 = vadd.f32 %v3251, %v3221
        %v3253 = vadd.f32 %v3252, %v3222
        %v3254 = vadd.f32 %v3253, %v3223
        %v3255 = vadd.f32 %v3254, %v3224
        %v3256 = vadd.f32 %v3255, %v3225
        %v3257 = vadd.f32 %v3256, %v3226
        %v3258 = vadd.f32 %v3257, %v3227
        %v3259 = vadd.f32 %v3258, %v3228
        %v3260 = vadd.f32 %v3259, %v3229
        %v3261 = vadd.f32 %v3260, %v3230
        %v3262 = vadd.f32 %v3261, %v3231
        %v3263 = vadd.f32 %v3262, %v3232
        %v3264 = vadd.f32 %v3263, %v3233
        %v3265 = vadd.f32 %v3264, %v3234
        %v3266 = vadd.f32 %v3265, %v3235
        %v3267 = vadd.f32 %v3266, %v3236
        %v3268 = vadd.f32 %v3267, %v3237
        %v3269 = vadd.f32 %v3268, %v3238
        %v3270 = vadd.f32 %v3269, %v3239
        %v3271 = vadd.f32 %v3270, %v3240
        %v3272 = vadd.f32 %v3271, %v3241
        %v3273 = vrot.slane %v3272, 4
        %v3274 = vadd.f32 %v3272, %v3273
        %v3275 = vrot.slane %v3274, 2
        %v3276 = vadd.f32 %v3274, %v3275
        %v3277 = vrot.slane %v3276, 1
        %v3278 = vadd.f32 %v3276, %v3277
        %vm3279 = vcmask 1040384
        %v3280 = vsel %vm3279, %v3209, %v3278
        %v3281 = vld [vmem:[#allocation13] sm:$0xff]
        %v3282 = vld [vmem:[#allocation13 + $0x8] sm:$0xff]
        %v3283 = vld [vmem:[#allocation13 + $0x10] sm:$0xff]
        %v3284 = vld [vmem:[#allocation13 + $0x18] sm:$0xff]
        %v3285 = vld [vmem:[#allocation13 + $0x20] sm:$0xff]
        %v3286 = vld [vmem:[#allocation13 + $0x28] sm:$0xff]
        %v3287 = vld [vmem:[#allocation13 + $0x30] sm:$0xff]
        %v3288 = vld [vmem:[#allocation13 + $0x38] sm:$0xff]
        %v3289 = vld [vmem:[#allocation13 + $0x40] sm:$0xff]
        %v3290 = vld [vmem:[#allocation13 + $0x48] sm:$0xff]
        %v3291 = vld [vmem:[#allocation13 + $0x50] sm:$0xff]
        %v3292 = vld [vmem:[#allocation13 + $0x58] sm:$0xff]
        %v3293 = vld [vmem:[#allocation13 + $0x60] sm:$0xff]
        %v3294 = vld [vmem:[#allocation13 + $0x68] sm:$0xff]
        %v3295 = vld [vmem:[#allocation13 + $0x70] sm:$0xff]
        %v3296 = vld [vmem:[#allocation13 + $0x78] sm:$0xff]
        %v3297 = vld [vmem:[#allocation14] sm:$0x1]
        %vm3298 = vcmp.lt.s32.totalorder %v3297, 8
        %3299 = vset.pattern.permute.xlu0 0
        %3300 = vperm.xlu0 %3299, %v3281
        %v3301 = vpop.permute.xlu0 %3300
        %3302 = vset.pattern.permute.xlu0 0
        %3303 = vperm.xlu0 %3302, %v3282
        %v3304 = vpop.permute.xlu0 %3303
        %3305 = vset.pattern.permute.xlu0 0
        %3306 = vperm.xlu0 %3305, %v3283
        %v3307 = vpop.permute.xlu0 %3306
        %3308 = vset.pattern.permute.xlu0 0
        %3309 = vperm.xlu0 %3308, %v3284
        %v3310 = vpop.permute.xlu0 %3309
        %3311 = vset.pattern.permute.xlu0 0
        %3312 = vperm.xlu0 %3311, %v3285
        %v3313 = vpop.permute.xlu0 %3312
        %3314 = vset.pattern.permute.xlu0 0
        %3315 = vperm.xlu0 %3314, %v3286
        %v3316 = vpop.permute.xlu0 %3315
        %3317 = vset.pattern.permute.xlu0 0
        %3318 = vperm.xlu0 %3317, %v3287
        %v3319 = vpop.permute.xlu0 %3318
        %3320 = vset.pattern.permute.xlu0 0
        %3321 = vperm.xlu0 %3320, %v3288
        %v3322 = vpop.permute.xlu0 %3321
        %3323 = vset.pattern.permute.xlu0 0
        %3324 = vperm.xlu0 %3323, %v3289
        %v3325 = vpop.permute.xlu0 %3324
        %3326 = vset.pattern.permute.xlu0 0
        %3327 = vperm.xlu0 %3326, %v3290
        %v3328 = vpop.permute.xlu0 %3327
        %3329 = vset.pattern.permute.xlu0 0
        %3330 = vperm.xlu0 %3329, %v3291
        %v3331 = vpop.permute.xlu0 %3330
        %3332 = vset.pattern.permute.xlu0 0
        %3333 = vperm.xlu0 %3332, %v3292
        %v3334 = vpop.permute.xlu0 %3333
        %3335 = vset.pattern.permute.xlu0 0
        %3336 = vperm.xlu0 %3335, %v3293
        %v3337 = vpop.permute.xlu0 %3336
        %3338 = vset.pattern.permute.xlu0 0
        %3339 = vperm.xlu0 %3338, %v3294
        %v3340 = vpop.permute.xlu0 %3339
        %3341 = vset.pattern.permute.xlu0 0
        %3342 = vperm.xlu0 %3341, %v3295
        %v3343 = vpop.permute.xlu0 %3342
        %3344 = vset.pattern.permute.xlu0 0
        %3345 = vperm.xlu0 %3344, %v3296
        %v3346 = vpop.permute.xlu0 %3345
        %v3347 = vlaneseq
        %v3348 = vshrl.u32 %v3347, 7
        %v3349 = vsub.s32 0, %v3348
        %v3350 = vrot.slane %v3297, %v3349
        %vm3351 = vcmp.eq.s32.totalorder %v3301, %v3350
        %vm3352 = vcmp.eq.s32.totalorder %v3304, %v3350
        %vm3353 = vcmp.eq.s32.totalorder %v3307, %v3350
        %vm3354 = vcmp.eq.s32.totalorder %v3310, %v3350
        %vm3355 = vcmp.eq.s32.totalorder %v3313, %v3350
        %vm3356 = vcmp.eq.s32.totalorder %v3316, %v3350
        %vm3357 = vcmp.eq.s32.totalorder %v3319, %v3350
        %vm3358 = vcmp.eq.s32.totalorder %v3322, %v3350
        %vm3359 = vcmp.eq.s32.totalorder %v3325, %v3350
        %vm3360 = vcmp.eq.s32.totalorder %v3328, %v3350
        %vm3361 = vcmp.eq.s32.totalorder %v3331, %v3350
        %vm3362 = vcmp.eq.s32.totalorder %v3334, %v3350
        %vm3363 = vcmp.eq.s32.totalorder %v3337, %v3350
        %vm3364 = vcmp.eq.s32.totalorder %v3340, %v3350
        %vm3365 = vcmp.eq.s32.totalorder %v3343, %v3350
        %vm3366 = vcmp.eq.s32.totalorder %v3346, %v3350
        %v3367 = vsel %vm3298, 1, 0
        %v3368 = vlaneseq
        %v3369 = vshrl.u32 %v3368, 7
        %v3370 = vsub.s32 0, %v3369
        %v3371 = vrot.slane %v3367, %v3370
        %vm3372 = vcmp.eq.s32.totalorder %v3371, 1
        %vm3373 = vmand %vm3351, %vm3372
        %vm3374 = vmand %vm3352, %vm3372
        %vm3375 = vmand %vm3353, %vm3372
        %vm3376 = vmand %vm3354, %vm3372
        %vm3377 = vmand %vm3355, %vm3372
        %vm3378 = vmand %vm3356, %vm3372
        %vm3379 = vmand %vm3357, %vm3372
        %vm3380 = vmand %vm3358, %vm3372
        %vm3381 = vmand %vm3359, %vm3372
        %vm3382 = vmand %vm3360, %vm3372
        %vm3383 = vmand %vm3361, %vm3372
        %vm3384 = vmand %vm3362, %vm3372
        %vm3385 = vmand %vm3363, %vm3372
        %vm3386 = vmand %vm3364, %vm3372
        %vm3387 = vmand %vm3365, %vm3372
        %vm3388 = vmand %vm3366, %vm3372
        %vm3389 = vcmp.lt.s32.totalorder %v3281, 8
        %vm3390 = vcmp.lt.s32.totalorder %v3282, 8
        %vm3391 = vcmp.lt.s32.totalorder %v3283, 8
        %vm3392 = vcmp.lt.s32.totalorder %v3284, 8
        %vm3393 = vcmp.lt.s32.totalorder %v3285, 8
        %vm3394 = vcmp.lt.s32.totalorder %v3286, 8
        %vm3395 = vcmp.lt.s32.totalorder %v3287, 8
        %vm3396 = vcmp.lt.s32.totalorder %v3288, 8
        %vm3397 = vcmp.lt.s32.totalorder %v3289, 8
        %vm3398 = vcmp.lt.s32.totalorder %v3290, 8
        %vm3399 = vcmp.lt.s32.totalorder %v3291, 8
        %vm3400 = vcmp.lt.s32.totalorder %v3292, 8
        %vm3401 = vcmp.lt.s32.totalorder %v3293, 8
        %vm3402 = vcmp.lt.s32.totalorder %v3294, 8
        %vm3403 = vcmp.lt.s32.totalorder %v3295, 8
        %vm3404 = vcmp.lt.s32.totalorder %v3296, 8
        %v3405 = vsel %vm3389, 1, 0
        %v3406 = vsel %vm3390, 1, 0
        %v3407 = vsel %vm3391, 1, 0
        %v3408 = vsel %vm3392, 1, 0
        %v3409 = vsel %vm3393, 1, 0
        %v3410 = vsel %vm3394, 1, 0
        %v3411 = vsel %vm3395, 1, 0
        %v3412 = vsel %vm3396, 1, 0
        %v3413 = vsel %vm3397, 1, 0
        %v3414 = vsel %vm3398, 1, 0
        %v3415 = vsel %vm3399, 1, 0
        %v3416 = vsel %vm3400, 1, 0
        %v3417 = vsel %vm3401, 1, 0
        %v3418 = vsel %vm3402, 1, 0
        %v3419 = vsel %vm3403, 1, 0
        %v3420 = vsel %vm3404, 1, 0
        %3421 = vset.pattern.permute.xlu0 0
        %3422 = vperm.xlu0 %3421, %v3405
        %v3423 = vpop.permute.xlu0 %3422
        %3424 = vset.pattern.permute.xlu0 0
        %3425 = vperm.xlu0 %3424, %v3406
        %v3426 = vpop.permute.xlu0 %3425
        %3427 = vset.pattern.permute.xlu0 0
        %3428 = vperm.xlu0 %3427, %v3407
        %v3429 = vpop.permute.xlu0 %3428
        %3430 = vset.pattern.permute.xlu0 0
        %3431 = vperm.xlu0 %3430, %v3408
        %v3432 = vpop.permute.xlu0 %3431
        %3433 = vset.pattern.permute.xlu0 0
        %3434 = vperm.xlu0 %3433, %v3409
        %v3435 = vpop.permute.xlu0 %3434
        %3436 = vset.pattern.permute.xlu0 0
        %3437 = vperm.xlu0 %3436, %v3410
        %v3438 = vpop.permute.xlu0 %3437
        %3439 = vset.pattern.permute.xlu0 0
        %3440 = vperm.xlu0 %3439, %v3411
        %v3441 = vpop.permute.xlu0 %3440
        %3442 = vset.pattern.permute.xlu0 0
        %3443 = vperm.xlu0 %3442, %v3412
        %v3444 = vpop.permute.xlu0 %3443
        %3445 = vset.pattern.permute.xlu0 0
        %3446 = vperm.xlu0 %3445, %v3413
        %v3447 = vpop.permute.xlu0 %3446
        %3448 = vset.pattern.permute.xlu0 0
        %3449 = vperm.xlu0 %3448, %v3414
        %v3450 = vpop.permute.xlu0 %3449
        %3451 = vset.pattern.permute.xlu0 0
        %3452 = vperm.xlu0 %3451, %v3415
        %v3453 = vpop.permute.xlu0 %3452
        %3454 = vset.pattern.permute.xlu0 0
        %3455 = vperm.xlu0 %3454, %v3416
        %v3456 = vpop.permute.xlu0 %3455
        %3457 = vset.pattern.permute.xlu0 0
        %3458 = vperm.xlu0 %3457, %v3417
        %v3459 = vpop.permute.xlu0 %3458
        %3460 = vset.pattern.permute.xlu0 0
        %3461 = vperm.xlu0 %3460, %v3418
        %v3462 = vpop.permute.xlu0 %3461
        %3463 = vset.pattern.permute.xlu0 0
        %3464 = vperm.xlu0 %3463, %v3419
        %v3465 = vpop.permute.xlu0 %3464
        %3466 = vset.pattern.permute.xlu0 0
        %3467 = vperm.xlu0 %3466, %v3420
        %v3468 = vpop.permute.xlu0 %3467
        %vm3469 = vcmp.eq.s32.totalorder %v3423, 1
        %vm3470 = vcmp.eq.s32.totalorder %v3426, 1
        %vm3471 = vcmp.eq.s32.totalorder %v3429, 1
        %vm3472 = vcmp.eq.s32.totalorder %v3432, 1
        %vm3473 = vcmp.eq.s32.totalorder %v3435, 1
        %vm3474 = vcmp.eq.s32.totalorder %v3438, 1
        %vm3475 = vcmp.eq.s32.totalorder %v3441, 1
        %vm3476 = vcmp.eq.s32.totalorder %v3444, 1
        %vm3477 = vcmp.eq.s32.totalorder %v3447, 1
        %vm3478 = vcmp.eq.s32.totalorder %v3450, 1
        %vm3479 = vcmp.eq.s32.totalorder %v3453, 1
        %vm3480 = vcmp.eq.s32.totalorder %v3456, 1
        %vm3481 = vcmp.eq.s32.totalorder %v3459, 1
        %vm3482 = vcmp.eq.s32.totalorder %v3462, 1
        %vm3483 = vcmp.eq.s32.totalorder %v3465, 1
        %vm3484 = vcmp.eq.s32.totalorder %v3468, 1
        %vm3485 = vmand %vm3373, %vm3469
        %vm3486 = vmand %vm3374, %vm3470
        %vm3487 = vmand %vm3375, %vm3471
        %vm3488 = vmand %vm3376, %vm3472
        %vm3489 = vmand %vm3377, %vm3473
        %vm3490 = vmand %vm3378, %vm3474
        %vm3491 = vmand %vm3379, %vm3475
        %vm3492 = vmand %vm3380, %vm3476
        %vm3493 = vmand %vm3381, %vm3477
        %vm3494 = vmand %vm3382, %vm3478
        %vm3495 = vmand %vm3383, %vm3479
        %vm3496 = vmand %vm3384, %vm3480
        %vm3497 = vmand %vm3385, %vm3481
        %vm3498 = vmand %vm3386, %vm3482
        %vm3499 = vmand %vm3387, %vm3483
        %vm3500 = vmand %vm3388, %vm3484
        %v3501 = vsel %vm3485, 1, 0
        %v3502 = vsel %vm3486, 1, 0
        %v3503 = vsel %vm3487, 1, 0
        %v3504 = vsel %vm3488, 1, 0
        %v3505 = vsel %vm3489, 1, 0
        %v3506 = vsel %vm3490, 1, 0
        %v3507 = vsel %vm3491, 1, 0
        %v3508 = vsel %vm3492, 1, 0
        %v3509 = vsel %vm3493, 1, 0
        %v3510 = vsel %vm3494, 1, 0
        %v3511 = vsel %vm3495, 1, 0
        %v3512 = vsel %vm3496, 1, 0
        %v3513 = vsel %vm3497, 1, 0
        %v3514 = vsel %vm3498, 1, 0
        %v3515 = vsel %vm3499, 1, 0
        %v3516 = vsel %vm3500, 1, 0
        %v3517 = vcvt.s32.f32 %v3501
        %v3518 = vcvt.s32.f32 %v3502
        %v3519 = vcvt.s32.f32 %v3503
        %v3520 = vcvt.s32.f32 %v3504
        %v3521 = vcvt.s32.f32 %v3505
        %v3522 = vcvt.s32.f32 %v3506
        %v3523 = vcvt.s32.f32 %v3507
        %v3524 = vcvt.s32.f32 %v3508
        %v3525 = vcvt.s32.f32 %v3509
        %v3526 = vcvt.s32.f32 %v3510
        %v3527 = vcvt.s32.f32 %v3511
        %v3528 = vcvt.s32.f32 %v3512
        %v3529 = vcvt.s32.f32 %v3513
        %v3530 = vcvt.s32.f32 %v3514
        %v3531 = vcvt.s32.f32 %v3515
        %v3532 = vcvt.s32.f32 %v3516
        %3533 = vmatprep.subr.mxu0 0.0
        %3534 = vmatpush1.msra.mxu0 %v3517
        %3535 = vmatprep.subr.mxu0 0.0
        %3536 = vmatpush1.msra.mxu0 %v3518
        %3537 = vmatprep.subr.mxu0 0.0
        %3538 = vmatpush1.msra.mxu0 %v3519
        %3539 = vmatprep.subr.mxu0 0.0
        %3540 = vmatpush1.msra.mxu0 %v3520
        %3541 = vmatprep.subr.mxu0 0.0
        %3542 = vmatpush1.msra.mxu0 %v3521
        %3543 = vmatprep.subr.mxu0 0.0
        %3544 = vmatpush1.msra.mxu0 %v3522
        %3545 = vmatprep.subr.mxu0 0.0
        %3546 = vmatpush1.msra.mxu0 %v3523
        %3547 = vmatprep.subr.mxu0 0.0
        %3548 = vmatpush1.msra.mxu0 %v3524
        %3549 = vmatprep.subr.mxu0 0.0
        %3550 = vmatpush1.msra.mxu0 %v3525
        %3551 = vmatprep.subr.mxu0 0.0
        %3552 = vmatpush1.msra.mxu0 %v3526
        %3553 = vmatprep.subr.mxu0 0.0
        %3554 = vmatpush1.msra.mxu0 %v3527
        %3555 = vmatprep.subr.mxu0 0.0
        %3556 = vmatpush1.msra.mxu0 %v3528
        %3557 = vmatprep.subr.mxu0 0.0
        %3558 = vmatpush1.msra.mxu0 %v3529
        %3559 = vmatprep.subr.mxu0 0.0
        %3560 = vmatpush1.msra.mxu0 %v3530
        %3561 = vmatprep.subr.mxu0 0.0
        %3562 = vmatpush1.msra.mxu0 %v3531
        %3563 = vmatprep.subr.mxu0 0.0
        %3564 = vmatpush1.msra.mxu0 %v3532
        %3565 = vmatprep.subr.mxu0 0.0
        %3566 = vmatpush1.msra.mxu0 0.0
        %3567 = vmatprep.subr.mxu0 0.0
        %3568 = vmatpush1.msra.mxu0 0.0
        %3569 = vmatprep.subr.mxu0 0.0
        %3570 = vmatpush1.msra.mxu0 0.0
        %3571 = vmatprep.subr.mxu0 0.0
        %3572 = vmatpush1.msra.mxu0 0.0
        %3573 = vmatprep.subr.mxu0 0.0
        %3574 = vmatpush1.msra.mxu0 0.0
        %3575 = vmatprep.subr.mxu0 0.0
        %3576 = vmatpush1.msra.mxu0 0.0
        %3577 = vmatprep.subr.mxu0 0.0
        %3578 = vmatpush1.msra.mxu0 0.0
        %3579 = vmatprep.subr.mxu0 0.0
        %3580 = vmatpush1.msra.mxu0 0.0
        %3581 = vmatprep.subr.mxu0 0.0
        %3582 = vmatpush1.msra.mxu0 0.0
        %3583 = vmatprep.subr.mxu0 0.0
        %3584 = vmatpush1.msra.mxu0 0.0
        %3585 = vmatprep.subr.mxu0 0.0
        %3586 = vmatpush1.msra.mxu0 0.0
        %3587 = vmatprep.subr.mxu0 0.0
        %3588 = vmatpush1.msra.mxu0 0.0
        %3589 = vmatprep.subr.mxu0 0.0
        %3590 = vmatpush1.msra.mxu0 0.0
        %3591 = vmatprep.subr.mxu0 0.0
        %3592 = vmatpush1.msra.mxu0 0.0
        %3593 = vmatprep.subr.mxu0 0.0
        %3594 = vmatpush1.msra.mxu0 0.0
        %3595 = vmatprep.subr.mxu0 0.0
        %3596 = vmatpush1.msra.mxu0 0.0
        %3597 = vmatprep.mubr.f32.mxu0 0.0
        %3598 = vmatmul.mubr.f32.gmra.mrb[0].mxu0 %v3280
        %v3599 = vpop.f32.mrb[0].mxu0
        %v3600 = vadd.f32 0.0, %v3599
        %v3601 = vpop.f32.mrb[0].mxu0
        %3602 = vdwg.mxu0
        %v3603 = vmul.f32 %v3600, 0.00390625
        %v3604 = vmul.f32 %v3603, %v3603
        %v3606 = vrot.slane %v3604, 7
        %v3608 = vsub.f32 %v3603, %v3606
        %v3609 = vadd.f32 %v3608, 1e-05
        %v3610 = vrsqrt.pop %v3609
        %v3611 = vlaneseq
        %v3612 = vshrl.u32 %v3611, 7
        %v3613 = vsub.s32 0, %v3612
        %v3614 = vrot.slane %v3603, %v3613
        %v3615 = vsub.f32 %v3141, %v3614
        %v3616 = vsub.f32 %v3142, %v3614
        %v3617 = vsub.f32 %v3143, %v3614
        %v3618 = vsub.f32 %v3144, %v3614
        %v3619 = vsub.f32 %v3145, %v3614
        %v3620 = vsub.f32 %v3146, %v3614
        %v3621 = vsub.f32 %v3147, %v3614
        %v3622 = vsub.f32 %v3148, %v3614
        %v3623 = vsub.f32 %v3149, %v3614
        %v3624 = vsub.f32 %v3150, %v3614
        %v3625 = vsub.f32 %v3151, %v3614
        %v3626 = vsub.f32 %v3152, %v3614
        %v3627 = vsub.f32 %v3153, %v3614
        %v3628 = vsub.f32 %v3154, %v3614
        %v3629 = vsub.f32 %v3155, %v3614
        %v3630 = vsub.f32 %v3156, %v3614
        %v3631 = vsub.f32 %v3157, %v3614
        %v3632 = vsub.f32 %v3158, %v3614
        %v3633 = vsub.f32 %v3159, %v3614
        %v3634 = vsub.f32 %v3160, %v3614
        %v3635 = vsub.f32 %v3161, %v3614
        %v3636 = vsub.f32 %v3162, %v3614
        %v3637 = vsub.f32 %v3163, %v3614
        %v3638 = vsub.f32 %v3164, %v3614
        %v3639 = vsub.f32 %v3165, %v3614
        %v3640 = vsub.f32 %v3166, %v3614
        %v3641 = vsub.f32 %v3167, %v3614
        %v3642 = vsub.f32 %v3168, %v3614
        %v3643 = vsub.f32 %v3169, %v3614
        %v3644 = vsub.f32 %v3170, %v3614
        %v3645 = vsub.f32 %v3171, %v3614
        %v3646 = vsub.f32 %v3172, %v3614
        %v3647 = vlaneseq
        %v3648 = vshrl.u32 %v3647, 7
        %v3649 = vsub.s32 1, %v3648
        %v3650 = vrot.slane %v3610, %v3649
        %v3651 = vmul.f32 %v3615, %v3650
        %v3652 = vmul.f32 %v3616, %v3650
        %v3653 = vmul.f32 %v3617, %v3650
        %v3654 = vmul.f32 %v3618, %v3650
        %v3655 = vmul.f32 %v3619, %v3650
        %v3656 = vmul.f32 %v3620, %v3650
        %v3657 = vmul.f32 %v3621, %v3650
        %v3658 = vmul.f32 %v3622, %v3650
        %v3659 = vmul.f32 %v3623, %v3650
        %v3660 = vmul.f32 %v3624, %v3650
        %v3661 = vmul.f32 %v3625, %v3650
        %v3662 = vmul.f32 %v3626, %v3650
        %v3663 = vmul.f32 %v3627, %v3650
        %v3664 = vmul.f32 %v3628, %v3650
        %v3665 = vmul.f32 %v3629, %v3650
        %v3666 = vmul.f32 %v3630, %v3650
        %v3667 = vmul.f32 %v3631, %v3650
        %v3668 = vmul.f32 %v3632, %v3650
        %v3669 = vmul.f32 %v3633, %v3650
        %v3670 = vmul.f32 %v3634, %v3650
        %v3671 = vmul.f32 %v3635, %v3650
        %v3672 = vmul.f32 %v3636, %v3650
        %v3673 = vmul.f32 %v3637, %v3650
        %v3674 = vmul.f32 %v3638, %v3650
        %v3675 = vmul.f32 %v3639, %v3650
        %v3676 = vmul.f32 %v3640, %v3650
        %v3677 = vmul.f32 %v3641, %v3650
        %v3678 = vmul.f32 %v3642, %v3650
        %v3679 = vmul.f32 %v3643, %v3650
        %v3680 = vmul.f32 %v3644, %v3650
        %v3681 = vmul.f32 %v3645, %v3650
        %v3682 = vmul.f32 %v3646, %v3650
        %v3683 = vld [vmem:[#allocation10] sm:$0x1]
        %v3685 = vlaneseq
        %v3686 = vshrl.u32 %v3685, 7
        %v3687 = vsub.s32 0, %v3686
        %v3688 = vrot.slane %v3683, %v3687
        %v3690 = vmul.f32 %v3651, %v3688
        %v3691 = vmul.f32 %v3652, %v3688
        %v3692 = vmul.f32 %v3653, %v3688
        %v3693 = vmul.f32 %v3654, %v3688
        %v3694 = vmul.f32 %v3655, %v3688
        %v3695 = vmul.f32 %v3656, %v3688
        %v3696 = vmul.f32 %v3657, %v3688
        %v3697 = vmul.f32 %v3658, %v3688
        %v3698 = vmul.f32 %v3659, %v3688
        %v3699 = vmul.f32 %v3660, %v3688
        %v3700 = vmul.f32 %v3661, %v3688
        %v3701 = vmul.f32 %v3662, %v3688
        %v3702 = vmul.f32 %v3663, %v3688
        %v3703 = vmul.f32 %v3664, %v3688
        %v3704 = vmul.f32 %v3665, %v3688
        %v3705 = vmul.f32 %v3666, %v3688
        %v3706 = vmul.f32 %v3667, %v3688
        %v3707 = vmul.f32 %v3668, %v3688
        %v3708 = vmul.f32 %v3669, %v3688
        %v3709 = vmul.f32 %v3670, %v3688
        %v3710 = vmul.f32 %v3671, %v3688
        %v3711 = vmul.f32 %v3672, %v3688
        %v3712 = vmul.f32 %v3673, %v3688
        %v3713 = vmul.f32 %v3674, %v3688
        %v3714 = vmul.f32 %v3675, %v3688
        %v3715 = vmul.f32 %v3676, %v3688
        %v3716 = vmul.f32 %v3677, %v3688
        %v3717 = vmul.f32 %v3678, %v3688
        %v3718 = vmul.f32 %v3679, %v3688
        %v3719 = vmul.f32 %v3680, %v3688
        %v3720 = vmul.f32 %v3681, %v3688
        %v3721 = vmul.f32 %v3682, %v3688
        %v3722 = vld [vmem:[#allocation11] sm:$0x1]
        %v3724 = vlaneseq
        %v3725 = vshrl.u32 %v3724, 7
        %v3726 = vsub.s32 0, %v3725
        %v3727 = vrot.slane %v3722, %v3726
        %v3729 = vadd.f32 %v3690, %v3727
        %v3730 = vadd.f32 %v3691, %v3727
        %v3731 = vadd.f32 %v3692, %v3727
        %v3732 = vadd.f32 %v3693, %v3727
        %v3733 = vadd.f32 %v3694, %v3727
        %v3734 = vadd.f32 %v3695, %v3727
        %v3735 = vadd.f32 %v3696, %v3727
        %v3736 = vadd.f32 %v3697, %v3727
        %v3737 = vadd.f32 %v3698, %v3727
        %v3738 = vadd.f32 %v3699, %v3727
        %v3739 = vadd.f32 %v3700, %v3727
        %v3740 = vadd.f32 %v3701, %v3727
        %v3741 = vadd.f32 %v3702, %v3727
        %v3742 = vadd.f32 %v3703, %v3727
        %v3743 = vadd.f32 %v3704, %v3727
        %v3744 = vadd.f32 %v3705, %v3727
        %v3745 = vadd.f32 %v3706, %v3727
        %v3746 = vadd.f32 %v3707, %v3727
        %v3747 = vadd.f32 %v3708, %v3727
        %v3748 = vadd.f32 %v3709, %v3727
        %v3749 = vadd.f32 %v3710, %v3727
        %v3750 = vadd.f32 %v3711, %v3727
        %v3751 = vadd.f32 %v3712, %v3727
        %v3752 = vadd.f32 %v3713, %v3727
        %v3753 = vadd.f32 %v3714, %v3727
        %v3754 = vadd.f32 %v3715, %v3727
        %v3755 = vadd.f32 %v3716, %v3727
        %v3756 = vadd.f32 %v3717, %v3727
        %v3757 = vadd.f32 %v3718, %v3727
        %v3758 = vadd.f32 %v3719, %v3727
        %v3759 = vadd.f32 %v3720, %v3727
        %v3760 = vadd.f32 %v3721, %v3727
        %v3761 = vxor.u32 %v3729, 2147483648
        %v3762 = vxor.u32 %v3730, 2147483648
        %v3763 = vxor.u32 %v3731, 2147483648
        %v3764 = vxor.u32 %v3732, 2147483648
        %v3765 = vxor.u32 %v3733, 2147483648
        %v3766 = vxor.u32 %v3734, 2147483648
        %v3767 = vxor.u32 %v3735, 2147483648
        %v3768 = vxor.u32 %v3736, 2147483648
        %v3769 = vxor.u32 %v3737, 2147483648
        %v3770 = vxor.u32 %v3738, 2147483648
        %v3771 = vxor.u32 %v3739, 2147483648
        %v3772 = vxor.u32 %v3740, 2147483648
        %v3773 = vxor.u32 %v3741, 2147483648
        %v3774 = vxor.u32 %v3742, 2147483648
        %v3775 = vxor.u32 %v3743, 2147483648
        %v3776 = vxor.u32 %v3744, 2147483648
        %v3777 = vxor.u32 %v3745, 2147483648
        %v3778 = vxor.u32 %v3746, 2147483648
        %v3779 = vxor.u32 %v3747, 2147483648
        %v3780 = vxor.u32 %v3748, 2147483648
        %v3781 = vxor.u32 %v3749, 2147483648
        %v3782 = vxor.u32 %v3750, 2147483648
        %v3783 = vxor.u32 %v3751, 2147483648
        %v3784 = vxor.u32 %v3752, 2147483648
        %v3785 = vxor.u32 %v3753, 2147483648
        %v3786 = vxor.u32 %v3754, 2147483648
        %v3787 = vxor.u32 %v3755, 2147483648
        %v3788 = vxor.u32 %v3756, 2147483648
        %v3789 = vxor.u32 %v3757, 2147483648
        %v3790 = vxor.u32 %v3758, 2147483648
        %v3791 = vxor.u32 %v3759, 2147483648
        %v3792 = vxor.u32 %v3760, 2147483648
        %v3793 = vmul.f32 %v3761, 1.442695
        %v3794 = vpow.pop %v3793
        %v3795 = vmul.f32 %v3762, 1.442695
        %v3796 = vpow.pop %v3795
        %v3797 = vmul.f32 %v3763, 1.442695
        %v3798 = vpow.pop %v3797
        %v3799 = vmul.f32 %v3764, 1.442695
        %v3800 = vpow.pop %v3799
        %v3801 = vmul.f32 %v3765, 1.442695
        %v3802 = vpow.pop %v3801
        %v3803 = vmul.f32 %v3766, 1.442695
        %v3804 = vpow.pop %v3803
        %v3805 = vmul.f32 %v3767, 1.442695
        %v3806 = vpow.pop %v3805
        %v3807 = vmul.f32 %v3768, 1.442695
        %v3808 = vpow.pop %v3807
        %v3809 = vmul.f32 %v3769, 1.442695
        %v3810 = vpow.pop %v3809
        %v3811 = vmul.f32 %v3770, 1.442695
        %v3812 = vpow.pop %v3811
        %v3813 = vmul.f32 %v3771, 1.442695
        %v3814 = vpow.pop %v3813
        %v3815 = vmul.f32 %v3772, 1.442695
        %v3816 = vpow.pop %v3815
        %v3817 = vmul.f32 %v3773, 1.442695
        %v3818 = vpow.pop %v3817
        %v3819 = vmul.f32 %v3774, 1.442695
        %v3820 = vpow.pop %v3819
        %v3821 = vmul.f32 %v3775, 1.442695
        %v3822 = vpow.pop %v3821
        %v3823 = vmul.f32 %v3776, 1.442695
        %v3824 = vpow.pop %v3823
        %v3825 = vmul.f32 %v3777, 1.442695
        %v3826 = vpow.pop %v3825
        %v3827 = vmul.f32 %v3778, 1.442695
        %v3828 = vpow.pop %v3827
        %v3829 = vmul.f32 %v3779, 1.442695
        %v3830 = vpow.pop %v3829
        %v3831 = vmul.f32 %v3780, 1.442695
        %v3832 = vpow.pop %v3831
        %v3833 = vmul.f32 %v3781, 1.442695
        %v3834 = vpow.pop %v3833
        %v3835 = vmul.f32 %v3782, 1.442695
        %v3836 = vpow.pop %v3835
        %v3837 = vmul.f32 %v3783, 1.442695
        %v3838 = vpow.pop %v3837
        %v3839 = vmul.f32 %v3784, 1.442695
        %v3840 = vpow.pop %v3839
        %v3841 = vmul.f32 %v3785, 1.442695
        %v3842 = vpow.pop %v3841
        %v3843 = vmul.f32 %v3786, 1.442695
        %v3844 = vpow.pop %v3843
        %v3845 = vmul.f32 %v3787, 1.442695
        %v3846 = vpow.pop %v3845
        %v3847 = vmul.f32 %v3788, 1.442695
        %v3848 = vpow.pop %v3847
        %v3849 = vmul.f32 %v3789, 1.442695
        %v3850 = vpow.pop %v3849
        %v3851 = vmul.f32 %v3790, 1.442695
        %v3852 = vpow.pop %v3851
        %v3853 = vmul.f32 %v3791, 1.442695
        %v3854 = vpow.pop %v3853
        %v3855 = vmul.f32 %v3792, 1.442695
        %v3856 = vpow.pop %v3855
        %v3857 = vadd.f32 %v3794, 1.0
        %v3858 = vadd.f32 %v3796, 1.0
        %v3859 = vadd.f32 %v3798, 1.0
        %v3860 = vadd.f32 %v3800, 1.0
        %v3861 = vadd.f32 %v3802, 1.0
        %v3862 = vadd.f32 %v3804, 1.0
        %v3863 = vadd.f32 %v3806, 1.0
        %v3864 = vadd.f32 %v3808, 1.0
        %v3865 = vadd.f32 %v3810, 1.0
        %v3866 = vadd.f32 %v3812, 1.0
        %v3867 = vadd.f32 %v3814, 1.0
        %v3868 = vadd.f32 %v3816, 1.0
        %v3869 = vadd.f32 %v3818, 1.0
        %v3870 = vadd.f32 %v3820, 1.0
        %v3871 = vadd.f32 %v3822, 1.0
        %v3872 = vadd.f32 %v3824, 1.0
        %v3873 = vadd.f32 %v3826, 1.0
        %v3874 = vadd.f32 %v3828, 1.0
        %v3875 = vadd.f32 %v3830, 1.0
        %v3876 = vadd.f32 %v3832, 1.0
        %v3877 = vadd.f32 %v3834, 1.0
        %v3878 = vadd.f32 %v3836, 1.0
        %v3879 = vadd.f32 %v3838, 1.0
        %v3880 = vadd.f32 %v3840, 1.0
        %v3881 = vadd.f32 %v3842, 1.0
        %v3882 = vadd.f32 %v3844, 1.0
        %v3883 = vadd.f32 %v3846, 1.0
        %v3884 = vadd.f32 %v3848, 1.0
        %v3885 = vadd.f32 %v3850, 1.0
        %v3886 = vadd.f32 %v3852, 1.0
        %v3887 = vadd.f32 %v3854, 1.0
        %v3888 = vadd.f32 %v3856, 1.0
        %v3889 = vrcp.pop %v3857
        %v3890 = vmul.f32 1.0, %v3889
        %v3891 = vrcp.pop %v3858
        %v3892 = vmul.f32 1.0, %v3891
        %v3893 = vrcp.pop %v3859
        %v3894 = vmul.f32 1.0, %v3893
        %v3895 = vrcp.pop %v3860
        %v3896 = vmul.f32 1.0, %v3895
        %v3897 = vrcp.pop %v3861
        %v3898 = vmul.f32 1.0, %v3897
        %v3899 = vrcp.pop %v3862
        %v3900 = vmul.f32 1.0, %v3899
        %v3901 = vrcp.pop %v3863
        %v3902 = vmul.f32 1.0, %v3901
        %v3903 = vrcp.pop %v3864
        %v3904 = vmul.f32 1.0, %v3903
        %v3905 = vrcp.pop %v3865
        %v3906 = vmul.f32 1.0, %v3905
        %v3907 = vrcp.pop %v3866
        %v3908 = vmul.f32 1.0, %v3907
        %v3909 = vrcp.pop %v3867
        %v3910 = vmul.f32 1.0, %v3909
        %v3911 = vrcp.pop %v3868
        %v3912 = vmul.f32 1.0, %v3911
        %v3913 = vrcp.pop %v3869
        %v3914 = vmul.f32 1.0, %v3913
        %v3915 = vrcp.pop %v3870
        %v3916 = vmul.f32 1.0, %v3915
        %v3917 = vrcp.pop %v3871
        %v3918 = vmul.f32 1.0, %v3917
        %v3919 = vrcp.pop %v3872
        %v3920 = vmul.f32 1.0, %v3919
        %v3921 = vrcp.pop %v3873
        %v3922 = vmul.f32 1.0, %v3921
        %v3923 = vrcp.pop %v3874
        %v3924 = vmul.f32 1.0, %v3923
        %v3925 = vrcp.pop %v3875
        %v3926 = vmul.f32 1.0, %v3925
        %v3927 = vrcp.pop %v3876
        %v3928 = vmul.f32 1.0, %v3927
        %v3929 = vrcp.pop %v3877
        %v3930 = vmul.f32 1.0, %v3929
        %v3931 = vrcp.pop %v3878
        %v3932 = vmul.f32 1.0, %v3931
        %v3933 = vrcp.pop %v3879
        %v3934 = vmul.f32 1.0, %v3933
        %v3935 = vrcp.pop %v3880
        %v3936 = vmul.f32 1.0, %v3935
        %v3937 = vrcp.pop %v3881
        %v3938 = vmul.f32 1.0, %v3937
        %v3939 = vrcp.pop %v3882
        %v3940 = vmul.f32 1.0, %v3939
        %v3941 = vrcp.pop %v3883
        %v3942 = vmul.f32 1.0, %v3941
        %v3943 = vrcp.pop %v3884
        %v3944 = vmul.f32 1.0, %v3943
        %v3945 = vrcp.pop %v3885
        %v3946 = vmul.f32 1.0, %v3945
        %v3947 = vrcp.pop %v3886
        %v3948 = vmul.f32 1.0, %v3947
        %v3949 = vrcp.pop %v3887
        %v3950 = vmul.f32 1.0, %v3949
        %v3951 = vrcp.pop %v3888
        %v3952 = vmul.f32 1.0, %v3951
        %v3953 = vmul.f32 %v3729, %v3890
        %v3954 = vmul.f32 %v3730, %v3892
        %v3955 = vmul.f32 %v3731, %v3894
        %v3956 = vmul.f32 %v3732, %v3896
        %v3957 = vmul.f32 %v3733, %v3898
        %v3958 = vmul.f32 %v3734, %v3900
        %v3959 = vmul.f32 %v3735, %v3902
        %v3960 = vmul.f32 %v3736, %v3904
        %v3961 = vmul.f32 %v3737, %v3906
        %v3962 = vmul.f32 %v3738, %v3908
        %v3963 = vmul.f32 %v3739, %v3910
        %v3964 = vmul.f32 %v3740, %v3912
        %v3965 = vmul.f32 %v3741, %v3914
        %v3966 = vmul.f32 %v3742, %v3916
        %v3967 = vmul.f32 %v3743, %v3918
        %v3968 = vmul.f32 %v3744, %v3920
        %v3969 = vmul.f32 %v3745, %v3922
        %v3970 = vmul.f32 %v3746, %v3924
        %v3971 = vmul.f32 %v3747, %v3926
        %v3972 = vmul.f32 %v3748, %v3928
        %v3973 = vmul.f32 %v3749, %v3930
        %v3974 = vmul.f32 %v3750, %v3932
        %v3975 = vmul.f32 %v3751, %v3934
        %v3976 = vmul.f32 %v3752, %v3936
        %v3977 = vmul.f32 %v3753, %v3938
        %v3978 = vmul.f32 %v3754, %v3940
        %v3979 = vmul.f32 %v3755, %v3942
        %v3980 = vmul.f32 %v3756, %v3944
        %v3981 = vmul.f32 %v3757, %v3946
        %v3982 = vmul.f32 %v3758, %v3948
        %v3983 = vmul.f32 %v3759, %v3950
        %v3984 = vmul.f32 %v3760, %v3952
        %v3985 = vld [vmem:[%s389] sm:$0xff]
        %v3986 = vld [vmem:[%s389 + $0x8] sm:$0xff]
        %v3987 = vld [vmem:[%s389 + $0x10] sm:$0xff]
        %v3988 = vld [vmem:[%s389 + $0x18] sm:$0xff]
        %v3989 = vld [vmem:[%s389 + $0x20] sm:$0xff]
        %v3990 = vld [vmem:[%s389 + $0x28] sm:$0xff]
        %v3991 = vld [vmem:[%s389 + $0x30] sm:$0xff]
        %v3992 = vld [vmem:[%s389 + $0x38] sm:$0xff]
        %v3993 = vld [vmem:[%s389 + $0x40] sm:$0xff]
        %v3994 = vld [vmem:[%s389 + $0x48] sm:$0xff]
        %v3995 = vld [vmem:[%s389 + $0x50] sm:$0xff]
        %v3996 = vld [vmem:[%s389 + $0x58] sm:$0xff]
        %v3997 = vld [vmem:[%s389 + $0x60] sm:$0xff]
        %v3998 = vld [vmem:[%s389 + $0x68] sm:$0xff]
        %v3999 = vld [vmem:[%s389 + $0x70] sm:$0xff]
        %v4000 = vld [vmem:[%s389 + $0x78] sm:$0xff]
        %v4001 = vld [vmem:[%s389 + $0x80] sm:$0xff]
        %v4002 = vld [vmem:[%s389 + $0x88] sm:$0xff]
        %v4003 = vld [vmem:[%s389 + $0x90] sm:$0xff]
        %v4004 = vld [vmem:[%s389 + $0x98] sm:$0xff]
        %v4005 = vld [vmem:[%s389 + $0xa0] sm:$0xff]
        %v4006 = vld [vmem:[%s389 + $0xa8] sm:$0xff]
        %v4007 = vld [vmem:[%s389 + $0xb0] sm:$0xff]
        %v4008 = vld [vmem:[%s389 + $0xb8] sm:$0xff]
        %v4009 = vld [vmem:[%s389 + $0xc0] sm:$0xff]
        %v4010 = vld [vmem:[%s389 + $0xc8] sm:$0xff]
        %v4011 = vld [vmem:[%s389 + $0xd0] sm:$0xff]
        %v4012 = vld [vmem:[%s389 + $0xd8] sm:$0xff]
        %v4013 = vld [vmem:[%s389 + $0xe0] sm:$0xff]
        %v4014 = vld [vmem:[%s389 + $0xe8] sm:$0xff]
        %v4015 = vld [vmem:[%s389 + $0xf0] sm:$0xff]
        %v4016 = vld [vmem:[%s389 + $0xf8] sm:$0xff]
        %v4017 = vadd.f32 %v3953, %v3985
        %v4018 = vadd.f32 %v3954, %v3986
        %v4019 = vadd.f32 %v3955, %v3987
        %v4020 = vadd.f32 %v3956, %v3988
        %v4021 = vadd.f32 %v3957, %v3989
        %v4022 = vadd.f32 %v3958, %v3990
        %v4023 = vadd.f32 %v3959, %v3991
        %v4024 = vadd.f32 %v3960, %v3992
        %v4025 = vadd.f32 %v3961, %v3993
        %v4026 = vadd.f32 %v3962, %v3994
        %v4027 = vadd.f32 %v3963, %v3995
        %v4028 = vadd.f32 %v3964, %v3996
        %v4029 = vadd.f32 %v3965, %v3997
        %v4030 = vadd.f32 %v3966, %v3998
        %v4031 = vadd.f32 %v3967, %v3999
        %v4032 = vadd.f32 %v3968, %v4000
        %v4033 = vadd.f32 %v3969, %v4001
        %v4034 = vadd.f32 %v3970, %v4002
        %v4035 = vadd.f32 %v3971, %v4003
        %v4036 = vadd.f32 %v3972, %v4004
        %v4037 = vadd.f32 %v3973, %v4005
        %v4038 = vadd.f32 %v3974, %v4006
        %v4039 = vadd.f32 %v3975, %v4007
        %v4040 = vadd.f32 %v3976, %v4008
        %v4041 = vadd.f32 %v3977, %v4009
        %v4042 = vadd.f32 %v3978, %v4010
        %v4043 = vadd.f32 %v3979, %v4011
        %v4044 = vadd.f32 %v3980, %v4012
        %v4045 = vadd.f32 %v3981, %v4013
        %v4046 = vadd.f32 %v3982, %v4014
        %v4047 = vadd.f32 %v3983, %v4015
        %v4048 = vadd.f32 %v3984, %v4016
        %v4049 = vsel %vm3372, %v4017, 0.0
        %v4050 = vsel %vm3372, %v4018, 0.0
        %v4051 = vsel %vm3372, %v4019, 0.0
        %v4052 = vsel %vm3372, %v4020, 0.0
        %v4053 = vsel %vm3372, %v4021, 0.0
        %v4054 = vsel %vm3372, %v4022, 0.0
        %v4055 = vsel %vm3372, %v4023, 0.0
        %v4056 = vsel %vm3372, %v4024, 0.0
        %v4057 = vsel %vm3372, %v4025, 0.0
        %v4058 = vsel %vm3372, %v4026, 0.0
        %v4059 = vsel %vm3372, %v4027, 0.0
        %v4060 = vsel %vm3372, %v4028, 0.0
        %v4061 = vsel %vm3372, %v4029, 0.0
        %v4062 = vsel %vm3372, %v4030, 0.0
        %v4063 = vsel %vm3372, %v4031, 0.0
        %v4064 = vsel %vm3372, %v4032, 0.0
        %v4065 = vsel %vm3372, %v4033, 0.0
        %v4066 = vsel %vm3372, %v4034, 0.0
        %v4067 = vsel %vm3372, %v4035, 0.0
        %v4068 = vsel %vm3372, %v4036, 0.0
        %v4069 = vsel %vm3372, %v4037, 0.0
        %v4070 = vsel %vm3372, %v4038, 0.0
        %v4071 = vsel %vm3372, %v4039, 0.0
        %v4072 = vsel %vm3372, %v4040, 0.0
        %v4073 = vsel %vm3372, %v4041, 0.0
        %v4074 = vsel %vm3372, %v4042, 0.0
        %v4075 = vsel %vm3372, %v4043, 0.0
        %v4076 = vsel %vm3372, %v4044, 0.0
        %v4077 = vsel %vm3372, %v4045, 0.0
        %v4078 = vsel %vm3372, %v4046, 0.0
        %v4079 = vsel %vm3372, %v4047, 0.0
        %v4080 = vsel %vm3372, %v4048, 0.0
        %4081 = vst [vmem:[%s442] sm:$0xff] %v4049
        %4082 = vst [vmem:[%s442 + $0x8] sm:$0xff] %v4050
        %4083 = vst [vmem:[%s442 + $0x10] sm:$0xff] %v4051
        %4084 = vst [vmem:[%s442 + $0x18] sm:$0xff] %v4052
        %4085 = vst [vmem:[%s442 + $0x20] sm:$0xff] %v4053
        %4086 = vst [vmem:[%s442 + $0x28] sm:$0xff] %v4054
        %4087 = vst [vmem:[%s442 + $0x30] sm:$0xff] %v4055
        %4088 = vst [vmem:[%s442 + $0x38] sm:$0xff] %v4056
        %4089 = vst [vmem:[%s442 + $0x40] sm:$0xff] %v4057
        %4090 = vst [vmem:[%s442 + $0x48] sm:$0xff] %v4058
        %4091 = vst [vmem:[%s442 + $0x50] sm:$0xff] %v4059
        %4092 = vst [vmem:[%s442 + $0x58] sm:$0xff] %v4060
        %4093 = vst [vmem:[%s442 + $0x60] sm:$0xff] %v4061
        %4094 = vst [vmem:[%s442 + $0x68] sm:$0xff] %v4062
        %4095 = vst [vmem:[%s442 + $0x70] sm:$0xff] %v4063
        %4096 = vst [vmem:[%s442 + $0x78] sm:$0xff] %v4064
        %4097 = vst [vmem:[%s442 + $0x80] sm:$0xff] %v4065
        %4098 = vst [vmem:[%s442 + $0x88] sm:$0xff] %v4066
        %4099 = vst [vmem:[%s442 + $0x90] sm:$0xff] %v4067
        %4100 = vst [vmem:[%s442 + $0x98] sm:$0xff] %v4068
        %4101 = vst [vmem:[%s442 + $0xa0] sm:$0xff] %v4069
        %4102 = vst [vmem:[%s442 + $0xa8] sm:$0xff] %v4070
        %4103 = vst [vmem:[%s442 + $0xb0] sm:$0xff] %v4071
        %4104 = vst [vmem:[%s442 + $0xb8] sm:$0xff] %v4072
        %4105 = vst [vmem:[%s442 + $0xc0] sm:$0xff] %v4073
        %4106 = vst [vmem:[%s442 + $0xc8] sm:$0xff] %v4074
        %4107 = vst [vmem:[%s442 + $0xd0] sm:$0xff] %v4075
        %4108 = vst [vmem:[%s442 + $0xd8] sm:$0xff] %v4076
        %4109 = vst [vmem:[%s442 + $0xe0] sm:$0xff] %v4077
        %4110 = vst [vmem:[%s442 + $0xe8] sm:$0xff] %v4078
        %4111 = vst [vmem:[%s442 + $0xf0] sm:$0xff] %v4079
        %4112 = vst [vmem:[%s442 + $0xf8] sm:$0xff] %v4080
        %s4113 = sand.u32 %s217, 1
        %s4114 = scalar_lea.sflag [#allocation4], %s4113
        %s4115 = sand.u32 %s217, 1
        %s4116 = smul.addr %s4115, 256
        %s4117 = scalar_lea.vmem [#allocation16], %s4116
        // Predicated region
        $region85: #{residual_block_forward.7} parent=51 // pred_check
          %p4118 = pneg %p227
        $region86: #{residual_block_forward.7} parent=51 // pred_check_branch
          %4120 = sbr.rel (%p4118) target = $region88
        $region87: #{residual_block_forward.7} parent=51 // pred_region
          %s4122 = ssub.s32 4096, 4096
          %4123 = vsyncadd %s4114, %s4122
          %s4124 = smul.addr %s31, 32
          %s4125 = smul.addr %s4124, 128
          %s4126 = scalar_lea.hbm %s8, %s4125
          %s4127 = sshll.u32 %s4117, 4
          %s4128 = int_to_ptr.vmem [resolvable:$true] %s4127
          %4133 = dma.vmem_to_hbm [thread:$0]  %s4128, 4096, %s4126, %s4114, 128, 128, 8
        $region88: #{residual_block_forward.7} parent=51 // pred_fallthru
          _
      $region52: #{residual_block_forward.7} parent=5 // pred_fallthru
        _
      %p4134 = scmp.le.s32.totalorder 2, %s26
      // Predicated region
      $region89: #{residual_block_forward.7} parent=5 // pred_check
        %p4135 = pneg %p4134
      $region90: #{residual_block_forward.7} parent=5 // pred_check_branch
        %4137 = sbr.rel (%p4135) target = $region92
      $region91: #{residual_block_forward.7} parent=5 // pred_region
        %s4138 = ssub.s32 %s26, 2
        // Predicated region
        $region93: #{residual_block_forward.7} parent=91 // pred_check
          %p4139 = pneg %p233
        $region94: #{residual_block_forward.7} parent=91 // pred_check_branch
          %4141 = sbr.rel (%p4139) target = $region96
        $region95: #{residual_block_forward.7} parent=91 // pred_region
          %s4142 = sand.u32 %s218, 1
          %s4143 = scalar_lea.sflag [#allocation4], %s4142
          %s4144 = sand.u32 %s218, 1
          %s4145 = smul.addr %s4144, 256
          %s4146 = scalar_lea.vmem [#allocation16], %s4145
          %4147 = dma.done %s4143, 4096
        $region96: #{residual_block_forward.7} parent=91 // pred_fallthru
          _
      $region92: #{residual_block_forward.7} parent=5 // pred_fallthru
        _
    $region6: #{residual_block_forward.7} parent=1 // loop_footer
      %s30 = sadd.s32 1, %s26
    $region7: #{residual_block_forward.7} parent=1 // loop_footer_branch
      %25 = sbr.rel target = $region3
    $region8: #{residual_block_forward.7} parent=1 // loop_exit
      _
    %4148 = vsyncpa [#allocation3], 1
    %s4149 = scalar_lea.sflag [#allocation3], 1
    %4150 = vsyncpa %s4149, 1
    %4151 = vsyncpa [#allocation6], 1
    %4152 = vsyncpa [#allocation9], 1
    %s4153 = scalar_lea.sflag [#allocation9], 1
    %4154 = vsyncpa %s4153, 1
    %4155 = vsyncpa [#allocation12], 1
    %4156 = vsyncpa [#allocation15], 1
    %4157 = vsyncpa [#allocation4], 1
    %s4158 = scalar_lea.sflag [#allocation4], 1
    %4159 = vsyncpa %s4158, 1

</llo_original>
